<compile_context>
chip_gen: v6e
topology: v6e:2x2x1
jax: 0.10.0
libtpu: 0.0.40
codegen_flags: <defaults>
</compile_context>

<pallas_src>
import functools

import numpy as np
import jax
import jax.numpy as jnp
from jax.experimental import pallas as pl
from jax.experimental.pallas import tpu as pltpu


# ----------------------------- Pallas kernel ---------------------------------

def _window_attn_kernel(x_ref, wqkv_ref, bqkv_ref, wproj_ref, bproj_ref,
                        bm_ref, out_ref):
    # x_ref:    (WB, N, C)        block of WB windows
    # wqkv_ref: (C, 3C)           q-columns pre-scaled by 1/sqrt(d)
    # bqkv_ref: (1, 3C)           q-part pre-scaled
    # wproj_ref:(C, C)
    # bproj_ref:(1, C)
    # bm_ref:   (H, nw, N, N)     relative-position bias + additive window mask (f32)
    # out_ref:  (WB, N, C)        f32
    wb, n, c = x_ref.shape
    num_heads, nw = bm_ref.shape[0], bm_ref.shape[1]
    head_dim = c // num_heads
    mm_dtype = x_ref.dtype                      # matmul input dtype (f32 or bf16)

    # qkv projection for all WB windows at once: (WB*N, C) @ (C, 3C)
    x2 = x_ref[...].reshape(wb * n, c)
    qkv = jnp.dot(x2, wqkv_ref[...], preferred_element_type=jnp.float32)
    qkv = qkv + bqkv_ref[...]                   # f32 bias add
    qkv3 = qkv.reshape(wb, n, 3 * c)

    # accumulate the output projection per head: concat(o_h) @ Wproj == sum_h o_h @ Wproj[h*d:(h+1)*d]
    acc = jnp.zeros((wb * n, c), jnp.float32)
    for h in range(num_heads):                  # static loop, H is small
        q = qkv3[:, :, h * head_dim:(h + 1) * head_dim].astype(mm_dtype)
        k = qkv3[:, :, c + h * head_dim: c + (h + 1) * head_dim].astype(mm_dtype)
        v = qkv3[:, :, 2 * c + h * head_dim: 2 * c + (h + 1) * head_dim].astype(mm_dtype)

        # window-batched scores: (WB, N, N), f32 accumulation
        s = jnp.einsum('wnd,wmd->wnm', q, k, preferred_element_type=jnp.float32)

        # add pre-combined bias+mask; windows in a block are grouped as (WB//nw, nw)
        bm_h = bm_ref[h]                        # (nw, N, N)
        s = (s.reshape(wb // nw, nw, n, n) + bm_h[None]).reshape(wb, n, n)

        # numerically-stable softmax in f32; approx reciprocal (EUP) + one Newton step
        s = s - jnp.max(s, axis=-1, keepdims=True)
        p = jnp.exp(s)
        denom = jnp.sum(p, axis=-1, keepdims=True)
        inv = pl.reciprocal(denom, approx=True)
        inv = inv * (2.0 - denom * inv)         # Newton refine -> ~f32 accuracy
        p = (p * inv).astype(mm_dtype)

        # (WB, N, N) @ (WB, N, d) -> (WB, N, d)
        o = jnp.einsum('wnm,wmd->wnd', p, v, preferred_element_type=jnp.float32)

        # fold head output straight into the output projection (row-slice of Wproj)
        acc = acc + jnp.dot(o.reshape(wb * n, head_dim).astype(mm_dtype),
                            wproj_ref[h * head_dim:(h + 1) * head_dim, :],
                            preferred_element_type=jnp.float32)

    out = acc + bproj_ref[...]
    out_ref[...] = out.reshape(wb, n, c).astype(out_ref.dtype)
    # NOTE: attn_drop / proj_drop have p=0.0 -> identity at inference; omitted.


# ----------------------------- wrapper -----------------------------------------

def _pick_windows_per_block(b_, nw, n, max_rows=4096):
    """Largest multiple of nw that divides b_ while keeping WB*N rows modest."""
    wb = nw
    for mult in range(2, b_ // nw + 1):
        cand = nw * mult
        if b_ % cand == 0 and cand * n <= max_rows:
            wb = cand
    return wb


def window_attention_pallas(x, w_qkv, b_qkv, w_proj, b_proj, bias_table, rpi, mask,
                            *, window_size, num_heads, windows_per_block=None,
                            param_dtype=jnp.float32):
    """x: (B_, N, C);  rpi: (N, N) int32;  mask: (nw, N, N) float32 or None."""
    b_, n, c = x.shape
    head_dim = c // num_heads
    scale = head_dim ** (-0.5)
    wh, ww = window_size
    assert n == wh * ww

    if mask is None:
        mask = jnp.zeros((1, n, n), jnp.float32)
    nw = mask.shape[0]
    assert b_ % nw == 0, "B_ must be a multiple of num_windows"

    if windows_per_block is None:
        windows_per_block = _pick_windows_per_block(b_, nw, n)
    wb = windows_per_block
    assert b_ % wb == 0 and wb % nw == 0

    # Fold 1/sqrt(d) into the q-columns of the qkv projection (one-time weight transform).
    w_qkv_f = w_qkv.astype(jnp.float32).at[:, :c].multiply(scale)
    b_qkv_f = b_qkv.astype(jnp.float32).at[:c].multiply(scale)

    # Glue: gather relative position bias -> (H, N, N), pre-add window mask -> (H, nw, N, N)
    bias_hnn = bias_table.astype(jnp.float32)[rpi.reshape(-1)]
    bias_hnn = bias_hnn.reshape(n, n, num_heads).transpose(2, 0, 1)
    bm = (bias_hnn[:, None, :, :] + mask.astype(jnp.float32)[None, :, :, :])  # (H, nw, N, N)

    xk = x.astype(param_dtype)
    wqkv = w_qkv_f.astype(param_dtype)
    wproj = w_proj.astype(param_dtype)
    bq = b_qkv_f.reshape(1, 3 * c).astype(jnp.float32)
    bp = b_proj.reshape(1, c).astype(jnp.float32)

    out = pl.pallas_call(
        _window_attn_kernel,
        out_shape=jax.ShapeDtypeStruct((b_, n, c), jnp.float32),
        grid=(b_ // wb,),
        in_specs=[
            pl.BlockSpec((wb, n, c), lambda i: (i, 0, 0)),              # x windows
            pl.BlockSpec((c, 3 * c), lambda i: (0, 0)),                 # W_qkv (scaled)
            pl.BlockSpec((1, 3 * c), lambda i: (0, 0)),                 # b_qkv (scaled)
            pl.BlockSpec((c, c), lambda i: (0, 0)),                     # W_proj
            pl.BlockSpec((1, c), lambda i: (0, 0)),                     # b_proj
            pl.BlockSpec((num_heads, nw, n, n), lambda i: (0, 0, 0, 0)),  # bias+mask
        ],
        out_specs=pl.BlockSpec((wb, n, c), lambda i: (i, 0, 0)),
        compiler_params=pltpu.CompilerParams(
            dimension_semantics=("parallel",),          # windows are independent (v7x 2 TCs)
            vmem_limit_bytes=32 * 1024 * 1024),
    )(xk, wqkv, bq, wproj, bp, bm)
    return out


# ----------------------------- pure-JAX reference -----------------------------

def window_attention_ref(x, w_qkv, b_qkv, w_proj, b_proj, bias_table, rpi, mask,
                         *, window_size, num_heads):
    b_, n, c = x.shape
    head_dim = c // num_heads
    scale = head_dim ** (-0.5)
    nw = mask.shape[0]

    qkv = x @ w_qkv + b_qkv                                        # (B_, N, 3C)
    qkv = qkv.reshape(b_, n, 3, num_heads, head_dim).transpose(2, 0, 3, 1, 4)
    q, k, v = qkv[0], qkv[1], qkv[2]
    q = q * scale
    attn = jnp.einsum('bhnd,bhmd->bhnm', q, k)
    bias_hnn = bias_table[rpi.reshape(-1)].reshape(n, n, num_heads).transpose(2, 0, 1)
    attn = attn + bias_hnn[None]
    attn = attn.reshape(b_ // nw, nw, num_heads, n, n) + mask[None, :, None]
    attn = attn.reshape(b_, num_heads, n, n)
    attn = jax.nn.softmax(attn, axis=-1)
    out = jnp.einsum('bhnm,bhmd->bhnd', attn, v)
    out = out.transpose(0, 2, 1, 3).reshape(b_, n, c)
    return out @ w_proj + b_proj


# ----------------------------- utilities --------------------------------------

def make_relative_position_index(window_size):
    wh, ww = window_size
    coords = np.stack(np.meshgrid(np.arange(wh), np.arange(ww), indexing='ij'))  # (2,Wh,Ww)
    coords_flat = coords.reshape(2, -1)                                           # (2, N)
    rel = coords_flat[:, :, None] - coords_flat[:, None, :]                       # (2, N, N)
    rel = rel.transpose(1, 2, 0).astype(np.int32)                                 # (N, N, 2)
    rel[:, :, 0] += wh - 1
    rel[:, :, 1] += ww - 1
    rel[:, :, 0] *= 2 * ww - 1
    return jnp.asarray(rel.sum(-1), dtype=jnp.int32)                              # (N, N)


# ----------------------------- main --------------------------------------------

if __name__ == "__main__":
    dim = 32
    window_size = (4, 4)
    num_heads = 4
    n = window_size[0] * window_size[1]      # 16
    nw = 4                                   # number of windows per image
    batch = 2
    b_ = batch * nw                          # 8

    key = jax.random.PRNGKey(0)
    keys = jax.random.split(key, 7)

    x = jax.random.normal(keys[0], (b_, n, dim), dtype=jnp.float32)
    w_qkv = jax.random.normal(keys[1], (dim, 3 * dim), dtype=jnp.float32) * 0.05
    b_qkv = jax.random.normal(keys[2], (3 * dim,), dtype=jnp.float32) * 0.05
    w_proj = jax.random.normal(keys[3], (dim, dim), dtype=jnp.float32) * 0.05
    b_proj = jax.random.normal(keys[4], (dim,), dtype=jnp.float32) * 0.05
    table_len = (2 * window_size[0] - 1) * (2 * window_size[1] - 1)
    bias_table = jax.random.truncated_normal(
        keys[5], -2.0, 2.0, (table_len, num_heads), dtype=jnp.float32) * 0.02

    rpi = make_relative_position_index(window_size)

    # 0 / -100 additive attention mask, one per window (shifted-window style).
    mask = jnp.where(jax.random.uniform(keys[6], (nw, n, n)) > 0.8, -100.0, 0.0)
    mask = mask.astype(jnp.float32)

    ref = window_attention_ref(x, w_qkv, b_qkv, w_proj, b_proj, bias_table, rpi, mask,
                               window_size=window_size, num_heads=num_heads)
    ref = jax.block_until_ready(ref)

    # f32 path (v5e-friendly; tight check)
    out_f32 = window_attention_pallas(x, w_qkv, b_qkv, w_proj, b_proj, bias_table, rpi, mask,
                                      window_size=window_size, num_heads=num_heads,
                                      param_dtype=jnp.float32)
    out_f32 = jax.block_until_ready(out_f32)
    assert out_f32.shape == (b_, n, dim)
    np.testing.assert_allclose(np.asarray(out_f32), np.asarray(ref), rtol=2e-3, atol=2e-3)

    # bf16 weights/activations path (v6e/v7x MXU-native; f32 accumulation + f32 softmax)
    out_bf16 = window_attention_pallas(x, w_qkv, b_qkv, w_proj, b_proj, bias_table, rpi, mask,
                                       window_size=window_size, num_heads=num_heads,
                                       param_dtype=jnp.bfloat16)
    out_bf16 = jax.block_until_ready(out_bf16)
    np.testing.assert_allclose(np.asarray(out_bf16), np.asarray(ref), rtol=3e-2, atol=3e-2)

    print("KERNEL_OK")
</pallas_src>

<mosaic_0001>
module attributes {stable_mosaic.version = 11 : i64} {
  func.func @_window_attn_kernel(%arg0: i32, %arg1: memref<8x16x32xf32, #tpu.memory_space<vmem>>, %arg2: memref<32x96xf32, #tpu.memory_space<vmem>>, %arg3: memref<1x96xf32, #tpu.memory_space<vmem>>, %arg4: memref<32x32xf32, #tpu.memory_space<vmem>>, %arg5: memref<1x32xf32, #tpu.memory_space<vmem>>, %arg6: memref<4x4x16x16xf32, #tpu.memory_space<vmem>>, %arg7: memref<8x16x32xf32, #tpu.memory_space<vmem>>) attributes {dimension_semantics = [#tpu.dimension_semantics<parallel>], iteration_bounds = array<i64: 1>, scalar_prefetch = 0 : i64, scratch_operands = 0 : i64, tpu.core_type = #tpu.core_type<tc>, window_params = [{transform_indices = @transform_0, window_bounds = array<i64: 8, 16, 32>}, {pipeline_mode = #tpu.pipeline_mode<synchronous>, transform_indices = @transform_1, window_bounds = array<i64: 32, 96>}, {pipeline_mode = #tpu.pipeline_mode<synchronous>, transform_indices = @transform_2, window_bounds = array<i64: 1, 96>}, {pipeline_mode = #tpu.pipeline_mode<synchronous>, transform_indices = @transform_3, window_bounds = array<i64: 32, 32>}, {pipeline_mode = #tpu.pipeline_mode<synchronous>, transform_indices = @transform_4, window_bounds = array<i64: 1, 32>}, {pipeline_mode = #tpu.pipeline_mode<synchronous>, transform_indices = @transform_5, window_bounds = array<i64: 4, 4, 16, 16>}, {transform_indices = @transform_6, window_bounds = array<i64: 8, 16, 32>}]} {
    %c0 = arith.constant 0 : index
    %c0_0 = arith.constant 0 : index
    %c0_1 = arith.constant 0 : index
    %0 = vector.load %arg1[%c0, %c0_0, %c0_1] : memref<8x16x32xf32, #tpu.memory_space<vmem>>, vector<8x16x32xf32>
    %1 = vector.shape_cast %0 : vector<8x16x32xf32> to vector<128x32xf32>
    %c0_2 = arith.constant 0 : index
    %c0_3 = arith.constant 0 : index
    %2 = vector.load %arg2[%c0_2, %c0_3] : memref<32x96xf32, #tpu.memory_space<vmem>>, vector<32x96xf32>
    %cst = arith.constant dense<0.000000e+00> : vector<128x96xf32>
    %3 = tpu.matmul %1, %2, %cst {dimension_numbers = #tpu.dot_dimension_numbers<[1], [0], [0], [1], [0, 0, 1, 1], [], []>} : vector<128x32xf32>, vector<32x96xf32>, vector<128x96xf32> -> vector<128x96xf32>
    %c0_4 = arith.constant 0 : index
    %c0_5 = arith.constant 0 : index
    %4 = vector.load %arg3[%c0_4, %c0_5] : memref<1x96xf32, #tpu.memory_space<vmem>>, vector<1x96xf32>
    %5 = vector.broadcast %4 : vector<1x96xf32> to vector<128x96xf32>
    %6 = arith.addf %3, %5 : vector<128x96xf32>
    %7 = vector.shape_cast %6 : vector<128x96xf32> to vector<8x16x96xf32>
    %cst_6 = arith.constant 0.000000e+00 : f32
    %8 = vector.broadcast %cst_6 : f32 to vector<128x32xf32>
    %9 = vector.extract_strided_slice %7 {offsets = [0, 0, 0], sizes = [8, 16, 8], strides = [1, 1, 1]} : vector<8x16x96xf32> to vector<8x16x8xf32>
    %10 = vector.extract_strided_slice %7 {offsets = [0, 0, 32], sizes = [8, 16, 8], strides = [1, 1, 1]} : vector<8x16x96xf32> to vector<8x16x8xf32>
    %11 = vector.extract_strided_slice %7 {offsets = [0, 0, 64], sizes = [8, 16, 8], strides = [1, 1, 1]} : vector<8x16x96xf32> to vector<8x16x8xf32>
    "tpu.trace_start"() <{level = 10 : i32, message = "wnd,wmd->wnm"}> : () -> ()
    %cst_7 = arith.constant dense<0.000000e+00> : vector<8x16x16xf32>
    %12 = tpu.matmul %9, %10, %cst_7 {dimension_numbers = #tpu.dot_dimension_numbers<[2], [2], [1], [1], [0, 0, 0, 1, 1, 1], [0], [0]>} : vector<8x16x8xf32>, vector<8x16x8xf32>, vector<8x16x16xf32> -> vector<8x16x16xf32>
    "tpu.trace_stop"() : () -> ()
    %c0_8 = arith.constant 0 : index
    %c0_9 = arith.constant 0 : index
    %c0_10 = arith.constant 0 : index
    %c0_11 = arith.constant 0 : index
    %13 = vector.load %arg6[%c0_8, %c0_9, %c0_10, %c0_11] : memref<4x4x16x16xf32, #tpu.memory_space<vmem>>, vector<1x4x16x16xf32>
    %14 = vector.shape_cast %13 : vector<1x4x16x16xf32> to vector<4x16x16xf32>
    %15 = vector.shape_cast %12 : vector<8x16x16xf32> to vector<2x4x16x16xf32>
    %16 = vector.shape_cast %14 : vector<4x16x16xf32> to vector<1x4x16x16xf32>
    %17 = vector.broadcast %16 : vector<1x4x16x16xf32> to vector<2x4x16x16xf32>
    %18 = arith.addf %15, %17 : vector<2x4x16x16xf32>
    %19 = vector.shape_cast %18 : vector<2x4x16x16xf32> to vector<8x16x16xf32>
    %cst_12 = arith.constant dense<0xFF800000> : vector<8x16xf32>
    %20 = vector.multi_reduction <maximumf>, %19, %cst_12 [2] : vector<8x16x16xf32> to vector<8x16xf32>
    %21 = vector.shape_cast %20 : vector<8x16xf32> to vector<8x16x1xf32>
    %22 = vector.broadcast %21 : vector<8x16x1xf32> to vector<8x16x16xf32>
    %23 = arith.subf %19, %22 : vector<8x16x16xf32>
    %24 = math.exp %23 : vector<8x16x16xf32>
    %cst_13 = arith.constant dense<0.000000e+00> : vector<8x16xf32>
    %25 = vector.multi_reduction <add>, %24, %cst_13 [2] : vector<8x16x16xf32> to vector<8x16xf32>
    %26 = vector.shape_cast %25 : vector<8x16xf32> to vector<8x16x1xf32>
    %27 = tpu.reciprocal %26 {approx = true} : vector<8x16x1xf32> -> vector<8x16x1xf32>
    %28 = arith.mulf %26, %27 : vector<8x16x1xf32>
    %cst_14 = arith.constant 2.000000e+00 : f32
    %29 = vector.broadcast %cst_14 : f32 to vector<8x16x1xf32>
    %30 = arith.subf %29, %28 : vector<8x16x1xf32>
    %31 = arith.mulf %27, %30 : vector<8x16x1xf32>
    %32 = vector.broadcast %31 : vector<8x16x1xf32> to vector<8x16x16xf32>
    %33 = arith.mulf %24, %32 : vector<8x16x16xf32>
    "tpu.trace_start"() <{level = 10 : i32, message = "wnm,wmd->wnd"}> : () -> ()
    %cst_15 = arith.constant dense<0.000000e+00> : vector<8x16x8xf32>
    %34 = tpu.matmul %33, %11, %cst_15 {dimension_numbers = #tpu.dot_dimension_numbers<[2], [1], [1], [2], [0, 0, 0, 1, 1, 2], [0], [0]>} : vector<8x16x16xf32>, vector<8x16x8xf32>, vector<8x16x8xf32> -> vector<8x16x8xf32>
    "tpu.trace_stop"() : () -> ()
    %35 = vector.shape_cast %34 : vector<8x16x8xf32> to vector<128x8xf32>
    %c0_16 = arith.constant 0 : index
    %c0_17 = arith.constant 0 : index
    %36 = vector.load %arg4[%c0_16, %c0_17] : memref<32x32xf32, #tpu.memory_space<vmem>>, vector<8x32xf32>
    %cst_18 = arith.constant dense<0.000000e+00> : vector<128x32xf32>
    %37 = tpu.matmul %35, %36, %cst_18 {dimension_numbers = #tpu.dot_dimension_numbers<[1], [0], [0], [1], [0, 0, 1, 1], [], []>} : vector<128x8xf32>, vector<8x32xf32>, vector<128x32xf32> -> vector<128x32xf32>
    %38 = arith.addf %8, %37 : vector<128x32xf32>
    %39 = vector.extract_strided_slice %7 {offsets = [0, 0, 8], sizes = [8, 16, 8], strides = [1, 1, 1]} : vector<8x16x96xf32> to vector<8x16x8xf32>
    %40 = vector.extract_strided_slice %7 {offsets = [0, 0, 40], sizes = [8, 16, 8], strides = [1, 1, 1]} : vector<8x16x96xf32> to vector<8x16x8xf32>
    %41 = vector.extract_strided_slice %7 {offsets = [0, 0, 72], sizes = [8, 16, 8], strides = [1, 1, 1]} : vector<8x16x96xf32> to vector<8x16x8xf32>
    "tpu.trace_start"() <{level = 10 : i32, message = "wnd,wmd->wnm"}> : () -> ()
    %cst_19 = arith.constant dense<0.000000e+00> : vector<8x16x16xf32>
    %42 = tpu.matmul %39, %40, %cst_19 {dimension_numbers = #tpu.dot_dimension_numbers<[2], [2], [1], [1], [0, 0, 0, 1, 1, 1], [0], [0]>} : vector<8x16x8xf32>, vector<8x16x8xf32>, vector<8x16x16xf32> -> vector<8x16x16xf32>
    "tpu.trace_stop"() : () -> ()
    %c1 = arith.constant 1 : index
    %c0_20 = arith.constant 0 : index
    %c0_21 = arith.constant 0 : index
    %c0_22 = arith.constant 0 : index
    %43 = vector.load %arg6[%c1, %c0_20, %c0_21, %c0_22] : memref<4x4x16x16xf32, #tpu.memory_space<vmem>>, vector<1x4x16x16xf32>
    %44 = vector.shape_cast %43 : vector<1x4x16x16xf32> to vector<4x16x16xf32>
    %45 = vector.shape_cast %42 : vector<8x16x16xf32> to vector<2x4x16x16xf32>
    %46 = vector.shape_cast %44 : vector<4x16x16xf32> to vector<1x4x16x16xf32>
    %47 = vector.broadcast %46 : vector<1x4x16x16xf32> to vector<2x4x16x16xf32>
    %48 = arith.addf %45, %47 : vector<2x4x16x16xf32>
    %49 = vector.shape_cast %48 : vector<2x4x16x16xf32> to vector<8x16x16xf32>
    %cst_23 = arith.constant dense<0xFF800000> : vector<8x16xf32>
    %50 = vector.multi_reduction <maximumf>, %49, %cst_23 [2] : vector<8x16x16xf32> to vector<8x16xf32>
    %51 = vector.shape_cast %50 : vector<8x16xf32> to vector<8x16x1xf32>
    %52 = vector.broadcast %51 : vector<8x16x1xf32> to vector<8x16x16xf32>
    %53 = arith.subf %49, %52 : vector<8x16x16xf32>
    %54 = math.exp %53 : vector<8x16x16xf32>
    %cst_24 = arith.constant dense<0.000000e+00> : vector<8x16xf32>
    %55 = vector.multi_reduction <add>, %54, %cst_24 [2] : vector<8x16x16xf32> to vector<8x16xf32>
    %56 = vector.shape_cast %55 : vector<8x16xf32> to vector<8x16x1xf32>
    %57 = tpu.reciprocal %56 {approx = true} : vector<8x16x1xf32> -> vector<8x16x1xf32>
    %58 = arith.mulf %56, %57 : vector<8x16x1xf32>
    %cst_25 = arith.constant 2.000000e+00 : f32
    %59 = vector.broadcast %cst_25 : f32 to vector<8x16x1xf32>
    %60 = arith.subf %59, %58 : vector<8x16x1xf32>
    %61 = arith.mulf %57, %60 : vector<8x16x1xf32>
    %62 = vector.broadcast %61 : vector<8x16x1xf32> to vector<8x16x16xf32>
    %63 = arith.mulf %54, %62 : vector<8x16x16xf32>
    "tpu.trace_start"() <{level = 10 : i32, message = "wnm,wmd->wnd"}> : () -> ()
    %cst_26 = arith.constant dense<0.000000e+00> : vector<8x16x8xf32>
    %64 = tpu.matmul %63, %41, %cst_26 {dimension_numbers = #tpu.dot_dimension_numbers<[2], [1], [1], [2], [0, 0, 0, 1, 1, 2], [0], [0]>} : vector<8x16x16xf32>, vector<8x16x8xf32>, vector<8x16x8xf32> -> vector<8x16x8xf32>
    "tpu.trace_stop"() : () -> ()
    %65 = vector.shape_cast %64 : vector<8x16x8xf32> to vector<128x8xf32>
    %c8 = arith.constant 8 : index
    %c0_27 = arith.constant 0 : index
    %66 = vector.load %arg4[%c8, %c0_27] : memref<32x32xf32, #tpu.memory_space<vmem>>, vector<8x32xf32>
    %cst_28 = arith.constant dense<0.000000e+00> : vector<128x32xf32>
    %67 = tpu.matmul %65, %66, %cst_28 {dimension_numbers = #tpu.dot_dimension_numbers<[1], [0], [0], [1], [0, 0, 1, 1], [], []>} : vector<128x8xf32>, vector<8x32xf32>, vector<128x32xf32> -> vector<128x32xf32>
    %68 = arith.addf %38, %67 : vector<128x32xf32>
    %69 = vector.extract_strided_slice %7 {offsets = [0, 0, 16], sizes = [8, 16, 8], strides = [1, 1, 1]} : vector<8x16x96xf32> to vector<8x16x8xf32>
    %70 = vector.extract_strided_slice %7 {offsets = [0, 0, 48], sizes = [8, 16, 8], strides = [1, 1, 1]} : vector<8x16x96xf32> to vector<8x16x8xf32>
    %71 = vector.extract_strided_slice %7 {offsets = [0, 0, 80], sizes = [8, 16, 8], strides = [1, 1, 1]} : vector<8x16x96xf32> to vector<8x16x8xf32>
    "tpu.trace_start"() <{level = 10 : i32, message = "wnd,wmd->wnm"}> : () -> ()
    %cst_29 = arith.constant dense<0.000000e+00> : vector<8x16x16xf32>
    %72 = tpu.matmul %69, %70, %cst_29 {dimension_numbers = #tpu.dot_dimension_numbers<[2], [2], [1], [1], [0, 0, 0, 1, 1, 1], [0], [0]>} : vector<8x16x8xf32>, vector<8x16x8xf32>, vector<8x16x16xf32> -> vector<8x16x16xf32>
    "tpu.trace_stop"() : () -> ()
    %c2 = arith.constant 2 : index
    %c0_30 = arith.constant 0 : index
    %c0_31 = arith.constant 0 : index
    %c0_32 = arith.constant 0 : index
    %73 = vector.load %arg6[%c2, %c0_30, %c0_31, %c0_32] : memref<4x4x16x16xf32, #tpu.memory_space<vmem>>, vector<1x4x16x16xf32>
    %74 = vector.shape_cast %73 : vector<1x4x16x16xf32> to vector<4x16x16xf32>
    %75 = vector.shape_cast %72 : vector<8x16x16xf32> to vector<2x4x16x16xf32>
    %76 = vector.shape_cast %74 : vector<4x16x16xf32> to vector<1x4x16x16xf32>
    %77 = vector.broadcast %76 : vector<1x4x16x16xf32> to vector<2x4x16x16xf32>
    %78 = arith.addf %75, %77 : vector<2x4x16x16xf32>
    %79 = vector.shape_cast %78 : vector<2x4x16x16xf32> to vector<8x16x16xf32>
    %cst_33 = arith.constant dense<0xFF800000> : vector<8x16xf32>
    %80 = vector.multi_reduction <maximumf>, %79, %cst_33 [2] : vector<8x16x16xf32> to vector<8x16xf32>
    %81 = vector.shape_cast %80 : vector<8x16xf32> to vector<8x16x1xf32>
    %82 = vector.broadcast %81 : vector<8x16x1xf32> to vector<8x16x16xf32>
    %83 = arith.subf %79, %82 : vector<8x16x16xf32>
    %84 = math.exp %83 : vector<8x16x16xf32>
    %cst_34 = arith.constant dense<0.000000e+00> : vector<8x16xf32>
    %85 = vector.multi_reduction <add>, %84, %cst_34 [2] : vector<8x16x16xf32> to vector<8x16xf32>
    %86 = vector.shape_cast %85 : vector<8x16xf32> to vector<8x16x1xf32>
    %87 = tpu.reciprocal %86 {approx = true} : vector<8x16x1xf32> -> vector<8x16x1xf32>
    %88 = arith.mulf %86, %87 : vector<8x16x1xf32>
    %cst_35 = arith.constant 2.000000e+00 : f32
    %89 = vector.broadcast %cst_35 : f32 to vector<8x16x1xf32>
    %90 = arith.subf %89, %88 : vector<8x16x1xf32>
    %91 = arith.mulf %87, %90 : vector<8x16x1xf32>
    %92 = vector.broadcast %91 : vector<8x16x1xf32> to vector<8x16x16xf32>
    %93 = arith.mulf %84, %92 : vector<8x16x16xf32>
    "tpu.trace_start"() <{level = 10 : i32, message = "wnm,wmd->wnd"}> : () -> ()
    %cst_36 = arith.constant dense<0.000000e+00> : vector<8x16x8xf32>
    %94 = tpu.matmul %93, %71, %cst_36 {dimension_numbers = #tpu.dot_dimension_numbers<[2], [1], [1], [2], [0, 0, 0, 1, 1, 2], [0], [0]>} : vector<8x16x16xf32>, vector<8x16x8xf32>, vector<8x16x8xf32> -> vector<8x16x8xf32>
    "tpu.trace_stop"() : () -> ()
    %95 = vector.shape_cast %94 : vector<8x16x8xf32> to vector<128x8xf32>
    %c16 = arith.constant 16 : index
    %c0_37 = arith.constant 0 : index
    %96 = vector.load %arg4[%c16, %c0_37] : memref<32x32xf32, #tpu.memory_space<vmem>>, vector<8x32xf32>
    %cst_38 = arith.constant dense<0.000000e+00> : vector<128x32xf32>
    %97 = tpu.matmul %95, %96, %cst_38 {dimension_numbers = #tpu.dot_dimension_numbers<[1], [0], [0], [1], [0, 0, 1, 1], [], []>} : vector<128x8xf32>, vector<8x32xf32>, vector<128x32xf32> -> vector<128x32xf32>
    %98 = arith.addf %68, %97 : vector<128x32xf32>
    %99 = vector.extract_strided_slice %7 {offsets = [0, 0, 24], sizes = [8, 16, 8], strides = [1, 1, 1]} : vector<8x16x96xf32> to vector<8x16x8xf32>
    %100 = vector.extract_strided_slice %7 {offsets = [0, 0, 56], sizes = [8, 16, 8], strides = [1, 1, 1]} : vector<8x16x96xf32> to vector<8x16x8xf32>
    %101 = vector.extract_strided_slice %7 {offsets = [0, 0, 88], sizes = [8, 16, 8], strides = [1, 1, 1]} : vector<8x16x96xf32> to vector<8x16x8xf32>
    "tpu.trace_start"() <{level = 10 : i32, message = "wnd,wmd->wnm"}> : () -> ()
    %cst_39 = arith.constant dense<0.000000e+00> : vector<8x16x16xf32>
    %102 = tpu.matmul %99, %100, %cst_39 {dimension_numbers = #tpu.dot_dimension_numbers<[2], [2], [1], [1], [0, 0, 0, 1, 1, 1], [0], [0]>} : vector<8x16x8xf32>, vector<8x16x8xf32>, vector<8x16x16xf32> -> vector<8x16x16xf32>
    "tpu.trace_stop"() : () -> ()
    %c3 = arith.constant 3 : index
    %c0_40 = arith.constant 0 : index
    %c0_41 = arith.constant 0 : index
    %c0_42 = arith.constant 0 : index
    %103 = vector.load %arg6[%c3, %c0_40, %c0_41, %c0_42] : memref<4x4x16x16xf32, #tpu.memory_space<vmem>>, vector<1x4x16x16xf32>
    %104 = vector.shape_cast %103 : vector<1x4x16x16xf32> to vector<4x16x16xf32>
    %105 = vector.shape_cast %102 : vector<8x16x16xf32> to vector<2x4x16x16xf32>
    %106 = vector.shape_cast %104 : vector<4x16x16xf32> to vector<1x4x16x16xf32>
    %107 = vector.broadcast %106 : vector<1x4x16x16xf32> to vector<2x4x16x16xf32>
    %108 = arith.addf %105, %107 : vector<2x4x16x16xf32>
    %109 = vector.shape_cast %108 : vector<2x4x16x16xf32> to vector<8x16x16xf32>
    %cst_43 = arith.constant dense<0xFF800000> : vector<8x16xf32>
    %110 = vector.multi_reduction <maximumf>, %109, %cst_43 [2] : vector<8x16x16xf32> to vector<8x16xf32>
    %111 = vector.shape_cast %110 : vector<8x16xf32> to vector<8x16x1xf32>
    %112 = vector.broadcast %111 : vector<8x16x1xf32> to vector<8x16x16xf32>
    %113 = arith.subf %109, %112 : vector<8x16x16xf32>
    %114 = math.exp %113 : vector<8x16x16xf32>
    %cst_44 = arith.constant dense<0.000000e+00> : vector<8x16xf32>
    %115 = vector.multi_reduction <add>, %114, %cst_44 [2] : vector<8x16x16xf32> to vector<8x16xf32>
    %116 = vector.shape_cast %115 : vector<8x16xf32> to vector<8x16x1xf32>
    %117 = tpu.reciprocal %116 {approx = true} : vector<8x16x1xf32> -> vector<8x16x1xf32>
    %118 = arith.mulf %116, %117 : vector<8x16x1xf32>
    %cst_45 = arith.constant 2.000000e+00 : f32
    %119 = vector.broadcast %cst_45 : f32 to vector<8x16x1xf32>
    %120 = arith.subf %119, %118 : vector<8x16x1xf32>
    %121 = arith.mulf %117, %120 : vector<8x16x1xf32>
    %122 = vector.broadcast %121 : vector<8x16x1xf32> to vector<8x16x16xf32>
    %123 = arith.mulf %114, %122 : vector<8x16x16xf32>
    "tpu.trace_start"() <{level = 10 : i32, message = "wnm,wmd->wnd"}> : () -> ()
    %cst_46 = arith.constant dense<0.000000e+00> : vector<8x16x8xf32>
    %124 = tpu.matmul %123, %101, %cst_46 {dimension_numbers = #tpu.dot_dimension_numbers<[2], [1], [1], [2], [0, 0, 0, 1, 1, 2], [0], [0]>} : vector<8x16x16xf32>, vector<8x16x8xf32>, vector<8x16x8xf32> -> vector<8x16x8xf32>
    "tpu.trace_stop"() : () -> ()
    %125 = vector.shape_cast %124 : vector<8x16x8xf32> to vector<128x8xf32>
    %c24 = arith.constant 24 : index
    %c0_47 = arith.constant 0 : index
    %126 = vector.load %arg4[%c24, %c0_47] : memref<32x32xf32, #tpu.memory_space<vmem>>, vector<8x32xf32>
    %cst_48 = arith.constant dense<0.000000e+00> : vector<128x32xf32>
    %127 = tpu.matmul %125, %126, %cst_48 {dimension_numbers = #tpu.dot_dimension_numbers<[1], [0], [0], [1], [0, 0, 1, 1], [], []>} : vector<128x8xf32>, vector<8x32xf32>, vector<128x32xf32> -> vector<128x32xf32>
    %128 = arith.addf %98, %127 : vector<128x32xf32>
    %c0_49 = arith.constant 0 : index
    %c0_50 = arith.constant 0 : index
    %129 = vector.load %arg5[%c0_49, %c0_50] : memref<1x32xf32, #tpu.memory_space<vmem>>, vector<1x32xf32>
    %130 = vector.broadcast %129 : vector<1x32xf32> to vector<128x32xf32>
    %131 = arith.addf %128, %130 : vector<128x32xf32>
    %132 = vector.shape_cast %131 : vector<128x32xf32> to vector<8x16x32xf32>
    %c0_51 = arith.constant 0 : index
    %c0_52 = arith.constant 0 : index
    %c0_53 = arith.constant 0 : index
    %133 = vector.load %arg7[%c0_51, %c0_52, %c0_53] : memref<8x16x32xf32, #tpu.memory_space<vmem>>, vector<8x16x32xf32>
    tpu.vector_store %arg7[%c0_51, %c0_52, %c0_53], %132 {strides = array<i32>} : memref<8x16x32xf32, #tpu.memory_space<vmem>>, vector<8x16x32xf32>,
    return
  }
  func.func @transform_0(%arg0: i32) -> (i32, i32, i32) {
    %c0_i32 = arith.constant 0 : i32
    %c0_i32_0 = arith.constant 0 : i32
    %c0_i32_1 = arith.constant 0 : i32
    return %arg0, %c0_i32, %c0_i32_0 : i32, i32, i32
  }
  func.func @transform_1(%arg0: i32) -> (i32, i32) {
    %c0_i32 = arith.constant 0 : i32
    %c0_i32_0 = arith.constant 0 : i32
    %c0_i32_1 = arith.constant 0 : i32
    return %c0_i32, %c0_i32_0 : i32, i32
  }
  func.func @transform_2(%arg0: i32) -> (i32, i32) {
    %c0_i32 = arith.constant 0 : i32
    %c0_i32_0 = arith.constant 0 : i32
    %c0_i32_1 = arith.constant 0 : i32
    return %c0_i32, %c0_i32_0 : i32, i32
  }
  func.func @transform_3(%arg0: i32) -> (i32, i32) {
    %c0_i32 = arith.constant 0 : i32
    %c0_i32_0 = arith.constant 0 : i32
    %c0_i32_1 = arith.constant 0 : i32
    return %c0_i32, %c0_i32_0 : i32, i32
  }
  func.func @transform_4(%arg0: i32) -> (i32, i32) {
    %c0_i32 = arith.constant 0 : i32
    %c0_i32_0 = arith.constant 0 : i32
    %c0_i32_1 = arith.constant 0 : i32
    return %c0_i32, %c0_i32_0 : i32, i32
  }
  func.func @transform_5(%arg0: i32) -> (i32, i32, i32, i32) {
    %c0_i32 = arith.constant 0 : i32
    %c0_i32_0 = arith.constant 0 : i32
    %c0_i32_1 = arith.constant 0 : i32
    %c0_i32_2 = arith.constant 0 : i32
    %c0_i32_3 = arith.constant 0 : i32
    return %c0_i32, %c0_i32_0, %c0_i32_1, %c0_i32_2 : i32, i32, i32, i32
  }
  func.func @transform_6(%arg0: i32) -> (i32, i32, i32) {
    %c0_i32 = arith.constant 0 : i32
    %c0_i32_0 = arith.constant 0 : i32
    %c0_i32_1 = arith.constant 0 : i32
    return %arg0, %c0_i32, %c0_i32_0 : i32, i32, i32
  }
}

</mosaic_0001>

<llo_original>
// kernel: tpu_custom_call.1
$region0: #{tpu_custom_call.1}
  #allocation0 [shape = 'u32[]', space=smem, size = 0x4, offset = 0x4, fixed_abs, tag = 'smem constant byte address 0x4 - core index']
  #allocation1 [shape = 'u32[144,128]{1,0:T(1,128)}', space=vmem, size = 0x12000, scoped, tag = 'internal scratch']
  %s0 = inlined_call_operand.hbm [shape: f32[8,16,32], index: 0, kind: input, shape index: {}]
  %s1 = inlined_call_operand.hbm [shape: f32[32,96], index: 1, kind: input, shape index: {}]
  %s2 = inlined_call_operand.vmem [shape: f32[1,96], index: 2, kind: input, shape index: {}]
  %s3 = inlined_call_operand.hbm [shape: f32[32,32], index: 3, kind: input, shape index: {}]
  %s4 = inlined_call_operand.vmem [shape: f32[1,32], index: 4, kind: input, shape index: {}]
  %s5 = inlined_call_operand.hbm [shape: f32[4,4,16,16], index: 5, kind: input, shape index: {}]
  %s6 = inlined_call_operand.hbm [shape: f32[8,16,32], index: 6, kind: output, shape index: {}]
  %s7 = sld [smem:[#allocation0]]
  $region50: #{tpu_custom_call.1} parent=0
    _
  %s9 = ssub.s32 1, %s7
  %s10 = scalar_select 0, %s9, %s7
  $region1: #{tpu_custom_call.1} parent=0
    #allocation2 [shape = 'u8[65536]{0}', space=vmem, size = 0x10000, scoped, tag = 'input window, operand 0, single buffered']
    #allocation3 [shape = 's32[1]{0}', space=sflag, size = 0x4, scoped, tag = 'scoped memory for tpu_custom_call.1']
    #allocation4 [shape = 's32[1]{0}', space=sflag, size = 0x4, scoped, tag = 'scoped memory for tpu_custom_call.1']
    #allocation5 [shape = 'u8[16384]{0}', space=vmem, size = 0x4000, scoped, tag = 'input window, operand 1, single buffered']
    #allocation6 [shape = 's32[1]{0}', space=sflag, size = 0x4, scoped, tag = 'scoped memory for tpu_custom_call.1']
    #allocation7 [shape = 'u8[16384]{0}', space=vmem, size = 0x4000, scoped, tag = 'input window, operand 3, single buffered']
    #allocation8 [shape = 'u8[131072]{0}', space=vmem, size = 0x20000, scoped, tag = 'input window, operand 5, single buffered']
    #allocation9 [shape = 's32[1]{0}', space=sflag, size = 0x4, scoped, tag = 'scoped memory for tpu_custom_call.1']
    #allocation10 [shape = 'u8[65536]{0}', space=vmem, size = 0x10000, scoped, tag = 'output window, operand 0, single buffered']
    %11 = vsyncpa [#allocation3], 0
    %12 = vsyncpa [#allocation6], 0
    %13 = vsyncpa [#allocation9], 0
    %14 = vsyncpa [#allocation4], 0
    // Predicated region
    $region2: #{tpu_custom_call.1} parent=1 // pred_check
      _
    $region3: #{tpu_custom_call.1} parent=1 // pred_check_branch
      %16 = sbr.rel (0) target = $region5
    $region4: #{tpu_custom_call.1} parent=1 // pred_region
      %s18 = ssub.s32 2048, 2048
      %19 = vsyncadd [#allocation3], %s18
      %s20 = sshll.u32 [#allocation2], 4
      %s21 = int_to_ptr.vmem [resolvable:$true] %s20
      %26 = dma.hbm_to_vmem [thread:$0]  %s0, 2048, %s21, [#allocation3], 128, 128, 8
    $region5: #{tpu_custom_call.1} parent=1 // pred_fallthru
      _
    // Predicated region
    $region6: #{tpu_custom_call.1} parent=1 // pred_check
      _
    $region7: #{tpu_custom_call.1} parent=1 // pred_check_branch
      %28 = sbr.rel (0) target = $region9
    $region8: #{tpu_custom_call.1} parent=1 // pred_region
      %s30 = ssub.s32 512, 512
      %31 = vsyncadd [#allocation6], %s30
      %s32 = sshll.u32 [#allocation5], 4
      %s33 = int_to_ptr.vmem [resolvable:$true] %s32
      %38 = dma.hbm_to_vmem [thread:$0]  %s1, 512, %s33, [#allocation6], 128, 128, 8
    $region9: #{tpu_custom_call.1} parent=1 // pred_fallthru
      _
    // Predicated region
    $region10: #{tpu_custom_call.1} parent=1 // pred_check
      _
    $region11: #{tpu_custom_call.1} parent=1 // pred_check_branch
      %40 = sbr.rel (0) target = $region13
    $region12: #{tpu_custom_call.1} parent=1 // pred_region
      _
    $region13: #{tpu_custom_call.1} parent=1 // pred_fallthru
      _
    // Predicated region
    $region14: #{tpu_custom_call.1} parent=1 // pred_check
      _
    $region15: #{tpu_custom_call.1} parent=1 // pred_check_branch
      %42 = sbr.rel (0) target = $region17
    $region16: #{tpu_custom_call.1} parent=1 // pred_region
      %s44 = ssub.s32 512, 512
      %45 = vsyncadd [#allocation6], %s44
      %s46 = sshll.u32 [#allocation7], 4
      %s47 = int_to_ptr.vmem [resolvable:$true] %s46
      %52 = dma.hbm_to_vmem [thread:$0]  %s3, 512, %s47, [#allocation6], 128, 128, 8
    $region17: #{tpu_custom_call.1} parent=1 // pred_fallthru
      _
    // Predicated region
    $region18: #{tpu_custom_call.1} parent=1 // pred_check
      _
    $region19: #{tpu_custom_call.1} parent=1 // pred_check_branch
      %54 = sbr.rel (0) target = $region21
    $region20: #{tpu_custom_call.1} parent=1 // pred_region
      _
    $region21: #{tpu_custom_call.1} parent=1 // pred_fallthru
      _
    // Predicated region
    $region22: #{tpu_custom_call.1} parent=1 // pred_check
      _
    $region23: #{tpu_custom_call.1} parent=1 // pred_check_branch
      %56 = sbr.rel (0) target = $region25
    $region24: #{tpu_custom_call.1} parent=1 // pred_region
      %s58 = ssub.s32 4096, 4096
      %59 = vsyncadd [#allocation9], %s58
      %s60 = sshll.u32 [#allocation8], 4
      %s61 = int_to_ptr.vmem [resolvable:$true] %s60
      %66 = dma.hbm_to_vmem [thread:$0]  %s5, 4096, %s61, [#allocation9], 128, 128, 8
    $region25: #{tpu_custom_call.1} parent=1 // pred_fallthru
      _
    // Predicated region
    $region26: #{tpu_custom_call.1} parent=1 // pred_check
      _
    $region27: #{tpu_custom_call.1} parent=1 // pred_check_branch
      %68 = sbr.rel (0) target = $region29
    $region28: #{tpu_custom_call.1} parent=1 // pred_region
      %69 = dma.done [#allocation3], 2048
    $region29: #{tpu_custom_call.1} parent=1 // pred_fallthru
      _
    // Predicated region
    $region30: #{tpu_custom_call.1} parent=1 // pred_check
      _
    $region31: #{tpu_custom_call.1} parent=1 // pred_check_branch
      %71 = sbr.rel (0) target = $region33
    $region32: #{tpu_custom_call.1} parent=1 // pred_region
      %72 = dma.done [#allocation6], 512
    $region33: #{tpu_custom_call.1} parent=1 // pred_fallthru
      _
    // Predicated region
    $region34: #{tpu_custom_call.1} parent=1 // pred_check
      _
    $region35: #{tpu_custom_call.1} parent=1 // pred_check_branch
      %74 = sbr.rel (0) target = $region37
    $region36: #{tpu_custom_call.1} parent=1 // pred_region
      %75 = dma.done [#allocation6], 512
    $region37: #{tpu_custom_call.1} parent=1 // pred_fallthru
      _
    // Predicated region
    $region38: #{tpu_custom_call.1} parent=1 // pred_check
      _
    $region39: #{tpu_custom_call.1} parent=1 // pred_check_branch
      %77 = sbr.rel (0) target = $region41
    $region40: #{tpu_custom_call.1} parent=1 // pred_region
      %78 = dma.done [#allocation9], 4096
    $region41: #{tpu_custom_call.1} parent=1 // pred_fallthru
      _
    %v79 = vld [vmem:[#allocation2] sm:$0xff]
    %v80 = vld [vmem:[#allocation2 + $0x8] sm:$0xff]
    %v81 = vld [vmem:[#allocation2 + $0x10] sm:$0xff]
    %v82 = vld [vmem:[#allocation2 + $0x18] sm:$0xff]
    %v83 = vld [vmem:[#allocation2 + $0x20] sm:$0xff]
    %v84 = vld [vmem:[#allocation2 + $0x28] sm:$0xff]
    %v85 = vld [vmem:[#allocation2 + $0x30] sm:$0xff]
    %v86 = vld [vmem:[#allocation2 + $0x38] sm:$0xff]
    %v87 = vld [vmem:[#allocation2 + $0x40] sm:$0xff]
    %v88 = vld [vmem:[#allocation2 + $0x48] sm:$0xff]
    %v89 = vld [vmem:[#allocation2 + $0x50] sm:$0xff]
    %v90 = vld [vmem:[#allocation2 + $0x58] sm:$0xff]
    %v91 = vld [vmem:[#allocation2 + $0x60] sm:$0xff]
    %v92 = vld [vmem:[#allocation2 + $0x68] sm:$0xff]
    %v93 = vld [vmem:[#allocation2 + $0x70] sm:$0xff]
    %v94 = vld [vmem:[#allocation2 + $0x78] sm:$0xff]
    %v95 = vld [vmem:[#allocation5] sm:$0xff]
    %v96 = vld [vmem:[#allocation5 + $0x8] sm:$0xff]
    %v97 = vld [vmem:[#allocation5 + $0x10] sm:$0xff]
    %v98 = vld [vmem:[#allocation5 + $0x18] sm:$0xff]
    %v99 = vld [vmem:[%s2] sm:$0x1]
    %v101 = vlaneseq
    %v102 = vshrl.u32 %v101, 7
    %v103 = vsub.s32 0, %v102
    %v104 = vrot.slane %v99, %v103
    %vm106 = vcmask 261120
    %v108 = vsel %vm106, %v79, 0
    %v111 = vsel %vm106, %v80, 0
    %v114 = vsel %vm106, %v81, 0
    %v117 = vsel %vm106, %v82, 0
    %v120 = vsel %vm106, %v83, 0
    %v123 = vsel %vm106, %v84, 0
    %v126 = vsel %vm106, %v85, 0
    %v129 = vsel %vm106, %v86, 0
    %v132 = vsel %vm106, %v87, 0
    %v135 = vsel %vm106, %v88, 0
    %v138 = vsel %vm106, %v89, 0
    %v141 = vsel %vm106, %v90, 0
    %v144 = vsel %vm106, %v91, 0
    %v147 = vsel %vm106, %v92, 0
    %v150 = vsel %vm106, %v93, 0
    %v153 = vsel %vm106, %v94, 0
    %155 = vmatprep.subr.mxu0 0.0
    %156 = vmatpush1.msra.mxu0 0.0
    %157 = vmatprep.subr.mxu0 0.0
    %158 = vmatpush1.msra.mxu0 0.0
    %159 = vmatprep.subr.mxu0 0.0
    %160 = vmatpush1.msra.mxu0 0.0
    %161 = vmatprep.subr.mxu0 0.0
    %162 = vmatpush1.msra.mxu0 0.0
    %163 = vmatprep.subr.mxu0 0.0
    %164 = vmatpush1.msra.mxu0 0.0
    %165 = vmatprep.subr.mxu0 0.0
    %166 = vmatpush1.msra.mxu0 0.0
    %167 = vmatprep.subr.mxu0 0.0
    %168 = vmatpush1.msra.mxu0 0.0
    %169 = vmatprep.subr.mxu0 0.0
    %170 = vmatpush1.msra.mxu0 0.0
    %171 = vmatprep.subr.mxu0 0.0
    %172 = vmatpush1.msra.mxu0 0.0
    %173 = vmatprep.subr.mxu0 0.0
    %174 = vmatpush1.msra.mxu0 0.0
    %175 = vmatprep.subr.mxu0 0.0
    %176 = vmatpush1.msra.mxu0 0.0
    %177 = vmatprep.subr.mxu0 0.0
    %178 = vmatpush1.msra.mxu0 0.0
    %179 = vmatprep.subr.mxu0 0.0
    %180 = vmatpush1.msra.mxu0 %v98
    %181 = vmatprep.subr.mxu0 0.0
    %182 = vmatpush1.msra.mxu0 %v97
    %183 = vmatprep.subr.mxu0 0.0
    %184 = vmatpush1.msra.mxu0 %v96
    %185 = vmatprep.subr.mxu0 0.0
    %186 = vmatpush1.msra.mxu0 %v95
    %187 = vmatprep.subr.mxu0 0.0
    %188 = vmatpush2.msra.mxu0 0.0
    %189 = vmatprep.subr.mxu0 0.0
    %190 = vmatpush2.msra.mxu0 0.0
    %191 = vmatprep.subr.mxu0 0.0
    %192 = vmatpush2.msra.mxu0 0.0
    %193 = vmatprep.subr.mxu0 0.0
    %194 = vmatpush2.msra.mxu0 0.0
    %195 = vmatprep.subr.mxu0 0.0
    %196 = vmatpush2.msra.mxu0 0.0
    %197 = vmatprep.subr.mxu0 0.0
    %198 = vmatpush2.msra.mxu0 0.0
    %199 = vmatprep.subr.mxu0 0.0
    %200 = vmatpush2.msra.mxu0 0.0
    %201 = vmatprep.subr.mxu0 0.0
    %202 = vmatpush2.msra.mxu0 0.0
    %203 = vmatprep.subr.mxu0 0.0
    %204 = vmatpush2.msra.mxu0 0.0
    %205 = vmatprep.subr.mxu0 0.0
    %206 = vmatpush2.msra.mxu0 0.0
    %207 = vmatprep.subr.mxu0 0.0
    %208 = vmatpush2.msra.mxu0 0.0
    %209 = vmatprep.subr.mxu0 0.0
    %210 = vmatpush2.msra.mxu0 0.0
    %211 = vmatprep.subr.mxu0 0.0
    %212 = vmatpush2.msra.mxu0 0.0
    %213 = vmatprep.subr.mxu0 0.0
    %214 = vmatpush2.msra.mxu0 0.0
    %215 = vmatprep.subr.mxu0 0.0
    %216 = vmatpush2.msra.mxu0 0.0
    %217 = vmatprep.subr.mxu0 0.0
    %218 = vmatpush2.msra.mxu0 0.0
    %219 = vmatprep.mubr.f32.mxu0 0.0
    %220 = vmatmul.mubr.f32.gmra.mxu0 %v108
    %v221 = vpop.f32.mrf.mxu0
    %v222 = vadd.f32 %v104, %v221
    %v223 = vpop.f32.mrf.mxu0
    %224 = vmatprep.mubr.f32.mxu0 0.0
    %225 = vmatmul.mubr.f32.gmra.mxu0 %v111
    %v226 = vpop.f32.mrf.mxu0
    %v227 = vadd.f32 %v104, %v226
    %v228 = vpop.f32.mrf.mxu0
    %229 = vmatprep.mubr.f32.mxu0 0.0
    %230 = vmatmul.mubr.f32.gmra.mxu0 %v114
    %v231 = vpop.f32.mrf.mxu0
    %v232 = vadd.f32 %v104, %v231
    %v233 = vpop.f32.mrf.mxu0
    %234 = vmatprep.mubr.f32.mxu0 0.0
    %235 = vmatmul.mubr.f32.gmra.mxu0 %v117
    %v236 = vpop.f32.mrf.mxu0
    %v237 = vadd.f32 %v104, %v236
    %v238 = vpop.f32.mrf.mxu0
    %239 = vmatprep.mubr.f32.mxu0 0.0
    %240 = vmatmul.mubr.f32.gmra.mxu0 %v120
    %v241 = vpop.f32.mrf.mxu0
    %v242 = vadd.f32 %v104, %v241
    %v243 = vpop.f32.mrf.mxu0
    %244 = vmatprep.mubr.f32.mxu0 0.0
    %245 = vmatmul.mubr.f32.gmra.mxu0 %v123
    %v246 = vpop.f32.mrf.mxu0
    %v247 = vadd.f32 %v104, %v246
    %v248 = vpop.f32.mrf.mxu0
    %249 = vmatprep.mubr.f32.mxu0 0.0
    %250 = vmatmul.mubr.f32.gmra.mxu0 %v126
    %v251 = vpop.f32.mrf.mxu0
    %v252 = vadd.f32 %v104, %v251
    %v253 = vpop.f32.mrf.mxu0
    %254 = vmatprep.mubr.f32.mxu0 0.0
    %255 = vmatmul.mubr.f32.gmra.mxu0 %v129
    %v256 = vpop.f32.mrf.mxu0
    %v257 = vadd.f32 %v104, %v256
    %v258 = vpop.f32.mrf.mxu0
    %259 = vmatprep.mubr.f32.mxu0 0.0
    %260 = vmatmul.mubr.f32.gmra.mxu0 %v132
    %v261 = vpop.f32.mrf.mxu0
    %v262 = vadd.f32 %v104, %v261
    %v263 = vpop.f32.mrf.mxu0
    %264 = vmatprep.mubr.f32.mxu0 0.0
    %265 = vmatmul.mubr.f32.gmra.mxu0 %v135
    %v266 = vpop.f32.mrf.mxu0
    %v267 = vadd.f32 %v104, %v266
    %v268 = vpop.f32.mrf.mxu0
    %269 = vmatprep.mubr.f32.mxu0 0.0
    %270 = vmatmul.mubr.f32.gmra.mxu0 %v138
    %v271 = vpop.f32.mrf.mxu0
    %v272 = vadd.f32 %v104, %v271
    %v273 = vpop.f32.mrf.mxu0
    %274 = vmatprep.mubr.f32.mxu0 0.0
    %275 = vmatmul.mubr.f32.gmra.mxu0 %v141
    %v276 = vpop.f32.mrf.mxu0
    %v277 = vadd.f32 %v104, %v276
    %v278 = vpop.f32.mrf.mxu0
    %279 = vmatprep.mubr.f32.mxu0 0.0
    %280 = vmatmul.mubr.f32.gmra.mxu0 %v144
    %v281 = vpop.f32.mrf.mxu0
    %v282 = vadd.f32 %v104, %v281
    %v283 = vpop.f32.mrf.mxu0
    %284 = vmatprep.mubr.f32.mxu0 0.0
    %285 = vmatmul.mubr.f32.gmra.mxu0 %v147
    %v286 = vpop.f32.mrf.mxu0
    %v287 = vadd.f32 %v104, %v286
    %v288 = vpop.f32.mrf.mxu0
    %289 = vmatprep.mubr.f32.mxu0 0.0
    %290 = vmatmul.mubr.f32.gmra.mxu0 %v150
    %v291 = vpop.f32.mrf.mxu0
    %v292 = vadd.f32 %v104, %v291
    %v293 = vpop.f32.mrf.mxu0
    %294 = vmatprep.mubr.f32.mxu0 0.0
    %295 = vmatmul.mubr.f32.gmra.mxu0 %v153
    %v296 = vpop.f32.mrf.mxu0
    %v297 = vadd.f32 %v104, %v296
    %v298 = vpop.f32.mrf.mxu0
    %299 = vdwg.mxu0
    %302 = vrot.lane.b32.xlu0 %v222, 96
    %v303 = vpop.permute.xlu0 %302
    %304 = vrot.lane.b32.xlu0 %v227, 96
    %v305 = vpop.permute.xlu0 %304
    %vm306 = vcmask 64512
    %v307 = vsel %vm306, %v222, 0
    %v309 = vsel %vm306, %v227, 0
    %v311 = vsel %vm306, %v303, 0
    %v313 = vsel %vm306, %v305, 0
    %315 = vmatprep.subr.mxu0 0.0
    %316 = vmatpush1.xpose.msra.mxu0 0.0
    %317 = vmatprep.subr.mxu0 0.0
    %318 = vmatpush1.xpose.msra.mxu0 0.0
    %319 = vmatprep.subr.mxu0 0.0
    %320 = vmatpush1.xpose.msra.mxu0 0.0
    %321 = vmatprep.subr.mxu0 0.0
    %322 = vmatpush1.xpose.msra.mxu0 0.0
    %323 = vmatprep.subr.mxu0 0.0
    %324 = vmatpush1.xpose.msra.mxu0 0.0
    %325 = vmatprep.subr.mxu0 0.0
    %326 = vmatpush1.xpose.msra.mxu0 0.0
    %327 = vmatprep.subr.mxu0 0.0
    %328 = vmatpush1.xpose.msra.mxu0 0.0
    %329 = vmatprep.subr.mxu0 0.0
    %330 = vmatpush1.xpose.msra.mxu0 0.0
    %331 = vmatprep.subr.mxu0 0.0
    %332 = vmatpush1.xpose.msra.mxu0 0.0
    %333 = vmatprep.subr.mxu0 0.0
    %334 = vmatpush1.xpose.msra.mxu0 0.0
    %335 = vmatprep.subr.mxu0 0.0
    %336 = vmatpush1.xpose.msra.mxu0 0.0
    %337 = vmatprep.subr.mxu0 0.0
    %338 = vmatpush1.xpose.msra.mxu0 0.0
    %339 = vmatprep.subr.mxu0 0.0
    %340 = vmatpush1.xpose.msra.mxu0 0.0
    %341 = vmatprep.subr.mxu0 0.0
    %342 = vmatpush1.xpose.msra.mxu0 0.0
    %343 = vmatprep.subr.mxu0 0.0
    %344 = vmatpush1.xpose.msra.mxu0 %v313
    %345 = vmatprep.subr.mxu0 0.0
    %346 = vmatpush1.xpose.msra.mxu0 %v311
    %347 = vmatprep.subr.mxu0 0.0
    %348 = vmatpush2.xpose.msra.mxu0 0.0
    %349 = vmatprep.subr.mxu0 0.0
    %350 = vmatpush2.xpose.msra.mxu0 0.0
    %351 = vmatprep.subr.mxu0 0.0
    %352 = vmatpush2.xpose.msra.mxu0 0.0
    %353 = vmatprep.subr.mxu0 0.0
    %354 = vmatpush2.xpose.msra.mxu0 0.0
    %355 = vmatprep.subr.mxu0 0.0
    %356 = vmatpush2.xpose.msra.mxu0 0.0
    %357 = vmatprep.subr.mxu0 0.0
    %358 = vmatpush2.xpose.msra.mxu0 0.0
    %359 = vmatprep.subr.mxu0 0.0
    %360 = vmatpush2.xpose.msra.mxu0 0.0
    %361 = vmatprep.subr.mxu0 0.0
    %362 = vmatpush2.xpose.msra.mxu0 0.0
    %363 = vmatprep.subr.mxu0 0.0
    %364 = vmatpush2.xpose.msra.mxu0 0.0
    %365 = vmatprep.subr.mxu0 0.0
    %366 = vmatpush2.xpose.msra.mxu0 0.0
    %367 = vmatprep.subr.mxu0 0.0
    %368 = vmatpush2.xpose.msra.mxu0 0.0
    %369 = vmatprep.subr.mxu0 0.0
    %370 = vmatpush2.xpose.msra.mxu0 0.0
    %371 = vmatprep.subr.mxu0 0.0
    %372 = vmatpush2.xpose.msra.mxu0 0.0
    %373 = vmatprep.subr.mxu0 0.0
    %374 = vmatpush2.xpose.msra.mxu0 0.0
    %375 = vmatprep.subr.mxu0 0.0
    %376 = vmatpush2.xpose.msra.mxu0 0.0
    %377 = vmatprep.subr.mxu0 0.0
    %378 = vmatpush2.xpose.msra.mxu0 0.0
    %379 = vmatprep.mubr.f32.mxu0 0.0
    %380 = vmatmul.mubr.f32.gmra.mxu0 %v307
    %v381 = vpop.f32.mrf.mxu0
    %v382 = vadd.f32 0.0, %v381
    %v383 = vpop.f32.mrf.mxu0
    %384 = vmatprep.mubr.f32.mxu0 0.0
    %385 = vmatmul.mubr.f32.gmra.mxu0 %v309
    %v386 = vpop.f32.mrf.mxu0
    %v387 = vadd.f32 0.0, %v386
    %v388 = vpop.f32.mrf.mxu0
    %389 = vdwg.mxu0
    %392 = vrot.lane.b32.xlu0 %v232, 96
    %v393 = vpop.permute.xlu0 %392
    %394 = vrot.lane.b32.xlu0 %v237, 96
    %v395 = vpop.permute.xlu0 %394
    %v396 = vsel %vm306, %v232, 0
    %v398 = vsel %vm306, %v237, 0
    %v400 = vsel %vm306, %v393, 0
    %v402 = vsel %vm306, %v395, 0
    %404 = vmatprep.subr.mxu0 0.0
    %405 = vmatpush1.xpose.msra.mxu0 0.0
    %406 = vmatprep.subr.mxu0 0.0
    %407 = vmatpush1.xpose.msra.mxu0 0.0
    %408 = vmatprep.subr.mxu0 0.0
    %409 = vmatpush1.xpose.msra.mxu0 0.0
    %410 = vmatprep.subr.mxu0 0.0
    %411 = vmatpush1.xpose.msra.mxu0 0.0
    %412 = vmatprep.subr.mxu0 0.0
    %413 = vmatpush1.xpose.msra.mxu0 0.0
    %414 = vmatprep.subr.mxu0 0.0
    %415 = vmatpush1.xpose.msra.mxu0 0.0
    %416 = vmatprep.subr.mxu0 0.0
    %417 = vmatpush1.xpose.msra.mxu0 0.0
    %418 = vmatprep.subr.mxu0 0.0
    %419 = vmatpush1.xpose.msra.mxu0 0.0
    %420 = vmatprep.subr.mxu0 0.0
    %421 = vmatpush1.xpose.msra.mxu0 0.0
    %422 = vmatprep.subr.mxu0 0.0
    %423 = vmatpush1.xpose.msra.mxu0 0.0
    %424 = vmatprep.subr.mxu0 0.0
    %425 = vmatpush1.xpose.msra.mxu0 0.0
    %426 = vmatprep.subr.mxu0 0.0
    %427 = vmatpush1.xpose.msra.mxu0 0.0
    %428 = vmatprep.subr.mxu0 0.0
    %429 = vmatpush1.xpose.msra.mxu0 0.0
    %430 = vmatprep.subr.mxu0 0.0
    %431 = vmatpush1.xpose.msra.mxu0 0.0
    %432 = vmatprep.subr.mxu0 0.0
    %433 = vmatpush1.xpose.msra.mxu0 %v402
    %434 = vmatprep.subr.mxu0 0.0
    %435 = vmatpush1.xpose.msra.mxu0 %v400
    %436 = vmatprep.subr.mxu0 0.0
    %437 = vmatpush2.xpose.msra.mxu0 0.0
    %438 = vmatprep.subr.mxu0 0.0
    %439 = vmatpush2.xpose.msra.mxu0 0.0
    %440 = vmatprep.subr.mxu0 0.0
    %441 = vmatpush2.xpose.msra.mxu0 0.0
    %442 = vmatprep.subr.mxu0 0.0
    %443 = vmatpush2.xpose.msra.mxu0 0.0
    %444 = vmatprep.subr.mxu0 0.0
    %445 = vmatpush2.xpose.msra.mxu0 0.0
    %446 = vmatprep.subr.mxu0 0.0
    %447 = vmatpush2.xpose.msra.mxu0 0.0
    %448 = vmatprep.subr.mxu0 0.0
    %449 = vmatpush2.xpose.msra.mxu0 0.0
    %450 = vmatprep.subr.mxu0 0.0
    %451 = vmatpush2.xpose.msra.mxu0 0.0
    %452 = vmatprep.subr.mxu0 0.0
    %453 = vmatpush2.xpose.msra.mxu0 0.0
    %454 = vmatprep.subr.mxu0 0.0
    %455 = vmatpush2.xpose.msra.mxu0 0.0
    %456 = vmatprep.subr.mxu0 0.0
    %457 = vmatpush2.xpose.msra.mxu0 0.0
    %458 = vmatprep.subr.mxu0 0.0
    %459 = vmatpush2.xpose.msra.mxu0 0.0
    %460 = vmatprep.subr.mxu0 0.0
    %461 = vmatpush2.xpose.msra.mxu0 0.0
    %462 = vmatprep.subr.mxu0 0.0
    %463 = vmatpush2.xpose.msra.mxu0 0.0
    %464 = vmatprep.subr.mxu0 0.0
    %465 = vmatpush2.xpose.msra.mxu0 0.0
    %466 = vmatprep.subr.mxu0 0.0
    %467 = vmatpush2.xpose.msra.mxu0 0.0
    %468 = vmatprep.mubr.f32.mxu0 0.0
    %469 = vmatmul.mubr.f32.gmra.mxu0 %v396
    %v470 = vpop.f32.mrf.mxu0
    %v471 = vadd.f32 0.0, %v470
    %v472 = vpop.f32.mrf.mxu0
    %473 = vmatprep.mubr.f32.mxu0 0.0
    %474 = vmatmul.mubr.f32.gmra.mxu0 %v398
    %v475 = vpop.f32.mrf.mxu0
    %v476 = vadd.f32 0.0, %v475
    %v477 = vpop.f32.mrf.mxu0
    %478 = vdwg.mxu0
    %481 = vrot.lane.b32.xlu0 %v242, 96
    %v482 = vpop.permute.xlu0 %481
    %483 = vrot.lane.b32.xlu0 %v247, 96
    %v484 = vpop.permute.xlu0 %483
    %v485 = vsel %vm306, %v242, 0
    %v487 = vsel %vm306, %v247, 0
    %v489 = vsel %vm306, %v482, 0
    %v491 = vsel %vm306, %v484, 0
    %493 = vmatprep.subr.mxu0 0.0
    %494 = vmatpush1.xpose.msra.mxu0 0.0
    %495 = vmatprep.subr.mxu0 0.0
    %496 = vmatpush1.xpose.msra.mxu0 0.0
    %497 = vmatprep.subr.mxu0 0.0
    %498 = vmatpush1.xpose.msra.mxu0 0.0
    %499 = vmatprep.subr.mxu0 0.0
    %500 = vmatpush1.xpose.msra.mxu0 0.0
    %501 = vmatprep.subr.mxu0 0.0
    %502 = vmatpush1.xpose.msra.mxu0 0.0
    %503 = vmatprep.subr.mxu0 0.0
    %504 = vmatpush1.xpose.msra.mxu0 0.0
    %505 = vmatprep.subr.mxu0 0.0
    %506 = vmatpush1.xpose.msra.mxu0 0.0
    %507 = vmatprep.subr.mxu0 0.0
    %508 = vmatpush1.xpose.msra.mxu0 0.0
    %509 = vmatprep.subr.mxu0 0.0
    %510 = vmatpush1.xpose.msra.mxu0 0.0
    %511 = vmatprep.subr.mxu0 0.0
    %512 = vmatpush1.xpose.msra.mxu0 0.0
    %513 = vmatprep.subr.mxu0 0.0
    %514 = vmatpush1.xpose.msra.mxu0 0.0
    %515 = vmatprep.subr.mxu0 0.0
    %516 = vmatpush1.xpose.msra.mxu0 0.0
    %517 = vmatprep.subr.mxu0 0.0
    %518 = vmatpush1.xpose.msra.mxu0 0.0
    %519 = vmatprep.subr.mxu0 0.0
    %520 = vmatpush1.xpose.msra.mxu0 0.0
    %521 = vmatprep.subr.mxu0 0.0
    %522 = vmatpush1.xpose.msra.mxu0 %v491
    %523 = vmatprep.subr.mxu0 0.0
    %524 = vmatpush1.xpose.msra.mxu0 %v489
    %525 = vmatprep.subr.mxu0 0.0
    %526 = vmatpush2.xpose.msra.mxu0 0.0
    %527 = vmatprep.subr.mxu0 0.0
    %528 = vmatpush2.xpose.msra.mxu0 0.0
    %529 = vmatprep.subr.mxu0 0.0
    %530 = vmatpush2.xpose.msra.mxu0 0.0
    %531 = vmatprep.subr.mxu0 0.0
    %532 = vmatpush2.xpose.msra.mxu0 0.0
    %533 = vmatprep.subr.mxu0 0.0
    %534 = vmatpush2.xpose.msra.mxu0 0.0
    %535 = vmatprep.subr.mxu0 0.0
    %536 = vmatpush2.xpose.msra.mxu0 0.0
    %537 = vmatprep.subr.mxu0 0.0
    %538 = vmatpush2.xpose.msra.mxu0 0.0
    %539 = vmatprep.subr.mxu0 0.0
    %540 = vmatpush2.xpose.msra.mxu0 0.0
    %541 = vmatprep.subr.mxu0 0.0
    %542 = vmatpush2.xpose.msra.mxu0 0.0
    %543 = vmatprep.subr.mxu0 0.0
    %544 = vmatpush2.xpose.msra.mxu0 0.0
    %545 = vmatprep.subr.mxu0 0.0
    %546 = vmatpush2.xpose.msra.mxu0 0.0
    %547 = vmatprep.subr.mxu0 0.0
    %548 = vmatpush2.xpose.msra.mxu0 0.0
    %549 = vmatprep.subr.mxu0 0.0
    %550 = vmatpush2.xpose.msra.mxu0 0.0
    %551 = vmatprep.subr.mxu0 0.0
    %552 = vmatpush2.xpose.msra.mxu0 0.0
    %553 = vmatprep.subr.mxu0 0.0
    %554 = vmatpush2.xpose.msra.mxu0 0.0
    %555 = vmatprep.subr.mxu0 0.0
    %556 = vmatpush2.xpose.msra.mxu0 0.0
    %557 = vmatprep.mubr.f32.mxu0 0.0
    %558 = vmatmul.mubr.f32.gmra.mxu0 %v485
    %v559 = vpop.f32.mrf.mxu0
    %v560 = vadd.f32 0.0, %v559
    %v561 = vpop.f32.mrf.mxu0
    %562 = vmatprep.mubr.f32.mxu0 0.0
    %563 = vmatmul.mubr.f32.gmra.mxu0 %v487
    %v564 = vpop.f32.mrf.mxu0
    %v565 = vadd.f32 0.0, %v564
    %v566 = vpop.f32.mrf.mxu0
    %567 = vdwg.mxu0
    %570 = vrot.lane.b32.xlu0 %v252, 96
    %v571 = vpop.permute.xlu0 %570
    %572 = vrot.lane.b32.xlu0 %v257, 96
    %v573 = vpop.permute.xlu0 %572
    %v574 = vsel %vm306, %v252, 0
    %v576 = vsel %vm306, %v257, 0
    %v578 = vsel %vm306, %v571, 0
    %v580 = vsel %vm306, %v573, 0
    %582 = vmatprep.subr.mxu0 0.0
    %583 = vmatpush1.xpose.msra.mxu0 0.0
    %584 = vmatprep.subr.mxu0 0.0
    %585 = vmatpush1.xpose.msra.mxu0 0.0
    %586 = vmatprep.subr.mxu0 0.0
    %587 = vmatpush1.xpose.msra.mxu0 0.0
    %588 = vmatprep.subr.mxu0 0.0
    %589 = vmatpush1.xpose.msra.mxu0 0.0
    %590 = vmatprep.subr.mxu0 0.0
    %591 = vmatpush1.xpose.msra.mxu0 0.0
    %592 = vmatprep.subr.mxu0 0.0
    %593 = vmatpush1.xpose.msra.mxu0 0.0
    %594 = vmatprep.subr.mxu0 0.0
    %595 = vmatpush1.xpose.msra.mxu0 0.0
    %596 = vmatprep.subr.mxu0 0.0
    %597 = vmatpush1.xpose.msra.mxu0 0.0
    %598 = vmatprep.subr.mxu0 0.0
    %599 = vmatpush1.xpose.msra.mxu0 0.0
    %600 = vmatprep.subr.mxu0 0.0
    %601 = vmatpush1.xpose.msra.mxu0 0.0
    %602 = vmatprep.subr.mxu0 0.0
    %603 = vmatpush1.xpose.msra.mxu0 0.0
    %604 = vmatprep.subr.mxu0 0.0
    %605 = vmatpush1.xpose.msra.mxu0 0.0
    %606 = vmatprep.subr.mxu0 0.0
    %607 = vmatpush1.xpose.msra.mxu0 0.0
    %608 = vmatprep.subr.mxu0 0.0
    %609 = vmatpush1.xpose.msra.mxu0 0.0
    %610 = vmatprep.subr.mxu0 0.0
    %611 = vmatpush1.xpose.msra.mxu0 %v580
    %612 = vmatprep.subr.mxu0 0.0
    %613 = vmatpush1.xpose.msra.mxu0 %v578
    %614 = vmatprep.subr.mxu0 0.0
    %615 = vmatpush2.xpose.msra.mxu0 0.0
    %616 = vmatprep.subr.mxu0 0.0
    %617 = vmatpush2.xpose.msra.mxu0 0.0
    %618 = vmatprep.subr.mxu0 0.0
    %619 = vmatpush2.xpose.msra.mxu0 0.0
    %620 = vmatprep.subr.mxu0 0.0
    %621 = vmatpush2.xpose.msra.mxu0 0.0
    %622 = vmatprep.subr.mxu0 0.0
    %623 = vmatpush2.xpose.msra.mxu0 0.0
    %624 = vmatprep.subr.mxu0 0.0
    %625 = vmatpush2.xpose.msra.mxu0 0.0
    %626 = vmatprep.subr.mxu0 0.0
    %627 = vmatpush2.xpose.msra.mxu0 0.0
    %628 = vmatprep.subr.mxu0 0.0
    %629 = vmatpush2.xpose.msra.mxu0 0.0
    %630 = vmatprep.subr.mxu0 0.0
    %631 = vmatpush2.xpose.msra.mxu0 0.0
    %632 = vmatprep.subr.mxu0 0.0
    %633 = vmatpush2.xpose.msra.mxu0 0.0
    %634 = vmatprep.subr.mxu0 0.0
    %635 = vmatpush2.xpose.msra.mxu0 0.0
    %636 = vmatprep.subr.mxu0 0.0
    %637 = vmatpush2.xpose.msra.mxu0 0.0
    %638 = vmatprep.subr.mxu0 0.0
    %639 = vmatpush2.xpose.msra.mxu0 0.0
    %640 = vmatprep.subr.mxu0 0.0
    %641 = vmatpush2.xpose.msra.mxu0 0.0
    %642 = vmatprep.subr.mxu0 0.0
    %643 = vmatpush2.xpose.msra.mxu0 0.0
    %644 = vmatprep.subr.mxu0 0.0
    %645 = vmatpush2.xpose.msra.mxu0 0.0
    %646 = vmatprep.mubr.f32.mxu0 0.0
    %647 = vmatmul.mubr.f32.gmra.mxu0 %v574
    %v648 = vpop.f32.mrf.mxu0
    %v649 = vadd.f32 0.0, %v648
    %v650 = vpop.f32.mrf.mxu0
    %651 = vmatprep.mubr.f32.mxu0 0.0
    %652 = vmatmul.mubr.f32.gmra.mxu0 %v576
    %v653 = vpop.f32.mrf.mxu0
    %v654 = vadd.f32 0.0, %v653
    %v655 = vpop.f32.mrf.mxu0
    %656 = vdwg.mxu0
    %659 = vrot.lane.b32.xlu0 %v262, 96
    %v660 = vpop.permute.xlu0 %659
    %661 = vrot.lane.b32.xlu0 %v267, 96
    %v662 = vpop.permute.xlu0 %661
    %v663 = vsel %vm306, %v262, 0
    %v665 = vsel %vm306, %v267, 0
    %v667 = vsel %vm306, %v660, 0
    %v669 = vsel %vm306, %v662, 0
    %671 = vmatprep.subr.mxu0 0.0
    %672 = vmatpush1.xpose.msra.mxu0 0.0
    %673 = vmatprep.subr.mxu0 0.0
    %674 = vmatpush1.xpose.msra.mxu0 0.0
    %675 = vmatprep.subr.mxu0 0.0
    %676 = vmatpush1.xpose.msra.mxu0 0.0
    %677 = vmatprep.subr.mxu0 0.0
    %678 = vmatpush1.xpose.msra.mxu0 0.0
    %679 = vmatprep.subr.mxu0 0.0
    %680 = vmatpush1.xpose.msra.mxu0 0.0
    %681 = vmatprep.subr.mxu0 0.0
    %682 = vmatpush1.xpose.msra.mxu0 0.0
    %683 = vmatprep.subr.mxu0 0.0
    %684 = vmatpush1.xpose.msra.mxu0 0.0
    %685 = vmatprep.subr.mxu0 0.0
    %686 = vmatpush1.xpose.msra.mxu0 0.0
    %687 = vmatprep.subr.mxu0 0.0
    %688 = vmatpush1.xpose.msra.mxu0 0.0
    %689 = vmatprep.subr.mxu0 0.0
    %690 = vmatpush1.xpose.msra.mxu0 0.0
    %691 = vmatprep.subr.mxu0 0.0
    %692 = vmatpush1.xpose.msra.mxu0 0.0
    %693 = vmatprep.subr.mxu0 0.0
    %694 = vmatpush1.xpose.msra.mxu0 0.0
    %695 = vmatprep.subr.mxu0 0.0
    %696 = vmatpush1.xpose.msra.mxu0 0.0
    %697 = vmatprep.subr.mxu0 0.0
    %698 = vmatpush1.xpose.msra.mxu0 0.0
    %699 = vmatprep.subr.mxu0 0.0
    %700 = vmatpush1.xpose.msra.mxu0 %v669
    %701 = vmatprep.subr.mxu0 0.0
    %702 = vmatpush1.xpose.msra.mxu0 %v667
    %703 = vmatprep.subr.mxu0 0.0
    %704 = vmatpush2.xpose.msra.mxu0 0.0
    %705 = vmatprep.subr.mxu0 0.0
    %706 = vmatpush2.xpose.msra.mxu0 0.0
    %707 = vmatprep.subr.mxu0 0.0
    %708 = vmatpush2.xpose.msra.mxu0 0.0
    %709 = vmatprep.subr.mxu0 0.0
    %710 = vmatpush2.xpose.msra.mxu0 0.0
    %711 = vmatprep.subr.mxu0 0.0
    %712 = vmatpush2.xpose.msra.mxu0 0.0
    %713 = vmatprep.subr.mxu0 0.0
    %714 = vmatpush2.xpose.msra.mxu0 0.0
    %715 = vmatprep.subr.mxu0 0.0
    %716 = vmatpush2.xpose.msra.mxu0 0.0
    %717 = vmatprep.subr.mxu0 0.0
    %718 = vmatpush2.xpose.msra.mxu0 0.0
    %719 = vmatprep.subr.mxu0 0.0
    %720 = vmatpush2.xpose.msra.mxu0 0.0
    %721 = vmatprep.subr.mxu0 0.0
    %722 = vmatpush2.xpose.msra.mxu0 0.0
    %723 = vmatprep.subr.mxu0 0.0
    %724 = vmatpush2.xpose.msra.mxu0 0.0
    %725 = vmatprep.subr.mxu0 0.0
    %726 = vmatpush2.xpose.msra.mxu0 0.0
    %727 = vmatprep.subr.mxu0 0.0
    %728 = vmatpush2.xpose.msra.mxu0 0.0
    %729 = vmatprep.subr.mxu0 0.0
    %730 = vmatpush2.xpose.msra.mxu0 0.0
    %731 = vmatprep.subr.mxu0 0.0
    %732 = vmatpush2.xpose.msra.mxu0 0.0
    %733 = vmatprep.subr.mxu0 0.0
    %734 = vmatpush2.xpose.msra.mxu0 0.0
    %735 = vmatprep.mubr.f32.mxu0 0.0
    %736 = vmatmul.mubr.f32.gmra.mxu0 %v663
    %v737 = vpop.f32.mrf.mxu0
    %v738 = vadd.f32 0.0, %v737
    %v739 = vpop.f32.mrf.mxu0
    %740 = vmatprep.mubr.f32.mxu0 0.0
    %741 = vmatmul.mubr.f32.gmra.mxu0 %v665
    %v742 = vpop.f32.mrf.mxu0
    %v743 = vadd.f32 0.0, %v742
    %v744 = vpop.f32.mrf.mxu0
    %745 = vdwg.mxu0
    %748 = vrot.lane.b32.xlu0 %v272, 96
    %v749 = vpop.permute.xlu0 %748
    %750 = vrot.lane.b32.xlu0 %v277, 96
    %v751 = vpop.permute.xlu0 %750
    %v752 = vsel %vm306, %v272, 0
    %v754 = vsel %vm306, %v277, 0
    %v756 = vsel %vm306, %v749, 0
    %v758 = vsel %vm306, %v751, 0
    %760 = vmatprep.subr.mxu0 0.0
    %761 = vmatpush1.xpose.msra.mxu0 0.0
    %762 = vmatprep.subr.mxu0 0.0
    %763 = vmatpush1.xpose.msra.mxu0 0.0
    %764 = vmatprep.subr.mxu0 0.0
    %765 = vmatpush1.xpose.msra.mxu0 0.0
    %766 = vmatprep.subr.mxu0 0.0
    %767 = vmatpush1.xpose.msra.mxu0 0.0
    %768 = vmatprep.subr.mxu0 0.0
    %769 = vmatpush1.xpose.msra.mxu0 0.0
    %770 = vmatprep.subr.mxu0 0.0
    %771 = vmatpush1.xpose.msra.mxu0 0.0
    %772 = vmatprep.subr.mxu0 0.0
    %773 = vmatpush1.xpose.msra.mxu0 0.0
    %774 = vmatprep.subr.mxu0 0.0
    %775 = vmatpush1.xpose.msra.mxu0 0.0
    %776 = vmatprep.subr.mxu0 0.0
    %777 = vmatpush1.xpose.msra.mxu0 0.0
    %778 = vmatprep.subr.mxu0 0.0
    %779 = vmatpush1.xpose.msra.mxu0 0.0
    %780 = vmatprep.subr.mxu0 0.0
    %781 = vmatpush1.xpose.msra.mxu0 0.0
    %782 = vmatprep.subr.mxu0 0.0
    %783 = vmatpush1.xpose.msra.mxu0 0.0
    %784 = vmatprep.subr.mxu0 0.0
    %785 = vmatpush1.xpose.msra.mxu0 0.0
    %786 = vmatprep.subr.mxu0 0.0
    %787 = vmatpush1.xpose.msra.mxu0 0.0
    %788 = vmatprep.subr.mxu0 0.0
    %789 = vmatpush1.xpose.msra.mxu0 %v758
    %790 = vmatprep.subr.mxu0 0.0
    %791 = vmatpush1.xpose.msra.mxu0 %v756
    %792 = vmatprep.subr.mxu0 0.0
    %793 = vmatpush2.xpose.msra.mxu0 0.0
    %794 = vmatprep.subr.mxu0 0.0
    %795 = vmatpush2.xpose.msra.mxu0 0.0
    %796 = vmatprep.subr.mxu0 0.0
    %797 = vmatpush2.xpose.msra.mxu0 0.0
    %798 = vmatprep.subr.mxu0 0.0
    %799 = vmatpush2.xpose.msra.mxu0 0.0
    %800 = vmatprep.subr.mxu0 0.0
    %801 = vmatpush2.xpose.msra.mxu0 0.0
    %802 = vmatprep.subr.mxu0 0.0
    %803 = vmatpush2.xpose.msra.mxu0 0.0
    %804 = vmatprep.subr.mxu0 0.0
    %805 = vmatpush2.xpose.msra.mxu0 0.0
    %806 = vmatprep.subr.mxu0 0.0
    %807 = vmatpush2.xpose.msra.mxu0 0.0
    %808 = vmatprep.subr.mxu0 0.0
    %809 = vmatpush2.xpose.msra.mxu0 0.0
    %810 = vmatprep.subr.mxu0 0.0
    %811 = vmatpush2.xpose.msra.mxu0 0.0
    %812 = vmatprep.subr.mxu0 0.0
    %813 = vmatpush2.xpose.msra.mxu0 0.0
    %814 = vmatprep.subr.mxu0 0.0
    %815 = vmatpush2.xpose.msra.mxu0 0.0
    %816 = vmatprep.subr.mxu0 0.0
    %817 = vmatpush2.xpose.msra.mxu0 0.0
    %818 = vmatprep.subr.mxu0 0.0
    %819 = vmatpush2.xpose.msra.mxu0 0.0
    %820 = vmatprep.subr.mxu0 0.0
    %821 = vmatpush2.xpose.msra.mxu0 0.0
    %822 = vmatprep.subr.mxu0 0.0
    %823 = vmatpush2.xpose.msra.mxu0 0.0
    %824 = vmatprep.mubr.f32.mxu0 0.0
    %825 = vmatmul.mubr.f32.gmra.mxu0 %v752
    %v826 = vpop.f32.mrf.mxu0
    %v827 = vadd.f32 0.0, %v826
    %v828 = vpop.f32.mrf.mxu0
    %829 = vmatprep.mubr.f32.mxu0 0.0
    %830 = vmatmul.mubr.f32.gmra.mxu0 %v754
    %v831 = vpop.f32.mrf.mxu0
    %v832 = vadd.f32 0.0, %v831
    %v833 = vpop.f32.mrf.mxu0
    %834 = vdwg.mxu0
    %837 = vrot.lane.b32.xlu0 %v282, 96
    %v838 = vpop.permute.xlu0 %837
    %839 = vrot.lane.b32.xlu0 %v287, 96
    %v840 = vpop.permute.xlu0 %839
    %v841 = vsel %vm306, %v282, 0
    %v843 = vsel %vm306, %v287, 0
    %v845 = vsel %vm306, %v838, 0
    %v847 = vsel %vm306, %v840, 0
    %849 = vmatprep.subr.mxu0 0.0
    %850 = vmatpush1.xpose.msra.mxu0 0.0
    %851 = vmatprep.subr.mxu0 0.0
    %852 = vmatpush1.xpose.msra.mxu0 0.0
    %853 = vmatprep.subr.mxu0 0.0
    %854 = vmatpush1.xpose.msra.mxu0 0.0
    %855 = vmatprep.subr.mxu0 0.0
    %856 = vmatpush1.xpose.msra.mxu0 0.0
    %857 = vmatprep.subr.mxu0 0.0
    %858 = vmatpush1.xpose.msra.mxu0 0.0
    %859 = vmatprep.subr.mxu0 0.0
    %860 = vmatpush1.xpose.msra.mxu0 0.0
    %861 = vmatprep.subr.mxu0 0.0
    %862 = vmatpush1.xpose.msra.mxu0 0.0
    %863 = vmatprep.subr.mxu0 0.0
    %864 = vmatpush1.xpose.msra.mxu0 0.0
    %865 = vmatprep.subr.mxu0 0.0
    %866 = vmatpush1.xpose.msra.mxu0 0.0
    %867 = vmatprep.subr.mxu0 0.0
    %868 = vmatpush1.xpose.msra.mxu0 0.0
    %869 = vmatprep.subr.mxu0 0.0
    %870 = vmatpush1.xpose.msra.mxu0 0.0
    %871 = vmatprep.subr.mxu0 0.0
    %872 = vmatpush1.xpose.msra.mxu0 0.0
    %873 = vmatprep.subr.mxu0 0.0
    %874 = vmatpush1.xpose.msra.mxu0 0.0
    %875 = vmatprep.subr.mxu0 0.0
    %876 = vmatpush1.xpose.msra.mxu0 0.0
    %877 = vmatprep.subr.mxu0 0.0
    %878 = vmatpush1.xpose.msra.mxu0 %v847
    %879 = vmatprep.subr.mxu0 0.0
    %880 = vmatpush1.xpose.msra.mxu0 %v845
    %881 = vmatprep.subr.mxu0 0.0
    %882 = vmatpush2.xpose.msra.mxu0 0.0
    %883 = vmatprep.subr.mxu0 0.0
    %884 = vmatpush2.xpose.msra.mxu0 0.0
    %885 = vmatprep.subr.mxu0 0.0
    %886 = vmatpush2.xpose.msra.mxu0 0.0
    %887 = vmatprep.subr.mxu0 0.0
    %888 = vmatpush2.xpose.msra.mxu0 0.0
    %889 = vmatprep.subr.mxu0 0.0
    %890 = vmatpush2.xpose.msra.mxu0 0.0
    %891 = vmatprep.subr.mxu0 0.0
    %892 = vmatpush2.xpose.msra.mxu0 0.0
    %893 = vmatprep.subr.mxu0 0.0
    %894 = vmatpush2.xpose.msra.mxu0 0.0
    %895 = vmatprep.subr.mxu0 0.0
    %896 = vmatpush2.xpose.msra.mxu0 0.0
    %897 = vmatprep.subr.mxu0 0.0
    %898 = vmatpush2.xpose.msra.mxu0 0.0
    %899 = vmatprep.subr.mxu0 0.0
    %900 = vmatpush2.xpose.msra.mxu0 0.0
    %901 = vmatprep.subr.mxu0 0.0
    %902 = vmatpush2.xpose.msra.mxu0 0.0
    %903 = vmatprep.subr.mxu0 0.0
    %904 = vmatpush2.xpose.msra.mxu0 0.0
    %905 = vmatprep.subr.mxu0 0.0
    %906 = vmatpush2.xpose.msra.mxu0 0.0
    %907 = vmatprep.subr.mxu0 0.0
    %908 = vmatpush2.xpose.msra.mxu0 0.0
    %909 = vmatprep.subr.mxu0 0.0
    %910 = vmatpush2.xpose.msra.mxu0 0.0
    %911 = vmatprep.subr.mxu0 0.0
    %912 = vmatpush2.xpose.msra.mxu0 0.0
    %913 = vmatprep.mubr.f32.mxu0 0.0
    %914 = vmatmul.mubr.f32.gmra.mxu0 %v841
    %v915 = vpop.f32.mrf.mxu0
    %v916 = vadd.f32 0.0, %v915
    %v917 = vpop.f32.mrf.mxu0
    %918 = vmatprep.mubr.f32.mxu0 0.0
    %919 = vmatmul.mubr.f32.gmra.mxu0 %v843
    %v920 = vpop.f32.mrf.mxu0
    %v921 = vadd.f32 0.0, %v920
    %v922 = vpop.f32.mrf.mxu0
    %923 = vdwg.mxu0
    %926 = vrot.lane.b32.xlu0 %v292, 96
    %v927 = vpop.permute.xlu0 %926
    %928 = vrot.lane.b32.xlu0 %v297, 96
    %v929 = vpop.permute.xlu0 %928
    %v930 = vsel %vm306, %v292, 0
    %v932 = vsel %vm306, %v297, 0
    %v934 = vsel %vm306, %v927, 0
    %v936 = vsel %vm306, %v929, 0
    %938 = vmatprep.subr.mxu0 0.0
    %939 = vmatpush1.xpose.msra.mxu0 0.0
    %940 = vmatprep.subr.mxu0 0.0
    %941 = vmatpush1.xpose.msra.mxu0 0.0
    %942 = vmatprep.subr.mxu0 0.0
    %943 = vmatpush1.xpose.msra.mxu0 0.0
    %944 = vmatprep.subr.mxu0 0.0
    %945 = vmatpush1.xpose.msra.mxu0 0.0
    %946 = vmatprep.subr.mxu0 0.0
    %947 = vmatpush1.xpose.msra.mxu0 0.0
    %948 = vmatprep.subr.mxu0 0.0
    %949 = vmatpush1.xpose.msra.mxu0 0.0
    %950 = vmatprep.subr.mxu0 0.0
    %951 = vmatpush1.xpose.msra.mxu0 0.0
    %952 = vmatprep.subr.mxu0 0.0
    %953 = vmatpush1.xpose.msra.mxu0 0.0
    %954 = vmatprep.subr.mxu0 0.0
    %955 = vmatpush1.xpose.msra.mxu0 0.0
    %956 = vmatprep.subr.mxu0 0.0
    %957 = vmatpush1.xpose.msra.mxu0 0.0
    %958 = vmatprep.subr.mxu0 0.0
    %959 = vmatpush1.xpose.msra.mxu0 0.0
    %960 = vmatprep.subr.mxu0 0.0
    %961 = vmatpush1.xpose.msra.mxu0 0.0
    %962 = vmatprep.subr.mxu0 0.0
    %963 = vmatpush1.xpose.msra.mxu0 0.0
    %964 = vmatprep.subr.mxu0 0.0
    %965 = vmatpush1.xpose.msra.mxu0 0.0
    %966 = vmatprep.subr.mxu0 0.0
    %967 = vmatpush1.xpose.msra.mxu0 %v936
    %968 = vmatprep.subr.mxu0 0.0
    %969 = vmatpush1.xpose.msra.mxu0 %v934
    %970 = vmatprep.subr.mxu0 0.0
    %971 = vmatpush2.xpose.msra.mxu0 0.0
    %972 = vmatprep.subr.mxu0 0.0
    %973 = vmatpush2.xpose.msra.mxu0 0.0
    %974 = vmatprep.subr.mxu0 0.0
    %975 = vmatpush2.xpose.msra.mxu0 0.0
    %976 = vmatprep.subr.mxu0 0.0
    %977 = vmatpush2.xpose.msra.mxu0 0.0
    %978 = vmatprep.subr.mxu0 0.0
    %979 = vmatpush2.xpose.msra.mxu0 0.0
    %980 = vmatprep.subr.mxu0 0.0
    %981 = vmatpush2.xpose.msra.mxu0 0.0
    %982 = vmatprep.subr.mxu0 0.0
    %983 = vmatpush2.xpose.msra.mxu0 0.0
    %984 = vmatprep.subr.mxu0 0.0
    %985 = vmatpush2.xpose.msra.mxu0 0.0
    %986 = vmatprep.subr.mxu0 0.0
    %987 = vmatpush2.xpose.msra.mxu0 0.0
    %988 = vmatprep.subr.mxu0 0.0
    %989 = vmatpush2.xpose.msra.mxu0 0.0
    %990 = vmatprep.subr.mxu0 0.0
    %991 = vmatpush2.xpose.msra.mxu0 0.0
    %992 = vmatprep.subr.mxu0 0.0
    %993 = vmatpush2.xpose.msra.mxu0 0.0
    %994 = vmatprep.subr.mxu0 0.0
    %995 = vmatpush2.xpose.msra.mxu0 0.0
    %996 = vmatprep.subr.mxu0 0.0
    %997 = vmatpush2.xpose.msra.mxu0 0.0
    %998 = vmatprep.subr.mxu0 0.0
    %999 = vmatpush2.xpose.msra.mxu0 0.0
    %1000 = vmatprep.subr.mxu0 0.0
    %1001 = vmatpush2.xpose.msra.mxu0 0.0
    %1002 = vmatprep.mubr.f32.mxu0 0.0
    %1003 = vmatmul.mubr.f32.gmra.mxu0 %v930
    %v1004 = vpop.f32.mrf.mxu0
    %v1005 = vadd.f32 0.0, %v1004
    %v1006 = vpop.f32.mrf.mxu0
    %1007 = vmatprep.mubr.f32.mxu0 0.0
    %1008 = vmatmul.mubr.f32.gmra.mxu0 %v932
    %v1009 = vpop.f32.mrf.mxu0
    %v1010 = vadd.f32 0.0, %v1009
    %v1011 = vpop.f32.mrf.mxu0
    %1012 = vdwg.mxu0
    %v1013 = vld [vmem:[#allocation8] sm:$0xff]
    %v1014 = vld [vmem:[#allocation8 + $0x8] sm:$0xff]
    %v1015 = vld [vmem:[#allocation8 + $0x10] sm:$0xff]
    %v1016 = vld [vmem:[#allocation8 + $0x18] sm:$0xff]
    %v1017 = vld [vmem:[#allocation8 + $0x20] sm:$0xff]
    %v1018 = vld [vmem:[#allocation8 + $0x28] sm:$0xff]
    %v1019 = vld [vmem:[#allocation8 + $0x30] sm:$0xff]
    %v1020 = vld [vmem:[#allocation8 + $0x38] sm:$0xff]
    %v1021 = vadd.f32 %v382, %v1013
    %v1022 = vadd.f32 %v387, %v1014
    %v1023 = vadd.f32 %v471, %v1015
    %v1024 = vadd.f32 %v476, %v1016
    %v1025 = vadd.f32 %v560, %v1017
    %v1026 = vadd.f32 %v565, %v1018
    %v1027 = vadd.f32 %v649, %v1019
    %v1028 = vadd.f32 %v654, %v1020
    %v1029 = vadd.f32 %v738, %v1013
    %v1030 = vadd.f32 %v743, %v1014
    %v1031 = vadd.f32 %v827, %v1015
    %v1032 = vadd.f32 %v832, %v1016
    %v1033 = vadd.f32 %v916, %v1017
    %v1034 = vadd.f32 %v921, %v1018
    %v1035 = vadd.f32 %v1005, %v1019
    %v1036 = vadd.f32 %v1010, %v1020
    %vm1037 = vcmask 130048
    %v1038 = vsel %vm1037, %v1021, -inf
    %1039 = vmax.xlane.f32.xlu0 %v1038
    %v1040 = vpop.xlane.xlu0 %1039
    %v1041 = vsel %vm1037, %v1022, -inf
    %1042 = vmax.xlane.f32.xlu0 %v1041
    %v1043 = vpop.xlane.xlu0 %1042
    %v1044 = vsel %vm1037, %v1023, -inf
    %1045 = vmax.xlane.f32.xlu0 %v1044
    %v1046 = vpop.xlane.xlu0 %1045
    %v1047 = vsel %vm1037, %v1024, -inf
    %1048 = vmax.xlane.f32.xlu0 %v1047
    %v1049 = vpop.xlane.xlu0 %1048
    %v1050 = vsel %vm1037, %v1025, -inf
    %1051 = vmax.xlane.f32.xlu0 %v1050
    %v1052 = vpop.xlane.xlu0 %1051
    %v1053 = vsel %vm1037, %v1026, -inf
    %1054 = vmax.xlane.f32.xlu0 %v1053
    %v1055 = vpop.xlane.xlu0 %1054
    %v1056 = vsel %vm1037, %v1027, -inf
    %1057 = vmax.xlane.f32.xlu0 %v1056
    %v1058 = vpop.xlane.xlu0 %1057
    %v1059 = vsel %vm1037, %v1028, -inf
    %1060 = vmax.xlane.f32.xlu0 %v1059
    %v1061 = vpop.xlane.xlu0 %1060
    %v1062 = vsel %vm1037, %v1029, -inf
    %1063 = vmax.xlane.f32.xlu0 %v1062
    %v1064 = vpop.xlane.xlu0 %1063
    %v1065 = vsel %vm1037, %v1030, -inf
    %1066 = vmax.xlane.f32.xlu0 %v1065
    %v1067 = vpop.xlane.xlu0 %1066
    %v1068 = vsel %vm1037, %v1031, -inf
    %1069 = vmax.xlane.f32.xlu0 %v1068
    %v1070 = vpop.xlane.xlu0 %1069
    %v1071 = vsel %vm1037, %v1032, -inf
    %1072 = vmax.xlane.f32.xlu0 %v1071
    %v1073 = vpop.xlane.xlu0 %1072
    %v1074 = vsel %vm1037, %v1033, -inf
    %1075 = vmax.xlane.f32.xlu0 %v1074
    %v1076 = vpop.xlane.xlu0 %1075
    %v1077 = vsel %vm1037, %v1034, -inf
    %1078 = vmax.xlane.f32.xlu0 %v1077
    %v1079 = vpop.xlane.xlu0 %1078
    %v1080 = vsel %vm1037, %v1035, -inf
    %1081 = vmax.xlane.f32.xlu0 %v1080
    %v1082 = vpop.xlane.xlu0 %1081
    %v1083 = vsel %vm1037, %v1036, -inf
    %1084 = vmax.xlane.f32.xlu0 %v1083
    %v1085 = vpop.xlane.xlu0 %1084
    %v1086 = vsub.f32 %v1021, %v1040
    %v1087 = vsub.f32 %v1022, %v1043
    %v1088 = vsub.f32 %v1023, %v1046
    %v1089 = vsub.f32 %v1024, %v1049
    %v1090 = vsub.f32 %v1025, %v1052
    %v1091 = vsub.f32 %v1026, %v1055
    %v1092 = vsub.f32 %v1027, %v1058
    %v1093 = vsub.f32 %v1028, %v1061
    %v1094 = vsub.f32 %v1029, %v1064
    %v1095 = vsub.f32 %v1030, %v1067
    %v1096 = vsub.f32 %v1031, %v1070
    %v1097 = vsub.f32 %v1032, %v1073
    %v1098 = vsub.f32 %v1033, %v1076
    %v1099 = vsub.f32 %v1034, %v1079
    %v1100 = vsub.f32 %v1035, %v1082
    %v1101 = vsub.f32 %v1036, %v1085
    %v1102 = vmul.f32 %v1086, 1.442695
    %v1103 = vpow.pop %v1102
    %v1104 = vmul.f32 %v1087, 1.442695
    %v1105 = vpow.pop %v1104
    %v1106 = vmul.f32 %v1088, 1.442695
    %v1107 = vpow.pop %v1106
    %v1108 = vmul.f32 %v1089, 1.442695
    %v1109 = vpow.pop %v1108
    %v1110 = vmul.f32 %v1090, 1.442695
    %v1111 = vpow.pop %v1110
    %v1112 = vmul.f32 %v1091, 1.442695
    %v1113 = vpow.pop %v1112
    %v1114 = vmul.f32 %v1092, 1.442695
    %v1115 = vpow.pop %v1114
    %v1116 = vmul.f32 %v1093, 1.442695
    %v1117 = vpow.pop %v1116
    %v1118 = vmul.f32 %v1094, 1.442695
    %v1119 = vpow.pop %v1118
    %v1120 = vmul.f32 %v1095, 1.442695
    %v1121 = vpow.pop %v1120
    %v1122 = vmul.f32 %v1096, 1.442695
    %v1123 = vpow.pop %v1122
    %v1124 = vmul.f32 %v1097, 1.442695
    %v1125 = vpow.pop %v1124
    %v1126 = vmul.f32 %v1098, 1.442695
    %v1127 = vpow.pop %v1126
    %v1128 = vmul.f32 %v1099, 1.442695
    %v1129 = vpow.pop %v1128
    %v1130 = vmul.f32 %v1100, 1.442695
    %v1131 = vpow.pop %v1130
    %v1132 = vmul.f32 %v1101, 1.442695
    %v1133 = vpow.pop %v1132
    %v1134 = vsel %vm1037, %v1103, 0.0
    %1135 = vadd.xlane.f32.xlu0 %v1134
    %v1136 = vpop.xlane.xlu0 %1135
    %v1137 = vsel %vm1037, %v1105, 0.0
    %1138 = vadd.xlane.f32.xlu0 %v1137
    %v1139 = vpop.xlane.xlu0 %1138
    %v1140 = vsel %vm1037, %v1107, 0.0
    %1141 = vadd.xlane.f32.xlu0 %v1140
    %v1142 = vpop.xlane.xlu0 %1141
    %v1143 = vsel %vm1037, %v1109, 0.0
    %1144 = vadd.xlane.f32.xlu0 %v1143
    %v1145 = vpop.xlane.xlu0 %1144
    %v1146 = vsel %vm1037, %v1111, 0.0
    %1147 = vadd.xlane.f32.xlu0 %v1146
    %v1148 = vpop.xlane.xlu0 %1147
    %v1149 = vsel %vm1037, %v1113, 0.0
    %1150 = vadd.xlane.f32.xlu0 %v1149
    %v1151 = vpop.xlane.xlu0 %1150
    %v1152 = vsel %vm1037, %v1115, 0.0
    %1153 = vadd.xlane.f32.xlu0 %v1152
    %v1154 = vpop.xlane.xlu0 %1153
    %v1155 = vsel %vm1037, %v1117, 0.0
    %1156 = vadd.xlane.f32.xlu0 %v1155
    %v1157 = vpop.xlane.xlu0 %1156
    %v1158 = vsel %vm1037, %v1119, 0.0
    %1159 = vadd.xlane.f32.xlu0 %v1158
    %v1160 = vpop.xlane.xlu0 %1159
    %v1161 = vsel %vm1037, %v1121, 0.0
    %1162 = vadd.xlane.f32.xlu0 %v1161
    %v1163 = vpop.xlane.xlu0 %1162
    %v1164 = vsel %vm1037, %v1123, 0.0
    %1165 = vadd.xlane.f32.xlu0 %v1164
    %v1166 = vpop.xlane.xlu0 %1165
    %v1167 = vsel %vm1037, %v1125, 0.0
    %1168 = vadd.xlane.f32.xlu0 %v1167
    %v1169 = vpop.xlane.xlu0 %1168
    %v1170 = vsel %vm1037, %v1127, 0.0
    %1171 = vadd.xlane.f32.xlu0 %v1170
    %v1172 = vpop.xlane.xlu0 %1171
    %v1173 = vsel %vm1037, %v1129, 0.0
    %1174 = vadd.xlane.f32.xlu0 %v1173
    %v1175 = vpop.xlane.xlu0 %1174
    %v1176 = vsel %vm1037, %v1131, 0.0
    %1177 = vadd.xlane.f32.xlu0 %v1176
    %v1178 = vpop.xlane.xlu0 %1177
    %v1179 = vsel %vm1037, %v1133, 0.0
    %1180 = vadd.xlane.f32.xlu0 %v1179
    %v1181 = vpop.xlane.xlu0 %1180
    %v1182 = vrcp.pop %v1136
    %v1183 = vrcp.pop %v1139
    %v1184 = vrcp.pop %v1142
    %v1185 = vrcp.pop %v1145
    %v1186 = vrcp.pop %v1148
    %v1187 = vrcp.pop %v1151
    %v1188 = vrcp.pop %v1154
    %v1189 = vrcp.pop %v1157
    %v1190 = vrcp.pop %v1160
    %v1191 = vrcp.pop %v1163
    %v1192 = vrcp.pop %v1166
    %v1193 = vrcp.pop %v1169
    %v1194 = vrcp.pop %v1172
    %v1195 = vrcp.pop %v1175
    %v1196 = vrcp.pop %v1178
    %v1197 = vrcp.pop %v1181
    %v1198 = vmul.f32 %v1136, %v1182
    %v1199 = vmul.f32 %v1139, %v1183
    %v1200 = vmul.f32 %v1142, %v1184
    %v1201 = vmul.f32 %v1145, %v1185
    %v1202 = vmul.f32 %v1148, %v1186
    %v1203 = vmul.f32 %v1151, %v1187
    %v1204 = vmul.f32 %v1154, %v1188
    %v1205 = vmul.f32 %v1157, %v1189
    %v1206 = vmul.f32 %v1160, %v1190
    %v1207 = vmul.f32 %v1163, %v1191
    %v1208 = vmul.f32 %v1166, %v1192
    %v1209 = vmul.f32 %v1169, %v1193
    %v1210 = vmul.f32 %v1172, %v1194
    %v1211 = vmul.f32 %v1175, %v1195
    %v1212 = vmul.f32 %v1178, %v1196
    %v1213 = vmul.f32 %v1181, %v1197
    %v1214 = vsub.f32 2.0, %v1198
    %v1215 = vsub.f32 2.0, %v1199
    %v1216 = vsub.f32 2.0, %v1200
    %v1217 = vsub.f32 2.0, %v1201
    %v1218 = vsub.f32 2.0, %v1202
    %v1219 = vsub.f32 2.0, %v1203
    %v1220 = vsub.f32 2.0, %v1204
    %v1221 = vsub.f32 2.0, %v1205
    %v1222 = vsub.f32 2.0, %v1206
    %v1223 = vsub.f32 2.0, %v1207
    %v1224 = vsub.f32 2.0, %v1208
    %v1225 = vsub.f32 2.0, %v1209
    %v1226 = vsub.f32 2.0, %v1210
    %v1227 = vsub.f32 2.0, %v1211
    %v1228 = vsub.f32 2.0, %v1212
    %v1229 = vsub.f32 2.0, %v1213
    %v1230 = vmul.f32 %v1182, %v1214
    %v1231 = vmul.f32 %v1183, %v1215
    %v1232 = vmul.f32 %v1184, %v1216
    %v1233 = vmul.f32 %v1185, %v1217
    %v1234 = vmul.f32 %v1186, %v1218
    %v1235 = vmul.f32 %v1187, %v1219
    %v1236 = vmul.f32 %v1188, %v1220
    %v1237 = vmul.f32 %v1189, %v1221
    %v1238 = vmul.f32 %v1190, %v1222
    %v1239 = vmul.f32 %v1191, %v1223
    %v1240 = vmul.f32 %v1192, %v1224
    %v1241 = vmul.f32 %v1193, %v1225
    %v1242 = vmul.f32 %v1194, %v1226
    %v1243 = vmul.f32 %v1195, %v1227
    %v1244 = vmul.f32 %v1196, %v1228
    %v1245 = vmul.f32 %v1197, %v1229
    %v1246 = vmul.f32 %v1103, %v1230
    %v1247 = vmul.f32 %v1105, %v1231
    %v1248 = vmul.f32 %v1107, %v1232
    %v1249 = vmul.f32 %v1109, %v1233
    %v1250 = vmul.f32 %v1111, %v1234
    %v1251 = vmul.f32 %v1113, %v1235
    %v1252 = vmul.f32 %v1115, %v1236
    %v1253 = vmul.f32 %v1117, %v1237
    %v1254 = vmul.f32 %v1119, %v1238
    %v1255 = vmul.f32 %v1121, %v1239
    %v1256 = vmul.f32 %v1123, %v1240
    %v1257 = vmul.f32 %v1125, %v1241
    %v1258 = vmul.f32 %v1127, %v1242
    %v1259 = vmul.f32 %v1129, %v1243
    %v1260 = vmul.f32 %v1131, %v1244
    %v1261 = vmul.f32 %v1133, %v1245
    %1262 = vrot.lane.b32.xlu0 %v222, 64
    %v1263 = vpop.permute.xlu0 %1262
    %1264 = vrot.lane.b32.xlu0 %v227, 64
    %v1265 = vpop.permute.xlu0 %1264
    %v1269 = vsel %vm1037, %v1246, 0
    %v1272 = vsel %vm1037, %v1247, 0
    %1274 = vmatprep.subr.mxu0 0.0
    %1275 = vmatpush1.msra.mxu0 0.0
    %1276 = vmatprep.subr.mxu0 0.0
    %1277 = vmatpush1.msra.mxu0 0.0
    %1278 = vmatprep.subr.mxu0 0.0
    %1279 = vmatpush1.msra.mxu0 0.0
    %1280 = vmatprep.subr.mxu0 0.0
    %1281 = vmatpush1.msra.mxu0 0.0
    %1282 = vmatprep.subr.mxu0 0.0
    %1283 = vmatpush1.msra.mxu0 0.0
    %1284 = vmatprep.subr.mxu0 0.0
    %1285 = vmatpush1.msra.mxu0 0.0
    %1286 = vmatprep.subr.mxu0 0.0
    %1287 = vmatpush1.msra.mxu0 0.0
    %1288 = vmatprep.subr.mxu0 0.0
    %1289 = vmatpush1.msra.mxu0 0.0
    %1290 = vmatprep.subr.mxu0 0.0
    %1291 = vmatpush1.msra.mxu0 0.0
    %1292 = vmatprep.subr.mxu0 0.0
    %1293 = vmatpush1.msra.mxu0 0.0
    %1294 = vmatprep.subr.mxu0 0.0
    %1295 = vmatpush1.msra.mxu0 0.0
    %1296 = vmatprep.subr.mxu0 0.0
    %1297 = vmatpush1.msra.mxu0 0.0
    %1298 = vmatprep.subr.mxu0 0.0
    %1299 = vmatpush1.msra.mxu0 0.0
    %1300 = vmatprep.subr.mxu0 0.0
    %1301 = vmatpush1.msra.mxu0 0.0
    %1302 = vmatprep.subr.mxu0 0.0
    %1303 = vmatpush1.msra.mxu0 %v1265
    %1304 = vmatprep.subr.mxu0 0.0
    %1305 = vmatpush1.msra.mxu0 %v1263
    %1306 = vmatprep.subr.mxu0 0.0
    %1307 = vmatpush2.msra.mxu0 0.0
    %1308 = vmatprep.subr.mxu0 0.0
    %1309 = vmatpush2.msra.mxu0 0.0
    %1310 = vmatprep.subr.mxu0 0.0
    %1311 = vmatpush2.msra.mxu0 0.0
    %1312 = vmatprep.subr.mxu0 0.0
    %1313 = vmatpush2.msra.mxu0 0.0
    %1314 = vmatprep.subr.mxu0 0.0
    %1315 = vmatpush2.msra.mxu0 0.0
    %1316 = vmatprep.subr.mxu0 0.0
    %1317 = vmatpush2.msra.mxu0 0.0
    %1318 = vmatprep.subr.mxu0 0.0
    %1319 = vmatpush2.msra.mxu0 0.0
    %1320 = vmatprep.subr.mxu0 0.0
    %1321 = vmatpush2.msra.mxu0 0.0
    %1322 = vmatprep.subr.mxu0 0.0
    %1323 = vmatpush2.msra.mxu0 0.0
    %1324 = vmatprep.subr.mxu0 0.0
    %1325 = vmatpush2.msra.mxu0 0.0
    %1326 = vmatprep.subr.mxu0 0.0
    %1327 = vmatpush2.msra.mxu0 0.0
    %1328 = vmatprep.subr.mxu0 0.0
    %1329 = vmatpush2.msra.mxu0 0.0
    %1330 = vmatprep.subr.mxu0 0.0
    %1331 = vmatpush2.msra.mxu0 0.0
    %1332 = vmatprep.subr.mxu0 0.0
    %1333 = vmatpush2.msra.mxu0 0.0
    %1334 = vmatprep.subr.mxu0 0.0
    %1335 = vmatpush2.msra.mxu0 0.0
    %1336 = vmatprep.subr.mxu0 0.0
    %1337 = vmatpush2.msra.mxu0 0.0
    %1338 = vmatprep.mubr.f32.mxu0 0.0
    %1339 = vmatmul.mubr.f32.gmra.mxu0 %v1269
    %v1340 = vpop.f32.mrf.mxu0
    %v1341 = vadd.f32 0.0, %v1340
    %v1342 = vpop.f32.mrf.mxu0
    %1343 = vmatprep.mubr.f32.mxu0 0.0
    %1344 = vmatmul.mubr.f32.gmra.mxu0 %v1272
    %v1345 = vpop.f32.mrf.mxu0
    %v1346 = vadd.f32 0.0, %v1345
    %v1347 = vpop.f32.mrf.mxu0
    %1348 = vdwg.mxu0
    %1349 = vrot.lane.b32.xlu0 %v232, 64
    %v1350 = vpop.permute.xlu0 %1349
    %1351 = vrot.lane.b32.xlu0 %v237, 64
    %v1352 = vpop.permute.xlu0 %1351
    %v1356 = vsel %vm1037, %v1248, 0
    %v1359 = vsel %vm1037, %v1249, 0
    %1361 = vmatprep.subr.mxu0 0.0
    %1362 = vmatpush1.msra.mxu0 0.0
    %1363 = vmatprep.subr.mxu0 0.0
    %1364 = vmatpush1.msra.mxu0 0.0
    %1365 = vmatprep.subr.mxu0 0.0
    %1366 = vmatpush1.msra.mxu0 0.0
    %1367 = vmatprep.subr.mxu0 0.0
    %1368 = vmatpush1.msra.mxu0 0.0
    %1369 = vmatprep.subr.mxu0 0.0
    %1370 = vmatpush1.msra.mxu0 0.0
    %1371 = vmatprep.subr.mxu0 0.0
    %1372 = vmatpush1.msra.mxu0 0.0
    %1373 = vmatprep.subr.mxu0 0.0
    %1374 = vmatpush1.msra.mxu0 0.0
    %1375 = vmatprep.subr.mxu0 0.0
    %1376 = vmatpush1.msra.mxu0 0.0
    %1377 = vmatprep.subr.mxu0 0.0
    %1378 = vmatpush1.msra.mxu0 0.0
    %1379 = vmatprep.subr.mxu0 0.0
    %1380 = vmatpush1.msra.mxu0 0.0
    %1381 = vmatprep.subr.mxu0 0.0
    %1382 = vmatpush1.msra.mxu0 0.0
    %1383 = vmatprep.subr.mxu0 0.0
    %1384 = vmatpush1.msra.mxu0 0.0
    %1385 = vmatprep.subr.mxu0 0.0
    %1386 = vmatpush1.msra.mxu0 0.0
    %1387 = vmatprep.subr.mxu0 0.0
    %1388 = vmatpush1.msra.mxu0 0.0
    %1389 = vmatprep.subr.mxu0 0.0
    %1390 = vmatpush1.msra.mxu0 %v1352
    %1391 = vmatprep.subr.mxu0 0.0
    %1392 = vmatpush1.msra.mxu0 %v1350
    %1393 = vmatprep.subr.mxu0 0.0
    %1394 = vmatpush2.msra.mxu0 0.0
    %1395 = vmatprep.subr.mxu0 0.0
    %1396 = vmatpush2.msra.mxu0 0.0
    %1397 = vmatprep.subr.mxu0 0.0
    %1398 = vmatpush2.msra.mxu0 0.0
    %1399 = vmatprep.subr.mxu0 0.0
    %1400 = vmatpush2.msra.mxu0 0.0
    %1401 = vmatprep.subr.mxu0 0.0
    %1402 = vmatpush2.msra.mxu0 0.0
    %1403 = vmatprep.subr.mxu0 0.0
    %1404 = vmatpush2.msra.mxu0 0.0
    %1405 = vmatprep.subr.mxu0 0.0
    %1406 = vmatpush2.msra.mxu0 0.0
    %1407 = vmatprep.subr.mxu0 0.0
    %1408 = vmatpush2.msra.mxu0 0.0
    %1409 = vmatprep.subr.mxu0 0.0
    %1410 = vmatpush2.msra.mxu0 0.0
    %1411 = vmatprep.subr.mxu0 0.0
    %1412 = vmatpush2.msra.mxu0 0.0
    %1413 = vmatprep.subr.mxu0 0.0
    %1414 = vmatpush2.msra.mxu0 0.0
    %1415 = vmatprep.subr.mxu0 0.0
    %1416 = vmatpush2.msra.mxu0 0.0
    %1417 = vmatprep.subr.mxu0 0.0
    %1418 = vmatpush2.msra.mxu0 0.0
    %1419 = vmatprep.subr.mxu0 0.0
    %1420 = vmatpush2.msra.mxu0 0.0
    %1421 = vmatprep.subr.mxu0 0.0
    %1422 = vmatpush2.msra.mxu0 0.0
    %1423 = vmatprep.subr.mxu0 0.0
    %1424 = vmatpush2.msra.mxu0 0.0
    %1425 = vmatprep.mubr.f32.mxu0 0.0
    %1426 = vmatmul.mubr.f32.gmra.mxu0 %v1356
    %v1427 = vpop.f32.mrf.mxu0
    %v1428 = vadd.f32 0.0, %v1427
    %v1429 = vpop.f32.mrf.mxu0
    %1430 = vmatprep.mubr.f32.mxu0 0.0
    %1431 = vmatmul.mubr.f32.gmra.mxu0 %v1359
    %v1432 = vpop.f32.mrf.mxu0
    %v1433 = vadd.f32 0.0, %v1432
    %v1434 = vpop.f32.mrf.mxu0
    %1435 = vdwg.mxu0
    %1436 = vrot.lane.b32.xlu0 %v242, 64
    %v1437 = vpop.permute.xlu0 %1436
    %1438 = vrot.lane.b32.xlu0 %v247, 64
    %v1439 = vpop.permute.xlu0 %1438
    %v1443 = vsel %vm1037, %v1250, 0
    %v1446 = vsel %vm1037, %v1251, 0
    %1448 = vmatprep.subr.mxu0 0.0
    %1449 = vmatpush1.msra.mxu0 0.0
    %1450 = vmatprep.subr.mxu0 0.0
    %1451 = vmatpush1.msra.mxu0 0.0
    %1452 = vmatprep.subr.mxu0 0.0
    %1453 = vmatpush1.msra.mxu0 0.0
    %1454 = vmatprep.subr.mxu0 0.0
    %1455 = vmatpush1.msra.mxu0 0.0
    %1456 = vmatprep.subr.mxu0 0.0
    %1457 = vmatpush1.msra.mxu0 0.0
    %1458 = vmatprep.subr.mxu0 0.0
    %1459 = vmatpush1.msra.mxu0 0.0
    %1460 = vmatprep.subr.mxu0 0.0
    %1461 = vmatpush1.msra.mxu0 0.0
    %1462 = vmatprep.subr.mxu0 0.0
    %1463 = vmatpush1.msra.mxu0 0.0
    %1464 = vmatprep.subr.mxu0 0.0
    %1465 = vmatpush1.msra.mxu0 0.0
    %1466 = vmatprep.subr.mxu0 0.0
    %1467 = vmatpush1.msra.mxu0 0.0
    %1468 = vmatprep.subr.mxu0 0.0
    %1469 = vmatpush1.msra.mxu0 0.0
    %1470 = vmatprep.subr.mxu0 0.0
    %1471 = vmatpush1.msra.mxu0 0.0
    %1472 = vmatprep.subr.mxu0 0.0
    %1473 = vmatpush1.msra.mxu0 0.0
    %1474 = vmatprep.subr.mxu0 0.0
    %1475 = vmatpush1.msra.mxu0 0.0
    %1476 = vmatprep.subr.mxu0 0.0
    %1477 = vmatpush1.msra.mxu0 %v1439
    %1478 = vmatprep.subr.mxu0 0.0
    %1479 = vmatpush1.msra.mxu0 %v1437
    %1480 = vmatprep.subr.mxu0 0.0
    %1481 = vmatpush2.msra.mxu0 0.0
    %1482 = vmatprep.subr.mxu0 0.0
    %1483 = vmatpush2.msra.mxu0 0.0
    %1484 = vmatprep.subr.mxu0 0.0
    %1485 = vmatpush2.msra.mxu0 0.0
    %1486 = vmatprep.subr.mxu0 0.0
    %1487 = vmatpush2.msra.mxu0 0.0
    %1488 = vmatprep.subr.mxu0 0.0
    %1489 = vmatpush2.msra.mxu0 0.0
    %1490 = vmatprep.subr.mxu0 0.0
    %1491 = vmatpush2.msra.mxu0 0.0
    %1492 = vmatprep.subr.mxu0 0.0
    %1493 = vmatpush2.msra.mxu0 0.0
    %1494 = vmatprep.subr.mxu0 0.0
    %1495 = vmatpush2.msra.mxu0 0.0
    %1496 = vmatprep.subr.mxu0 0.0
    %1497 = vmatpush2.msra.mxu0 0.0
    %1498 = vmatprep.subr.mxu0 0.0
    %1499 = vmatpush2.msra.mxu0 0.0
    %1500 = vmatprep.subr.mxu0 0.0
    %1501 = vmatpush2.msra.mxu0 0.0
    %1502 = vmatprep.subr.mxu0 0.0
    %1503 = vmatpush2.msra.mxu0 0.0
    %1504 = vmatprep.subr.mxu0 0.0
    %1505 = vmatpush2.msra.mxu0 0.0
    %1506 = vmatprep.subr.mxu0 0.0
    %1507 = vmatpush2.msra.mxu0 0.0
    %1508 = vmatprep.subr.mxu0 0.0
    %1509 = vmatpush2.msra.mxu0 0.0
    %1510 = vmatprep.subr.mxu0 0.0
    %1511 = vmatpush2.msra.mxu0 0.0
    %1512 = vmatprep.mubr.f32.mxu0 0.0
    %1513 = vmatmul.mubr.f32.gmra.mxu0 %v1443
    %v1514 = vpop.f32.mrf.mxu0
    %v1515 = vadd.f32 0.0, %v1514
    %v1516 = vpop.f32.mrf.mxu0
    %1517 = vmatprep.mubr.f32.mxu0 0.0
    %1518 = vmatmul.mubr.f32.gmra.mxu0 %v1446
    %v1519 = vpop.f32.mrf.mxu0
    %v1520 = vadd.f32 0.0, %v1519
    %v1521 = vpop.f32.mrf.mxu0
    %1522 = vdwg.mxu0
    %1523 = vrot.lane.b32.xlu0 %v252, 64
    %v1524 = vpop.permute.xlu0 %1523
    %1525 = vrot.lane.b32.xlu0 %v257, 64
    %v1526 = vpop.permute.xlu0 %1525
    %v1530 = vsel %vm1037, %v1252, 0
    %v1533 = vsel %vm1037, %v1253, 0
    %1535 = vmatprep.subr.mxu0 0.0
    %1536 = vmatpush1.msra.mxu0 0.0
    %1537 = vmatprep.subr.mxu0 0.0
    %1538 = vmatpush1.msra.mxu0 0.0
    %1539 = vmatprep.subr.mxu0 0.0
    %1540 = vmatpush1.msra.mxu0 0.0
    %1541 = vmatprep.subr.mxu0 0.0
    %1542 = vmatpush1.msra.mxu0 0.0
    %1543 = vmatprep.subr.mxu0 0.0
    %1544 = vmatpush1.msra.mxu0 0.0
    %1545 = vmatprep.subr.mxu0 0.0
    %1546 = vmatpush1.msra.mxu0 0.0
    %1547 = vmatprep.subr.mxu0 0.0
    %1548 = vmatpush1.msra.mxu0 0.0
    %1549 = vmatprep.subr.mxu0 0.0
    %1550 = vmatpush1.msra.mxu0 0.0
    %1551 = vmatprep.subr.mxu0 0.0
    %1552 = vmatpush1.msra.mxu0 0.0
    %1553 = vmatprep.subr.mxu0 0.0
    %1554 = vmatpush1.msra.mxu0 0.0
    %1555 = vmatprep.subr.mxu0 0.0
    %1556 = vmatpush1.msra.mxu0 0.0
    %1557 = vmatprep.subr.mxu0 0.0
    %1558 = vmatpush1.msra.mxu0 0.0
    %1559 = vmatprep.subr.mxu0 0.0
    %1560 = vmatpush1.msra.mxu0 0.0
    %1561 = vmatprep.subr.mxu0 0.0
    %1562 = vmatpush1.msra.mxu0 0.0
    %1563 = vmatprep.subr.mxu0 0.0
    %1564 = vmatpush1.msra.mxu0 %v1526
    %1565 = vmatprep.subr.mxu0 0.0
    %1566 = vmatpush1.msra.mxu0 %v1524
    %1567 = vmatprep.subr.mxu0 0.0
    %1568 = vmatpush2.msra.mxu0 0.0
    %1569 = vmatprep.subr.mxu0 0.0
    %1570 = vmatpush2.msra.mxu0 0.0
    %1571 = vmatprep.subr.mxu0 0.0
    %1572 = vmatpush2.msra.mxu0 0.0
    %1573 = vmatprep.subr.mxu0 0.0
    %1574 = vmatpush2.msra.mxu0 0.0
    %1575 = vmatprep.subr.mxu0 0.0
    %1576 = vmatpush2.msra.mxu0 0.0
    %1577 = vmatprep.subr.mxu0 0.0
    %1578 = vmatpush2.msra.mxu0 0.0
    %1579 = vmatprep.subr.mxu0 0.0
    %1580 = vmatpush2.msra.mxu0 0.0
    %1581 = vmatprep.subr.mxu0 0.0
    %1582 = vmatpush2.msra.mxu0 0.0
    %1583 = vmatprep.subr.mxu0 0.0
    %1584 = vmatpush2.msra.mxu0 0.0
    %1585 = vmatprep.subr.mxu0 0.0
    %1586 = vmatpush2.msra.mxu0 0.0
    %1587 = vmatprep.subr.mxu0 0.0
    %1588 = vmatpush2.msra.mxu0 0.0
    %1589 = vmatprep.subr.mxu0 0.0
    %1590 = vmatpush2.msra.mxu0 0.0
    %1591 = vmatprep.subr.mxu0 0.0
    %1592 = vmatpush2.msra.mxu0 0.0
    %1593 = vmatprep.subr.mxu0 0.0
    %1594 = vmatpush2.msra.mxu0 0.0
    %1595 = vmatprep.subr.mxu0 0.0
    %1596 = vmatpush2.msra.mxu0 0.0
    %1597 = vmatprep.subr.mxu0 0.0
    %1598 = vmatpush2.msra.mxu0 0.0
    %1599 = vmatprep.mubr.f32.mxu0 0.0
    %1600 = vmatmul.mubr.f32.gmra.mxu0 %v1530
    %v1601 = vpop.f32.mrf.mxu0
    %v1602 = vadd.f32 0.0, %v1601
    %v1603 = vpop.f32.mrf.mxu0
    %1604 = vmatprep.mubr.f32.mxu0 0.0
    %1605 = vmatmul.mubr.f32.gmra.mxu0 %v1533
    %v1606 = vpop.f32.mrf.mxu0
    %v1607 = vadd.f32 0.0, %v1606
    %v1608 = vpop.f32.mrf.mxu0
    %1609 = vdwg.mxu0
    %1610 = vrot.lane.b32.xlu0 %v262, 64
    %v1611 = vpop.permute.xlu0 %1610
    %1612 = vrot.lane.b32.xlu0 %v267, 64
    %v1613 = vpop.permute.xlu0 %1612
    %v1617 = vsel %vm1037, %v1254, 0
    %v1620 = vsel %vm1037, %v1255, 0
    %1622 = vmatprep.subr.mxu0 0.0
    %1623 = vmatpush1.msra.mxu0 0.0
    %1624 = vmatprep.subr.mxu0 0.0
    %1625 = vmatpush1.msra.mxu0 0.0
    %1626 = vmatprep.subr.mxu0 0.0
    %1627 = vmatpush1.msra.mxu0 0.0
    %1628 = vmatprep.subr.mxu0 0.0
    %1629 = vmatpush1.msra.mxu0 0.0
    %1630 = vmatprep.subr.mxu0 0.0
    %1631 = vmatpush1.msra.mxu0 0.0
    %1632 = vmatprep.subr.mxu0 0.0
    %1633 = vmatpush1.msra.mxu0 0.0
    %1634 = vmatprep.subr.mxu0 0.0
    %1635 = vmatpush1.msra.mxu0 0.0
    %1636 = vmatprep.subr.mxu0 0.0
    %1637 = vmatpush1.msra.mxu0 0.0
    %1638 = vmatprep.subr.mxu0 0.0
    %1639 = vmatpush1.msra.mxu0 0.0
    %1640 = vmatprep.subr.mxu0 0.0
    %1641 = vmatpush1.msra.mxu0 0.0
    %1642 = vmatprep.subr.mxu0 0.0
    %1643 = vmatpush1.msra.mxu0 0.0
    %1644 = vmatprep.subr.mxu0 0.0
    %1645 = vmatpush1.msra.mxu0 0.0
    %1646 = vmatprep.subr.mxu0 0.0
    %1647 = vmatpush1.msra.mxu0 0.0
    %1648 = vmatprep.subr.mxu0 0.0
    %1649 = vmatpush1.msra.mxu0 0.0
    %1650 = vmatprep.subr.mxu0 0.0
    %1651 = vmatpush1.msra.mxu0 %v1613
    %1652 = vmatprep.subr.mxu0 0.0
    %1653 = vmatpush1.msra.mxu0 %v1611
    %1654 = vmatprep.subr.mxu0 0.0
    %1655 = vmatpush2.msra.mxu0 0.0
    %1656 = vmatprep.subr.mxu0 0.0
    %1657 = vmatpush2.msra.mxu0 0.0
    %1658 = vmatprep.subr.mxu0 0.0
    %1659 = vmatpush2.msra.mxu0 0.0
    %1660 = vmatprep.subr.mxu0 0.0
    %1661 = vmatpush2.msra.mxu0 0.0
    %1662 = vmatprep.subr.mxu0 0.0
    %1663 = vmatpush2.msra.mxu0 0.0
    %1664 = vmatprep.subr.mxu0 0.0
    %1665 = vmatpush2.msra.mxu0 0.0
    %1666 = vmatprep.subr.mxu0 0.0
    %1667 = vmatpush2.msra.mxu0 0.0
    %1668 = vmatprep.subr.mxu0 0.0
    %1669 = vmatpush2.msra.mxu0 0.0
    %1670 = vmatprep.subr.mxu0 0.0
    %1671 = vmatpush2.msra.mxu0 0.0
    %1672 = vmatprep.subr.mxu0 0.0
    %1673 = vmatpush2.msra.mxu0 0.0
    %1674 = vmatprep.subr.mxu0 0.0
    %1675 = vmatpush2.msra.mxu0 0.0
    %1676 = vmatprep.subr.mxu0 0.0
    %1677 = vmatpush2.msra.mxu0 0.0
    %1678 = vmatprep.subr.mxu0 0.0
    %1679 = vmatpush2.msra.mxu0 0.0
    %1680 = vmatprep.subr.mxu0 0.0
    %1681 = vmatpush2.msra.mxu0 0.0
    %1682 = vmatprep.subr.mxu0 0.0
    %1683 = vmatpush2.msra.mxu0 0.0
    %1684 = vmatprep.subr.mxu0 0.0
    %1685 = vmatpush2.msra.mxu0 0.0
    %1686 = vmatprep.mubr.f32.mxu0 0.0
    %1687 = vmatmul.mubr.f32.gmra.mxu0 %v1617
    %v1688 = vpop.f32.mrf.mxu0
    %v1689 = vadd.f32 0.0, %v1688
    %v1690 = vpop.f32.mrf.mxu0
    %1691 = vmatprep.mubr.f32.mxu0 0.0
    %1692 = vmatmul.mubr.f32.gmra.mxu0 %v1620
    %v1693 = vpop.f32.mrf.mxu0
    %v1694 = vadd.f32 0.0, %v1693
    %v1695 = vpop.f32.mrf.mxu0
    %1696 = vdwg.mxu0
    %1697 = vrot.lane.b32.xlu0 %v272, 64
    %v1698 = vpop.permute.xlu0 %1697
    %1699 = vrot.lane.b32.xlu0 %v277, 64
    %v1700 = vpop.permute.xlu0 %1699
    %v1704 = vsel %vm1037, %v1256, 0
    %v1707 = vsel %vm1037, %v1257, 0
    %1709 = vmatprep.subr.mxu0 0.0
    %1710 = vmatpush1.msra.mxu0 0.0
    %1711 = vmatprep.subr.mxu0 0.0
    %1712 = vmatpush1.msra.mxu0 0.0
    %1713 = vmatprep.subr.mxu0 0.0
    %1714 = vmatpush1.msra.mxu0 0.0
    %1715 = vmatprep.subr.mxu0 0.0
    %1716 = vmatpush1.msra.mxu0 0.0
    %1717 = vmatprep.subr.mxu0 0.0
    %1718 = vmatpush1.msra.mxu0 0.0
    %1719 = vmatprep.subr.mxu0 0.0
    %1720 = vmatpush1.msra.mxu0 0.0
    %1721 = vmatprep.subr.mxu0 0.0
    %1722 = vmatpush1.msra.mxu0 0.0
    %1723 = vmatprep.subr.mxu0 0.0
    %1724 = vmatpush1.msra.mxu0 0.0
    %1725 = vmatprep.subr.mxu0 0.0
    %1726 = vmatpush1.msra.mxu0 0.0
    %1727 = vmatprep.subr.mxu0 0.0
    %1728 = vmatpush1.msra.mxu0 0.0
    %1729 = vmatprep.subr.mxu0 0.0
    %1730 = vmatpush1.msra.mxu0 0.0
    %1731 = vmatprep.subr.mxu0 0.0
    %1732 = vmatpush1.msra.mxu0 0.0
    %1733 = vmatprep.subr.mxu0 0.0
    %1734 = vmatpush1.msra.mxu0 0.0
    %1735 = vmatprep.subr.mxu0 0.0
    %1736 = vmatpush1.msra.mxu0 0.0
    %1737 = vmatprep.subr.mxu0 0.0
    %1738 = vmatpush1.msra.mxu0 %v1700
    %1739 = vmatprep.subr.mxu0 0.0
    %1740 = vmatpush1.msra.mxu0 %v1698
    %1741 = vmatprep.subr.mxu0 0.0
    %1742 = vmatpush2.msra.mxu0 0.0
    %1743 = vmatprep.subr.mxu0 0.0
    %1744 = vmatpush2.msra.mxu0 0.0
    %1745 = vmatprep.subr.mxu0 0.0
    %1746 = vmatpush2.msra.mxu0 0.0
    %1747 = vmatprep.subr.mxu0 0.0
    %1748 = vmatpush2.msra.mxu0 0.0
    %1749 = vmatprep.subr.mxu0 0.0
    %1750 = vmatpush2.msra.mxu0 0.0
    %1751 = vmatprep.subr.mxu0 0.0
    %1752 = vmatpush2.msra.mxu0 0.0
    %1753 = vmatprep.subr.mxu0 0.0
    %1754 = vmatpush2.msra.mxu0 0.0
    %1755 = vmatprep.subr.mxu0 0.0
    %1756 = vmatpush2.msra.mxu0 0.0
    %1757 = vmatprep.subr.mxu0 0.0
    %1758 = vmatpush2.msra.mxu0 0.0
    %1759 = vmatprep.subr.mxu0 0.0
    %1760 = vmatpush2.msra.mxu0 0.0
    %1761 = vmatprep.subr.mxu0 0.0
    %1762 = vmatpush2.msra.mxu0 0.0
    %1763 = vmatprep.subr.mxu0 0.0
    %1764 = vmatpush2.msra.mxu0 0.0
    %1765 = vmatprep.subr.mxu0 0.0
    %1766 = vmatpush2.msra.mxu0 0.0
    %1767 = vmatprep.subr.mxu0 0.0
    %1768 = vmatpush2.msra.mxu0 0.0
    %1769 = vmatprep.subr.mxu0 0.0
    %1770 = vmatpush2.msra.mxu0 0.0
    %1771 = vmatprep.subr.mxu0 0.0
    %1772 = vmatpush2.msra.mxu0 0.0
    %1773 = vmatprep.mubr.f32.mxu0 0.0
    %1774 = vmatmul.mubr.f32.gmra.mxu0 %v1704
    %v1775 = vpop.f32.mrf.mxu0
    %v1776 = vadd.f32 0.0, %v1775
    %v1777 = vpop.f32.mrf.mxu0
    %1778 = vmatprep.mubr.f32.mxu0 0.0
    %1779 = vmatmul.mubr.f32.gmra.mxu0 %v1707
    %v1780 = vpop.f32.mrf.mxu0
    %v1781 = vadd.f32 0.0, %v1780
    %v1782 = vpop.f32.mrf.mxu0
    %1783 = vdwg.mxu0
    %1784 = vrot.lane.b32.xlu0 %v282, 64
    %v1785 = vpop.permute.xlu0 %1784
    %1786 = vrot.lane.b32.xlu0 %v287, 64
    %v1787 = vpop.permute.xlu0 %1786
    %v1791 = vsel %vm1037, %v1258, 0
    %v1794 = vsel %vm1037, %v1259, 0
    %1796 = vmatprep.subr.mxu0 0.0
    %1797 = vmatpush1.msra.mxu0 0.0
    %1798 = vmatprep.subr.mxu0 0.0
    %1799 = vmatpush1.msra.mxu0 0.0
    %1800 = vmatprep.subr.mxu0 0.0
    %1801 = vmatpush1.msra.mxu0 0.0
    %1802 = vmatprep.subr.mxu0 0.0
    %1803 = vmatpush1.msra.mxu0 0.0
    %1804 = vmatprep.subr.mxu0 0.0
    %1805 = vmatpush1.msra.mxu0 0.0
    %1806 = vmatprep.subr.mxu0 0.0
    %1807 = vmatpush1.msra.mxu0 0.0
    %1808 = vmatprep.subr.mxu0 0.0
    %1809 = vmatpush1.msra.mxu0 0.0
    %1810 = vmatprep.subr.mxu0 0.0
    %1811 = vmatpush1.msra.mxu0 0.0
    %1812 = vmatprep.subr.mxu0 0.0
    %1813 = vmatpush1.msra.mxu0 0.0
    %1814 = vmatprep.subr.mxu0 0.0
    %1815 = vmatpush1.msra.mxu0 0.0
    %1816 = vmatprep.subr.mxu0 0.0
    %1817 = vmatpush1.msra.mxu0 0.0
    %1818 = vmatprep.subr.mxu0 0.0
    %1819 = vmatpush1.msra.mxu0 0.0
    %1820 = vmatprep.subr.mxu0 0.0
    %1821 = vmatpush1.msra.mxu0 0.0
    %1822 = vmatprep.subr.mxu0 0.0
    %1823 = vmatpush1.msra.mxu0 0.0
    %1824 = vmatprep.subr.mxu0 0.0
    %1825 = vmatpush1.msra.mxu0 %v1787
    %1826 = vmatprep.subr.mxu0 0.0
    %1827 = vmatpush1.msra.mxu0 %v1785
    %1828 = vmatprep.subr.mxu0 0.0
    %1829 = vmatpush2.msra.mxu0 0.0
    %1830 = vmatprep.subr.mxu0 0.0
    %1831 = vmatpush2.msra.mxu0 0.0
    %1832 = vmatprep.subr.mxu0 0.0
    %1833 = vmatpush2.msra.mxu0 0.0
    %1834 = vmatprep.subr.mxu0 0.0
    %1835 = vmatpush2.msra.mxu0 0.0
    %1836 = vmatprep.subr.mxu0 0.0
    %1837 = vmatpush2.msra.mxu0 0.0
    %1838 = vmatprep.subr.mxu0 0.0
    %1839 = vmatpush2.msra.mxu0 0.0
    %1840 = vmatprep.subr.mxu0 0.0
    %1841 = vmatpush2.msra.mxu0 0.0
    %1842 = vmatprep.subr.mxu0 0.0
    %1843 = vmatpush2.msra.mxu0 0.0
    %1844 = vmatprep.subr.mxu0 0.0
    %1845 = vmatpush2.msra.mxu0 0.0
    %1846 = vmatprep.subr.mxu0 0.0
    %1847 = vmatpush2.msra.mxu0 0.0
    %1848 = vmatprep.subr.mxu0 0.0
    %1849 = vmatpush2.msra.mxu0 0.0
    %1850 = vmatprep.subr.mxu0 0.0
    %1851 = vmatpush2.msra.mxu0 0.0
    %1852 = vmatprep.subr.mxu0 0.0
    %1853 = vmatpush2.msra.mxu0 0.0
    %1854 = vmatprep.subr.mxu0 0.0
    %1855 = vmatpush2.msra.mxu0 0.0
    %1856 = vmatprep.subr.mxu0 0.0
    %1857 = vmatpush2.msra.mxu0 0.0
    %1858 = vmatprep.subr.mxu0 0.0
    %1859 = vmatpush2.msra.mxu0 0.0
    %1860 = vmatprep.mubr.f32.mxu0 0.0
    %1861 = vmatmul.mubr.f32.gmra.mxu0 %v1791
    %v1862 = vpop.f32.mrf.mxu0
    %v1863 = vadd.f32 0.0, %v1862
    %v1864 = vpop.f32.mrf.mxu0
    %1865 = vmatprep.mubr.f32.mxu0 0.0
    %1866 = vmatmul.mubr.f32.gmra.mxu0 %v1794
    %v1867 = vpop.f32.mrf.mxu0
    %v1868 = vadd.f32 0.0, %v1867
    %v1869 = vpop.f32.mrf.mxu0
    %1870 = vdwg.mxu0
    %1871 = vrot.lane.b32.xlu0 %v292, 64
    %v1872 = vpop.permute.xlu0 %1871
    %1873 = vrot.lane.b32.xlu0 %v297, 64
    %v1874 = vpop.permute.xlu0 %1873
    %v1878 = vsel %vm1037, %v1260, 0
    %v1881 = vsel %vm1037, %v1261, 0
    %1883 = vmatprep.subr.mxu0 0.0
    %1884 = vmatpush1.msra.mxu0 0.0
    %1885 = vmatprep.subr.mxu0 0.0
    %1886 = vmatpush1.msra.mxu0 0.0
    %1887 = vmatprep.subr.mxu0 0.0
    %1888 = vmatpush1.msra.mxu0 0.0
    %1889 = vmatprep.subr.mxu0 0.0
    %1890 = vmatpush1.msra.mxu0 0.0
    %1891 = vmatprep.subr.mxu0 0.0
    %1892 = vmatpush1.msra.mxu0 0.0
    %1893 = vmatprep.subr.mxu0 0.0
    %1894 = vmatpush1.msra.mxu0 0.0
    %1895 = vmatprep.subr.mxu0 0.0
    %1896 = vmatpush1.msra.mxu0 0.0
    %1897 = vmatprep.subr.mxu0 0.0
    %1898 = vmatpush1.msra.mxu0 0.0
    %1899 = vmatprep.subr.mxu0 0.0
    %1900 = vmatpush1.msra.mxu0 0.0
    %1901 = vmatprep.subr.mxu0 0.0
    %1902 = vmatpush1.msra.mxu0 0.0
    %1903 = vmatprep.subr.mxu0 0.0
    %1904 = vmatpush1.msra.mxu0 0.0
    %1905 = vmatprep.subr.mxu0 0.0
    %1906 = vmatpush1.msra.mxu0 0.0
    %1907 = vmatprep.subr.mxu0 0.0
    %1908 = vmatpush1.msra.mxu0 0.0
    %1909 = vmatprep.subr.mxu0 0.0
    %1910 = vmatpush1.msra.mxu0 0.0
    %1911 = vmatprep.subr.mxu0 0.0
    %1912 = vmatpush1.msra.mxu0 %v1874
    %1913 = vmatprep.subr.mxu0 0.0
    %1914 = vmatpush1.msra.mxu0 %v1872
    %1915 = vmatprep.subr.mxu0 0.0
    %1916 = vmatpush2.msra.mxu0 0.0
    %1917 = vmatprep.subr.mxu0 0.0
    %1918 = vmatpush2.msra.mxu0 0.0
    %1919 = vmatprep.subr.mxu0 0.0
    %1920 = vmatpush2.msra.mxu0 0.0
    %1921 = vmatprep.subr.mxu0 0.0
    %1922 = vmatpush2.msra.mxu0 0.0
    %1923 = vmatprep.subr.mxu0 0.0
    %1924 = vmatpush2.msra.mxu0 0.0
    %1925 = vmatprep.subr.mxu0 0.0
    %1926 = vmatpush2.msra.mxu0 0.0
    %1927 = vmatprep.subr.mxu0 0.0
    %1928 = vmatpush2.msra.mxu0 0.0
    %1929 = vmatprep.subr.mxu0 0.0
    %1930 = vmatpush2.msra.mxu0 0.0
    %1931 = vmatprep.subr.mxu0 0.0
    %1932 = vmatpush2.msra.mxu0 0.0
    %1933 = vmatprep.subr.mxu0 0.0
    %1934 = vmatpush2.msra.mxu0 0.0
    %1935 = vmatprep.subr.mxu0 0.0
    %1936 = vmatpush2.msra.mxu0 0.0
    %1937 = vmatprep.subr.mxu0 0.0
    %1938 = vmatpush2.msra.mxu0 0.0
    %1939 = vmatprep.subr.mxu0 0.0
    %1940 = vmatpush2.msra.mxu0 0.0
    %1941 = vmatprep.subr.mxu0 0.0
    %1942 = vmatpush2.msra.mxu0 0.0
    %1943 = vmatprep.subr.mxu0 0.0
    %1944 = vmatpush2.msra.mxu0 0.0
    %1945 = vmatprep.subr.mxu0 0.0
    %1946 = vmatpush2.msra.mxu0 0.0
    %1947 = vmatprep.mubr.f32.mxu0 0.0
    %1948 = vmatmul.mubr.f32.gmra.mxu0 %v1878
    %v1949 = vpop.f32.mrf.mxu0
    %v1950 = vadd.f32 0.0, %v1949
    %v1951 = vpop.f32.mrf.mxu0
    %1952 = vmatprep.mubr.f32.mxu0 0.0
    %1953 = vmatmul.mubr.f32.gmra.mxu0 %v1881
    %v1954 = vpop.f32.mrf.mxu0
    %v1955 = vadd.f32 0.0, %v1954
    %v1956 = vpop.f32.mrf.mxu0
    %1957 = vdwg.mxu0
    %v1958 = vld [vmem:[#allocation7] sm:$0xff]
    %1959 = vrot.lane.b32.xlu0 %v222, 120
    %v1960 = vpop.permute.xlu0 %1959
    %1961 = vrot.lane.b32.xlu0 %v227, 120
    %v1962 = vpop.permute.xlu0 %1961
    %1963 = vrot.lane.b32.xlu0 %v222, 88
    %v1964 = vpop.permute.xlu0 %1963
    %1965 = vrot.lane.b32.xlu0 %v227, 88
    %v1966 = vpop.permute.xlu0 %1965
    %v1967 = vsel %vm306, %v1960, 0
    %v1969 = vsel %vm306, %v1962, 0
    %v1971 = vsel %vm306, %v1964, 0
    %v1973 = vsel %vm306, %v1966, 0
    %1975 = vmatprep.subr.mxu0 0.0
    %1976 = vmatpush1.xpose.msra.mxu0 0.0
    %1977 = vmatprep.subr.mxu0 0.0
    %1978 = vmatpush1.xpose.msra.mxu0 0.0
    %1979 = vmatprep.subr.mxu0 0.0
    %1980 = vmatpush1.xpose.msra.mxu0 0.0
    %1981 = vmatprep.subr.mxu0 0.0
    %1982 = vmatpush1.xpose.msra.mxu0 0.0
    %1983 = vmatprep.subr.mxu0 0.0
    %1984 = vmatpush1.xpose.msra.mxu0 0.0
    %1985 = vmatprep.subr.mxu0 0.0
    %1986 = vmatpush1.xpose.msra.mxu0 0.0
    %1987 = vmatprep.subr.mxu0 0.0
    %1988 = vmatpush1.xpose.msra.mxu0 0.0
    %1989 = vmatprep.subr.mxu0 0.0
    %1990 = vmatpush1.xpose.msra.mxu0 0.0
    %1991 = vmatprep.subr.mxu0 0.0
    %1992 = vmatpush1.xpose.msra.mxu0 0.0
    %1993 = vmatprep.subr.mxu0 0.0
    %1994 = vmatpush1.xpose.msra.mxu0 0.0
    %1995 = vmatprep.subr.mxu0 0.0
    %1996 = vmatpush1.xpose.msra.mxu0 0.0
    %1997 = vmatprep.subr.mxu0 0.0
    %1998 = vmatpush1.xpose.msra.mxu0 0.0
    %1999 = vmatprep.subr.mxu0 0.0
    %2000 = vmatpush1.xpose.msra.mxu0 0.0
    %2001 = vmatprep.subr.mxu0 0.0
    %2002 = vmatpush1.xpose.msra.mxu0 0.0
    %2003 = vmatprep.subr.mxu0 0.0
    %2004 = vmatpush1.xpose.msra.mxu0 %v1973
    %2005 = vmatprep.subr.mxu0 0.0
    %2006 = vmatpush1.xpose.msra.mxu0 %v1971
    %2007 = vmatprep.subr.mxu0 0.0
    %2008 = vmatpush2.xpose.msra.mxu0 0.0
    %2009 = vmatprep.subr.mxu0 0.0
    %2010 = vmatpush2.xpose.msra.mxu0 0.0
    %2011 = vmatprep.subr.mxu0 0.0
    %2012 = vmatpush2.xpose.msra.mxu0 0.0
    %2013 = vmatprep.subr.mxu0 0.0
    %2014 = vmatpush2.xpose.msra.mxu0 0.0
    %2015 = vmatprep.subr.mxu0 0.0
    %2016 = vmatpush2.xpose.msra.mxu0 0.0
    %2017 = vmatprep.subr.mxu0 0.0
    %2018 = vmatpush2.xpose.msra.mxu0 0.0
    %2019 = vmatprep.subr.mxu0 0.0
    %2020 = vmatpush2.xpose.msra.mxu0 0.0
    %2021 = vmatprep.subr.mxu0 0.0
    %2022 = vmatpush2.xpose.msra.mxu0 0.0
    %2023 = vmatprep.subr.mxu0 0.0
    %2024 = vmatpush2.xpose.msra.mxu0 0.0
    %2025 = vmatprep.subr.mxu0 0.0
    %2026 = vmatpush2.xpose.msra.mxu0 0.0
    %2027 = vmatprep.subr.mxu0 0.0
    %2028 = vmatpush2.xpose.msra.mxu0 0.0
    %2029 = vmatprep.subr.mxu0 0.0
    %2030 = vmatpush2.xpose.msra.mxu0 0.0
    %2031 = vmatprep.subr.mxu0 0.0
    %2032 = vmatpush2.xpose.msra.mxu0 0.0
    %2033 = vmatprep.subr.mxu0 0.0
    %2034 = vmatpush2.xpose.msra.mxu0 0.0
    %2035 = vmatprep.subr.mxu0 0.0
    %2036 = vmatpush2.xpose.msra.mxu0 0.0
    %2037 = vmatprep.subr.mxu0 0.0
    %2038 = vmatpush2.xpose.msra.mxu0 0.0
    %2039 = vmatprep.mubr.f32.mxu0 0.0
    %2040 = vmatmul.mubr.f32.gmra.mxu0 %v1967
    %v2041 = vpop.f32.mrf.mxu0
    %v2042 = vadd.f32 0.0, %v2041
    %v2043 = vpop.f32.mrf.mxu0
    %2044 = vmatprep.mubr.f32.mxu0 0.0
    %2045 = vmatmul.mubr.f32.gmra.mxu0 %v1969
    %v2046 = vpop.f32.mrf.mxu0
    %v2047 = vadd.f32 0.0, %v2046
    %v2048 = vpop.f32.mrf.mxu0
    %2049 = vdwg.mxu0
    %2050 = vrot.lane.b32.xlu0 %v232, 120
    %v2051 = vpop.permute.xlu0 %2050
    %2052 = vrot.lane.b32.xlu0 %v237, 120
    %v2053 = vpop.permute.xlu0 %2052
    %2054 = vrot.lane.b32.xlu0 %v232, 88
    %v2055 = vpop.permute.xlu0 %2054
    %2056 = vrot.lane.b32.xlu0 %v237, 88
    %v2057 = vpop.permute.xlu0 %2056
    %v2058 = vsel %vm306, %v2051, 0
    %v2060 = vsel %vm306, %v2053, 0
    %v2062 = vsel %vm306, %v2055, 0
    %v2064 = vsel %vm306, %v2057, 0
    %2066 = vmatprep.subr.mxu0 0.0
    %2067 = vmatpush1.xpose.msra.mxu0 0.0
    %2068 = vmatprep.subr.mxu0 0.0
    %2069 = vmatpush1.xpose.msra.mxu0 0.0
    %2070 = vmatprep.subr.mxu0 0.0
    %2071 = vmatpush1.xpose.msra.mxu0 0.0
    %2072 = vmatprep.subr.mxu0 0.0
    %2073 = vmatpush1.xpose.msra.mxu0 0.0
    %2074 = vmatprep.subr.mxu0 0.0
    %2075 = vmatpush1.xpose.msra.mxu0 0.0
    %2076 = vmatprep.subr.mxu0 0.0
    %2077 = vmatpush1.xpose.msra.mxu0 0.0
    %2078 = vmatprep.subr.mxu0 0.0
    %2079 = vmatpush1.xpose.msra.mxu0 0.0
    %2080 = vmatprep.subr.mxu0 0.0
    %2081 = vmatpush1.xpose.msra.mxu0 0.0
    %2082 = vmatprep.subr.mxu0 0.0
    %2083 = vmatpush1.xpose.msra.mxu0 0.0
    %2084 = vmatprep.subr.mxu0 0.0
    %2085 = vmatpush1.xpose.msra.mxu0 0.0
    %2086 = vmatprep.subr.mxu0 0.0
    %2087 = vmatpush1.xpose.msra.mxu0 0.0
    %2088 = vmatprep.subr.mxu0 0.0
    %2089 = vmatpush1.xpose.msra.mxu0 0.0
    %2090 = vmatprep.subr.mxu0 0.0
    %2091 = vmatpush1.xpose.msra.mxu0 0.0
    %2092 = vmatprep.subr.mxu0 0.0
    %2093 = vmatpush1.xpose.msra.mxu0 0.0
    %2094 = vmatprep.subr.mxu0 0.0
    %2095 = vmatpush1.xpose.msra.mxu0 %v2064
    %2096 = vmatprep.subr.mxu0 0.0
    %2097 = vmatpush1.xpose.msra.mxu0 %v2062
    %2098 = vmatprep.subr.mxu0 0.0
    %2099 = vmatpush2.xpose.msra.mxu0 0.0
    %2100 = vmatprep.subr.mxu0 0.0
    %2101 = vmatpush2.xpose.msra.mxu0 0.0
    %2102 = vmatprep.subr.mxu0 0.0
    %2103 = vmatpush2.xpose.msra.mxu0 0.0
    %2104 = vmatprep.subr.mxu0 0.0
    %2105 = vmatpush2.xpose.msra.mxu0 0.0
    %2106 = vmatprep.subr.mxu0 0.0
    %2107 = vmatpush2.xpose.msra.mxu0 0.0
    %2108 = vmatprep.subr.mxu0 0.0
    %2109 = vmatpush2.xpose.msra.mxu0 0.0
    %2110 = vmatprep.subr.mxu0 0.0
    %2111 = vmatpush2.xpose.msra.mxu0 0.0
    %2112 = vmatprep.subr.mxu0 0.0
    %2113 = vmatpush2.xpose.msra.mxu0 0.0
    %2114 = vmatprep.subr.mxu0 0.0
    %2115 = vmatpush2.xpose.msra.mxu0 0.0
    %2116 = vmatprep.subr.mxu0 0.0
    %2117 = vmatpush2.xpose.msra.mxu0 0.0
    %2118 = vmatprep.subr.mxu0 0.0
    %2119 = vmatpush2.xpose.msra.mxu0 0.0
    %2120 = vmatprep.subr.mxu0 0.0
    %2121 = vmatpush2.xpose.msra.mxu0 0.0
    %2122 = vmatprep.subr.mxu0 0.0
    %2123 = vmatpush2.xpose.msra.mxu0 0.0
    %2124 = vmatprep.subr.mxu0 0.0
    %2125 = vmatpush2.xpose.msra.mxu0 0.0
    %2126 = vmatprep.subr.mxu0 0.0
    %2127 = vmatpush2.xpose.msra.mxu0 0.0
    %2128 = vmatprep.subr.mxu0 0.0
    %2129 = vmatpush2.xpose.msra.mxu0 0.0
    %2130 = vmatprep.mubr.f32.mxu0 0.0
    %2131 = vmatmul.mubr.f32.gmra.mxu0 %v2058
    %v2132 = vpop.f32.mrf.mxu0
    %v2133 = vadd.f32 0.0, %v2132
    %v2134 = vpop.f32.mrf.mxu0
    %2135 = vmatprep.mubr.f32.mxu0 0.0
    %2136 = vmatmul.mubr.f32.gmra.mxu0 %v2060
    %v2137 = vpop.f32.mrf.mxu0
    %v2138 = vadd.f32 0.0, %v2137
    %v2139 = vpop.f32.mrf.mxu0
    %2140 = vdwg.mxu0
    %2141 = vrot.lane.b32.xlu0 %v242, 120
    %v2142 = vpop.permute.xlu0 %2141
    %2143 = vrot.lane.b32.xlu0 %v247, 120
    %v2144 = vpop.permute.xlu0 %2143
    %2145 = vrot.lane.b32.xlu0 %v242, 88
    %v2146 = vpop.permute.xlu0 %2145
    %2147 = vrot.lane.b32.xlu0 %v247, 88
    %v2148 = vpop.permute.xlu0 %2147
    %v2149 = vsel %vm306, %v2142, 0
    %v2151 = vsel %vm306, %v2144, 0
    %v2153 = vsel %vm306, %v2146, 0
    %v2155 = vsel %vm306, %v2148, 0
    %2157 = vmatprep.subr.mxu0 0.0
    %2158 = vmatpush1.xpose.msra.mxu0 0.0
    %2159 = vmatprep.subr.mxu0 0.0
    %2160 = vmatpush1.xpose.msra.mxu0 0.0
    %2161 = vmatprep.subr.mxu0 0.0
    %2162 = vmatpush1.xpose.msra.mxu0 0.0
    %2163 = vmatprep.subr.mxu0 0.0
    %2164 = vmatpush1.xpose.msra.mxu0 0.0
    %2165 = vmatprep.subr.mxu0 0.0
    %2166 = vmatpush1.xpose.msra.mxu0 0.0
    %2167 = vmatprep.subr.mxu0 0.0
    %2168 = vmatpush1.xpose.msra.mxu0 0.0
    %2169 = vmatprep.subr.mxu0 0.0
    %2170 = vmatpush1.xpose.msra.mxu0 0.0
    %2171 = vmatprep.subr.mxu0 0.0
    %2172 = vmatpush1.xpose.msra.mxu0 0.0
    %2173 = vmatprep.subr.mxu0 0.0
    %2174 = vmatpush1.xpose.msra.mxu0 0.0
    %2175 = vmatprep.subr.mxu0 0.0
    %2176 = vmatpush1.xpose.msra.mxu0 0.0
    %2177 = vmatprep.subr.mxu0 0.0
    %2178 = vmatpush1.xpose.msra.mxu0 0.0
    %2179 = vmatprep.subr.mxu0 0.0
    %2180 = vmatpush1.xpose.msra.mxu0 0.0
    %2181 = vmatprep.subr.mxu0 0.0
    %2182 = vmatpush1.xpose.msra.mxu0 0.0
    %2183 = vmatprep.subr.mxu0 0.0
    %2184 = vmatpush1.xpose.msra.mxu0 0.0
    %2185 = vmatprep.subr.mxu0 0.0
    %2186 = vmatpush1.xpose.msra.mxu0 %v2155
    %2187 = vmatprep.subr.mxu0 0.0
    %2188 = vmatpush1.xpose.msra.mxu0 %v2153
    %2189 = vmatprep.subr.mxu0 0.0
    %2190 = vmatpush2.xpose.msra.mxu0 0.0
    %2191 = vmatprep.subr.mxu0 0.0
    %2192 = vmatpush2.xpose.msra.mxu0 0.0
    %2193 = vmatprep.subr.mxu0 0.0
    %2194 = vmatpush2.xpose.msra.mxu0 0.0
    %2195 = vmatprep.subr.mxu0 0.0
    %2196 = vmatpush2.xpose.msra.mxu0 0.0
    %2197 = vmatprep.subr.mxu0 0.0
    %2198 = vmatpush2.xpose.msra.mxu0 0.0
    %2199 = vmatprep.subr.mxu0 0.0
    %2200 = vmatpush2.xpose.msra.mxu0 0.0
    %2201 = vmatprep.subr.mxu0 0.0
    %2202 = vmatpush2.xpose.msra.mxu0 0.0
    %2203 = vmatprep.subr.mxu0 0.0
    %2204 = vmatpush2.xpose.msra.mxu0 0.0
    %2205 = vmatprep.subr.mxu0 0.0
    %2206 = vmatpush2.xpose.msra.mxu0 0.0
    %2207 = vmatprep.subr.mxu0 0.0
    %2208 = vmatpush2.xpose.msra.mxu0 0.0
    %2209 = vmatprep.subr.mxu0 0.0
    %2210 = vmatpush2.xpose.msra.mxu0 0.0
    %2211 = vmatprep.subr.mxu0 0.0
    %2212 = vmatpush2.xpose.msra.mxu0 0.0
    %2213 = vmatprep.subr.mxu0 0.0
    %2214 = vmatpush2.xpose.msra.mxu0 0.0
    %2215 = vmatprep.subr.mxu0 0.0
    %2216 = vmatpush2.xpose.msra.mxu0 0.0
    %2217 = vmatprep.subr.mxu0 0.0
    %2218 = vmatpush2.xpose.msra.mxu0 0.0
    %2219 = vmatprep.subr.mxu0 0.0
    %2220 = vmatpush2.xpose.msra.mxu0 0.0
    %2221 = vmatprep.mubr.f32.mxu0 0.0
    %2222 = vmatmul.mubr.f32.gmra.mxu0 %v2149
    %v2223 = vpop.f32.mrf.mxu0
    %v2224 = vadd.f32 0.0, %v2223
    %v2225 = vpop.f32.mrf.mxu0
    %2226 = vmatprep.mubr.f32.mxu0 0.0
    %2227 = vmatmul.mubr.f32.gmra.mxu0 %v2151
    %v2228 = vpop.f32.mrf.mxu0
    %v2229 = vadd.f32 0.0, %v2228
    %v2230 = vpop.f32.mrf.mxu0
    %2231 = vdwg.mxu0
    %2232 = vrot.lane.b32.xlu0 %v252, 120
    %v2233 = vpop.permute.xlu0 %2232
    %2234 = vrot.lane.b32.xlu0 %v257, 120
    %v2235 = vpop.permute.xlu0 %2234
    %2236 = vrot.lane.b32.xlu0 %v252, 88
    %v2237 = vpop.permute.xlu0 %2236
    %2238 = vrot.lane.b32.xlu0 %v257, 88
    %v2239 = vpop.permute.xlu0 %2238
    %v2240 = vsel %vm306, %v2233, 0
    %v2242 = vsel %vm306, %v2235, 0
    %v2244 = vsel %vm306, %v2237, 0
    %v2246 = vsel %vm306, %v2239, 0
    %2248 = vmatprep.subr.mxu0 0.0
    %2249 = vmatpush1.xpose.msra.mxu0 0.0
    %2250 = vmatprep.subr.mxu0 0.0
    %2251 = vmatpush1.xpose.msra.mxu0 0.0
    %2252 = vmatprep.subr.mxu0 0.0
    %2253 = vmatpush1.xpose.msra.mxu0 0.0
    %2254 = vmatprep.subr.mxu0 0.0
    %2255 = vmatpush1.xpose.msra.mxu0 0.0
    %2256 = vmatprep.subr.mxu0 0.0
    %2257 = vmatpush1.xpose.msra.mxu0 0.0
    %2258 = vmatprep.subr.mxu0 0.0
    %2259 = vmatpush1.xpose.msra.mxu0 0.0
    %2260 = vmatprep.subr.mxu0 0.0
    %2261 = vmatpush1.xpose.msra.mxu0 0.0
    %2262 = vmatprep.subr.mxu0 0.0
    %2263 = vmatpush1.xpose.msra.mxu0 0.0
    %2264 = vmatprep.subr.mxu0 0.0
    %2265 = vmatpush1.xpose.msra.mxu0 0.0
    %2266 = vmatprep.subr.mxu0 0.0
    %2267 = vmatpush1.xpose.msra.mxu0 0.0
    %2268 = vmatprep.subr.mxu0 0.0
    %2269 = vmatpush1.xpose.msra.mxu0 0.0
    %2270 = vmatprep.subr.mxu0 0.0
    %2271 = vmatpush1.xpose.msra.mxu0 0.0
    %2272 = vmatprep.subr.mxu0 0.0
    %2273 = vmatpush1.xpose.msra.mxu0 0.0
    %2274 = vmatprep.subr.mxu0 0.0
    %2275 = vmatpush1.xpose.msra.mxu0 0.0
    %2276 = vmatprep.subr.mxu0 0.0
    %2277 = vmatpush1.xpose.msra.mxu0 %v2246
    %2278 = vmatprep.subr.mxu0 0.0
    %2279 = vmatpush1.xpose.msra.mxu0 %v2244
    %2280 = vmatprep.subr.mxu0 0.0
    %2281 = vmatpush2.xpose.msra.mxu0 0.0
    %2282 = vmatprep.subr.mxu0 0.0
    %2283 = vmatpush2.xpose.msra.mxu0 0.0
    %2284 = vmatprep.subr.mxu0 0.0
    %2285 = vmatpush2.xpose.msra.mxu0 0.0
    %2286 = vmatprep.subr.mxu0 0.0
    %2287 = vmatpush2.xpose.msra.mxu0 0.0
    %2288 = vmatprep.subr.mxu0 0.0
    %2289 = vmatpush2.xpose.msra.mxu0 0.0
    %2290 = vmatprep.subr.mxu0 0.0
    %2291 = vmatpush2.xpose.msra.mxu0 0.0
    %2292 = vmatprep.subr.mxu0 0.0
    %2293 = vmatpush2.xpose.msra.mxu0 0.0
    %2294 = vmatprep.subr.mxu0 0.0
    %2295 = vmatpush2.xpose.msra.mxu0 0.0
    %2296 = vmatprep.subr.mxu0 0.0
    %2297 = vmatpush2.xpose.msra.mxu0 0.0
    %2298 = vmatprep.subr.mxu0 0.0
    %2299 = vmatpush2.xpose.msra.mxu0 0.0
    %2300 = vmatprep.subr.mxu0 0.0
    %2301 = vmatpush2.xpose.msra.mxu0 0.0
    %2302 = vmatprep.subr.mxu0 0.0
    %2303 = vmatpush2.xpose.msra.mxu0 0.0
    %2304 = vmatprep.subr.mxu0 0.0
    %2305 = vmatpush2.xpose.msra.mxu0 0.0
    %2306 = vmatprep.subr.mxu0 0.0
    %2307 = vmatpush2.xpose.msra.mxu0 0.0
    %2308 = vmatprep.subr.mxu0 0.0
    %2309 = vmatpush2.xpose.msra.mxu0 0.0
    %2310 = vmatprep.subr.mxu0 0.0
    %2311 = vmatpush2.xpose.msra.mxu0 0.0
    %2312 = vmatprep.mubr.f32.mxu0 0.0
    %2313 = vmatmul.mubr.f32.gmra.mxu0 %v2240
    %v2314 = vpop.f32.mrf.mxu0
    %v2315 = vadd.f32 0.0, %v2314
    %v2316 = vpop.f32.mrf.mxu0
    %2317 = vmatprep.mubr.f32.mxu0 0.0
    %2318 = vmatmul.mubr.f32.gmra.mxu0 %v2242
    %v2319 = vpop.f32.mrf.mxu0
    %v2320 = vadd.f32 0.0, %v2319
    %v2321 = vpop.f32.mrf.mxu0
    %2322 = vdwg.mxu0
    %2323 = vrot.lane.b32.xlu0 %v262, 120
    %v2324 = vpop.permute.xlu0 %2323
    %2325 = vrot.lane.b32.xlu0 %v267, 120
    %v2326 = vpop.permute.xlu0 %2325
    %2327 = vrot.lane.b32.xlu0 %v262, 88
    %v2328 = vpop.permute.xlu0 %2327
    %2329 = vrot.lane.b32.xlu0 %v267, 88
    %v2330 = vpop.permute.xlu0 %2329
    %v2331 = vsel %vm306, %v2324, 0
    %v2333 = vsel %vm306, %v2326, 0
    %v2335 = vsel %vm306, %v2328, 0
    %v2337 = vsel %vm306, %v2330, 0
    %2339 = vmatprep.subr.mxu0 0.0
    %2340 = vmatpush1.xpose.msra.mxu0 0.0
    %2341 = vmatprep.subr.mxu0 0.0
    %2342 = vmatpush1.xpose.msra.mxu0 0.0
    %2343 = vmatprep.subr.mxu0 0.0
    %2344 = vmatpush1.xpose.msra.mxu0 0.0
    %2345 = vmatprep.subr.mxu0 0.0
    %2346 = vmatpush1.xpose.msra.mxu0 0.0
    %2347 = vmatprep.subr.mxu0 0.0
    %2348 = vmatpush1.xpose.msra.mxu0 0.0
    %2349 = vmatprep.subr.mxu0 0.0
    %2350 = vmatpush1.xpose.msra.mxu0 0.0
    %2351 = vmatprep.subr.mxu0 0.0
    %2352 = vmatpush1.xpose.msra.mxu0 0.0
    %2353 = vmatprep.subr.mxu0 0.0
    %2354 = vmatpush1.xpose.msra.mxu0 0.0
    %2355 = vmatprep.subr.mxu0 0.0
    %2356 = vmatpush1.xpose.msra.mxu0 0.0
    %2357 = vmatprep.subr.mxu0 0.0
    %2358 = vmatpush1.xpose.msra.mxu0 0.0
    %2359 = vmatprep.subr.mxu0 0.0
    %2360 = vmatpush1.xpose.msra.mxu0 0.0
    %2361 = vmatprep.subr.mxu0 0.0
    %2362 = vmatpush1.xpose.msra.mxu0 0.0
    %2363 = vmatprep.subr.mxu0 0.0
    %2364 = vmatpush1.xpose.msra.mxu0 0.0
    %2365 = vmatprep.subr.mxu0 0.0
    %2366 = vmatpush1.xpose.msra.mxu0 0.0
    %2367 = vmatprep.subr.mxu0 0.0
    %2368 = vmatpush1.xpose.msra.mxu0 %v2337
    %2369 = vmatprep.subr.mxu0 0.0
    %2370 = vmatpush1.xpose.msra.mxu0 %v2335
    %2371 = vmatprep.subr.mxu0 0.0
    %2372 = vmatpush2.xpose.msra.mxu0 0.0
    %2373 = vmatprep.subr.mxu0 0.0
    %2374 = vmatpush2.xpose.msra.mxu0 0.0
    %2375 = vmatprep.subr.mxu0 0.0
    %2376 = vmatpush2.xpose.msra.mxu0 0.0
    %2377 = vmatprep.subr.mxu0 0.0
    %2378 = vmatpush2.xpose.msra.mxu0 0.0
    %2379 = vmatprep.subr.mxu0 0.0
    %2380 = vmatpush2.xpose.msra.mxu0 0.0
    %2381 = vmatprep.subr.mxu0 0.0
    %2382 = vmatpush2.xpose.msra.mxu0 0.0
    %2383 = vmatprep.subr.mxu0 0.0
    %2384 = vmatpush2.xpose.msra.mxu0 0.0
    %2385 = vmatprep.subr.mxu0 0.0
    %2386 = vmatpush2.xpose.msra.mxu0 0.0
    %2387 = vmatprep.subr.mxu0 0.0
    %2388 = vmatpush2.xpose.msra.mxu0 0.0
    %2389 = vmatprep.subr.mxu0 0.0
    %2390 = vmatpush2.xpose.msra.mxu0 0.0
    %2391 = vmatprep.subr.mxu0 0.0
    %2392 = vmatpush2.xpose.msra.mxu0 0.0
    %2393 = vmatprep.subr.mxu0 0.0
    %2394 = vmatpush2.xpose.msra.mxu0 0.0
    %2395 = vmatprep.subr.mxu0 0.0
    %2396 = vmatpush2.xpose.msra.mxu0 0.0
    %2397 = vmatprep.subr.mxu0 0.0
    %2398 = vmatpush2.xpose.msra.mxu0 0.0
    %2399 = vmatprep.subr.mxu0 0.0
    %2400 = vmatpush2.xpose.msra.mxu0 0.0
    %2401 = vmatprep.subr.mxu0 0.0
    %2402 = vmatpush2.xpose.msra.mxu0 0.0
    %2403 = vmatprep.mubr.f32.mxu0 0.0
    %2404 = vmatmul.mubr.f32.gmra.mxu0 %v2331
    %v2405 = vpop.f32.mrf.mxu0
    %v2406 = vadd.f32 0.0, %v2405
    %v2407 = vpop.f32.mrf.mxu0
    %2408 = vmatprep.mubr.f32.mxu0 0.0
    %2409 = vmatmul.mubr.f32.gmra.mxu0 %v2333
    %v2410 = vpop.f32.mrf.mxu0
    %v2411 = vadd.f32 0.0, %v2410
    %v2412 = vpop.f32.mrf.mxu0
    %2413 = vdwg.mxu0
    %2414 = vrot.lane.b32.xlu0 %v272, 120
    %v2415 = vpop.permute.xlu0 %2414
    %2416 = vrot.lane.b32.xlu0 %v277, 120
    %v2417 = vpop.permute.xlu0 %2416
    %2418 = vrot.lane.b32.xlu0 %v272, 88
    %v2419 = vpop.permute.xlu0 %2418
    %2420 = vrot.lane.b32.xlu0 %v277, 88
    %v2421 = vpop.permute.xlu0 %2420
    %v2422 = vsel %vm306, %v2415, 0
    %v2424 = vsel %vm306, %v2417, 0
    %v2426 = vsel %vm306, %v2419, 0
    %v2428 = vsel %vm306, %v2421, 0
    %2430 = vmatprep.subr.mxu0 0.0
    %2431 = vmatpush1.xpose.msra.mxu0 0.0
    %2432 = vmatprep.subr.mxu0 0.0
    %2433 = vmatpush1.xpose.msra.mxu0 0.0
    %2434 = vmatprep.subr.mxu0 0.0
    %2435 = vmatpush1.xpose.msra.mxu0 0.0
    %2436 = vmatprep.subr.mxu0 0.0
    %2437 = vmatpush1.xpose.msra.mxu0 0.0
    %2438 = vmatprep.subr.mxu0 0.0
    %2439 = vmatpush1.xpose.msra.mxu0 0.0
    %2440 = vmatprep.subr.mxu0 0.0
    %2441 = vmatpush1.xpose.msra.mxu0 0.0
    %2442 = vmatprep.subr.mxu0 0.0
    %2443 = vmatpush1.xpose.msra.mxu0 0.0
    %2444 = vmatprep.subr.mxu0 0.0
    %2445 = vmatpush1.xpose.msra.mxu0 0.0
    %2446 = vmatprep.subr.mxu0 0.0
    %2447 = vmatpush1.xpose.msra.mxu0 0.0
    %2448 = vmatprep.subr.mxu0 0.0
    %2449 = vmatpush1.xpose.msra.mxu0 0.0
    %2450 = vmatprep.subr.mxu0 0.0
    %2451 = vmatpush1.xpose.msra.mxu0 0.0
    %2452 = vmatprep.subr.mxu0 0.0
    %2453 = vmatpush1.xpose.msra.mxu0 0.0
    %2454 = vmatprep.subr.mxu0 0.0
    %2455 = vmatpush1.xpose.msra.mxu0 0.0
    %2456 = vmatprep.subr.mxu0 0.0
    %2457 = vmatpush1.xpose.msra.mxu0 0.0
    %2458 = vmatprep.subr.mxu0 0.0
    %2459 = vmatpush1.xpose.msra.mxu0 %v2428
    %2460 = vmatprep.subr.mxu0 0.0
    %2461 = vmatpush1.xpose.msra.mxu0 %v2426
    %2462 = vmatprep.subr.mxu0 0.0
    %2463 = vmatpush2.xpose.msra.mxu0 0.0
    %2464 = vmatprep.subr.mxu0 0.0
    %2465 = vmatpush2.xpose.msra.mxu0 0.0
    %2466 = vmatprep.subr.mxu0 0.0
    %2467 = vmatpush2.xpose.msra.mxu0 0.0
    %2468 = vmatprep.subr.mxu0 0.0
    %2469 = vmatpush2.xpose.msra.mxu0 0.0
    %2470 = vmatprep.subr.mxu0 0.0
    %2471 = vmatpush2.xpose.msra.mxu0 0.0
    %2472 = vmatprep.subr.mxu0 0.0
    %2473 = vmatpush2.xpose.msra.mxu0 0.0
    %2474 = vmatprep.subr.mxu0 0.0
    %2475 = vmatpush2.xpose.msra.mxu0 0.0
    %2476 = vmatprep.subr.mxu0 0.0
    %2477 = vmatpush2.xpose.msra.mxu0 0.0
    %2478 = vmatprep.subr.mxu0 0.0
    %2479 = vmatpush2.xpose.msra.mxu0 0.0
    %2480 = vmatprep.subr.mxu0 0.0
    %2481 = vmatpush2.xpose.msra.mxu0 0.0
    %2482 = vmatprep.subr.mxu0 0.0
    %2483 = vmatpush2.xpose.msra.mxu0 0.0
    %2484 = vmatprep.subr.mxu0 0.0
    %2485 = vmatpush2.xpose.msra.mxu0 0.0
    %2486 = vmatprep.subr.mxu0 0.0
    %2487 = vmatpush2.xpose.msra.mxu0 0.0
    %2488 = vmatprep.subr.mxu0 0.0
    %2489 = vmatpush2.xpose.msra.mxu0 0.0
    %2490 = vmatprep.subr.mxu0 0.0
    %2491 = vmatpush2.xpose.msra.mxu0 0.0
    %2492 = vmatprep.subr.mxu0 0.0
    %2493 = vmatpush2.xpose.msra.mxu0 0.0
    %2494 = vmatprep.mubr.f32.mxu0 0.0
    %2495 = vmatmul.mubr.f32.gmra.mxu0 %v2422
    %v2496 = vpop.f32.mrf.mxu0
    %v2497 = vadd.f32 0.0, %v2496
    %v2498 = vpop.f32.mrf.mxu0
    %2499 = vmatprep.mubr.f32.mxu0 0.0
    %2500 = vmatmul.mubr.f32.gmra.mxu0 %v2424
    %v2501 = vpop.f32.mrf.mxu0
    %v2502 = vadd.f32 0.0, %v2501
    %v2503 = vpop.f32.mrf.mxu0
    %2504 = vdwg.mxu0
    %2505 = vrot.lane.b32.xlu0 %v282, 120
    %v2506 = vpop.permute.xlu0 %2505
    %2507 = vrot.lane.b32.xlu0 %v287, 120
    %v2508 = vpop.permute.xlu0 %2507
    %2509 = vrot.lane.b32.xlu0 %v282, 88
    %v2510 = vpop.permute.xlu0 %2509
    %2511 = vrot.lane.b32.xlu0 %v287, 88
    %v2512 = vpop.permute.xlu0 %2511
    %v2513 = vsel %vm306, %v2506, 0
    %v2515 = vsel %vm306, %v2508, 0
    %v2517 = vsel %vm306, %v2510, 0
    %v2519 = vsel %vm306, %v2512, 0
    %2521 = vmatprep.subr.mxu0 0.0
    %2522 = vmatpush1.xpose.msra.mxu0 0.0
    %2523 = vmatprep.subr.mxu0 0.0
    %2524 = vmatpush1.xpose.msra.mxu0 0.0
    %2525 = vmatprep.subr.mxu0 0.0
    %2526 = vmatpush1.xpose.msra.mxu0 0.0
    %2527 = vmatprep.subr.mxu0 0.0
    %2528 = vmatpush1.xpose.msra.mxu0 0.0
    %2529 = vmatprep.subr.mxu0 0.0
    %2530 = vmatpush1.xpose.msra.mxu0 0.0
    %2531 = vmatprep.subr.mxu0 0.0
    %2532 = vmatpush1.xpose.msra.mxu0 0.0
    %2533 = vmatprep.subr.mxu0 0.0
    %2534 = vmatpush1.xpose.msra.mxu0 0.0
    %2535 = vmatprep.subr.mxu0 0.0
    %2536 = vmatpush1.xpose.msra.mxu0 0.0
    %2537 = vmatprep.subr.mxu0 0.0
    %2538 = vmatpush1.xpose.msra.mxu0 0.0
    %2539 = vmatprep.subr.mxu0 0.0
    %2540 = vmatpush1.xpose.msra.mxu0 0.0
    %2541 = vmatprep.subr.mxu0 0.0
    %2542 = vmatpush1.xpose.msra.mxu0 0.0
    %2543 = vmatprep.subr.mxu0 0.0
    %2544 = vmatpush1.xpose.msra.mxu0 0.0
    %2545 = vmatprep.subr.mxu0 0.0
    %2546 = vmatpush1.xpose.msra.mxu0 0.0
    %2547 = vmatprep.subr.mxu0 0.0
    %2548 = vmatpush1.xpose.msra.mxu0 0.0
    %2549 = vmatprep.subr.mxu0 0.0
    %2550 = vmatpush1.xpose.msra.mxu0 %v2519
    %2551 = vmatprep.subr.mxu0 0.0
    %2552 = vmatpush1.xpose.msra.mxu0 %v2517
    %2553 = vmatprep.subr.mxu0 0.0
    %2554 = vmatpush2.xpose.msra.mxu0 0.0
    %2555 = vmatprep.subr.mxu0 0.0
    %2556 = vmatpush2.xpose.msra.mxu0 0.0
    %2557 = vmatprep.subr.mxu0 0.0
    %2558 = vmatpush2.xpose.msra.mxu0 0.0
    %2559 = vmatprep.subr.mxu0 0.0
    %2560 = vmatpush2.xpose.msra.mxu0 0.0
    %2561 = vmatprep.subr.mxu0 0.0
    %2562 = vmatpush2.xpose.msra.mxu0 0.0
    %2563 = vmatprep.subr.mxu0 0.0
    %2564 = vmatpush2.xpose.msra.mxu0 0.0
    %2565 = vmatprep.subr.mxu0 0.0
    %2566 = vmatpush2.xpose.msra.mxu0 0.0
    %2567 = vmatprep.subr.mxu0 0.0
    %2568 = vmatpush2.xpose.msra.mxu0 0.0
    %2569 = vmatprep.subr.mxu0 0.0
    %2570 = vmatpush2.xpose.msra.mxu0 0.0
    %2571 = vmatprep.subr.mxu0 0.0
    %2572 = vmatpush2.xpose.msra.mxu0 0.0
    %2573 = vmatprep.subr.mxu0 0.0
    %2574 = vmatpush2.xpose.msra.mxu0 0.0
    %2575 = vmatprep.subr.mxu0 0.0
    %2576 = vmatpush2.xpose.msra.mxu0 0.0
    %2577 = vmatprep.subr.mxu0 0.0
    %2578 = vmatpush2.xpose.msra.mxu0 0.0
    %2579 = vmatprep.subr.mxu0 0.0
    %2580 = vmatpush2.xpose.msra.mxu0 0.0
    %2581 = vmatprep.subr.mxu0 0.0
    %2582 = vmatpush2.xpose.msra.mxu0 0.0
    %2583 = vmatprep.subr.mxu0 0.0
    %2584 = vmatpush2.xpose.msra.mxu0 0.0
    %2585 = vmatprep.mubr.f32.mxu0 0.0
    %2586 = vmatmul.mubr.f32.gmra.mxu0 %v2513
    %v2587 = vpop.f32.mrf.mxu0
    %v2588 = vadd.f32 0.0, %v2587
    %v2589 = vpop.f32.mrf.mxu0
    %2590 = vmatprep.mubr.f32.mxu0 0.0
    %2591 = vmatmul.mubr.f32.gmra.mxu0 %v2515
    %v2592 = vpop.f32.mrf.mxu0
    %v2593 = vadd.f32 0.0, %v2592
    %v2594 = vpop.f32.mrf.mxu0
    %2595 = vdwg.mxu0
    %2596 = vrot.lane.b32.xlu0 %v292, 120
    %v2597 = vpop.permute.xlu0 %2596
    %2598 = vrot.lane.b32.xlu0 %v297, 120
    %v2599 = vpop.permute.xlu0 %2598
    %2600 = vrot.lane.b32.xlu0 %v292, 88
    %v2601 = vpop.permute.xlu0 %2600
    %2602 = vrot.lane.b32.xlu0 %v297, 88
    %v2603 = vpop.permute.xlu0 %2602
    %v2604 = vsel %vm306, %v2597, 0
    %v2606 = vsel %vm306, %v2599, 0
    %v2608 = vsel %vm306, %v2601, 0
    %v2610 = vsel %vm306, %v2603, 0
    %2612 = vmatprep.subr.mxu0 0.0
    %2613 = vmatpush1.xpose.msra.mxu0 0.0
    %2614 = vmatprep.subr.mxu0 0.0
    %2615 = vmatpush1.xpose.msra.mxu0 0.0
    %2616 = vmatprep.subr.mxu0 0.0
    %2617 = vmatpush1.xpose.msra.mxu0 0.0
    %2618 = vmatprep.subr.mxu0 0.0
    %2619 = vmatpush1.xpose.msra.mxu0 0.0
    %2620 = vmatprep.subr.mxu0 0.0
    %2621 = vmatpush1.xpose.msra.mxu0 0.0
    %2622 = vmatprep.subr.mxu0 0.0
    %2623 = vmatpush1.xpose.msra.mxu0 0.0
    %2624 = vmatprep.subr.mxu0 0.0
    %2625 = vmatpush1.xpose.msra.mxu0 0.0
    %2626 = vmatprep.subr.mxu0 0.0
    %2627 = vmatpush1.xpose.msra.mxu0 0.0
    %2628 = vmatprep.subr.mxu0 0.0
    %2629 = vmatpush1.xpose.msra.mxu0 0.0
    %2630 = vmatprep.subr.mxu0 0.0
    %2631 = vmatpush1.xpose.msra.mxu0 0.0
    %2632 = vmatprep.subr.mxu0 0.0
    %2633 = vmatpush1.xpose.msra.mxu0 0.0
    %2634 = vmatprep.subr.mxu0 0.0
    %2635 = vmatpush1.xpose.msra.mxu0 0.0
    %2636 = vmatprep.subr.mxu0 0.0
    %2637 = vmatpush1.xpose.msra.mxu0 0.0
    %2638 = vmatprep.subr.mxu0 0.0
    %2639 = vmatpush1.xpose.msra.mxu0 0.0
    %2640 = vmatprep.subr.mxu0 0.0
    %2641 = vmatpush1.xpose.msra.mxu0 %v2610
    %2642 = vmatprep.subr.mxu0 0.0
    %2643 = vmatpush1.xpose.msra.mxu0 %v2608
    %2644 = vmatprep.subr.mxu0 0.0
    %2645 = vmatpush2.xpose.msra.mxu0 0.0
    %2646 = vmatprep.subr.mxu0 0.0
    %2647 = vmatpush2.xpose.msra.mxu0 0.0
    %2648 = vmatprep.subr.mxu0 0.0
    %2649 = vmatpush2.xpose.msra.mxu0 0.0
    %2650 = vmatprep.subr.mxu0 0.0
    %2651 = vmatpush2.xpose.msra.mxu0 0.0
    %2652 = vmatprep.subr.mxu0 0.0
    %2653 = vmatpush2.xpose.msra.mxu0 0.0
    %2654 = vmatprep.subr.mxu0 0.0
    %2655 = vmatpush2.xpose.msra.mxu0 0.0
    %2656 = vmatprep.subr.mxu0 0.0
    %2657 = vmatpush2.xpose.msra.mxu0 0.0
    %2658 = vmatprep.subr.mxu0 0.0
    %2659 = vmatpush2.xpose.msra.mxu0 0.0
    %2660 = vmatprep.subr.mxu0 0.0
    %2661 = vmatpush2.xpose.msra.mxu0 0.0
    %2662 = vmatprep.subr.mxu0 0.0
    %2663 = vmatpush2.xpose.msra.mxu0 0.0
    %2664 = vmatprep.subr.mxu0 0.0
    %2665 = vmatpush2.xpose.msra.mxu0 0.0
    %2666 = vmatprep.subr.mxu0 0.0
    %2667 = vmatpush2.xpose.msra.mxu0 0.0
    %2668 = vmatprep.subr.mxu0 0.0
    %2669 = vmatpush2.xpose.msra.mxu0 0.0
    %2670 = vmatprep.subr.mxu0 0.0
    %2671 = vmatpush2.xpose.msra.mxu0 0.0
    %2672 = vmatprep.subr.mxu0 0.0
    %2673 = vmatpush2.xpose.msra.mxu0 0.0
    %2674 = vmatprep.subr.mxu0 0.0
    %2675 = vmatpush2.xpose.msra.mxu0 0.0
    %2676 = vmatprep.mubr.f32.mxu0 0.0
    %2677 = vmatmul.mubr.f32.gmra.mxu0 %v2604
    %v2678 = vpop.f32.mrf.mxu0
    %v2679 = vadd.f32 0.0, %v2678
    %v2680 = vpop.f32.mrf.mxu0
    %2681 = vmatprep.mubr.f32.mxu0 0.0
    %2682 = vmatmul.mubr.f32.gmra.mxu0 %v2606
    %v2683 = vpop.f32.mrf.mxu0
    %v2684 = vadd.f32 0.0, %v2683
    %v2685 = vpop.f32.mrf.mxu0
    %2686 = vdwg.mxu0
    %s2687 = scalar_lea.vmem [#allocation8], 64
    %v2688 = vld [vmem:[%s2687] sm:$0xff]
    %v2689 = vld [vmem:[%s2687 + $0x8] sm:$0xff]
    %v2690 = vld [vmem:[%s2687 + $0x10] sm:$0xff]
    %v2691 = vld [vmem:[%s2687 + $0x18] sm:$0xff]
    %v2692 = vld [vmem:[%s2687 + $0x20] sm:$0xff]
    %v2693 = vld [vmem:[%s2687 + $0x28] sm:$0xff]
    %v2694 = vld [vmem:[%s2687 + $0x30] sm:$0xff]
    %v2695 = vld [vmem:[%s2687 + $0x38] sm:$0xff]
    %v2696 = vadd.f32 %v2042, %v2688
    %v2697 = vadd.f32 %v2047, %v2689
    %v2698 = vadd.f32 %v2133, %v2690
    %v2699 = vadd.f32 %v2138, %v2691
    %v2700 = vadd.f32 %v2224, %v2692
    %v2701 = vadd.f32 %v2229, %v2693
    %v2702 = vadd.f32 %v2315, %v2694
    %v2703 = vadd.f32 %v2320, %v2695
    %v2704 = vadd.f32 %v2406, %v2688
    %v2705 = vadd.f32 %v2411, %v2689
    %v2706 = vadd.f32 %v2497, %v2690
    %v2707 = vadd.f32 %v2502, %v2691
    %v2708 = vadd.f32 %v2588, %v2692
    %v2709 = vadd.f32 %v2593, %v2693
    %v2710 = vadd.f32 %v2679, %v2694
    %v2711 = vadd.f32 %v2684, %v2695
    %v2712 = vsel %vm1037, %v2696, -inf
    %2713 = vmax.xlane.f32.xlu0 %v2712
    %v2714 = vpop.xlane.xlu0 %2713
    %v2715 = vsel %vm1037, %v2697, -inf
    %2716 = vmax.xlane.f32.xlu0 %v2715
    %v2717 = vpop.xlane.xlu0 %2716
    %v2718 = vsel %vm1037, %v2698, -inf
    %2719 = vmax.xlane.f32.xlu0 %v2718
    %v2720 = vpop.xlane.xlu0 %2719
    %v2721 = vsel %vm1037, %v2699, -inf
    %2722 = vmax.xlane.f32.xlu0 %v2721
    %v2723 = vpop.xlane.xlu0 %2722
    %v2724 = vsel %vm1037, %v2700, -inf
    %2725 = vmax.xlane.f32.xlu0 %v2724
    %v2726 = vpop.xlane.xlu0 %2725
    %v2727 = vsel %vm1037, %v2701, -inf
    %2728 = vmax.xlane.f32.xlu0 %v2727
    %v2729 = vpop.xlane.xlu0 %2728
    %v2730 = vsel %vm1037, %v2702, -inf
    %2731 = vmax.xlane.f32.xlu0 %v2730
    %v2732 = vpop.xlane.xlu0 %2731
    %v2733 = vsel %vm1037, %v2703, -inf
    %2734 = vmax.xlane.f32.xlu0 %v2733
    %v2735 = vpop.xlane.xlu0 %2734
    %v2736 = vsel %vm1037, %v2704, -inf
    %2737 = vmax.xlane.f32.xlu0 %v2736
    %v2738 = vpop.xlane.xlu0 %2737
    %v2739 = vsel %vm1037, %v2705, -inf
    %2740 = vmax.xlane.f32.xlu0 %v2739
    %v2741 = vpop.xlane.xlu0 %2740
    %v2742 = vsel %vm1037, %v2706, -inf
    %2743 = vmax.xlane.f32.xlu0 %v2742
    %v2744 = vpop.xlane.xlu0 %2743
    %v2745 = vsel %vm1037, %v2707, -inf
    %2746 = vmax.xlane.f32.xlu0 %v2745
    %v2747 = vpop.xlane.xlu0 %2746
    %v2748 = vsel %vm1037, %v2708, -inf
    %2749 = vmax.xlane.f32.xlu0 %v2748
    %v2750 = vpop.xlane.xlu0 %2749
    %v2751 = vsel %vm1037, %v2709, -inf
    %2752 = vmax.xlane.f32.xlu0 %v2751
    %v2753 = vpop.xlane.xlu0 %2752
    %v2754 = vsel %vm1037, %v2710, -inf
    %2755 = vmax.xlane.f32.xlu0 %v2754
    %v2756 = vpop.xlane.xlu0 %2755
    %v2757 = vsel %vm1037, %v2711, -inf
    %2758 = vmax.xlane.f32.xlu0 %v2757
    %v2759 = vpop.xlane.xlu0 %2758
    %v2760 = vsub.f32 %v2696, %v2714
    %v2761 = vsub.f32 %v2697, %v2717
    %v2762 = vsub.f32 %v2698, %v2720
    %v2763 = vsub.f32 %v2699, %v2723
    %v2764 = vsub.f32 %v2700, %v2726
    %v2765 = vsub.f32 %v2701, %v2729
    %v2766 = vsub.f32 %v2702, %v2732
    %v2767 = vsub.f32 %v2703, %v2735
    %v2768 = vsub.f32 %v2704, %v2738
    %v2769 = vsub.f32 %v2705, %v2741
    %v2770 = vsub.f32 %v2706, %v2744
    %v2771 = vsub.f32 %v2707, %v2747
    %v2772 = vsub.f32 %v2708, %v2750
    %v2773 = vsub.f32 %v2709, %v2753
    %v2774 = vsub.f32 %v2710, %v2756
    %v2775 = vsub.f32 %v2711, %v2759
    %v2776 = vmul.f32 %v2760, 1.442695
    %v2777 = vpow.pop %v2776
    %v2778 = vmul.f32 %v2761, 1.442695
    %v2779 = vpow.pop %v2778
    %v2780 = vmul.f32 %v2762, 1.442695
    %v2781 = vpow.pop %v2780
    %v2782 = vmul.f32 %v2763, 1.442695
    %v2783 = vpow.pop %v2782
    %v2784 = vmul.f32 %v2764, 1.442695
    %v2785 = vpow.pop %v2784
    %v2786 = vmul.f32 %v2765, 1.442695
    %v2787 = vpow.pop %v2786
    %v2788 = vmul.f32 %v2766, 1.442695
    %v2789 = vpow.pop %v2788
    %v2790 = vmul.f32 %v2767, 1.442695
    %v2791 = vpow.pop %v2790
    %v2792 = vmul.f32 %v2768, 1.442695
    %v2793 = vpow.pop %v2792
    %v2794 = vmul.f32 %v2769, 1.442695
    %v2795 = vpow.pop %v2794
    %v2796 = vmul.f32 %v2770, 1.442695
    %v2797 = vpow.pop %v2796
    %v2798 = vmul.f32 %v2771, 1.442695
    %v2799 = vpow.pop %v2798
    %v2800 = vmul.f32 %v2772, 1.442695
    %v2801 = vpow.pop %v2800
    %v2802 = vmul.f32 %v2773, 1.442695
    %v2803 = vpow.pop %v2802
    %v2804 = vmul.f32 %v2774, 1.442695
    %v2805 = vpow.pop %v2804
    %v2806 = vmul.f32 %v2775, 1.442695
    %v2807 = vpow.pop %v2806
    %v2808 = vsel %vm1037, %v2777, 0.0
    %2809 = vadd.xlane.f32.xlu0 %v2808
    %v2810 = vpop.xlane.xlu0 %2809
    %v2811 = vsel %vm1037, %v2779, 0.0
    %2812 = vadd.xlane.f32.xlu0 %v2811
    %v2813 = vpop.xlane.xlu0 %2812
    %v2814 = vsel %vm1037, %v2781, 0.0
    %2815 = vadd.xlane.f32.xlu0 %v2814
    %v2816 = vpop.xlane.xlu0 %2815
    %v2817 = vsel %vm1037, %v2783, 0.0
    %2818 = vadd.xlane.f32.xlu0 %v2817
    %v2819 = vpop.xlane.xlu0 %2818
    %v2820 = vsel %vm1037, %v2785, 0.0
    %2821 = vadd.xlane.f32.xlu0 %v2820
    %v2822 = vpop.xlane.xlu0 %2821
    %v2823 = vsel %vm1037, %v2787, 0.0
    %2824 = vadd.xlane.f32.xlu0 %v2823
    %v2825 = vpop.xlane.xlu0 %2824
    %v2826 = vsel %vm1037, %v2789, 0.0
    %2827 = vadd.xlane.f32.xlu0 %v2826
    %v2828 = vpop.xlane.xlu0 %2827
    %v2829 = vsel %vm1037, %v2791, 0.0
    %2830 = vadd.xlane.f32.xlu0 %v2829
    %v2831 = vpop.xlane.xlu0 %2830
    %v2832 = vsel %vm1037, %v2793, 0.0
    %2833 = vadd.xlane.f32.xlu0 %v2832
    %v2834 = vpop.xlane.xlu0 %2833
    %v2835 = vsel %vm1037, %v2795, 0.0
    %2836 = vadd.xlane.f32.xlu0 %v2835
    %v2837 = vpop.xlane.xlu0 %2836
    %v2838 = vsel %vm1037, %v2797, 0.0
    %2839 = vadd.xlane.f32.xlu0 %v2838
    %v2840 = vpop.xlane.xlu0 %2839
    %v2841 = vsel %vm1037, %v2799, 0.0
    %2842 = vadd.xlane.f32.xlu0 %v2841
    %v2843 = vpop.xlane.xlu0 %2842
    %v2844 = vsel %vm1037, %v2801, 0.0
    %2845 = vadd.xlane.f32.xlu0 %v2844
    %v2846 = vpop.xlane.xlu0 %2845
    %v2847 = vsel %vm1037, %v2803, 0.0
    %2848 = vadd.xlane.f32.xlu0 %v2847
    %v2849 = vpop.xlane.xlu0 %2848
    %v2850 = vsel %vm1037, %v2805, 0.0
    %2851 = vadd.xlane.f32.xlu0 %v2850
    %v2852 = vpop.xlane.xlu0 %2851
    %v2853 = vsel %vm1037, %v2807, 0.0
    %2854 = vadd.xlane.f32.xlu0 %v2853
    %v2855 = vpop.xlane.xlu0 %2854
    %v2856 = vrcp.pop %v2810
    %v2857 = vrcp.pop %v2813
    %v2858 = vrcp.pop %v2816
    %v2859 = vrcp.pop %v2819
    %v2860 = vrcp.pop %v2822
    %v2861 = vrcp.pop %v2825
    %v2862 = vrcp.pop %v2828
    %v2863 = vrcp.pop %v2831
    %v2864 = vrcp.pop %v2834
    %v2865 = vrcp.pop %v2837
    %v2866 = vrcp.pop %v2840
    %v2867 = vrcp.pop %v2843
    %v2868 = vrcp.pop %v2846
    %v2869 = vrcp.pop %v2849
    %v2870 = vrcp.pop %v2852
    %v2871 = vrcp.pop %v2855
    %v2872 = vmul.f32 %v2810, %v2856
    %v2873 = vmul.f32 %v2813, %v2857
    %v2874 = vmul.f32 %v2816, %v2858
    %v2875 = vmul.f32 %v2819, %v2859
    %v2876 = vmul.f32 %v2822, %v2860
    %v2877 = vmul.f32 %v2825, %v2861
    %v2878 = vmul.f32 %v2828, %v2862
    %v2879 = vmul.f32 %v2831, %v2863
    %v2880 = vmul.f32 %v2834, %v2864
    %v2881 = vmul.f32 %v2837, %v2865
    %v2882 = vmul.f32 %v2840, %v2866
    %v2883 = vmul.f32 %v2843, %v2867
    %v2884 = vmul.f32 %v2846, %v2868
    %v2885 = vmul.f32 %v2849, %v2869
    %v2886 = vmul.f32 %v2852, %v2870
    %v2887 = vmul.f32 %v2855, %v2871
    %v2888 = vsub.f32 2.0, %v2872
    %v2889 = vsub.f32 2.0, %v2873
    %v2890 = vsub.f32 2.0, %v2874
    %v2891 = vsub.f32 2.0, %v2875
    %v2892 = vsub.f32 2.0, %v2876
    %v2893 = vsub.f32 2.0, %v2877
    %v2894 = vsub.f32 2.0, %v2878
    %v2895 = vsub.f32 2.0, %v2879
    %v2896 = vsub.f32 2.0, %v2880
    %v2897 = vsub.f32 2.0, %v2881
    %v2898 = vsub.f32 2.0, %v2882
    %v2899 = vsub.f32 2.0, %v2883
    %v2900 = vsub.f32 2.0, %v2884
    %v2901 = vsub.f32 2.0, %v2885
    %v2902 = vsub.f32 2.0, %v2886
    %v2903 = vsub.f32 2.0, %v2887
    %v2904 = vmul.f32 %v2856, %v2888
    %v2905 = vmul.f32 %v2857, %v2889
    %v2906 = vmul.f32 %v2858, %v2890
    %v2907 = vmul.f32 %v2859, %v2891
    %v2908 = vmul.f32 %v2860, %v2892
    %v2909 = vmul.f32 %v2861, %v2893
    %v2910 = vmul.f32 %v2862, %v2894
    %v2911 = vmul.f32 %v2863, %v2895
    %v2912 = vmul.f32 %v2864, %v2896
    %v2913 = vmul.f32 %v2865, %v2897
    %v2914 = vmul.f32 %v2866, %v2898
    %v2915 = vmul.f32 %v2867, %v2899
    %v2916 = vmul.f32 %v2868, %v2900
    %v2917 = vmul.f32 %v2869, %v2901
    %v2918 = vmul.f32 %v2870, %v2902
    %v2919 = vmul.f32 %v2871, %v2903
    %v2920 = vmul.f32 %v2777, %v2904
    %v2921 = vmul.f32 %v2779, %v2905
    %v2922 = vmul.f32 %v2781, %v2906
    %v2923 = vmul.f32 %v2783, %v2907
    %v2924 = vmul.f32 %v2785, %v2908
    %v2925 = vmul.f32 %v2787, %v2909
    %v2926 = vmul.f32 %v2789, %v2910
    %v2927 = vmul.f32 %v2791, %v2911
    %v2928 = vmul.f32 %v2793, %v2912
    %v2929 = vmul.f32 %v2795, %v2913
    %v2930 = vmul.f32 %v2797, %v2914
    %v2931 = vmul.f32 %v2799, %v2915
    %v2932 = vmul.f32 %v2801, %v2916
    %v2933 = vmul.f32 %v2803, %v2917
    %v2934 = vmul.f32 %v2805, %v2918
    %v2935 = vmul.f32 %v2807, %v2919
    %2936 = vrot.lane.b32.xlu0 %v222, 56
    %v2937 = vpop.permute.xlu0 %2936
    %2938 = vrot.lane.b32.xlu0 %v227, 56
    %v2939 = vpop.permute.xlu0 %2938
    %v2943 = vsel %vm1037, %v2920, 0
    %v2946 = vsel %vm1037, %v2921, 0
    %2948 = vmatprep.subr.mxu0 0.0
    %2949 = vmatpush1.msra.mxu0 0.0
    %2950 = vmatprep.subr.mxu0 0.0
    %2951 = vmatpush1.msra.mxu0 0.0
    %2952 = vmatprep.subr.mxu0 0.0
    %2953 = vmatpush1.msra.mxu0 0.0
    %2954 = vmatprep.subr.mxu0 0.0
    %2955 = vmatpush1.msra.mxu0 0.0
    %2956 = vmatprep.subr.mxu0 0.0
    %2957 = vmatpush1.msra.mxu0 0.0
    %2958 = vmatprep.subr.mxu0 0.0
    %2959 = vmatpush1.msra.mxu0 0.0
    %2960 = vmatprep.subr.mxu0 0.0
    %2961 = vmatpush1.msra.mxu0 0.0
    %2962 = vmatprep.subr.mxu0 0.0
    %2963 = vmatpush1.msra.mxu0 0.0
    %2964 = vmatprep.subr.mxu0 0.0
    %2965 = vmatpush1.msra.mxu0 0.0
    %2966 = vmatprep.subr.mxu0 0.0
    %2967 = vmatpush1.msra.mxu0 0.0
    %2968 = vmatprep.subr.mxu0 0.0
    %2969 = vmatpush1.msra.mxu0 0.0
    %2970 = vmatprep.subr.mxu0 0.0
    %2971 = vmatpush1.msra.mxu0 0.0
    %2972 = vmatprep.subr.mxu0 0.0
    %2973 = vmatpush1.msra.mxu0 0.0
    %2974 = vmatprep.subr.mxu0 0.0
    %2975 = vmatpush1.msra.mxu0 0.0
    %2976 = vmatprep.subr.mxu0 0.0
    %2977 = vmatpush1.msra.mxu0 %v2939
    %2978 = vmatprep.subr.mxu0 0.0
    %2979 = vmatpush1.msra.mxu0 %v2937
    %2980 = vmatprep.subr.mxu0 0.0
    %2981 = vmatpush2.msra.mxu0 0.0
    %2982 = vmatprep.subr.mxu0 0.0
    %2983 = vmatpush2.msra.mxu0 0.0
    %2984 = vmatprep.subr.mxu0 0.0
    %2985 = vmatpush2.msra.mxu0 0.0
    %2986 = vmatprep.subr.mxu0 0.0
    %2987 = vmatpush2.msra.mxu0 0.0
    %2988 = vmatprep.subr.mxu0 0.0
    %2989 = vmatpush2.msra.mxu0 0.0
    %2990 = vmatprep.subr.mxu0 0.0
    %2991 = vmatpush2.msra.mxu0 0.0
    %2992 = vmatprep.subr.mxu0 0.0
    %2993 = vmatpush2.msra.mxu0 0.0
    %2994 = vmatprep.subr.mxu0 0.0
    %2995 = vmatpush2.msra.mxu0 0.0
    %2996 = vmatprep.subr.mxu0 0.0
    %2997 = vmatpush2.msra.mxu0 0.0
    %2998 = vmatprep.subr.mxu0 0.0
    %2999 = vmatpush2.msra.mxu0 0.0
    %3000 = vmatprep.subr.mxu0 0.0
    %3001 = vmatpush2.msra.mxu0 0.0
    %3002 = vmatprep.subr.mxu0 0.0
    %3003 = vmatpush2.msra.mxu0 0.0
    %3004 = vmatprep.subr.mxu0 0.0
    %3005 = vmatpush2.msra.mxu0 0.0
    %3006 = vmatprep.subr.mxu0 0.0
    %3007 = vmatpush2.msra.mxu0 0.0
    %3008 = vmatprep.subr.mxu0 0.0
    %3009 = vmatpush2.msra.mxu0 0.0
    %3010 = vmatprep.subr.mxu0 0.0
    %3011 = vmatpush2.msra.mxu0 0.0
    %3012 = vmatprep.mubr.f32.mxu0 0.0
    %3013 = vmatmul.mubr.f32.gmra.mxu0 %v2943
    %v3014 = vpop.f32.mrf.mxu0
    %v3015 = vadd.f32 0.0, %v3014
    %v3016 = vpop.f32.mrf.mxu0
    %3017 = vmatprep.mubr.f32.mxu0 0.0
    %3018 = vmatmul.mubr.f32.gmra.mxu0 %v2946
    %v3019 = vpop.f32.mrf.mxu0
    %v3020 = vadd.f32 0.0, %v3019
    %v3021 = vpop.f32.mrf.mxu0
    %3022 = vdwg.mxu0
    %3023 = vrot.lane.b32.xlu0 %v232, 56
    %v3024 = vpop.permute.xlu0 %3023
    %3025 = vrot.lane.b32.xlu0 %v237, 56
    %v3026 = vpop.permute.xlu0 %3025
    %v3030 = vsel %vm1037, %v2922, 0
    %v3033 = vsel %vm1037, %v2923, 0
    %3035 = vmatprep.subr.mxu0 0.0
    %3036 = vmatpush1.msra.mxu0 0.0
    %3037 = vmatprep.subr.mxu0 0.0
    %3038 = vmatpush1.msra.mxu0 0.0
    %3039 = vmatprep.subr.mxu0 0.0
    %3040 = vmatpush1.msra.mxu0 0.0
    %3041 = vmatprep.subr.mxu0 0.0
    %3042 = vmatpush1.msra.mxu0 0.0
    %3043 = vmatprep.subr.mxu0 0.0
    %3044 = vmatpush1.msra.mxu0 0.0
    %3045 = vmatprep.subr.mxu0 0.0
    %3046 = vmatpush1.msra.mxu0 0.0
    %3047 = vmatprep.subr.mxu0 0.0
    %3048 = vmatpush1.msra.mxu0 0.0
    %3049 = vmatprep.subr.mxu0 0.0
    %3050 = vmatpush1.msra.mxu0 0.0
    %3051 = vmatprep.subr.mxu0 0.0
    %3052 = vmatpush1.msra.mxu0 0.0
    %3053 = vmatprep.subr.mxu0 0.0
    %3054 = vmatpush1.msra.mxu0 0.0
    %3055 = vmatprep.subr.mxu0 0.0
    %3056 = vmatpush1.msra.mxu0 0.0
    %3057 = vmatprep.subr.mxu0 0.0
    %3058 = vmatpush1.msra.mxu0 0.0
    %3059 = vmatprep.subr.mxu0 0.0
    %3060 = vmatpush1.msra.mxu0 0.0
    %3061 = vmatprep.subr.mxu0 0.0
    %3062 = vmatpush1.msra.mxu0 0.0
    %3063 = vmatprep.subr.mxu0 0.0
    %3064 = vmatpush1.msra.mxu0 %v3026
    %3065 = vmatprep.subr.mxu0 0.0
    %3066 = vmatpush1.msra.mxu0 %v3024
    %3067 = vmatprep.subr.mxu0 0.0
    %3068 = vmatpush2.msra.mxu0 0.0
    %3069 = vmatprep.subr.mxu0 0.0
    %3070 = vmatpush2.msra.mxu0 0.0
    %3071 = vmatprep.subr.mxu0 0.0
    %3072 = vmatpush2.msra.mxu0 0.0
    %3073 = vmatprep.subr.mxu0 0.0
    %3074 = vmatpush2.msra.mxu0 0.0
    %3075 = vmatprep.subr.mxu0 0.0
    %3076 = vmatpush2.msra.mxu0 0.0
    %3077 = vmatprep.subr.mxu0 0.0
    %3078 = vmatpush2.msra.mxu0 0.0
    %3079 = vmatprep.subr.mxu0 0.0
    %3080 = vmatpush2.msra.mxu0 0.0
    %3081 = vmatprep.subr.mxu0 0.0
    %3082 = vmatpush2.msra.mxu0 0.0
    %3083 = vmatprep.subr.mxu0 0.0
    %3084 = vmatpush2.msra.mxu0 0.0
    %3085 = vmatprep.subr.mxu0 0.0
    %3086 = vmatpush2.msra.mxu0 0.0
    %3087 = vmatprep.subr.mxu0 0.0
    %3088 = vmatpush2.msra.mxu0 0.0
    %3089 = vmatprep.subr.mxu0 0.0
    %3090 = vmatpush2.msra.mxu0 0.0
    %3091 = vmatprep.subr.mxu0 0.0
    %3092 = vmatpush2.msra.mxu0 0.0
    %3093 = vmatprep.subr.mxu0 0.0
    %3094 = vmatpush2.msra.mxu0 0.0
    %3095 = vmatprep.subr.mxu0 0.0
    %3096 = vmatpush2.msra.mxu0 0.0
    %3097 = vmatprep.subr.mxu0 0.0
    %3098 = vmatpush2.msra.mxu0 0.0
    %3099 = vmatprep.mubr.f32.mxu0 0.0
    %3100 = vmatmul.mubr.f32.gmra.mxu0 %v3030
    %v3101 = vpop.f32.mrf.mxu0
    %v3102 = vadd.f32 0.0, %v3101
    %v3103 = vpop.f32.mrf.mxu0
    %3104 = vmatprep.mubr.f32.mxu0 0.0
    %3105 = vmatmul.mubr.f32.gmra.mxu0 %v3033
    %v3106 = vpop.f32.mrf.mxu0
    %v3107 = vadd.f32 0.0, %v3106
    %v3108 = vpop.f32.mrf.mxu0
    %3109 = vdwg.mxu0
    %3110 = vrot.lane.b32.xlu0 %v242, 56
    %v3111 = vpop.permute.xlu0 %3110
    %3112 = vrot.lane.b32.xlu0 %v247, 56
    %v3113 = vpop.permute.xlu0 %3112
    %v3117 = vsel %vm1037, %v2924, 0
    %v3120 = vsel %vm1037, %v2925, 0
    %3122 = vmatprep.subr.mxu0 0.0
    %3123 = vmatpush1.msra.mxu0 0.0
    %3124 = vmatprep.subr.mxu0 0.0
    %3125 = vmatpush1.msra.mxu0 0.0
    %3126 = vmatprep.subr.mxu0 0.0
    %3127 = vmatpush1.msra.mxu0 0.0
    %3128 = vmatprep.subr.mxu0 0.0
    %3129 = vmatpush1.msra.mxu0 0.0
    %3130 = vmatprep.subr.mxu0 0.0
    %3131 = vmatpush1.msra.mxu0 0.0
    %3132 = vmatprep.subr.mxu0 0.0
    %3133 = vmatpush1.msra.mxu0 0.0
    %3134 = vmatprep.subr.mxu0 0.0
    %3135 = vmatpush1.msra.mxu0 0.0
    %3136 = vmatprep.subr.mxu0 0.0
    %3137 = vmatpush1.msra.mxu0 0.0
    %3138 = vmatprep.subr.mxu0 0.0
    %3139 = vmatpush1.msra.mxu0 0.0
    %3140 = vmatprep.subr.mxu0 0.0
    %3141 = vmatpush1.msra.mxu0 0.0
    %3142 = vmatprep.subr.mxu0 0.0
    %3143 = vmatpush1.msra.mxu0 0.0
    %3144 = vmatprep.subr.mxu0 0.0
    %3145 = vmatpush1.msra.mxu0 0.0
    %3146 = vmatprep.subr.mxu0 0.0
    %3147 = vmatpush1.msra.mxu0 0.0
    %3148 = vmatprep.subr.mxu0 0.0
    %3149 = vmatpush1.msra.mxu0 0.0
    %3150 = vmatprep.subr.mxu0 0.0
    %3151 = vmatpush1.msra.mxu0 %v3113
    %3152 = vmatprep.subr.mxu0 0.0
    %3153 = vmatpush1.msra.mxu0 %v3111
    %3154 = vmatprep.subr.mxu0 0.0
    %3155 = vmatpush2.msra.mxu0 0.0
    %3156 = vmatprep.subr.mxu0 0.0
    %3157 = vmatpush2.msra.mxu0 0.0
    %3158 = vmatprep.subr.mxu0 0.0
    %3159 = vmatpush2.msra.mxu0 0.0
    %3160 = vmatprep.subr.mxu0 0.0
    %3161 = vmatpush2.msra.mxu0 0.0
    %3162 = vmatprep.subr.mxu0 0.0
    %3163 = vmatpush2.msra.mxu0 0.0
    %3164 = vmatprep.subr.mxu0 0.0
    %3165 = vmatpush2.msra.mxu0 0.0
    %3166 = vmatprep.subr.mxu0 0.0
    %3167 = vmatpush2.msra.mxu0 0.0
    %3168 = vmatprep.subr.mxu0 0.0
    %3169 = vmatpush2.msra.mxu0 0.0
    %3170 = vmatprep.subr.mxu0 0.0
    %3171 = vmatpush2.msra.mxu0 0.0
    %3172 = vmatprep.subr.mxu0 0.0
    %3173 = vmatpush2.msra.mxu0 0.0
    %3174 = vmatprep.subr.mxu0 0.0
    %3175 = vmatpush2.msra.mxu0 0.0
    %3176 = vmatprep.subr.mxu0 0.0
    %3177 = vmatpush2.msra.mxu0 0.0
    %3178 = vmatprep.subr.mxu0 0.0
    %3179 = vmatpush2.msra.mxu0 0.0
    %3180 = vmatprep.subr.mxu0 0.0
    %3181 = vmatpush2.msra.mxu0 0.0
    %3182 = vmatprep.subr.mxu0 0.0
    %3183 = vmatpush2.msra.mxu0 0.0
    %3184 = vmatprep.subr.mxu0 0.0
    %3185 = vmatpush2.msra.mxu0 0.0
    %3186 = vmatprep.mubr.f32.mxu0 0.0
    %3187 = vmatmul.mubr.f32.gmra.mxu0 %v3117
    %v3188 = vpop.f32.mrf.mxu0
    %v3189 = vadd.f32 0.0, %v3188
    %v3190 = vpop.f32.mrf.mxu0
    %3191 = vmatprep.mubr.f32.mxu0 0.0
    %3192 = vmatmul.mubr.f32.gmra.mxu0 %v3120
    %v3193 = vpop.f32.mrf.mxu0
    %v3194 = vadd.f32 0.0, %v3193
    %v3195 = vpop.f32.mrf.mxu0
    %3196 = vdwg.mxu0
    %3197 = vrot.lane.b32.xlu0 %v252, 56
    %v3198 = vpop.permute.xlu0 %3197
    %3199 = vrot.lane.b32.xlu0 %v257, 56
    %v3200 = vpop.permute.xlu0 %3199
    %v3204 = vsel %vm1037, %v2926, 0
    %v3207 = vsel %vm1037, %v2927, 0
    %3209 = vmatprep.subr.mxu0 0.0
    %3210 = vmatpush1.msra.mxu0 0.0
    %3211 = vmatprep.subr.mxu0 0.0
    %3212 = vmatpush1.msra.mxu0 0.0
    %3213 = vmatprep.subr.mxu0 0.0
    %3214 = vmatpush1.msra.mxu0 0.0
    %3215 = vmatprep.subr.mxu0 0.0
    %3216 = vmatpush1.msra.mxu0 0.0
    %3217 = vmatprep.subr.mxu0 0.0
    %3218 = vmatpush1.msra.mxu0 0.0
    %3219 = vmatprep.subr.mxu0 0.0
    %3220 = vmatpush1.msra.mxu0 0.0
    %3221 = vmatprep.subr.mxu0 0.0
    %3222 = vmatpush1.msra.mxu0 0.0
    %3223 = vmatprep.subr.mxu0 0.0
    %3224 = vmatpush1.msra.mxu0 0.0
    %3225 = vmatprep.subr.mxu0 0.0
    %3226 = vmatpush1.msra.mxu0 0.0
    %3227 = vmatprep.subr.mxu0 0.0
    %3228 = vmatpush1.msra.mxu0 0.0
    %3229 = vmatprep.subr.mxu0 0.0
    %3230 = vmatpush1.msra.mxu0 0.0
    %3231 = vmatprep.subr.mxu0 0.0
    %3232 = vmatpush1.msra.mxu0 0.0
    %3233 = vmatprep.subr.mxu0 0.0
    %3234 = vmatpush1.msra.mxu0 0.0
    %3235 = vmatprep.subr.mxu0 0.0
    %3236 = vmatpush1.msra.mxu0 0.0
    %3237 = vmatprep.subr.mxu0 0.0
    %3238 = vmatpush1.msra.mxu0 %v3200
    %3239 = vmatprep.subr.mxu0 0.0
    %3240 = vmatpush1.msra.mxu0 %v3198
    %3241 = vmatprep.subr.mxu0 0.0
    %3242 = vmatpush2.msra.mxu0 0.0
    %3243 = vmatprep.subr.mxu0 0.0
    %3244 = vmatpush2.msra.mxu0 0.0
    %3245 = vmatprep.subr.mxu0 0.0
    %3246 = vmatpush2.msra.mxu0 0.0
    %3247 = vmatprep.subr.mxu0 0.0
    %3248 = vmatpush2.msra.mxu0 0.0
    %3249 = vmatprep.subr.mxu0 0.0
    %3250 = vmatpush2.msra.mxu0 0.0
    %3251 = vmatprep.subr.mxu0 0.0
    %3252 = vmatpush2.msra.mxu0 0.0
    %3253 = vmatprep.subr.mxu0 0.0
    %3254 = vmatpush2.msra.mxu0 0.0
    %3255 = vmatprep.subr.mxu0 0.0
    %3256 = vmatpush2.msra.mxu0 0.0
    %3257 = vmatprep.subr.mxu0 0.0
    %3258 = vmatpush2.msra.mxu0 0.0
    %3259 = vmatprep.subr.mxu0 0.0
    %3260 = vmatpush2.msra.mxu0 0.0
    %3261 = vmatprep.subr.mxu0 0.0
    %3262 = vmatpush2.msra.mxu0 0.0
    %3263 = vmatprep.subr.mxu0 0.0
    %3264 = vmatpush2.msra.mxu0 0.0
    %3265 = vmatprep.subr.mxu0 0.0
    %3266 = vmatpush2.msra.mxu0 0.0
    %3267 = vmatprep.subr.mxu0 0.0
    %3268 = vmatpush2.msra.mxu0 0.0
    %3269 = vmatprep.subr.mxu0 0.0
    %3270 = vmatpush2.msra.mxu0 0.0
    %3271 = vmatprep.subr.mxu0 0.0
    %3272 = vmatpush2.msra.mxu0 0.0
    %3273 = vmatprep.mubr.f32.mxu0 0.0
    %3274 = vmatmul.mubr.f32.gmra.mxu0 %v3204
    %v3275 = vpop.f32.mrf.mxu0
    %v3276 = vadd.f32 0.0, %v3275
    %v3277 = vpop.f32.mrf.mxu0
    %3278 = vmatprep.mubr.f32.mxu0 0.0
    %3279 = vmatmul.mubr.f32.gmra.mxu0 %v3207
    %v3280 = vpop.f32.mrf.mxu0
    %v3281 = vadd.f32 0.0, %v3280
    %v3282 = vpop.f32.mrf.mxu0
    %3283 = vdwg.mxu0
    %3284 = vrot.lane.b32.xlu0 %v262, 56
    %v3285 = vpop.permute.xlu0 %3284
    %3286 = vrot.lane.b32.xlu0 %v267, 56
    %v3287 = vpop.permute.xlu0 %3286
    %v3291 = vsel %vm1037, %v2928, 0
    %v3294 = vsel %vm1037, %v2929, 0
    %3296 = vmatprep.subr.mxu0 0.0
    %3297 = vmatpush1.msra.mxu0 0.0
    %3298 = vmatprep.subr.mxu0 0.0
    %3299 = vmatpush1.msra.mxu0 0.0
    %3300 = vmatprep.subr.mxu0 0.0
    %3301 = vmatpush1.msra.mxu0 0.0
    %3302 = vmatprep.subr.mxu0 0.0
    %3303 = vmatpush1.msra.mxu0 0.0
    %3304 = vmatprep.subr.mxu0 0.0
    %3305 = vmatpush1.msra.mxu0 0.0
    %3306 = vmatprep.subr.mxu0 0.0
    %3307 = vmatpush1.msra.mxu0 0.0
    %3308 = vmatprep.subr.mxu0 0.0
    %3309 = vmatpush1.msra.mxu0 0.0
    %3310 = vmatprep.subr.mxu0 0.0
    %3311 = vmatpush1.msra.mxu0 0.0
    %3312 = vmatprep.subr.mxu0 0.0
    %3313 = vmatpush1.msra.mxu0 0.0
    %3314 = vmatprep.subr.mxu0 0.0
    %3315 = vmatpush1.msra.mxu0 0.0
    %3316 = vmatprep.subr.mxu0 0.0
    %3317 = vmatpush1.msra.mxu0 0.0
    %3318 = vmatprep.subr.mxu0 0.0
    %3319 = vmatpush1.msra.mxu0 0.0
    %3320 = vmatprep.subr.mxu0 0.0
    %3321 = vmatpush1.msra.mxu0 0.0
    %3322 = vmatprep.subr.mxu0 0.0
    %3323 = vmatpush1.msra.mxu0 0.0
    %3324 = vmatprep.subr.mxu0 0.0
    %3325 = vmatpush1.msra.mxu0 %v3287
    %3326 = vmatprep.subr.mxu0 0.0
    %3327 = vmatpush1.msra.mxu0 %v3285
    %3328 = vmatprep.subr.mxu0 0.0
    %3329 = vmatpush2.msra.mxu0 0.0
    %3330 = vmatprep.subr.mxu0 0.0
    %3331 = vmatpush2.msra.mxu0 0.0
    %3332 = vmatprep.subr.mxu0 0.0
    %3333 = vmatpush2.msra.mxu0 0.0
    %3334 = vmatprep.subr.mxu0 0.0
    %3335 = vmatpush2.msra.mxu0 0.0
    %3336 = vmatprep.subr.mxu0 0.0
    %3337 = vmatpush2.msra.mxu0 0.0
    %3338 = vmatprep.subr.mxu0 0.0
    %3339 = vmatpush2.msra.mxu0 0.0
    %3340 = vmatprep.subr.mxu0 0.0
    %3341 = vmatpush2.msra.mxu0 0.0
    %3342 = vmatprep.subr.mxu0 0.0
    %3343 = vmatpush2.msra.mxu0 0.0
    %3344 = vmatprep.subr.mxu0 0.0
    %3345 = vmatpush2.msra.mxu0 0.0
    %3346 = vmatprep.subr.mxu0 0.0
    %3347 = vmatpush2.msra.mxu0 0.0
    %3348 = vmatprep.subr.mxu0 0.0
    %3349 = vmatpush2.msra.mxu0 0.0
    %3350 = vmatprep.subr.mxu0 0.0
    %3351 = vmatpush2.msra.mxu0 0.0
    %3352 = vmatprep.subr.mxu0 0.0
    %3353 = vmatpush2.msra.mxu0 0.0
    %3354 = vmatprep.subr.mxu0 0.0
    %3355 = vmatpush2.msra.mxu0 0.0
    %3356 = vmatprep.subr.mxu0 0.0
    %3357 = vmatpush2.msra.mxu0 0.0
    %3358 = vmatprep.subr.mxu0 0.0
    %3359 = vmatpush2.msra.mxu0 0.0
    %3360 = vmatprep.mubr.f32.mxu0 0.0
    %3361 = vmatmul.mubr.f32.gmra.mxu0 %v3291
    %v3362 = vpop.f32.mrf.mxu0
    %v3363 = vadd.f32 0.0, %v3362
    %v3364 = vpop.f32.mrf.mxu0
    %3365 = vmatprep.mubr.f32.mxu0 0.0
    %3366 = vmatmul.mubr.f32.gmra.mxu0 %v3294
    %v3367 = vpop.f32.mrf.mxu0
    %v3368 = vadd.f32 0.0, %v3367
    %v3369 = vpop.f32.mrf.mxu0
    %3370 = vdwg.mxu0
    %3371 = vrot.lane.b32.xlu0 %v272, 56
    %v3372 = vpop.permute.xlu0 %3371
    %3373 = vrot.lane.b32.xlu0 %v277, 56
    %v3374 = vpop.permute.xlu0 %3373
    %v3378 = vsel %vm1037, %v2930, 0
    %v3381 = vsel %vm1037, %v2931, 0
    %3383 = vmatprep.subr.mxu0 0.0
    %3384 = vmatpush1.msra.mxu0 0.0
    %3385 = vmatprep.subr.mxu0 0.0
    %3386 = vmatpush1.msra.mxu0 0.0
    %3387 = vmatprep.subr.mxu0 0.0
    %3388 = vmatpush1.msra.mxu0 0.0
    %3389 = vmatprep.subr.mxu0 0.0
    %3390 = vmatpush1.msra.mxu0 0.0
    %3391 = vmatprep.subr.mxu0 0.0
    %3392 = vmatpush1.msra.mxu0 0.0
    %3393 = vmatprep.subr.mxu0 0.0
    %3394 = vmatpush1.msra.mxu0 0.0
    %3395 = vmatprep.subr.mxu0 0.0
    %3396 = vmatpush1.msra.mxu0 0.0
    %3397 = vmatprep.subr.mxu0 0.0
    %3398 = vmatpush1.msra.mxu0 0.0
    %3399 = vmatprep.subr.mxu0 0.0
    %3400 = vmatpush1.msra.mxu0 0.0
    %3401 = vmatprep.subr.mxu0 0.0
    %3402 = vmatpush1.msra.mxu0 0.0
    %3403 = vmatprep.subr.mxu0 0.0
    %3404 = vmatpush1.msra.mxu0 0.0
    %3405 = vmatprep.subr.mxu0 0.0
    %3406 = vmatpush1.msra.mxu0 0.0
    %3407 = vmatprep.subr.mxu0 0.0
    %3408 = vmatpush1.msra.mxu0 0.0
    %3409 = vmatprep.subr.mxu0 0.0
    %3410 = vmatpush1.msra.mxu0 0.0
    %3411 = vmatprep.subr.mxu0 0.0
    %3412 = vmatpush1.msra.mxu0 %v3374
    %3413 = vmatprep.subr.mxu0 0.0
    %3414 = vmatpush1.msra.mxu0 %v3372
    %3415 = vmatprep.subr.mxu0 0.0
    %3416 = vmatpush2.msra.mxu0 0.0
    %3417 = vmatprep.subr.mxu0 0.0
    %3418 = vmatpush2.msra.mxu0 0.0
    %3419 = vmatprep.subr.mxu0 0.0
    %3420 = vmatpush2.msra.mxu0 0.0
    %3421 = vmatprep.subr.mxu0 0.0
    %3422 = vmatpush2.msra.mxu0 0.0
    %3423 = vmatprep.subr.mxu0 0.0
    %3424 = vmatpush2.msra.mxu0 0.0
    %3425 = vmatprep.subr.mxu0 0.0
    %3426 = vmatpush2.msra.mxu0 0.0
    %3427 = vmatprep.subr.mxu0 0.0
    %3428 = vmatpush2.msra.mxu0 0.0
    %3429 = vmatprep.subr.mxu0 0.0
    %3430 = vmatpush2.msra.mxu0 0.0
    %3431 = vmatprep.subr.mxu0 0.0
    %3432 = vmatpush2.msra.mxu0 0.0
    %3433 = vmatprep.subr.mxu0 0.0
    %3434 = vmatpush2.msra.mxu0 0.0
    %3435 = vmatprep.subr.mxu0 0.0
    %3436 = vmatpush2.msra.mxu0 0.0
    %3437 = vmatprep.subr.mxu0 0.0
    %3438 = vmatpush2.msra.mxu0 0.0
    %3439 = vmatprep.subr.mxu0 0.0
    %3440 = vmatpush2.msra.mxu0 0.0
    %3441 = vmatprep.subr.mxu0 0.0
    %3442 = vmatpush2.msra.mxu0 0.0
    %3443 = vmatprep.subr.mxu0 0.0
    %3444 = vmatpush2.msra.mxu0 0.0
    %3445 = vmatprep.subr.mxu0 0.0
    %3446 = vmatpush2.msra.mxu0 0.0
    %3447 = vmatprep.mubr.f32.mxu0 0.0
    %3448 = vmatmul.mubr.f32.gmra.mxu0 %v3378
    %v3449 = vpop.f32.mrf.mxu0
    %v3450 = vadd.f32 0.0, %v3449
    %v3451 = vpop.f32.mrf.mxu0
    %3452 = vmatprep.mubr.f32.mxu0 0.0
    %3453 = vmatmul.mubr.f32.gmra.mxu0 %v3381
    %v3454 = vpop.f32.mrf.mxu0
    %v3455 = vadd.f32 0.0, %v3454
    %v3456 = vpop.f32.mrf.mxu0
    %3457 = vdwg.mxu0
    %3458 = vrot.lane.b32.xlu0 %v282, 56
    %v3459 = vpop.permute.xlu0 %3458
    %3460 = vrot.lane.b32.xlu0 %v287, 56
    %v3461 = vpop.permute.xlu0 %3460
    %v3465 = vsel %vm1037, %v2932, 0
    %v3468 = vsel %vm1037, %v2933, 0
    %3470 = vmatprep.subr.mxu0 0.0
    %3471 = vmatpush1.msra.mxu0 0.0
    %3472 = vmatprep.subr.mxu0 0.0
    %3473 = vmatpush1.msra.mxu0 0.0
    %3474 = vmatprep.subr.mxu0 0.0
    %3475 = vmatpush1.msra.mxu0 0.0
    %3476 = vmatprep.subr.mxu0 0.0
    %3477 = vmatpush1.msra.mxu0 0.0
    %3478 = vmatprep.subr.mxu0 0.0
    %3479 = vmatpush1.msra.mxu0 0.0
    %3480 = vmatprep.subr.mxu0 0.0
    %3481 = vmatpush1.msra.mxu0 0.0
    %3482 = vmatprep.subr.mxu0 0.0
    %3483 = vmatpush1.msra.mxu0 0.0
    %3484 = vmatprep.subr.mxu0 0.0
    %3485 = vmatpush1.msra.mxu0 0.0
    %3486 = vmatprep.subr.mxu0 0.0
    %3487 = vmatpush1.msra.mxu0 0.0
    %3488 = vmatprep.subr.mxu0 0.0
    %3489 = vmatpush1.msra.mxu0 0.0
    %3490 = vmatprep.subr.mxu0 0.0
    %3491 = vmatpush1.msra.mxu0 0.0
    %3492 = vmatprep.subr.mxu0 0.0
    %3493 = vmatpush1.msra.mxu0 0.0
    %3494 = vmatprep.subr.mxu0 0.0
    %3495 = vmatpush1.msra.mxu0 0.0
    %3496 = vmatprep.subr.mxu0 0.0
    %3497 = vmatpush1.msra.mxu0 0.0
    %3498 = vmatprep.subr.mxu0 0.0
    %3499 = vmatpush1.msra.mxu0 %v3461
    %3500 = vmatprep.subr.mxu0 0.0
    %3501 = vmatpush1.msra.mxu0 %v3459
    %3502 = vmatprep.subr.mxu0 0.0
    %3503 = vmatpush2.msra.mxu0 0.0
    %3504 = vmatprep.subr.mxu0 0.0
    %3505 = vmatpush2.msra.mxu0 0.0
    %3506 = vmatprep.subr.mxu0 0.0
    %3507 = vmatpush2.msra.mxu0 0.0
    %3508 = vmatprep.subr.mxu0 0.0
    %3509 = vmatpush2.msra.mxu0 0.0
    %3510 = vmatprep.subr.mxu0 0.0
    %3511 = vmatpush2.msra.mxu0 0.0
    %3512 = vmatprep.subr.mxu0 0.0
    %3513 = vmatpush2.msra.mxu0 0.0
    %3514 = vmatprep.subr.mxu0 0.0
    %3515 = vmatpush2.msra.mxu0 0.0
    %3516 = vmatprep.subr.mxu0 0.0
    %3517 = vmatpush2.msra.mxu0 0.0
    %3518 = vmatprep.subr.mxu0 0.0
    %3519 = vmatpush2.msra.mxu0 0.0
    %3520 = vmatprep.subr.mxu0 0.0
    %3521 = vmatpush2.msra.mxu0 0.0
    %3522 = vmatprep.subr.mxu0 0.0
    %3523 = vmatpush2.msra.mxu0 0.0
    %3524 = vmatprep.subr.mxu0 0.0
    %3525 = vmatpush2.msra.mxu0 0.0
    %3526 = vmatprep.subr.mxu0 0.0
    %3527 = vmatpush2.msra.mxu0 0.0
    %3528 = vmatprep.subr.mxu0 0.0
    %3529 = vmatpush2.msra.mxu0 0.0
    %3530 = vmatprep.subr.mxu0 0.0
    %3531 = vmatpush2.msra.mxu0 0.0
    %3532 = vmatprep.subr.mxu0 0.0
    %3533 = vmatpush2.msra.mxu0 0.0
    %3534 = vmatprep.mubr.f32.mxu0 0.0
    %3535 = vmatmul.mubr.f32.gmra.mxu0 %v3465
    %v3536 = vpop.f32.mrf.mxu0
    %v3537 = vadd.f32 0.0, %v3536
    %v3538 = vpop.f32.mrf.mxu0
    %3539 = vmatprep.mubr.f32.mxu0 0.0
    %3540 = vmatmul.mubr.f32.gmra.mxu0 %v3468
    %v3541 = vpop.f32.mrf.mxu0
    %v3542 = vadd.f32 0.0, %v3541
    %v3543 = vpop.f32.mrf.mxu0
    %3544 = vdwg.mxu0
    %3545 = vrot.lane.b32.xlu0 %v292, 56
    %v3546 = vpop.permute.xlu0 %3545
    %3547 = vrot.lane.b32.xlu0 %v297, 56
    %v3548 = vpop.permute.xlu0 %3547
    %v3552 = vsel %vm1037, %v2934, 0
    %v3555 = vsel %vm1037, %v2935, 0
    %3557 = vmatprep.subr.mxu0 0.0
    %3558 = vmatpush1.msra.mxu0 0.0
    %3559 = vmatprep.subr.mxu0 0.0
    %3560 = vmatpush1.msra.mxu0 0.0
    %3561 = vmatprep.subr.mxu0 0.0
    %3562 = vmatpush1.msra.mxu0 0.0
    %3563 = vmatprep.subr.mxu0 0.0
    %3564 = vmatpush1.msra.mxu0 0.0
    %3565 = vmatprep.subr.mxu0 0.0
    %3566 = vmatpush1.msra.mxu0 0.0
    %3567 = vmatprep.subr.mxu0 0.0
    %3568 = vmatpush1.msra.mxu0 0.0
    %3569 = vmatprep.subr.mxu0 0.0
    %3570 = vmatpush1.msra.mxu0 0.0
    %3571 = vmatprep.subr.mxu0 0.0
    %3572 = vmatpush1.msra.mxu0 0.0
    %3573 = vmatprep.subr.mxu0 0.0
    %3574 = vmatpush1.msra.mxu0 0.0
    %3575 = vmatprep.subr.mxu0 0.0
    %3576 = vmatpush1.msra.mxu0 0.0
    %3577 = vmatprep.subr.mxu0 0.0
    %3578 = vmatpush1.msra.mxu0 0.0
    %3579 = vmatprep.subr.mxu0 0.0
    %3580 = vmatpush1.msra.mxu0 0.0
    %3581 = vmatprep.subr.mxu0 0.0
    %3582 = vmatpush1.msra.mxu0 0.0
    %3583 = vmatprep.subr.mxu0 0.0
    %3584 = vmatpush1.msra.mxu0 0.0
    %3585 = vmatprep.subr.mxu0 0.0
    %3586 = vmatpush1.msra.mxu0 %v3548
    %3587 = vmatprep.subr.mxu0 0.0
    %3588 = vmatpush1.msra.mxu0 %v3546
    %3589 = vmatprep.subr.mxu0 0.0
    %3590 = vmatpush2.msra.mxu0 0.0
    %3591 = vmatprep.subr.mxu0 0.0
    %3592 = vmatpush2.msra.mxu0 0.0
    %3593 = vmatprep.subr.mxu0 0.0
    %3594 = vmatpush2.msra.mxu0 0.0
    %3595 = vmatprep.subr.mxu0 0.0
    %3596 = vmatpush2.msra.mxu0 0.0
    %3597 = vmatprep.subr.mxu0 0.0
    %3598 = vmatpush2.msra.mxu0 0.0
    %3599 = vmatprep.subr.mxu0 0.0
    %3600 = vmatpush2.msra.mxu0 0.0
    %3601 = vmatprep.subr.mxu0 0.0
    %3602 = vmatpush2.msra.mxu0 0.0
    %3603 = vmatprep.subr.mxu0 0.0
    %3604 = vmatpush2.msra.mxu0 0.0
    %3605 = vmatprep.subr.mxu0 0.0
    %3606 = vmatpush2.msra.mxu0 0.0
    %3607 = vmatprep.subr.mxu0 0.0
    %3608 = vmatpush2.msra.mxu0 0.0
    %3609 = vmatprep.subr.mxu0 0.0
    %3610 = vmatpush2.msra.mxu0 0.0
    %3611 = vmatprep.subr.mxu0 0.0
    %3612 = vmatpush2.msra.mxu0 0.0
    %3613 = vmatprep.subr.mxu0 0.0
    %3614 = vmatpush2.msra.mxu0 0.0
    %3615 = vmatprep.subr.mxu0 0.0
    %3616 = vmatpush2.msra.mxu0 0.0
    %3617 = vmatprep.subr.mxu0 0.0
    %3618 = vmatpush2.msra.mxu0 0.0
    %3619 = vmatprep.subr.mxu0 0.0
    %3620 = vmatpush2.msra.mxu0 0.0
    %3621 = vmatprep.mubr.f32.mxu0 0.0
    %3622 = vmatmul.mubr.f32.gmra.mxu0 %v3552
    %v3623 = vpop.f32.mrf.mxu0
    %v3624 = vadd.f32 0.0, %v3623
    %v3625 = vpop.f32.mrf.mxu0
    %3626 = vmatprep.mubr.f32.mxu0 0.0
    %3627 = vmatmul.mubr.f32.gmra.mxu0 %v3555
    %v3628 = vpop.f32.mrf.mxu0
    %v3629 = vadd.f32 0.0, %v3628
    %v3630 = vpop.f32.mrf.mxu0
    %3631 = vdwg.mxu0
    %v3632 = vld [vmem:[#allocation7 + $0x8] sm:$0xff]
    %v3634 = vsel %vm306, %v3015, 0
    %v3637 = vsel %vm306, %v3020, 0
    %v3640 = vsel %vm306, %v3102, 0
    %v3643 = vsel %vm306, %v3107, 0
    %v3646 = vsel %vm306, %v3189, 0
    %v3649 = vsel %vm306, %v3194, 0
    %v3652 = vsel %vm306, %v3276, 0
    %v3655 = vsel %vm306, %v3281, 0
    %v3658 = vsel %vm306, %v3363, 0
    %v3661 = vsel %vm306, %v3368, 0
    %v3664 = vsel %vm306, %v3450, 0
    %v3667 = vsel %vm306, %v3455, 0
    %v3670 = vsel %vm306, %v3537, 0
    %v3673 = vsel %vm306, %v3542, 0
    %v3676 = vsel %vm306, %v3624, 0
    %v3679 = vsel %vm306, %v3629, 0
    %3681 = vmatprep.subr.mxu0 0.0
    %3682 = vmatpush1.msra.mxu0 0.0
    %3683 = vmatprep.subr.mxu0 0.0
    %3684 = vmatpush1.msra.mxu0 0.0
    %3685 = vmatprep.subr.mxu0 0.0
    %3686 = vmatpush1.msra.mxu0 0.0
    %3687 = vmatprep.subr.mxu0 0.0
    %3688 = vmatpush1.msra.mxu0 0.0
    %3689 = vmatprep.subr.mxu0 0.0
    %3690 = vmatpush1.msra.mxu0 0.0
    %3691 = vmatprep.subr.mxu0 0.0
    %3692 = vmatpush1.msra.mxu0 0.0
    %3693 = vmatprep.subr.mxu0 0.0
    %3694 = vmatpush1.msra.mxu0 0.0
    %3695 = vmatprep.subr.mxu0 0.0
    %3696 = vmatpush1.msra.mxu0 0.0
    %3697 = vmatprep.subr.mxu0 0.0
    %3698 = vmatpush1.msra.mxu0 0.0
    %3699 = vmatprep.subr.mxu0 0.0
    %3700 = vmatpush1.msra.mxu0 0.0
    %3701 = vmatprep.subr.mxu0 0.0
    %3702 = vmatpush1.msra.mxu0 0.0
    %3703 = vmatprep.subr.mxu0 0.0
    %3704 = vmatpush1.msra.mxu0 0.0
    %3705 = vmatprep.subr.mxu0 0.0
    %3706 = vmatpush1.msra.mxu0 0.0
    %3707 = vmatprep.subr.mxu0 0.0
    %3708 = vmatpush1.msra.mxu0 0.0
    %3709 = vmatprep.subr.mxu0 0.0
    %3710 = vmatpush1.msra.mxu0 0.0
    %3711 = vmatprep.subr.mxu0 0.0
    %3712 = vmatpush1.msra.mxu0 %v3632
    %3713 = vmatprep.subr.mxu0 0.0
    %3714 = vmatpush2.msra.mxu0 0.0
    %3715 = vmatprep.subr.mxu0 0.0
    %3716 = vmatpush2.msra.mxu0 0.0
    %3717 = vmatprep.subr.mxu0 0.0
    %3718 = vmatpush2.msra.mxu0 0.0
    %3719 = vmatprep.subr.mxu0 0.0
    %3720 = vmatpush2.msra.mxu0 0.0
    %3721 = vmatprep.subr.mxu0 0.0
    %3722 = vmatpush2.msra.mxu0 0.0
    %3723 = vmatprep.subr.mxu0 0.0
    %3724 = vmatpush2.msra.mxu0 0.0
    %3725 = vmatprep.subr.mxu0 0.0
    %3726 = vmatpush2.msra.mxu0 0.0
    %3727 = vmatprep.subr.mxu0 0.0
    %3728 = vmatpush2.msra.mxu0 0.0
    %3729 = vmatprep.subr.mxu0 0.0
    %3730 = vmatpush2.msra.mxu0 0.0
    %3731 = vmatprep.subr.mxu0 0.0
    %3732 = vmatpush2.msra.mxu0 0.0
    %3733 = vmatprep.subr.mxu0 0.0
    %3734 = vmatpush2.msra.mxu0 0.0
    %3735 = vmatprep.subr.mxu0 0.0
    %3736 = vmatpush2.msra.mxu0 0.0
    %3737 = vmatprep.subr.mxu0 0.0
    %3738 = vmatpush2.msra.mxu0 0.0
    %3739 = vmatprep.subr.mxu0 0.0
    %3740 = vmatpush2.msra.mxu0 0.0
    %3741 = vmatprep.subr.mxu0 0.0
    %3742 = vmatpush2.msra.mxu0 0.0
    %3743 = vmatprep.subr.mxu0 0.0
    %3744 = vmatpush2.msra.mxu0 0.0
    %3745 = vmatprep.mubr.f32.mxu0 0.0
    %3746 = vmatmul.mubr.f32.gmra.mxu0 %v3634
    %v3747 = vpop.f32.mrf.mxu0
    %v3748 = vadd.f32 0.0, %v3747
    %v3749 = vpop.f32.mrf.mxu0
    %3750 = vmatprep.mubr.f32.mxu0 0.0
    %3751 = vmatmul.mubr.f32.gmra.mxu0 %v3637
    %v3752 = vpop.f32.mrf.mxu0
    %v3753 = vadd.f32 0.0, %v3752
    %v3754 = vpop.f32.mrf.mxu0
    %3755 = vmatprep.mubr.f32.mxu0 0.0
    %3756 = vmatmul.mubr.f32.gmra.mxu0 %v3640
    %v3757 = vpop.f32.mrf.mxu0
    %v3758 = vadd.f32 0.0, %v3757
    %v3759 = vpop.f32.mrf.mxu0
    %3760 = vmatprep.mubr.f32.mxu0 0.0
    %3761 = vmatmul.mubr.f32.gmra.mxu0 %v3643
    %v3762 = vpop.f32.mrf.mxu0
    %v3763 = vadd.f32 0.0, %v3762
    %v3764 = vpop.f32.mrf.mxu0
    %3765 = vmatprep.mubr.f32.mxu0 0.0
    %3766 = vmatmul.mubr.f32.gmra.mxu0 %v3646
    %v3767 = vpop.f32.mrf.mxu0
    %v3768 = vadd.f32 0.0, %v3767
    %v3769 = vpop.f32.mrf.mxu0
    %3770 = vmatprep.mubr.f32.mxu0 0.0
    %3771 = vmatmul.mubr.f32.gmra.mxu0 %v3649
    %v3772 = vpop.f32.mrf.mxu0
    %v3773 = vadd.f32 0.0, %v3772
    %v3774 = vpop.f32.mrf.mxu0
    %3775 = vmatprep.mubr.f32.mxu0 0.0
    %3776 = vmatmul.mubr.f32.gmra.mxu0 %v3652
    %v3777 = vpop.f32.mrf.mxu0
    %v3778 = vadd.f32 0.0, %v3777
    %v3779 = vpop.f32.mrf.mxu0
    %3780 = vmatprep.mubr.f32.mxu0 0.0
    %3781 = vmatmul.mubr.f32.gmra.mxu0 %v3655
    %v3782 = vpop.f32.mrf.mxu0
    %v3783 = vadd.f32 0.0, %v3782
    %v3784 = vpop.f32.mrf.mxu0
    %3785 = vmatprep.mubr.f32.mxu0 0.0
    %3786 = vmatmul.mubr.f32.gmra.mxu0 %v3658
    %v3787 = vpop.f32.mrf.mxu0
    %v3788 = vadd.f32 0.0, %v3787
    %v3789 = vpop.f32.mrf.mxu0
    %3790 = vmatprep.mubr.f32.mxu0 0.0
    %3791 = vmatmul.mubr.f32.gmra.mxu0 %v3661
    %v3792 = vpop.f32.mrf.mxu0
    %v3793 = vadd.f32 0.0, %v3792
    %v3794 = vpop.f32.mrf.mxu0
    %3795 = vmatprep.mubr.f32.mxu0 0.0
    %3796 = vmatmul.mubr.f32.gmra.mxu0 %v3664
    %v3797 = vpop.f32.mrf.mxu0
    %v3798 = vadd.f32 0.0, %v3797
    %v3799 = vpop.f32.mrf.mxu0
    %3800 = vmatprep.mubr.f32.mxu0 0.0
    %3801 = vmatmul.mubr.f32.gmra.mxu0 %v3667
    %v3802 = vpop.f32.mrf.mxu0
    %v3803 = vadd.f32 0.0, %v3802
    %v3804 = vpop.f32.mrf.mxu0
    %3805 = vmatprep.mubr.f32.mxu0 0.0
    %3806 = vmatmul.mubr.f32.gmra.mxu0 %v3670
    %v3807 = vpop.f32.mrf.mxu0
    %v3808 = vadd.f32 0.0, %v3807
    %v3809 = vpop.f32.mrf.mxu0
    %3810 = vmatprep.mubr.f32.mxu0 0.0
    %3811 = vmatmul.mubr.f32.gmra.mxu0 %v3673
    %v3812 = vpop.f32.mrf.mxu0
    %v3813 = vadd.f32 0.0, %v3812
    %v3814 = vpop.f32.mrf.mxu0
    %3815 = vmatprep.mubr.f32.mxu0 0.0
    %3816 = vmatmul.mubr.f32.gmra.mxu0 %v3676
    %v3817 = vpop.f32.mrf.mxu0
    %v3818 = vadd.f32 0.0, %v3817
    %v3819 = vpop.f32.mrf.mxu0
    %3820 = vmatprep.mubr.f32.mxu0 0.0
    %3821 = vmatmul.mubr.f32.gmra.mxu0 %v3679
    %v3822 = vpop.f32.mrf.mxu0
    %v3823 = vadd.f32 0.0, %v3822
    %v3824 = vpop.f32.mrf.mxu0
    %3825 = vdwg.mxu0
    %v3827 = vsel %vm306, %v1341, 0
    %v3830 = vsel %vm306, %v1346, 0
    %v3833 = vsel %vm306, %v1428, 0
    %v3836 = vsel %vm306, %v1433, 0
    %v3839 = vsel %vm306, %v1515, 0
    %v3842 = vsel %vm306, %v1520, 0
    %v3845 = vsel %vm306, %v1602, 0
    %v3848 = vsel %vm306, %v1607, 0
    %v3851 = vsel %vm306, %v1689, 0
    %v3854 = vsel %vm306, %v1694, 0
    %v3857 = vsel %vm306, %v1776, 0
    %v3860 = vsel %vm306, %v1781, 0
    %v3863 = vsel %vm306, %v1863, 0
    %v3866 = vsel %vm306, %v1868, 0
    %v3869 = vsel %vm306, %v1950, 0
    %v3872 = vsel %vm306, %v1955, 0
    %3874 = vmatprep.subr.mxu0 0.0
    %3875 = vmatpush1.msra.mxu0 0.0
    %3876 = vmatprep.subr.mxu0 0.0
    %3877 = vmatpush1.msra.mxu0 0.0
    %3878 = vmatprep.subr.mxu0 0.0
    %3879 = vmatpush1.msra.mxu0 0.0
    %3880 = vmatprep.subr.mxu0 0.0
    %3881 = vmatpush1.msra.mxu0 0.0
    %3882 = vmatprep.subr.mxu0 0.0
    %3883 = vmatpush1.msra.mxu0 0.0
    %3884 = vmatprep.subr.mxu0 0.0
    %3885 = vmatpush1.msra.mxu0 0.0
    %3886 = vmatprep.subr.mxu0 0.0
    %3887 = vmatpush1.msra.mxu0 0.0
    %3888 = vmatprep.subr.mxu0 0.0
    %3889 = vmatpush1.msra.mxu0 0.0
    %3890 = vmatprep.subr.mxu0 0.0
    %3891 = vmatpush1.msra.mxu0 0.0
    %3892 = vmatprep.subr.mxu0 0.0
    %3893 = vmatpush1.msra.mxu0 0.0
    %3894 = vmatprep.subr.mxu0 0.0
    %3895 = vmatpush1.msra.mxu0 0.0
    %3896 = vmatprep.subr.mxu0 0.0
    %3897 = vmatpush1.msra.mxu0 0.0
    %3898 = vmatprep.subr.mxu0 0.0
    %3899 = vmatpush1.msra.mxu0 0.0
    %3900 = vmatprep.subr.mxu0 0.0
    %3901 = vmatpush1.msra.mxu0 0.0
    %3902 = vmatprep.subr.mxu0 0.0
    %3903 = vmatpush1.msra.mxu0 0.0
    %3904 = vmatprep.subr.mxu0 0.0
    %3905 = vmatpush1.msra.mxu0 %v1958
    %3906 = vmatprep.subr.mxu0 0.0
    %3907 = vmatpush2.msra.mxu0 0.0
    %3908 = vmatprep.subr.mxu0 0.0
    %3909 = vmatpush2.msra.mxu0 0.0
    %3910 = vmatprep.subr.mxu0 0.0
    %3911 = vmatpush2.msra.mxu0 0.0
    %3912 = vmatprep.subr.mxu0 0.0
    %3913 = vmatpush2.msra.mxu0 0.0
    %3914 = vmatprep.subr.mxu0 0.0
    %3915 = vmatpush2.msra.mxu0 0.0
    %3916 = vmatprep.subr.mxu0 0.0
    %3917 = vmatpush2.msra.mxu0 0.0
    %3918 = vmatprep.subr.mxu0 0.0
    %3919 = vmatpush2.msra.mxu0 0.0
    %3920 = vmatprep.subr.mxu0 0.0
    %3921 = vmatpush2.msra.mxu0 0.0
    %3922 = vmatprep.subr.mxu0 0.0
    %3923 = vmatpush2.msra.mxu0 0.0
    %3924 = vmatprep.subr.mxu0 0.0
    %3925 = vmatpush2.msra.mxu0 0.0
    %3926 = vmatprep.subr.mxu0 0.0
    %3927 = vmatpush2.msra.mxu0 0.0
    %3928 = vmatprep.subr.mxu0 0.0
    %3929 = vmatpush2.msra.mxu0 0.0
    %3930 = vmatprep.subr.mxu0 0.0
    %3931 = vmatpush2.msra.mxu0 0.0
    %3932 = vmatprep.subr.mxu0 0.0
    %3933 = vmatpush2.msra.mxu0 0.0
    %3934 = vmatprep.subr.mxu0 0.0
    %3935 = vmatpush2.msra.mxu0 0.0
    %3936 = vmatprep.subr.mxu0 0.0
    %3937 = vmatpush2.msra.mxu0 0.0
    %3938 = vmatprep.mubr.f32.mxu0 0.0
    %3939 = vmatmul.mubr.f32.gmra.mxu0 %v3827
    %v3940 = vpop.f32.mrf.mxu0
    %v3941 = vadd.f32 %v3748, %v3940
    %v3942 = vpop.f32.mrf.mxu0
    %3943 = vmatprep.mubr.f32.mxu0 0.0
    %3944 = vmatmul.mubr.f32.gmra.mxu0 %v3830
    %v3945 = vpop.f32.mrf.mxu0
    %v3946 = vadd.f32 %v3753, %v3945
    %v3947 = vpop.f32.mrf.mxu0
    %3948 = vmatprep.mubr.f32.mxu0 0.0
    %3949 = vmatmul.mubr.f32.gmra.mxu0 %v3833
    %v3950 = vpop.f32.mrf.mxu0
    %v3951 = vadd.f32 %v3758, %v3950
    %v3952 = vpop.f32.mrf.mxu0
    %3953 = vmatprep.mubr.f32.mxu0 0.0
    %3954 = vmatmul.mubr.f32.gmra.mxu0 %v3836
    %v3955 = vpop.f32.mrf.mxu0
    %v3956 = vadd.f32 %v3763, %v3955
    %v3957 = vpop.f32.mrf.mxu0
    %3958 = vmatprep.mubr.f32.mxu0 0.0
    %3959 = vmatmul.mubr.f32.gmra.mxu0 %v3839
    %v3960 = vpop.f32.mrf.mxu0
    %v3961 = vadd.f32 %v3768, %v3960
    %v3962 = vpop.f32.mrf.mxu0
    %3963 = vmatprep.mubr.f32.mxu0 0.0
    %3964 = vmatmul.mubr.f32.gmra.mxu0 %v3842
    %v3965 = vpop.f32.mrf.mxu0
    %v3966 = vadd.f32 %v3773, %v3965
    %v3967 = vpop.f32.mrf.mxu0
    %3968 = vmatprep.mubr.f32.mxu0 0.0
    %3969 = vmatmul.mubr.f32.gmra.mxu0 %v3845
    %v3970 = vpop.f32.mrf.mxu0
    %v3971 = vadd.f32 %v3778, %v3970
    %v3972 = vpop.f32.mrf.mxu0
    %3973 = vmatprep.mubr.f32.mxu0 0.0
    %3974 = vmatmul.mubr.f32.gmra.mxu0 %v3848
    %v3975 = vpop.f32.mrf.mxu0
    %v3976 = vadd.f32 %v3783, %v3975
    %v3977 = vpop.f32.mrf.mxu0
    %3978 = vmatprep.mubr.f32.mxu0 0.0
    %3979 = vmatmul.mubr.f32.gmra.mxu0 %v3851
    %v3980 = vpop.f32.mrf.mxu0
    %v3981 = vadd.f32 %v3788, %v3980
    %v3982 = vpop.f32.mrf.mxu0
    %3983 = vmatprep.mubr.f32.mxu0 0.0
    %3984 = vmatmul.mubr.f32.gmra.mxu0 %v3854
    %v3985 = vpop.f32.mrf.mxu0
    %v3986 = vadd.f32 %v3793, %v3985
    %v3987 = vpop.f32.mrf.mxu0
    %3988 = vmatprep.mubr.f32.mxu0 0.0
    %3989 = vmatmul.mubr.f32.gmra.mxu0 %v3857
    %v3990 = vpop.f32.mrf.mxu0
    %v3991 = vadd.f32 %v3798, %v3990
    %v3992 = vpop.f32.mrf.mxu0
    %3993 = vmatprep.mubr.f32.mxu0 0.0
    %3994 = vmatmul.mubr.f32.gmra.mxu0 %v3860
    %v3995 = vpop.f32.mrf.mxu0
    %v3996 = vadd.f32 %v3803, %v3995
    %v3997 = vpop.f32.mrf.mxu0
    %3998 = vmatprep.mubr.f32.mxu0 0.0
    %3999 = vmatmul.mubr.f32.gmra.mxu0 %v3863
    %v4000 = vpop.f32.mrf.mxu0
    %v4001 = vadd.f32 %v3808, %v4000
    %v4002 = vpop.f32.mrf.mxu0
    %4003 = vmatprep.mubr.f32.mxu0 0.0
    %4004 = vmatmul.mubr.f32.gmra.mxu0 %v3866
    %v4005 = vpop.f32.mrf.mxu0
    %v4006 = vadd.f32 %v3813, %v4005
    %v4007 = vpop.f32.mrf.mxu0
    %4008 = vmatprep.mubr.f32.mxu0 0.0
    %4009 = vmatmul.mubr.f32.gmra.mxu0 %v3869
    %v4010 = vpop.f32.mrf.mxu0
    %v4011 = vadd.f32 %v3818, %v4010
    %v4012 = vpop.f32.mrf.mxu0
    %4013 = vmatprep.mubr.f32.mxu0 0.0
    %4014 = vmatmul.mubr.f32.gmra.mxu0 %v3872
    %v4015 = vpop.f32.mrf.mxu0
    %v4016 = vadd.f32 %v3823, %v4015
    %v4017 = vpop.f32.mrf.mxu0
    %4018 = vdwg.mxu0
    %4019 = vrot.lane.b32.xlu0 %v222, 112
    %v4020 = vpop.permute.xlu0 %4019
    %4021 = vrot.lane.b32.xlu0 %v227, 112
    %v4022 = vpop.permute.xlu0 %4021
    %4023 = vrot.lane.b32.xlu0 %v222, 80
    %v4024 = vpop.permute.xlu0 %4023
    %4025 = vrot.lane.b32.xlu0 %v227, 80
    %v4026 = vpop.permute.xlu0 %4025
    %v4027 = vsel %vm306, %v4020, 0
    %v4029 = vsel %vm306, %v4022, 0
    %v4031 = vsel %vm306, %v4024, 0
    %v4033 = vsel %vm306, %v4026, 0
    %4035 = vmatprep.subr.mxu0 0.0
    %4036 = vmatpush1.xpose.msra.mxu0 0.0
    %4037 = vmatprep.subr.mxu0 0.0
    %4038 = vmatpush1.xpose.msra.mxu0 0.0
    %4039 = vmatprep.subr.mxu0 0.0
    %4040 = vmatpush1.xpose.msra.mxu0 0.0
    %4041 = vmatprep.subr.mxu0 0.0
    %4042 = vmatpush1.xpose.msra.mxu0 0.0
    %4043 = vmatprep.subr.mxu0 0.0
    %4044 = vmatpush1.xpose.msra.mxu0 0.0
    %4045 = vmatprep.subr.mxu0 0.0
    %4046 = vmatpush1.xpose.msra.mxu0 0.0
    %4047 = vmatprep.subr.mxu0 0.0
    %4048 = vmatpush1.xpose.msra.mxu0 0.0
    %4049 = vmatprep.subr.mxu0 0.0
    %4050 = vmatpush1.xpose.msra.mxu0 0.0
    %4051 = vmatprep.subr.mxu0 0.0
    %4052 = vmatpush1.xpose.msra.mxu0 0.0
    %4053 = vmatprep.subr.mxu0 0.0
    %4054 = vmatpush1.xpose.msra.mxu0 0.0
    %4055 = vmatprep.subr.mxu0 0.0
    %4056 = vmatpush1.xpose.msra.mxu0 0.0
    %4057 = vmatprep.subr.mxu0 0.0
    %4058 = vmatpush1.xpose.msra.mxu0 0.0
    %4059 = vmatprep.subr.mxu0 0.0
    %4060 = vmatpush1.xpose.msra.mxu0 0.0
    %4061 = vmatprep.subr.mxu0 0.0
    %4062 = vmatpush1.xpose.msra.mxu0 0.0
    %4063 = vmatprep.subr.mxu0 0.0
    %4064 = vmatpush1.xpose.msra.mxu0 %v4033
    %4065 = vmatprep.subr.mxu0 0.0
    %4066 = vmatpush1.xpose.msra.mxu0 %v4031
    %4067 = vmatprep.subr.mxu0 0.0
    %4068 = vmatpush2.xpose.msra.mxu0 0.0
    %4069 = vmatprep.subr.mxu0 0.0
    %4070 = vmatpush2.xpose.msra.mxu0 0.0
    %4071 = vmatprep.subr.mxu0 0.0
    %4072 = vmatpush2.xpose.msra.mxu0 0.0
    %4073 = vmatprep.subr.mxu0 0.0
    %4074 = vmatpush2.xpose.msra.mxu0 0.0
    %4075 = vmatprep.subr.mxu0 0.0
    %4076 = vmatpush2.xpose.msra.mxu0 0.0
    %4077 = vmatprep.subr.mxu0 0.0
    %4078 = vmatpush2.xpose.msra.mxu0 0.0
    %4079 = vmatprep.subr.mxu0 0.0
    %4080 = vmatpush2.xpose.msra.mxu0 0.0
    %4081 = vmatprep.subr.mxu0 0.0
    %4082 = vmatpush2.xpose.msra.mxu0 0.0
    %4083 = vmatprep.subr.mxu0 0.0
    %4084 = vmatpush2.xpose.msra.mxu0 0.0
    %4085 = vmatprep.subr.mxu0 0.0
    %4086 = vmatpush2.xpose.msra.mxu0 0.0
    %4087 = vmatprep.subr.mxu0 0.0
    %4088 = vmatpush2.xpose.msra.mxu0 0.0
    %4089 = vmatprep.subr.mxu0 0.0
    %4090 = vmatpush2.xpose.msra.mxu0 0.0
    %4091 = vmatprep.subr.mxu0 0.0
    %4092 = vmatpush2.xpose.msra.mxu0 0.0
    %4093 = vmatprep.subr.mxu0 0.0
    %4094 = vmatpush2.xpose.msra.mxu0 0.0
    %4095 = vmatprep.subr.mxu0 0.0
    %4096 = vmatpush2.xpose.msra.mxu0 0.0
    %4097 = vmatprep.subr.mxu0 0.0
    %4098 = vmatpush2.xpose.msra.mxu0 0.0
    %4099 = vmatprep.mubr.f32.mxu0 0.0
    %4100 = vmatmul.mubr.f32.gmra.mxu0 %v4027
    %v4101 = vpop.f32.mrf.mxu0
    %v4102 = vadd.f32 0.0, %v4101
    %v4103 = vpop.f32.mrf.mxu0
    %4104 = vmatprep.mubr.f32.mxu0 0.0
    %4105 = vmatmul.mubr.f32.gmra.mxu0 %v4029
    %v4106 = vpop.f32.mrf.mxu0
    %v4107 = vadd.f32 0.0, %v4106
    %v4108 = vpop.f32.mrf.mxu0
    %4109 = vdwg.mxu0
    %4110 = vrot.lane.b32.xlu0 %v232, 112
    %v4111 = vpop.permute.xlu0 %4110
    %4112 = vrot.lane.b32.xlu0 %v237, 112
    %v4113 = vpop.permute.xlu0 %4112
    %4114 = vrot.lane.b32.xlu0 %v232, 80
    %v4115 = vpop.permute.xlu0 %4114
    %4116 = vrot.lane.b32.xlu0 %v237, 80
    %v4117 = vpop.permute.xlu0 %4116
    %v4118 = vsel %vm306, %v4111, 0
    %v4120 = vsel %vm306, %v4113, 0
    %v4122 = vsel %vm306, %v4115, 0
    %v4124 = vsel %vm306, %v4117, 0
    %4126 = vmatprep.subr.mxu0 0.0
    %4127 = vmatpush1.xpose.msra.mxu0 0.0
    %4128 = vmatprep.subr.mxu0 0.0
    %4129 = vmatpush1.xpose.msra.mxu0 0.0
    %4130 = vmatprep.subr.mxu0 0.0
    %4131 = vmatpush1.xpose.msra.mxu0 0.0
    %4132 = vmatprep.subr.mxu0 0.0
    %4133 = vmatpush1.xpose.msra.mxu0 0.0
    %4134 = vmatprep.subr.mxu0 0.0
    %4135 = vmatpush1.xpose.msra.mxu0 0.0
    %4136 = vmatprep.subr.mxu0 0.0
    %4137 = vmatpush1.xpose.msra.mxu0 0.0
    %4138 = vmatprep.subr.mxu0 0.0
    %4139 = vmatpush1.xpose.msra.mxu0 0.0
    %4140 = vmatprep.subr.mxu0 0.0
    %4141 = vmatpush1.xpose.msra.mxu0 0.0
    %4142 = vmatprep.subr.mxu0 0.0
    %4143 = vmatpush1.xpose.msra.mxu0 0.0
    %4144 = vmatprep.subr.mxu0 0.0
    %4145 = vmatpush1.xpose.msra.mxu0 0.0
    %4146 = vmatprep.subr.mxu0 0.0
    %4147 = vmatpush1.xpose.msra.mxu0 0.0
    %4148 = vmatprep.subr.mxu0 0.0
    %4149 = vmatpush1.xpose.msra.mxu0 0.0
    %4150 = vmatprep.subr.mxu0 0.0
    %4151 = vmatpush1.xpose.msra.mxu0 0.0
    %4152 = vmatprep.subr.mxu0 0.0
    %4153 = vmatpush1.xpose.msra.mxu0 0.0
    %4154 = vmatprep.subr.mxu0 0.0
    %4155 = vmatpush1.xpose.msra.mxu0 %v4124
    %4156 = vmatprep.subr.mxu0 0.0
    %4157 = vmatpush1.xpose.msra.mxu0 %v4122
    %4158 = vmatprep.subr.mxu0 0.0
    %4159 = vmatpush2.xpose.msra.mxu0 0.0
    %4160 = vmatprep.subr.mxu0 0.0
    %4161 = vmatpush2.xpose.msra.mxu0 0.0
    %4162 = vmatprep.subr.mxu0 0.0
    %4163 = vmatpush2.xpose.msra.mxu0 0.0
    %4164 = vmatprep.subr.mxu0 0.0
    %4165 = vmatpush2.xpose.msra.mxu0 0.0
    %4166 = vmatprep.subr.mxu0 0.0
    %4167 = vmatpush2.xpose.msra.mxu0 0.0
    %4168 = vmatprep.subr.mxu0 0.0
    %4169 = vmatpush2.xpose.msra.mxu0 0.0
    %4170 = vmatprep.subr.mxu0 0.0
    %4171 = vmatpush2.xpose.msra.mxu0 0.0
    %4172 = vmatprep.subr.mxu0 0.0
    %4173 = vmatpush2.xpose.msra.mxu0 0.0
    %4174 = vmatprep.subr.mxu0 0.0
    %4175 = vmatpush2.xpose.msra.mxu0 0.0
    %4176 = vmatprep.subr.mxu0 0.0
    %4177 = vmatpush2.xpose.msra.mxu0 0.0
    %4178 = vmatprep.subr.mxu0 0.0
    %4179 = vmatpush2.xpose.msra.mxu0 0.0
    %4180 = vmatprep.subr.mxu0 0.0
    %4181 = vmatpush2.xpose.msra.mxu0 0.0
    %4182 = vmatprep.subr.mxu0 0.0
    %4183 = vmatpush2.xpose.msra.mxu0 0.0
    %4184 = vmatprep.subr.mxu0 0.0
    %4185 = vmatpush2.xpose.msra.mxu0 0.0
    %4186 = vmatprep.subr.mxu0 0.0
    %4187 = vmatpush2.xpose.msra.mxu0 0.0
    %4188 = vmatprep.subr.mxu0 0.0
    %4189 = vmatpush2.xpose.msra.mxu0 0.0
    %4190 = vmatprep.mubr.f32.mxu0 0.0
    %4191 = vmatmul.mubr.f32.gmra.mxu0 %v4118
    %v4192 = vpop.f32.mrf.mxu0
    %v4193 = vadd.f32 0.0, %v4192
    %v4194 = vpop.f32.mrf.mxu0
    %4195 = vmatprep.mubr.f32.mxu0 0.0
    %4196 = vmatmul.mubr.f32.gmra.mxu0 %v4120
    %v4197 = vpop.f32.mrf.mxu0
    %v4198 = vadd.f32 0.0, %v4197
    %v4199 = vpop.f32.mrf.mxu0
    %4200 = vdwg.mxu0
    %4201 = vrot.lane.b32.xlu0 %v242, 112
    %v4202 = vpop.permute.xlu0 %4201
    %4203 = vrot.lane.b32.xlu0 %v247, 112
    %v4204 = vpop.permute.xlu0 %4203
    %4205 = vrot.lane.b32.xlu0 %v242, 80
    %v4206 = vpop.permute.xlu0 %4205
    %4207 = vrot.lane.b32.xlu0 %v247, 80
    %v4208 = vpop.permute.xlu0 %4207
    %v4209 = vsel %vm306, %v4202, 0
    %v4211 = vsel %vm306, %v4204, 0
    %v4213 = vsel %vm306, %v4206, 0
    %v4215 = vsel %vm306, %v4208, 0
    %4217 = vmatprep.subr.mxu0 0.0
    %4218 = vmatpush1.xpose.msra.mxu0 0.0
    %4219 = vmatprep.subr.mxu0 0.0
    %4220 = vmatpush1.xpose.msra.mxu0 0.0
    %4221 = vmatprep.subr.mxu0 0.0
    %4222 = vmatpush1.xpose.msra.mxu0 0.0
    %4223 = vmatprep.subr.mxu0 0.0
    %4224 = vmatpush1.xpose.msra.mxu0 0.0
    %4225 = vmatprep.subr.mxu0 0.0
    %4226 = vmatpush1.xpose.msra.mxu0 0.0
    %4227 = vmatprep.subr.mxu0 0.0
    %4228 = vmatpush1.xpose.msra.mxu0 0.0
    %4229 = vmatprep.subr.mxu0 0.0
    %4230 = vmatpush1.xpose.msra.mxu0 0.0
    %4231 = vmatprep.subr.mxu0 0.0
    %4232 = vmatpush1.xpose.msra.mxu0 0.0
    %4233 = vmatprep.subr.mxu0 0.0
    %4234 = vmatpush1.xpose.msra.mxu0 0.0
    %4235 = vmatprep.subr.mxu0 0.0
    %4236 = vmatpush1.xpose.msra.mxu0 0.0
    %4237 = vmatprep.subr.mxu0 0.0
    %4238 = vmatpush1.xpose.msra.mxu0 0.0
    %4239 = vmatprep.subr.mxu0 0.0
    %4240 = vmatpush1.xpose.msra.mxu0 0.0
    %4241 = vmatprep.subr.mxu0 0.0
    %4242 = vmatpush1.xpose.msra.mxu0 0.0
    %4243 = vmatprep.subr.mxu0 0.0
    %4244 = vmatpush1.xpose.msra.mxu0 0.0
    %4245 = vmatprep.subr.mxu0 0.0
    %4246 = vmatpush1.xpose.msra.mxu0 %v4215
    %4247 = vmatprep.subr.mxu0 0.0
    %4248 = vmatpush1.xpose.msra.mxu0 %v4213
    %4249 = vmatprep.subr.mxu0 0.0
    %4250 = vmatpush2.xpose.msra.mxu0 0.0
    %4251 = vmatprep.subr.mxu0 0.0
    %4252 = vmatpush2.xpose.msra.mxu0 0.0
    %4253 = vmatprep.subr.mxu0 0.0
    %4254 = vmatpush2.xpose.msra.mxu0 0.0
    %4255 = vmatprep.subr.mxu0 0.0
    %4256 = vmatpush2.xpose.msra.mxu0 0.0
    %4257 = vmatprep.subr.mxu0 0.0
    %4258 = vmatpush2.xpose.msra.mxu0 0.0
    %4259 = vmatprep.subr.mxu0 0.0
    %4260 = vmatpush2.xpose.msra.mxu0 0.0
    %4261 = vmatprep.subr.mxu0 0.0
    %4262 = vmatpush2.xpose.msra.mxu0 0.0
    %4263 = vmatprep.subr.mxu0 0.0
    %4264 = vmatpush2.xpose.msra.mxu0 0.0
    %4265 = vmatprep.subr.mxu0 0.0
    %4266 = vmatpush2.xpose.msra.mxu0 0.0
    %4267 = vmatprep.subr.mxu0 0.0
    %4268 = vmatpush2.xpose.msra.mxu0 0.0
    %4269 = vmatprep.subr.mxu0 0.0
    %4270 = vmatpush2.xpose.msra.mxu0 0.0
    %4271 = vmatprep.subr.mxu0 0.0
    %4272 = vmatpush2.xpose.msra.mxu0 0.0
    %4273 = vmatprep.subr.mxu0 0.0
    %4274 = vmatpush2.xpose.msra.mxu0 0.0
    %4275 = vmatprep.subr.mxu0 0.0
    %4276 = vmatpush2.xpose.msra.mxu0 0.0
    %4277 = vmatprep.subr.mxu0 0.0
    %4278 = vmatpush2.xpose.msra.mxu0 0.0
    %4279 = vmatprep.subr.mxu0 0.0
    %4280 = vmatpush2.xpose.msra.mxu0 0.0
    %4281 = vmatprep.mubr.f32.mxu0 0.0
    %4282 = vmatmul.mubr.f32.gmra.mxu0 %v4209
    %v4283 = vpop.f32.mrf.mxu0
    %v4284 = vadd.f32 0.0, %v4283
    %v4285 = vpop.f32.mrf.mxu0
    %4286 = vmatprep.mubr.f32.mxu0 0.0
    %4287 = vmatmul.mubr.f32.gmra.mxu0 %v4211
    %v4288 = vpop.f32.mrf.mxu0
    %v4289 = vadd.f32 0.0, %v4288
    %v4290 = vpop.f32.mrf.mxu0
    %4291 = vdwg.mxu0
    %4292 = vrot.lane.b32.xlu0 %v252, 112
    %v4293 = vpop.permute.xlu0 %4292
    %4294 = vrot.lane.b32.xlu0 %v257, 112
    %v4295 = vpop.permute.xlu0 %4294
    %4296 = vrot.lane.b32.xlu0 %v252, 80
    %v4297 = vpop.permute.xlu0 %4296
    %4298 = vrot.lane.b32.xlu0 %v257, 80
    %v4299 = vpop.permute.xlu0 %4298
    %v4300 = vsel %vm306, %v4293, 0
    %v4302 = vsel %vm306, %v4295, 0
    %v4304 = vsel %vm306, %v4297, 0
    %v4306 = vsel %vm306, %v4299, 0
    %4308 = vmatprep.subr.mxu0 0.0
    %4309 = vmatpush1.xpose.msra.mxu0 0.0
    %4310 = vmatprep.subr.mxu0 0.0
    %4311 = vmatpush1.xpose.msra.mxu0 0.0
    %4312 = vmatprep.subr.mxu0 0.0
    %4313 = vmatpush1.xpose.msra.mxu0 0.0
    %4314 = vmatprep.subr.mxu0 0.0
    %4315 = vmatpush1.xpose.msra.mxu0 0.0
    %4316 = vmatprep.subr.mxu0 0.0
    %4317 = vmatpush1.xpose.msra.mxu0 0.0
    %4318 = vmatprep.subr.mxu0 0.0
    %4319 = vmatpush1.xpose.msra.mxu0 0.0
    %4320 = vmatprep.subr.mxu0 0.0
    %4321 = vmatpush1.xpose.msra.mxu0 0.0
    %4322 = vmatprep.subr.mxu0 0.0
    %4323 = vmatpush1.xpose.msra.mxu0 0.0
    %4324 = vmatprep.subr.mxu0 0.0
    %4325 = vmatpush1.xpose.msra.mxu0 0.0
    %4326 = vmatprep.subr.mxu0 0.0
    %4327 = vmatpush1.xpose.msra.mxu0 0.0
    %4328 = vmatprep.subr.mxu0 0.0
    %4329 = vmatpush1.xpose.msra.mxu0 0.0
    %4330 = vmatprep.subr.mxu0 0.0
    %4331 = vmatpush1.xpose.msra.mxu0 0.0
    %4332 = vmatprep.subr.mxu0 0.0
    %4333 = vmatpush1.xpose.msra.mxu0 0.0
    %4334 = vmatprep.subr.mxu0 0.0
    %4335 = vmatpush1.xpose.msra.mxu0 0.0
    %4336 = vmatprep.subr.mxu0 0.0
    %4337 = vmatpush1.xpose.msra.mxu0 %v4306
    %4338 = vmatprep.subr.mxu0 0.0
    %4339 = vmatpush1.xpose.msra.mxu0 %v4304
    %4340 = vmatprep.subr.mxu0 0.0
    %4341 = vmatpush2.xpose.msra.mxu0 0.0
    %4342 = vmatprep.subr.mxu0 0.0
    %4343 = vmatpush2.xpose.msra.mxu0 0.0
    %4344 = vmatprep.subr.mxu0 0.0
    %4345 = vmatpush2.xpose.msra.mxu0 0.0
    %4346 = vmatprep.subr.mxu0 0.0
    %4347 = vmatpush2.xpose.msra.mxu0 0.0
    %4348 = vmatprep.subr.mxu0 0.0
    %4349 = vmatpush2.xpose.msra.mxu0 0.0
    %4350 = vmatprep.subr.mxu0 0.0
    %4351 = vmatpush2.xpose.msra.mxu0 0.0
    %4352 = vmatprep.subr.mxu0 0.0
    %4353 = vmatpush2.xpose.msra.mxu0 0.0
    %4354 = vmatprep.subr.mxu0 0.0
    %4355 = vmatpush2.xpose.msra.mxu0 0.0
    %4356 = vmatprep.subr.mxu0 0.0
    %4357 = vmatpush2.xpose.msra.mxu0 0.0
    %4358 = vmatprep.subr.mxu0 0.0
    %4359 = vmatpush2.xpose.msra.mxu0 0.0
    %4360 = vmatprep.subr.mxu0 0.0
    %4361 = vmatpush2.xpose.msra.mxu0 0.0
    %4362 = vmatprep.subr.mxu0 0.0
    %4363 = vmatpush2.xpose.msra.mxu0 0.0
    %4364 = vmatprep.subr.mxu0 0.0
    %4365 = vmatpush2.xpose.msra.mxu0 0.0
    %4366 = vmatprep.subr.mxu0 0.0
    %4367 = vmatpush2.xpose.msra.mxu0 0.0
    %4368 = vmatprep.subr.mxu0 0.0
    %4369 = vmatpush2.xpose.msra.mxu0 0.0
    %4370 = vmatprep.subr.mxu0 0.0
    %4371 = vmatpush2.xpose.msra.mxu0 0.0
    %4372 = vmatprep.mubr.f32.mxu0 0.0
    %4373 = vmatmul.mubr.f32.gmra.mxu0 %v4300
    %v4374 = vpop.f32.mrf.mxu0
    %v4375 = vadd.f32 0.0, %v4374
    %v4376 = vpop.f32.mrf.mxu0
    %4377 = vmatprep.mubr.f32.mxu0 0.0
    %4378 = vmatmul.mubr.f32.gmra.mxu0 %v4302
    %v4379 = vpop.f32.mrf.mxu0
    %v4380 = vadd.f32 0.0, %v4379
    %v4381 = vpop.f32.mrf.mxu0
    %4382 = vdwg.mxu0
    %4383 = vrot.lane.b32.xlu0 %v262, 112
    %v4384 = vpop.permute.xlu0 %4383
    %4385 = vrot.lane.b32.xlu0 %v267, 112
    %v4386 = vpop.permute.xlu0 %4385
    %4387 = vrot.lane.b32.xlu0 %v262, 80
    %v4388 = vpop.permute.xlu0 %4387
    %4389 = vrot.lane.b32.xlu0 %v267, 80
    %v4390 = vpop.permute.xlu0 %4389
    %v4391 = vsel %vm306, %v4384, 0
    %v4393 = vsel %vm306, %v4386, 0
    %v4395 = vsel %vm306, %v4388, 0
    %v4397 = vsel %vm306, %v4390, 0
    %4399 = vmatprep.subr.mxu0 0.0
    %4400 = vmatpush1.xpose.msra.mxu0 0.0
    %4401 = vmatprep.subr.mxu0 0.0
    %4402 = vmatpush1.xpose.msra.mxu0 0.0
    %4403 = vmatprep.subr.mxu0 0.0
    %4404 = vmatpush1.xpose.msra.mxu0 0.0
    %4405 = vmatprep.subr.mxu0 0.0
    %4406 = vmatpush1.xpose.msra.mxu0 0.0
    %4407 = vmatprep.subr.mxu0 0.0
    %4408 = vmatpush1.xpose.msra.mxu0 0.0
    %4409 = vmatprep.subr.mxu0 0.0
    %4410 = vmatpush1.xpose.msra.mxu0 0.0
    %4411 = vmatprep.subr.mxu0 0.0
    %4412 = vmatpush1.xpose.msra.mxu0 0.0
    %4413 = vmatprep.subr.mxu0 0.0
    %4414 = vmatpush1.xpose.msra.mxu0 0.0
    %4415 = vmatprep.subr.mxu0 0.0
    %4416 = vmatpush1.xpose.msra.mxu0 0.0
    %4417 = vmatprep.subr.mxu0 0.0
    %4418 = vmatpush1.xpose.msra.mxu0 0.0
    %4419 = vmatprep.subr.mxu0 0.0
    %4420 = vmatpush1.xpose.msra.mxu0 0.0
    %4421 = vmatprep.subr.mxu0 0.0
    %4422 = vmatpush1.xpose.msra.mxu0 0.0
    %4423 = vmatprep.subr.mxu0 0.0
    %4424 = vmatpush1.xpose.msra.mxu0 0.0
    %4425 = vmatprep.subr.mxu0 0.0
    %4426 = vmatpush1.xpose.msra.mxu0 0.0
    %4427 = vmatprep.subr.mxu0 0.0
    %4428 = vmatpush1.xpose.msra.mxu0 %v4397
    %4429 = vmatprep.subr.mxu0 0.0
    %4430 = vmatpush1.xpose.msra.mxu0 %v4395
    %4431 = vmatprep.subr.mxu0 0.0
    %4432 = vmatpush2.xpose.msra.mxu0 0.0
    %4433 = vmatprep.subr.mxu0 0.0
    %4434 = vmatpush2.xpose.msra.mxu0 0.0
    %4435 = vmatprep.subr.mxu0 0.0
    %4436 = vmatpush2.xpose.msra.mxu0 0.0
    %4437 = vmatprep.subr.mxu0 0.0
    %4438 = vmatpush2.xpose.msra.mxu0 0.0
    %4439 = vmatprep.subr.mxu0 0.0
    %4440 = vmatpush2.xpose.msra.mxu0 0.0
    %4441 = vmatprep.subr.mxu0 0.0
    %4442 = vmatpush2.xpose.msra.mxu0 0.0
    %4443 = vmatprep.subr.mxu0 0.0
    %4444 = vmatpush2.xpose.msra.mxu0 0.0
    %4445 = vmatprep.subr.mxu0 0.0
    %4446 = vmatpush2.xpose.msra.mxu0 0.0
    %4447 = vmatprep.subr.mxu0 0.0
    %4448 = vmatpush2.xpose.msra.mxu0 0.0
    %4449 = vmatprep.subr.mxu0 0.0
    %4450 = vmatpush2.xpose.msra.mxu0 0.0
    %4451 = vmatprep.subr.mxu0 0.0
    %4452 = vmatpush2.xpose.msra.mxu0 0.0
    %4453 = vmatprep.subr.mxu0 0.0
    %4454 = vmatpush2.xpose.msra.mxu0 0.0
    %4455 = vmatprep.subr.mxu0 0.0
    %4456 = vmatpush2.xpose.msra.mxu0 0.0
    %4457 = vmatprep.subr.mxu0 0.0
    %4458 = vmatpush2.xpose.msra.mxu0 0.0
    %4459 = vmatprep.subr.mxu0 0.0
    %4460 = vmatpush2.xpose.msra.mxu0 0.0
    %4461 = vmatprep.subr.mxu0 0.0
    %4462 = vmatpush2.xpose.msra.mxu0 0.0
    %4463 = vmatprep.mubr.f32.mxu0 0.0
    %4464 = vmatmul.mubr.f32.gmra.mxu0 %v4391
    %v4465 = vpop.f32.mrf.mxu0
    %v4466 = vadd.f32 0.0, %v4465
    %v4467 = vpop.f32.mrf.mxu0
    %4468 = vmatprep.mubr.f32.mxu0 0.0
    %4469 = vmatmul.mubr.f32.gmra.mxu0 %v4393
    %v4470 = vpop.f32.mrf.mxu0
    %v4471 = vadd.f32 0.0, %v4470
    %v4472 = vpop.f32.mrf.mxu0
    %4473 = vdwg.mxu0
    %4474 = vrot.lane.b32.xlu0 %v272, 112
    %v4475 = vpop.permute.xlu0 %4474
    %4476 = vrot.lane.b32.xlu0 %v277, 112
    %v4477 = vpop.permute.xlu0 %4476
    %4478 = vrot.lane.b32.xlu0 %v272, 80
    %v4479 = vpop.permute.xlu0 %4478
    %4480 = vrot.lane.b32.xlu0 %v277, 80
    %v4481 = vpop.permute.xlu0 %4480
    %v4482 = vsel %vm306, %v4475, 0
    %v4484 = vsel %vm306, %v4477, 0
    %v4486 = vsel %vm306, %v4479, 0
    %v4488 = vsel %vm306, %v4481, 0
    %4490 = vmatprep.subr.mxu0 0.0
    %4491 = vmatpush1.xpose.msra.mxu0 0.0
    %4492 = vmatprep.subr.mxu0 0.0
    %4493 = vmatpush1.xpose.msra.mxu0 0.0
    %4494 = vmatprep.subr.mxu0 0.0
    %4495 = vmatpush1.xpose.msra.mxu0 0.0
    %4496 = vmatprep.subr.mxu0 0.0
    %4497 = vmatpush1.xpose.msra.mxu0 0.0
    %4498 = vmatprep.subr.mxu0 0.0
    %4499 = vmatpush1.xpose.msra.mxu0 0.0
    %4500 = vmatprep.subr.mxu0 0.0
    %4501 = vmatpush1.xpose.msra.mxu0 0.0
    %4502 = vmatprep.subr.mxu0 0.0
    %4503 = vmatpush1.xpose.msra.mxu0 0.0
    %4504 = vmatprep.subr.mxu0 0.0
    %4505 = vmatpush1.xpose.msra.mxu0 0.0
    %4506 = vmatprep.subr.mxu0 0.0
    %4507 = vmatpush1.xpose.msra.mxu0 0.0
    %4508 = vmatprep.subr.mxu0 0.0
    %4509 = vmatpush1.xpose.msra.mxu0 0.0
    %4510 = vmatprep.subr.mxu0 0.0
    %4511 = vmatpush1.xpose.msra.mxu0 0.0
    %4512 = vmatprep.subr.mxu0 0.0
    %4513 = vmatpush1.xpose.msra.mxu0 0.0
    %4514 = vmatprep.subr.mxu0 0.0
    %4515 = vmatpush1.xpose.msra.mxu0 0.0
    %4516 = vmatprep.subr.mxu0 0.0
    %4517 = vmatpush1.xpose.msra.mxu0 0.0
    %4518 = vmatprep.subr.mxu0 0.0
    %4519 = vmatpush1.xpose.msra.mxu0 %v4488
    %4520 = vmatprep.subr.mxu0 0.0
    %4521 = vmatpush1.xpose.msra.mxu0 %v4486
    %4522 = vmatprep.subr.mxu0 0.0
    %4523 = vmatpush2.xpose.msra.mxu0 0.0
    %4524 = vmatprep.subr.mxu0 0.0
    %4525 = vmatpush2.xpose.msra.mxu0 0.0
    %4526 = vmatprep.subr.mxu0 0.0
    %4527 = vmatpush2.xpose.msra.mxu0 0.0
    %4528 = vmatprep.subr.mxu0 0.0
    %4529 = vmatpush2.xpose.msra.mxu0 0.0
    %4530 = vmatprep.subr.mxu0 0.0
    %4531 = vmatpush2.xpose.msra.mxu0 0.0
    %4532 = vmatprep.subr.mxu0 0.0
    %4533 = vmatpush2.xpose.msra.mxu0 0.0
    %4534 = vmatprep.subr.mxu0 0.0
    %4535 = vmatpush2.xpose.msra.mxu0 0.0
    %4536 = vmatprep.subr.mxu0 0.0
    %4537 = vmatpush2.xpose.msra.mxu0 0.0
    %4538 = vmatprep.subr.mxu0 0.0
    %4539 = vmatpush2.xpose.msra.mxu0 0.0
    %4540 = vmatprep.subr.mxu0 0.0
    %4541 = vmatpush2.xpose.msra.mxu0 0.0
    %4542 = vmatprep.subr.mxu0 0.0
    %4543 = vmatpush2.xpose.msra.mxu0 0.0
    %4544 = vmatprep.subr.mxu0 0.0
    %4545 = vmatpush2.xpose.msra.mxu0 0.0
    %4546 = vmatprep.subr.mxu0 0.0
    %4547 = vmatpush2.xpose.msra.mxu0 0.0
    %4548 = vmatprep.subr.mxu0 0.0
    %4549 = vmatpush2.xpose.msra.mxu0 0.0
    %4550 = vmatprep.subr.mxu0 0.0
    %4551 = vmatpush2.xpose.msra.mxu0 0.0
    %4552 = vmatprep.subr.mxu0 0.0
    %4553 = vmatpush2.xpose.msra.mxu0 0.0
    %4554 = vmatprep.mubr.f32.mxu0 0.0
    %4555 = vmatmul.mubr.f32.gmra.mxu0 %v4482
    %v4556 = vpop.f32.mrf.mxu0
    %v4557 = vadd.f32 0.0, %v4556
    %v4558 = vpop.f32.mrf.mxu0
    %4559 = vmatprep.mubr.f32.mxu0 0.0
    %4560 = vmatmul.mubr.f32.gmra.mxu0 %v4484
    %v4561 = vpop.f32.mrf.mxu0
    %v4562 = vadd.f32 0.0, %v4561
    %v4563 = vpop.f32.mrf.mxu0
    %4564 = vdwg.mxu0
    %4565 = vrot.lane.b32.xlu0 %v282, 112
    %v4566 = vpop.permute.xlu0 %4565
    %4567 = vrot.lane.b32.xlu0 %v287, 112
    %v4568 = vpop.permute.xlu0 %4567
    %4569 = vrot.lane.b32.xlu0 %v282, 80
    %v4570 = vpop.permute.xlu0 %4569
    %4571 = vrot.lane.b32.xlu0 %v287, 80
    %v4572 = vpop.permute.xlu0 %4571
    %v4573 = vsel %vm306, %v4566, 0
    %v4575 = vsel %vm306, %v4568, 0
    %v4577 = vsel %vm306, %v4570, 0
    %v4579 = vsel %vm306, %v4572, 0
    %4581 = vmatprep.subr.mxu0 0.0
    %4582 = vmatpush1.xpose.msra.mxu0 0.0
    %4583 = vmatprep.subr.mxu0 0.0
    %4584 = vmatpush1.xpose.msra.mxu0 0.0
    %4585 = vmatprep.subr.mxu0 0.0
    %4586 = vmatpush1.xpose.msra.mxu0 0.0
    %4587 = vmatprep.subr.mxu0 0.0
    %4588 = vmatpush1.xpose.msra.mxu0 0.0
    %4589 = vmatprep.subr.mxu0 0.0
    %4590 = vmatpush1.xpose.msra.mxu0 0.0
    %4591 = vmatprep.subr.mxu0 0.0
    %4592 = vmatpush1.xpose.msra.mxu0 0.0
    %4593 = vmatprep.subr.mxu0 0.0
    %4594 = vmatpush1.xpose.msra.mxu0 0.0
    %4595 = vmatprep.subr.mxu0 0.0
    %4596 = vmatpush1.xpose.msra.mxu0 0.0
    %4597 = vmatprep.subr.mxu0 0.0
    %4598 = vmatpush1.xpose.msra.mxu0 0.0
    %4599 = vmatprep.subr.mxu0 0.0
    %4600 = vmatpush1.xpose.msra.mxu0 0.0
    %4601 = vmatprep.subr.mxu0 0.0
    %4602 = vmatpush1.xpose.msra.mxu0 0.0
    %4603 = vmatprep.subr.mxu0 0.0
    %4604 = vmatpush1.xpose.msra.mxu0 0.0
    %4605 = vmatprep.subr.mxu0 0.0
    %4606 = vmatpush1.xpose.msra.mxu0 0.0
    %4607 = vmatprep.subr.mxu0 0.0
    %4608 = vmatpush1.xpose.msra.mxu0 0.0
    %4609 = vmatprep.subr.mxu0 0.0
    %4610 = vmatpush1.xpose.msra.mxu0 %v4579
    %4611 = vmatprep.subr.mxu0 0.0
    %4612 = vmatpush1.xpose.msra.mxu0 %v4577
    %4613 = vmatprep.subr.mxu0 0.0
    %4614 = vmatpush2.xpose.msra.mxu0 0.0
    %4615 = vmatprep.subr.mxu0 0.0
    %4616 = vmatpush2.xpose.msra.mxu0 0.0
    %4617 = vmatprep.subr.mxu0 0.0
    %4618 = vmatpush2.xpose.msra.mxu0 0.0
    %4619 = vmatprep.subr.mxu0 0.0
    %4620 = vmatpush2.xpose.msra.mxu0 0.0
    %4621 = vmatprep.subr.mxu0 0.0
    %4622 = vmatpush2.xpose.msra.mxu0 0.0
    %4623 = vmatprep.subr.mxu0 0.0
    %4624 = vmatpush2.xpose.msra.mxu0 0.0
    %4625 = vmatprep.subr.mxu0 0.0
    %4626 = vmatpush2.xpose.msra.mxu0 0.0
    %4627 = vmatprep.subr.mxu0 0.0
    %4628 = vmatpush2.xpose.msra.mxu0 0.0
    %4629 = vmatprep.subr.mxu0 0.0
    %4630 = vmatpush2.xpose.msra.mxu0 0.0
    %4631 = vmatprep.subr.mxu0 0.0
    %4632 = vmatpush2.xpose.msra.mxu0 0.0
    %4633 = vmatprep.subr.mxu0 0.0
    %4634 = vmatpush2.xpose.msra.mxu0 0.0
    %4635 = vmatprep.subr.mxu0 0.0
    %4636 = vmatpush2.xpose.msra.mxu0 0.0
    %4637 = vmatprep.subr.mxu0 0.0
    %4638 = vmatpush2.xpose.msra.mxu0 0.0
    %4639 = vmatprep.subr.mxu0 0.0
    %4640 = vmatpush2.xpose.msra.mxu0 0.0
    %4641 = vmatprep.subr.mxu0 0.0
    %4642 = vmatpush2.xpose.msra.mxu0 0.0
    %4643 = vmatprep.subr.mxu0 0.0
    %4644 = vmatpush2.xpose.msra.mxu0 0.0
    %4645 = vmatprep.mubr.f32.mxu0 0.0
    %4646 = vmatmul.mubr.f32.gmra.mxu0 %v4573
    %v4647 = vpop.f32.mrf.mxu0
    %v4648 = vadd.f32 0.0, %v4647
    %v4649 = vpop.f32.mrf.mxu0
    %4650 = vmatprep.mubr.f32.mxu0 0.0
    %4651 = vmatmul.mubr.f32.gmra.mxu0 %v4575
    %v4652 = vpop.f32.mrf.mxu0
    %v4653 = vadd.f32 0.0, %v4652
    %v4654 = vpop.f32.mrf.mxu0
    %4655 = vdwg.mxu0
    %4656 = vrot.lane.b32.xlu0 %v292, 112
    %v4657 = vpop.permute.xlu0 %4656
    %4658 = vrot.lane.b32.xlu0 %v297, 112
    %v4659 = vpop.permute.xlu0 %4658
    %4660 = vrot.lane.b32.xlu0 %v292, 80
    %v4661 = vpop.permute.xlu0 %4660
    %4662 = vrot.lane.b32.xlu0 %v297, 80
    %v4663 = vpop.permute.xlu0 %4662
    %v4664 = vsel %vm306, %v4657, 0
    %v4666 = vsel %vm306, %v4659, 0
    %v4668 = vsel %vm306, %v4661, 0
    %v4670 = vsel %vm306, %v4663, 0
    %4672 = vmatprep.subr.mxu0 0.0
    %4673 = vmatpush1.xpose.msra.mxu0 0.0
    %4674 = vmatprep.subr.mxu0 0.0
    %4675 = vmatpush1.xpose.msra.mxu0 0.0
    %4676 = vmatprep.subr.mxu0 0.0
    %4677 = vmatpush1.xpose.msra.mxu0 0.0
    %4678 = vmatprep.subr.mxu0 0.0
    %4679 = vmatpush1.xpose.msra.mxu0 0.0
    %4680 = vmatprep.subr.mxu0 0.0
    %4681 = vmatpush1.xpose.msra.mxu0 0.0
    %4682 = vmatprep.subr.mxu0 0.0
    %4683 = vmatpush1.xpose.msra.mxu0 0.0
    %4684 = vmatprep.subr.mxu0 0.0
    %4685 = vmatpush1.xpose.msra.mxu0 0.0
    %4686 = vmatprep.subr.mxu0 0.0
    %4687 = vmatpush1.xpose.msra.mxu0 0.0
    %4688 = vmatprep.subr.mxu0 0.0
    %4689 = vmatpush1.xpose.msra.mxu0 0.0
    %4690 = vmatprep.subr.mxu0 0.0
    %4691 = vmatpush1.xpose.msra.mxu0 0.0
    %4692 = vmatprep.subr.mxu0 0.0
    %4693 = vmatpush1.xpose.msra.mxu0 0.0
    %4694 = vmatprep.subr.mxu0 0.0
    %4695 = vmatpush1.xpose.msra.mxu0 0.0
    %4696 = vmatprep.subr.mxu0 0.0
    %4697 = vmatpush1.xpose.msra.mxu0 0.0
    %4698 = vmatprep.subr.mxu0 0.0
    %4699 = vmatpush1.xpose.msra.mxu0 0.0
    %4700 = vmatprep.subr.mxu0 0.0
    %4701 = vmatpush1.xpose.msra.mxu0 %v4670
    %4702 = vmatprep.subr.mxu0 0.0
    %4703 = vmatpush1.xpose.msra.mxu0 %v4668
    %4704 = vmatprep.subr.mxu0 0.0
    %4705 = vmatpush2.xpose.msra.mxu0 0.0
    %4706 = vmatprep.subr.mxu0 0.0
    %4707 = vmatpush2.xpose.msra.mxu0 0.0
    %4708 = vmatprep.subr.mxu0 0.0
    %4709 = vmatpush2.xpose.msra.mxu0 0.0
    %4710 = vmatprep.subr.mxu0 0.0
    %4711 = vmatpush2.xpose.msra.mxu0 0.0
    %4712 = vmatprep.subr.mxu0 0.0
    %4713 = vmatpush2.xpose.msra.mxu0 0.0
    %4714 = vmatprep.subr.mxu0 0.0
    %4715 = vmatpush2.xpose.msra.mxu0 0.0
    %4716 = vmatprep.subr.mxu0 0.0
    %4717 = vmatpush2.xpose.msra.mxu0 0.0
    %4718 = vmatprep.subr.mxu0 0.0
    %4719 = vmatpush2.xpose.msra.mxu0 0.0
    %4720 = vmatprep.subr.mxu0 0.0
    %4721 = vmatpush2.xpose.msra.mxu0 0.0
    %4722 = vmatprep.subr.mxu0 0.0
    %4723 = vmatpush2.xpose.msra.mxu0 0.0
    %4724 = vmatprep.subr.mxu0 0.0
    %4725 = vmatpush2.xpose.msra.mxu0 0.0
    %4726 = vmatprep.subr.mxu0 0.0
    %4727 = vmatpush2.xpose.msra.mxu0 0.0
    %4728 = vmatprep.subr.mxu0 0.0
    %4729 = vmatpush2.xpose.msra.mxu0 0.0
    %4730 = vmatprep.subr.mxu0 0.0
    %4731 = vmatpush2.xpose.msra.mxu0 0.0
    %4732 = vmatprep.subr.mxu0 0.0
    %4733 = vmatpush2.xpose.msra.mxu0 0.0
    %4734 = vmatprep.subr.mxu0 0.0
    %4735 = vmatpush2.xpose.msra.mxu0 0.0
    %4736 = vmatprep.mubr.f32.mxu0 0.0
    %4737 = vmatmul.mubr.f32.gmra.mxu0 %v4664
    %v4738 = vpop.f32.mrf.mxu0
    %v4739 = vadd.f32 0.0, %v4738
    %v4740 = vpop.f32.mrf.mxu0
    %4741 = vmatprep.mubr.f32.mxu0 0.0
    %4742 = vmatmul.mubr.f32.gmra.mxu0 %v4666
    %v4743 = vpop.f32.mrf.mxu0
    %v4744 = vadd.f32 0.0, %v4743
    %v4745 = vpop.f32.mrf.mxu0
    %4746 = vdwg.mxu0
    %s4747 = scalar_lea.vmem [#allocation8], 128
    %v4748 = vld [vmem:[%s4747] sm:$0xff]
    %v4749 = vld [vmem:[%s4747 + $0x8] sm:$0xff]
    %v4750 = vld [vmem:[%s4747 + $0x10] sm:$0xff]
    %v4751 = vld [vmem:[%s4747 + $0x18] sm:$0xff]
    %v4752 = vld [vmem:[%s4747 + $0x20] sm:$0xff]
    %v4753 = vld [vmem:[%s4747 + $0x28] sm:$0xff]
    %v4754 = vld [vmem:[%s4747 + $0x30] sm:$0xff]
    %v4755 = vld [vmem:[%s4747 + $0x38] sm:$0xff]
    %v4756 = vadd.f32 %v4102, %v4748
    %v4757 = vadd.f32 %v4107, %v4749
    %v4758 = vadd.f32 %v4193, %v4750
    %v4759 = vadd.f32 %v4198, %v4751
    %v4760 = vadd.f32 %v4284, %v4752
    %v4761 = vadd.f32 %v4289, %v4753
    %v4762 = vadd.f32 %v4375, %v4754
    %v4763 = vadd.f32 %v4380, %v4755
    %v4764 = vadd.f32 %v4466, %v4748
    %v4765 = vadd.f32 %v4471, %v4749
    %v4766 = vadd.f32 %v4557, %v4750
    %v4767 = vadd.f32 %v4562, %v4751
    %v4768 = vadd.f32 %v4648, %v4752
    %v4769 = vadd.f32 %v4653, %v4753
    %v4770 = vadd.f32 %v4739, %v4754
    %v4771 = vadd.f32 %v4744, %v4755
    %v4772 = vsel %vm1037, %v4756, -inf
    %4773 = vmax.xlane.f32.xlu0 %v4772
    %v4774 = vpop.xlane.xlu0 %4773
    %v4775 = vsel %vm1037, %v4757, -inf
    %4776 = vmax.xlane.f32.xlu0 %v4775
    %v4777 = vpop.xlane.xlu0 %4776
    %v4778 = vsel %vm1037, %v4758, -inf
    %4779 = vmax.xlane.f32.xlu0 %v4778
    %v4780 = vpop.xlane.xlu0 %4779
    %v4781 = vsel %vm1037, %v4759, -inf
    %4782 = vmax.xlane.f32.xlu0 %v4781
    %v4783 = vpop.xlane.xlu0 %4782
    %v4784 = vsel %vm1037, %v4760, -inf
    %4785 = vmax.xlane.f32.xlu0 %v4784
    %v4786 = vpop.xlane.xlu0 %4785
    %v4787 = vsel %vm1037, %v4761, -inf
    %4788 = vmax.xlane.f32.xlu0 %v4787
    %v4789 = vpop.xlane.xlu0 %4788
    %v4790 = vsel %vm1037, %v4762, -inf
    %4791 = vmax.xlane.f32.xlu0 %v4790
    %v4792 = vpop.xlane.xlu0 %4791
    %v4793 = vsel %vm1037, %v4763, -inf
    %4794 = vmax.xlane.f32.xlu0 %v4793
    %v4795 = vpop.xlane.xlu0 %4794
    %v4796 = vsel %vm1037, %v4764, -inf
    %4797 = vmax.xlane.f32.xlu0 %v4796
    %v4798 = vpop.xlane.xlu0 %4797
    %v4799 = vsel %vm1037, %v4765, -inf
    %4800 = vmax.xlane.f32.xlu0 %v4799
    %v4801 = vpop.xlane.xlu0 %4800
    %v4802 = vsel %vm1037, %v4766, -inf
    %4803 = vmax.xlane.f32.xlu0 %v4802
    %v4804 = vpop.xlane.xlu0 %4803
    %v4805 = vsel %vm1037, %v4767, -inf
    %4806 = vmax.xlane.f32.xlu0 %v4805
    %v4807 = vpop.xlane.xlu0 %4806
    %v4808 = vsel %vm1037, %v4768, -inf
    %4809 = vmax.xlane.f32.xlu0 %v4808
    %v4810 = vpop.xlane.xlu0 %4809
    %v4811 = vsel %vm1037, %v4769, -inf
    %4812 = vmax.xlane.f32.xlu0 %v4811
    %v4813 = vpop.xlane.xlu0 %4812
    %v4814 = vsel %vm1037, %v4770, -inf
    %4815 = vmax.xlane.f32.xlu0 %v4814
    %v4816 = vpop.xlane.xlu0 %4815
    %v4817 = vsel %vm1037, %v4771, -inf
    %4818 = vmax.xlane.f32.xlu0 %v4817
    %v4819 = vpop.xlane.xlu0 %4818
    %v4820 = vsub.f32 %v4756, %v4774
    %v4821 = vsub.f32 %v4757, %v4777
    %v4822 = vsub.f32 %v4758, %v4780
    %v4823 = vsub.f32 %v4759, %v4783
    %v4824 = vsub.f32 %v4760, %v4786
    %v4825 = vsub.f32 %v4761, %v4789
    %v4826 = vsub.f32 %v4762, %v4792
    %v4827 = vsub.f32 %v4763, %v4795
    %v4828 = vsub.f32 %v4764, %v4798
    %v4829 = vsub.f32 %v4765, %v4801
    %v4830 = vsub.f32 %v4766, %v4804
    %v4831 = vsub.f32 %v4767, %v4807
    %v4832 = vsub.f32 %v4768, %v4810
    %v4833 = vsub.f32 %v4769, %v4813
    %v4834 = vsub.f32 %v4770, %v4816
    %v4835 = vsub.f32 %v4771, %v4819
    %v4836 = vmul.f32 %v4820, 1.442695
    %v4837 = vpow.pop %v4836
    %v4838 = vmul.f32 %v4821, 1.442695
    %v4839 = vpow.pop %v4838
    %v4840 = vmul.f32 %v4822, 1.442695
    %v4841 = vpow.pop %v4840
    %v4842 = vmul.f32 %v4823, 1.442695
    %v4843 = vpow.pop %v4842
    %v4844 = vmul.f32 %v4824, 1.442695
    %v4845 = vpow.pop %v4844
    %v4846 = vmul.f32 %v4825, 1.442695
    %v4847 = vpow.pop %v4846
    %v4848 = vmul.f32 %v4826, 1.442695
    %v4849 = vpow.pop %v4848
    %v4850 = vmul.f32 %v4827, 1.442695
    %v4851 = vpow.pop %v4850
    %v4852 = vmul.f32 %v4828, 1.442695
    %v4853 = vpow.pop %v4852
    %v4854 = vmul.f32 %v4829, 1.442695
    %v4855 = vpow.pop %v4854
    %v4856 = vmul.f32 %v4830, 1.442695
    %v4857 = vpow.pop %v4856
    %v4858 = vmul.f32 %v4831, 1.442695
    %v4859 = vpow.pop %v4858
    %v4860 = vmul.f32 %v4832, 1.442695
    %v4861 = vpow.pop %v4860
    %v4862 = vmul.f32 %v4833, 1.442695
    %v4863 = vpow.pop %v4862
    %v4864 = vmul.f32 %v4834, 1.442695
    %v4865 = vpow.pop %v4864
    %v4866 = vmul.f32 %v4835, 1.442695
    %v4867 = vpow.pop %v4866
    %v4868 = vsel %vm1037, %v4837, 0.0
    %4869 = vadd.xlane.f32.xlu0 %v4868
    %v4870 = vpop.xlane.xlu0 %4869
    %v4871 = vsel %vm1037, %v4839, 0.0
    %4872 = vadd.xlane.f32.xlu0 %v4871
    %v4873 = vpop.xlane.xlu0 %4872
    %v4874 = vsel %vm1037, %v4841, 0.0
    %4875 = vadd.xlane.f32.xlu0 %v4874
    %v4876 = vpop.xlane.xlu0 %4875
    %v4877 = vsel %vm1037, %v4843, 0.0
    %4878 = vadd.xlane.f32.xlu0 %v4877
    %v4879 = vpop.xlane.xlu0 %4878
    %v4880 = vsel %vm1037, %v4845, 0.0
    %4881 = vadd.xlane.f32.xlu0 %v4880
    %v4882 = vpop.xlane.xlu0 %4881
    %v4883 = vsel %vm1037, %v4847, 0.0
    %4884 = vadd.xlane.f32.xlu0 %v4883
    %v4885 = vpop.xlane.xlu0 %4884
    %v4886 = vsel %vm1037, %v4849, 0.0
    %4887 = vadd.xlane.f32.xlu0 %v4886
    %v4888 = vpop.xlane.xlu0 %4887
    %v4889 = vsel %vm1037, %v4851, 0.0
    %4890 = vadd.xlane.f32.xlu0 %v4889
    %v4891 = vpop.xlane.xlu0 %4890
    %v4892 = vsel %vm1037, %v4853, 0.0
    %4893 = vadd.xlane.f32.xlu0 %v4892
    %v4894 = vpop.xlane.xlu0 %4893
    %v4895 = vsel %vm1037, %v4855, 0.0
    %4896 = vadd.xlane.f32.xlu0 %v4895
    %v4897 = vpop.xlane.xlu0 %4896
    %v4898 = vsel %vm1037, %v4857, 0.0
    %4899 = vadd.xlane.f32.xlu0 %v4898
    %v4900 = vpop.xlane.xlu0 %4899
    %v4901 = vsel %vm1037, %v4859, 0.0
    %4902 = vadd.xlane.f32.xlu0 %v4901
    %v4903 = vpop.xlane.xlu0 %4902
    %v4904 = vsel %vm1037, %v4861, 0.0
    %4905 = vadd.xlane.f32.xlu0 %v4904
    %v4906 = vpop.xlane.xlu0 %4905
    %v4907 = vsel %vm1037, %v4863, 0.0
    %4908 = vadd.xlane.f32.xlu0 %v4907
    %v4909 = vpop.xlane.xlu0 %4908
    %v4910 = vsel %vm1037, %v4865, 0.0
    %4911 = vadd.xlane.f32.xlu0 %v4910
    %v4912 = vpop.xlane.xlu0 %4911
    %v4913 = vsel %vm1037, %v4867, 0.0
    %4914 = vadd.xlane.f32.xlu0 %v4913
    %v4915 = vpop.xlane.xlu0 %4914
    %v4916 = vrcp.pop %v4870
    %v4917 = vrcp.pop %v4873
    %v4918 = vrcp.pop %v4876
    %v4919 = vrcp.pop %v4879
    %v4920 = vrcp.pop %v4882
    %v4921 = vrcp.pop %v4885
    %v4922 = vrcp.pop %v4888
    %v4923 = vrcp.pop %v4891
    %v4924 = vrcp.pop %v4894
    %v4925 = vrcp.pop %v4897
    %v4926 = vrcp.pop %v4900
    %v4927 = vrcp.pop %v4903
    %v4928 = vrcp.pop %v4906
    %v4929 = vrcp.pop %v4909
    %v4930 = vrcp.pop %v4912
    %v4931 = vrcp.pop %v4915
    %v4932 = vmul.f32 %v4870, %v4916
    %v4933 = vmul.f32 %v4873, %v4917
    %v4934 = vmul.f32 %v4876, %v4918
    %v4935 = vmul.f32 %v4879, %v4919
    %v4936 = vmul.f32 %v4882, %v4920
    %v4937 = vmul.f32 %v4885, %v4921
    %v4938 = vmul.f32 %v4888, %v4922
    %v4939 = vmul.f32 %v4891, %v4923
    %v4940 = vmul.f32 %v4894, %v4924
    %v4941 = vmul.f32 %v4897, %v4925
    %v4942 = vmul.f32 %v4900, %v4926
    %v4943 = vmul.f32 %v4903, %v4927
    %v4944 = vmul.f32 %v4906, %v4928
    %v4945 = vmul.f32 %v4909, %v4929
    %v4946 = vmul.f32 %v4912, %v4930
    %v4947 = vmul.f32 %v4915, %v4931
    %v4948 = vsub.f32 2.0, %v4932
    %v4949 = vsub.f32 2.0, %v4933
    %v4950 = vsub.f32 2.0, %v4934
    %v4951 = vsub.f32 2.0, %v4935
    %v4952 = vsub.f32 2.0, %v4936
    %v4953 = vsub.f32 2.0, %v4937
    %v4954 = vsub.f32 2.0, %v4938
    %v4955 = vsub.f32 2.0, %v4939
    %v4956 = vsub.f32 2.0, %v4940
    %v4957 = vsub.f32 2.0, %v4941
    %v4958 = vsub.f32 2.0, %v4942
    %v4959 = vsub.f32 2.0, %v4943
    %v4960 = vsub.f32 2.0, %v4944
    %v4961 = vsub.f32 2.0, %v4945
    %v4962 = vsub.f32 2.0, %v4946
    %v4963 = vsub.f32 2.0, %v4947
    %v4964 = vmul.f32 %v4916, %v4948
    %v4965 = vmul.f32 %v4917, %v4949
    %v4966 = vmul.f32 %v4918, %v4950
    %v4967 = vmul.f32 %v4919, %v4951
    %v4968 = vmul.f32 %v4920, %v4952
    %v4969 = vmul.f32 %v4921, %v4953
    %v4970 = vmul.f32 %v4922, %v4954
    %v4971 = vmul.f32 %v4923, %v4955
    %v4972 = vmul.f32 %v4924, %v4956
    %v4973 = vmul.f32 %v4925, %v4957
    %v4974 = vmul.f32 %v4926, %v4958
    %v4975 = vmul.f32 %v4927, %v4959
    %v4976 = vmul.f32 %v4928, %v4960
    %v4977 = vmul.f32 %v4929, %v4961
    %v4978 = vmul.f32 %v4930, %v4962
    %v4979 = vmul.f32 %v4931, %v4963
    %v4980 = vmul.f32 %v4837, %v4964
    %v4981 = vmul.f32 %v4839, %v4965
    %v4982 = vmul.f32 %v4841, %v4966
    %v4983 = vmul.f32 %v4843, %v4967
    %v4984 = vmul.f32 %v4845, %v4968
    %v4985 = vmul.f32 %v4847, %v4969
    %v4986 = vmul.f32 %v4849, %v4970
    %v4987 = vmul.f32 %v4851, %v4971
    %v4988 = vmul.f32 %v4853, %v4972
    %v4989 = vmul.f32 %v4855, %v4973
    %v4990 = vmul.f32 %v4857, %v4974
    %v4991 = vmul.f32 %v4859, %v4975
    %v4992 = vmul.f32 %v4861, %v4976
    %v4993 = vmul.f32 %v4863, %v4977
    %v4994 = vmul.f32 %v4865, %v4978
    %v4995 = vmul.f32 %v4867, %v4979
    %4996 = vrot.lane.b32.xlu0 %v222, 48
    %v4997 = vpop.permute.xlu0 %4996
    %4998 = vrot.lane.b32.xlu0 %v227, 48
    %v4999 = vpop.permute.xlu0 %4998
    %v5003 = vsel %vm1037, %v4980, 0
    %v5006 = vsel %vm1037, %v4981, 0
    %5008 = vmatprep.subr.mxu0 0.0
    %5009 = vmatpush1.msra.mxu0 0.0
    %5010 = vmatprep.subr.mxu0 0.0
    %5011 = vmatpush1.msra.mxu0 0.0
    %5012 = vmatprep.subr.mxu0 0.0
    %5013 = vmatpush1.msra.mxu0 0.0
    %5014 = vmatprep.subr.mxu0 0.0
    %5015 = vmatpush1.msra.mxu0 0.0
    %5016 = vmatprep.subr.mxu0 0.0
    %5017 = vmatpush1.msra.mxu0 0.0
    %5018 = vmatprep.subr.mxu0 0.0
    %5019 = vmatpush1.msra.mxu0 0.0
    %5020 = vmatprep.subr.mxu0 0.0
    %5021 = vmatpush1.msra.mxu0 0.0
    %5022 = vmatprep.subr.mxu0 0.0
    %5023 = vmatpush1.msra.mxu0 0.0
    %5024 = vmatprep.subr.mxu0 0.0
    %5025 = vmatpush1.msra.mxu0 0.0
    %5026 = vmatprep.subr.mxu0 0.0
    %5027 = vmatpush1.msra.mxu0 0.0
    %5028 = vmatprep.subr.mxu0 0.0
    %5029 = vmatpush1.msra.mxu0 0.0
    %5030 = vmatprep.subr.mxu0 0.0
    %5031 = vmatpush1.msra.mxu0 0.0
    %5032 = vmatprep.subr.mxu0 0.0
    %5033 = vmatpush1.msra.mxu0 0.0
    %5034 = vmatprep.subr.mxu0 0.0
    %5035 = vmatpush1.msra.mxu0 0.0
    %5036 = vmatprep.subr.mxu0 0.0
    %5037 = vmatpush1.msra.mxu0 %v4999
    %5038 = vmatprep.subr.mxu0 0.0
    %5039 = vmatpush1.msra.mxu0 %v4997
    %5040 = vmatprep.subr.mxu0 0.0
    %5041 = vmatpush2.msra.mxu0 0.0
    %5042 = vmatprep.subr.mxu0 0.0
    %5043 = vmatpush2.msra.mxu0 0.0
    %5044 = vmatprep.subr.mxu0 0.0
    %5045 = vmatpush2.msra.mxu0 0.0
    %5046 = vmatprep.subr.mxu0 0.0
    %5047 = vmatpush2.msra.mxu0 0.0
    %5048 = vmatprep.subr.mxu0 0.0
    %5049 = vmatpush2.msra.mxu0 0.0
    %5050 = vmatprep.subr.mxu0 0.0
    %5051 = vmatpush2.msra.mxu0 0.0
    %5052 = vmatprep.subr.mxu0 0.0
    %5053 = vmatpush2.msra.mxu0 0.0
    %5054 = vmatprep.subr.mxu0 0.0
    %5055 = vmatpush2.msra.mxu0 0.0
    %5056 = vmatprep.subr.mxu0 0.0
    %5057 = vmatpush2.msra.mxu0 0.0
    %5058 = vmatprep.subr.mxu0 0.0
    %5059 = vmatpush2.msra.mxu0 0.0
    %5060 = vmatprep.subr.mxu0 0.0
    %5061 = vmatpush2.msra.mxu0 0.0
    %5062 = vmatprep.subr.mxu0 0.0
    %5063 = vmatpush2.msra.mxu0 0.0
    %5064 = vmatprep.subr.mxu0 0.0
    %5065 = vmatpush2.msra.mxu0 0.0
    %5066 = vmatprep.subr.mxu0 0.0
    %5067 = vmatpush2.msra.mxu0 0.0
    %5068 = vmatprep.subr.mxu0 0.0
    %5069 = vmatpush2.msra.mxu0 0.0
    %5070 = vmatprep.subr.mxu0 0.0
    %5071 = vmatpush2.msra.mxu0 0.0
    %5072 = vmatprep.mubr.f32.mxu0 0.0
    %5073 = vmatmul.mubr.f32.gmra.mxu0 %v5003
    %v5074 = vpop.f32.mrf.mxu0
    %v5075 = vadd.f32 0.0, %v5074
    %v5076 = vpop.f32.mrf.mxu0
    %5077 = vmatprep.mubr.f32.mxu0 0.0
    %5078 = vmatmul.mubr.f32.gmra.mxu0 %v5006
    %v5079 = vpop.f32.mrf.mxu0
    %v5080 = vadd.f32 0.0, %v5079
    %v5081 = vpop.f32.mrf.mxu0
    %5082 = vdwg.mxu0
    %5083 = vrot.lane.b32.xlu0 %v232, 48
    %v5084 = vpop.permute.xlu0 %5083
    %5085 = vrot.lane.b32.xlu0 %v237, 48
    %v5086 = vpop.permute.xlu0 %5085
    %v5090 = vsel %vm1037, %v4982, 0
    %v5093 = vsel %vm1037, %v4983, 0
    %5095 = vmatprep.subr.mxu0 0.0
    %5096 = vmatpush1.msra.mxu0 0.0
    %5097 = vmatprep.subr.mxu0 0.0
    %5098 = vmatpush1.msra.mxu0 0.0
    %5099 = vmatprep.subr.mxu0 0.0
    %5100 = vmatpush1.msra.mxu0 0.0
    %5101 = vmatprep.subr.mxu0 0.0
    %5102 = vmatpush1.msra.mxu0 0.0
    %5103 = vmatprep.subr.mxu0 0.0
    %5104 = vmatpush1.msra.mxu0 0.0
    %5105 = vmatprep.subr.mxu0 0.0
    %5106 = vmatpush1.msra.mxu0 0.0
    %5107 = vmatprep.subr.mxu0 0.0
    %5108 = vmatpush1.msra.mxu0 0.0
    %5109 = vmatprep.subr.mxu0 0.0
    %5110 = vmatpush1.msra.mxu0 0.0
    %5111 = vmatprep.subr.mxu0 0.0
    %5112 = vmatpush1.msra.mxu0 0.0
    %5113 = vmatprep.subr.mxu0 0.0
    %5114 = vmatpush1.msra.mxu0 0.0
    %5115 = vmatprep.subr.mxu0 0.0
    %5116 = vmatpush1.msra.mxu0 0.0
    %5117 = vmatprep.subr.mxu0 0.0
    %5118 = vmatpush1.msra.mxu0 0.0
    %5119 = vmatprep.subr.mxu0 0.0
    %5120 = vmatpush1.msra.mxu0 0.0
    %5121 = vmatprep.subr.mxu0 0.0
    %5122 = vmatpush1.msra.mxu0 0.0
    %5123 = vmatprep.subr.mxu0 0.0
    %5124 = vmatpush1.msra.mxu0 %v5086
    %5125 = vmatprep.subr.mxu0 0.0
    %5126 = vmatpush1.msra.mxu0 %v5084
    %5127 = vmatprep.subr.mxu0 0.0
    %5128 = vmatpush2.msra.mxu0 0.0
    %5129 = vmatprep.subr.mxu0 0.0
    %5130 = vmatpush2.msra.mxu0 0.0
    %5131 = vmatprep.subr.mxu0 0.0
    %5132 = vmatpush2.msra.mxu0 0.0
    %5133 = vmatprep.subr.mxu0 0.0
    %5134 = vmatpush2.msra.mxu0 0.0
    %5135 = vmatprep.subr.mxu0 0.0
    %5136 = vmatpush2.msra.mxu0 0.0
    %5137 = vmatprep.subr.mxu0 0.0
    %5138 = vmatpush2.msra.mxu0 0.0
    %5139 = vmatprep.subr.mxu0 0.0
    %5140 = vmatpush2.msra.mxu0 0.0
    %5141 = vmatprep.subr.mxu0 0.0
    %5142 = vmatpush2.msra.mxu0 0.0
    %5143 = vmatprep.subr.mxu0 0.0
    %5144 = vmatpush2.msra.mxu0 0.0
    %5145 = vmatprep.subr.mxu0 0.0
    %5146 = vmatpush2.msra.mxu0 0.0
    %5147 = vmatprep.subr.mxu0 0.0
    %5148 = vmatpush2.msra.mxu0 0.0
    %5149 = vmatprep.subr.mxu0 0.0
    %5150 = vmatpush2.msra.mxu0 0.0
    %5151 = vmatprep.subr.mxu0 0.0
    %5152 = vmatpush2.msra.mxu0 0.0
    %5153 = vmatprep.subr.mxu0 0.0
    %5154 = vmatpush2.msra.mxu0 0.0
    %5155 = vmatprep.subr.mxu0 0.0
    %5156 = vmatpush2.msra.mxu0 0.0
    %5157 = vmatprep.subr.mxu0 0.0
    %5158 = vmatpush2.msra.mxu0 0.0
    %5159 = vmatprep.mubr.f32.mxu0 0.0
    %5160 = vmatmul.mubr.f32.gmra.mxu0 %v5090
    %v5161 = vpop.f32.mrf.mxu0
    %v5162 = vadd.f32 0.0, %v5161
    %v5163 = vpop.f32.mrf.mxu0
    %5164 = vmatprep.mubr.f32.mxu0 0.0
    %5165 = vmatmul.mubr.f32.gmra.mxu0 %v5093
    %v5166 = vpop.f32.mrf.mxu0
    %v5167 = vadd.f32 0.0, %v5166
    %v5168 = vpop.f32.mrf.mxu0
    %5169 = vdwg.mxu0
    %5170 = vrot.lane.b32.xlu0 %v242, 48
    %v5171 = vpop.permute.xlu0 %5170
    %5172 = vrot.lane.b32.xlu0 %v247, 48
    %v5173 = vpop.permute.xlu0 %5172
    %v5177 = vsel %vm1037, %v4984, 0
    %v5180 = vsel %vm1037, %v4985, 0
    %5182 = vmatprep.subr.mxu0 0.0
    %5183 = vmatpush1.msra.mxu0 0.0
    %5184 = vmatprep.subr.mxu0 0.0
    %5185 = vmatpush1.msra.mxu0 0.0
    %5186 = vmatprep.subr.mxu0 0.0
    %5187 = vmatpush1.msra.mxu0 0.0
    %5188 = vmatprep.subr.mxu0 0.0
    %5189 = vmatpush1.msra.mxu0 0.0
    %5190 = vmatprep.subr.mxu0 0.0
    %5191 = vmatpush1.msra.mxu0 0.0
    %5192 = vmatprep.subr.mxu0 0.0
    %5193 = vmatpush1.msra.mxu0 0.0
    %5194 = vmatprep.subr.mxu0 0.0
    %5195 = vmatpush1.msra.mxu0 0.0
    %5196 = vmatprep.subr.mxu0 0.0
    %5197 = vmatpush1.msra.mxu0 0.0
    %5198 = vmatprep.subr.mxu0 0.0
    %5199 = vmatpush1.msra.mxu0 0.0
    %5200 = vmatprep.subr.mxu0 0.0
    %5201 = vmatpush1.msra.mxu0 0.0
    %5202 = vmatprep.subr.mxu0 0.0
    %5203 = vmatpush1.msra.mxu0 0.0
    %5204 = vmatprep.subr.mxu0 0.0
    %5205 = vmatpush1.msra.mxu0 0.0
    %5206 = vmatprep.subr.mxu0 0.0
    %5207 = vmatpush1.msra.mxu0 0.0
    %5208 = vmatprep.subr.mxu0 0.0
    %5209 = vmatpush1.msra.mxu0 0.0
    %5210 = vmatprep.subr.mxu0 0.0
    %5211 = vmatpush1.msra.mxu0 %v5173
    %5212 = vmatprep.subr.mxu0 0.0
    %5213 = vmatpush1.msra.mxu0 %v5171
    %5214 = vmatprep.subr.mxu0 0.0
    %5215 = vmatpush2.msra.mxu0 0.0
    %5216 = vmatprep.subr.mxu0 0.0
    %5217 = vmatpush2.msra.mxu0 0.0
    %5218 = vmatprep.subr.mxu0 0.0
    %5219 = vmatpush2.msra.mxu0 0.0
    %5220 = vmatprep.subr.mxu0 0.0
    %5221 = vmatpush2.msra.mxu0 0.0
    %5222 = vmatprep.subr.mxu0 0.0
    %5223 = vmatpush2.msra.mxu0 0.0
    %5224 = vmatprep.subr.mxu0 0.0
    %5225 = vmatpush2.msra.mxu0 0.0
    %5226 = vmatprep.subr.mxu0 0.0
    %5227 = vmatpush2.msra.mxu0 0.0
    %5228 = vmatprep.subr.mxu0 0.0
    %5229 = vmatpush2.msra.mxu0 0.0
    %5230 = vmatprep.subr.mxu0 0.0
    %5231 = vmatpush2.msra.mxu0 0.0
    %5232 = vmatprep.subr.mxu0 0.0
    %5233 = vmatpush2.msra.mxu0 0.0
    %5234 = vmatprep.subr.mxu0 0.0
    %5235 = vmatpush2.msra.mxu0 0.0
    %5236 = vmatprep.subr.mxu0 0.0
    %5237 = vmatpush2.msra.mxu0 0.0
    %5238 = vmatprep.subr.mxu0 0.0
    %5239 = vmatpush2.msra.mxu0 0.0
    %5240 = vmatprep.subr.mxu0 0.0
    %5241 = vmatpush2.msra.mxu0 0.0
    %5242 = vmatprep.subr.mxu0 0.0
    %5243 = vmatpush2.msra.mxu0 0.0
    %5244 = vmatprep.subr.mxu0 0.0
    %5245 = vmatpush2.msra.mxu0 0.0
    %5246 = vmatprep.mubr.f32.mxu0 0.0
    %5247 = vmatmul.mubr.f32.gmra.mxu0 %v5177
    %v5248 = vpop.f32.mrf.mxu0
    %v5249 = vadd.f32 0.0, %v5248
    %v5250 = vpop.f32.mrf.mxu0
    %5251 = vmatprep.mubr.f32.mxu0 0.0
    %5252 = vmatmul.mubr.f32.gmra.mxu0 %v5180
    %v5253 = vpop.f32.mrf.mxu0
    %v5254 = vadd.f32 0.0, %v5253
    %v5255 = vpop.f32.mrf.mxu0
    %5256 = vdwg.mxu0
    %5257 = vrot.lane.b32.xlu0 %v252, 48
    %v5258 = vpop.permute.xlu0 %5257
    %5259 = vrot.lane.b32.xlu0 %v257, 48
    %v5260 = vpop.permute.xlu0 %5259
    %v5264 = vsel %vm1037, %v4986, 0
    %v5267 = vsel %vm1037, %v4987, 0
    %5269 = vmatprep.subr.mxu0 0.0
    %5270 = vmatpush1.msra.mxu0 0.0
    %5271 = vmatprep.subr.mxu0 0.0
    %5272 = vmatpush1.msra.mxu0 0.0
    %5273 = vmatprep.subr.mxu0 0.0
    %5274 = vmatpush1.msra.mxu0 0.0
    %5275 = vmatprep.subr.mxu0 0.0
    %5276 = vmatpush1.msra.mxu0 0.0
    %5277 = vmatprep.subr.mxu0 0.0
    %5278 = vmatpush1.msra.mxu0 0.0
    %5279 = vmatprep.subr.mxu0 0.0
    %5280 = vmatpush1.msra.mxu0 0.0
    %5281 = vmatprep.subr.mxu0 0.0
    %5282 = vmatpush1.msra.mxu0 0.0
    %5283 = vmatprep.subr.mxu0 0.0
    %5284 = vmatpush1.msra.mxu0 0.0
    %5285 = vmatprep.subr.mxu0 0.0
    %5286 = vmatpush1.msra.mxu0 0.0
    %5287 = vmatprep.subr.mxu0 0.0
    %5288 = vmatpush1.msra.mxu0 0.0
    %5289 = vmatprep.subr.mxu0 0.0
    %5290 = vmatpush1.msra.mxu0 0.0
    %5291 = vmatprep.subr.mxu0 0.0
    %5292 = vmatpush1.msra.mxu0 0.0
    %5293 = vmatprep.subr.mxu0 0.0
    %5294 = vmatpush1.msra.mxu0 0.0
    %5295 = vmatprep.subr.mxu0 0.0
    %5296 = vmatpush1.msra.mxu0 0.0
    %5297 = vmatprep.subr.mxu0 0.0
    %5298 = vmatpush1.msra.mxu0 %v5260
    %5299 = vmatprep.subr.mxu0 0.0
    %5300 = vmatpush1.msra.mxu0 %v5258
    %5301 = vmatprep.subr.mxu0 0.0
    %5302 = vmatpush2.msra.mxu0 0.0
    %5303 = vmatprep.subr.mxu0 0.0
    %5304 = vmatpush2.msra.mxu0 0.0
    %5305 = vmatprep.subr.mxu0 0.0
    %5306 = vmatpush2.msra.mxu0 0.0
    %5307 = vmatprep.subr.mxu0 0.0
    %5308 = vmatpush2.msra.mxu0 0.0
    %5309 = vmatprep.subr.mxu0 0.0
    %5310 = vmatpush2.msra.mxu0 0.0
    %5311 = vmatprep.subr.mxu0 0.0
    %5312 = vmatpush2.msra.mxu0 0.0
    %5313 = vmatprep.subr.mxu0 0.0
    %5314 = vmatpush2.msra.mxu0 0.0
    %5315 = vmatprep.subr.mxu0 0.0
    %5316 = vmatpush2.msra.mxu0 0.0
    %5317 = vmatprep.subr.mxu0 0.0
    %5318 = vmatpush2.msra.mxu0 0.0
    %5319 = vmatprep.subr.mxu0 0.0
    %5320 = vmatpush2.msra.mxu0 0.0
    %5321 = vmatprep.subr.mxu0 0.0
    %5322 = vmatpush2.msra.mxu0 0.0
    %5323 = vmatprep.subr.mxu0 0.0
    %5324 = vmatpush2.msra.mxu0 0.0
    %5325 = vmatprep.subr.mxu0 0.0
    %5326 = vmatpush2.msra.mxu0 0.0
    %5327 = vmatprep.subr.mxu0 0.0
    %5328 = vmatpush2.msra.mxu0 0.0
    %5329 = vmatprep.subr.mxu0 0.0
    %5330 = vmatpush2.msra.mxu0 0.0
    %5331 = vmatprep.subr.mxu0 0.0
    %5332 = vmatpush2.msra.mxu0 0.0
    %5333 = vmatprep.mubr.f32.mxu0 0.0
    %5334 = vmatmul.mubr.f32.gmra.mxu0 %v5264
    %v5335 = vpop.f32.mrf.mxu0
    %v5336 = vadd.f32 0.0, %v5335
    %v5337 = vpop.f32.mrf.mxu0
    %5338 = vmatprep.mubr.f32.mxu0 0.0
    %5339 = vmatmul.mubr.f32.gmra.mxu0 %v5267
    %v5340 = vpop.f32.mrf.mxu0
    %v5341 = vadd.f32 0.0, %v5340
    %v5342 = vpop.f32.mrf.mxu0
    %5343 = vdwg.mxu0
    %5344 = vrot.lane.b32.xlu0 %v262, 48
    %v5345 = vpop.permute.xlu0 %5344
    %5346 = vrot.lane.b32.xlu0 %v267, 48
    %v5347 = vpop.permute.xlu0 %5346
    %v5351 = vsel %vm1037, %v4988, 0
    %v5354 = vsel %vm1037, %v4989, 0
    %5356 = vmatprep.subr.mxu0 0.0
    %5357 = vmatpush1.msra.mxu0 0.0
    %5358 = vmatprep.subr.mxu0 0.0
    %5359 = vmatpush1.msra.mxu0 0.0
    %5360 = vmatprep.subr.mxu0 0.0
    %5361 = vmatpush1.msra.mxu0 0.0
    %5362 = vmatprep.subr.mxu0 0.0
    %5363 = vmatpush1.msra.mxu0 0.0
    %5364 = vmatprep.subr.mxu0 0.0
    %5365 = vmatpush1.msra.mxu0 0.0
    %5366 = vmatprep.subr.mxu0 0.0
    %5367 = vmatpush1.msra.mxu0 0.0
    %5368 = vmatprep.subr.mxu0 0.0
    %5369 = vmatpush1.msra.mxu0 0.0
    %5370 = vmatprep.subr.mxu0 0.0
    %5371 = vmatpush1.msra.mxu0 0.0
    %5372 = vmatprep.subr.mxu0 0.0
    %5373 = vmatpush1.msra.mxu0 0.0
    %5374 = vmatprep.subr.mxu0 0.0
    %5375 = vmatpush1.msra.mxu0 0.0
    %5376 = vmatprep.subr.mxu0 0.0
    %5377 = vmatpush1.msra.mxu0 0.0
    %5378 = vmatprep.subr.mxu0 0.0
    %5379 = vmatpush1.msra.mxu0 0.0
    %5380 = vmatprep.subr.mxu0 0.0
    %5381 = vmatpush1.msra.mxu0 0.0
    %5382 = vmatprep.subr.mxu0 0.0
    %5383 = vmatpush1.msra.mxu0 0.0
    %5384 = vmatprep.subr.mxu0 0.0
    %5385 = vmatpush1.msra.mxu0 %v5347
    %5386 = vmatprep.subr.mxu0 0.0
    %5387 = vmatpush1.msra.mxu0 %v5345
    %5388 = vmatprep.subr.mxu0 0.0
    %5389 = vmatpush2.msra.mxu0 0.0
    %5390 = vmatprep.subr.mxu0 0.0
    %5391 = vmatpush2.msra.mxu0 0.0
    %5392 = vmatprep.subr.mxu0 0.0
    %5393 = vmatpush2.msra.mxu0 0.0
    %5394 = vmatprep.subr.mxu0 0.0
    %5395 = vmatpush2.msra.mxu0 0.0
    %5396 = vmatprep.subr.mxu0 0.0
    %5397 = vmatpush2.msra.mxu0 0.0
    %5398 = vmatprep.subr.mxu0 0.0
    %5399 = vmatpush2.msra.mxu0 0.0
    %5400 = vmatprep.subr.mxu0 0.0
    %5401 = vmatpush2.msra.mxu0 0.0
    %5402 = vmatprep.subr.mxu0 0.0
    %5403 = vmatpush2.msra.mxu0 0.0
    %5404 = vmatprep.subr.mxu0 0.0
    %5405 = vmatpush2.msra.mxu0 0.0
    %5406 = vmatprep.subr.mxu0 0.0
    %5407 = vmatpush2.msra.mxu0 0.0
    %5408 = vmatprep.subr.mxu0 0.0
    %5409 = vmatpush2.msra.mxu0 0.0
    %5410 = vmatprep.subr.mxu0 0.0
    %5411 = vmatpush2.msra.mxu0 0.0
    %5412 = vmatprep.subr.mxu0 0.0
    %5413 = vmatpush2.msra.mxu0 0.0
    %5414 = vmatprep.subr.mxu0 0.0
    %5415 = vmatpush2.msra.mxu0 0.0
    %5416 = vmatprep.subr.mxu0 0.0
    %5417 = vmatpush2.msra.mxu0 0.0
    %5418 = vmatprep.subr.mxu0 0.0
    %5419 = vmatpush2.msra.mxu0 0.0
    %5420 = vmatprep.mubr.f32.mxu0 0.0
    %5421 = vmatmul.mubr.f32.gmra.mxu0 %v5351
    %v5422 = vpop.f32.mrf.mxu0
    %v5423 = vadd.f32 0.0, %v5422
    %v5424 = vpop.f32.mrf.mxu0
    %5425 = vmatprep.mubr.f32.mxu0 0.0
    %5426 = vmatmul.mubr.f32.gmra.mxu0 %v5354
    %v5427 = vpop.f32.mrf.mxu0
    %v5428 = vadd.f32 0.0, %v5427
    %v5429 = vpop.f32.mrf.mxu0
    %5430 = vdwg.mxu0
    %5431 = vrot.lane.b32.xlu0 %v272, 48
    %v5432 = vpop.permute.xlu0 %5431
    %5433 = vrot.lane.b32.xlu0 %v277, 48
    %v5434 = vpop.permute.xlu0 %5433
    %v5438 = vsel %vm1037, %v4990, 0
    %v5441 = vsel %vm1037, %v4991, 0
    %5443 = vmatprep.subr.mxu0 0.0
    %5444 = vmatpush1.msra.mxu0 0.0
    %5445 = vmatprep.subr.mxu0 0.0
    %5446 = vmatpush1.msra.mxu0 0.0
    %5447 = vmatprep.subr.mxu0 0.0
    %5448 = vmatpush1.msra.mxu0 0.0
    %5449 = vmatprep.subr.mxu0 0.0
    %5450 = vmatpush1.msra.mxu0 0.0
    %5451 = vmatprep.subr.mxu0 0.0
    %5452 = vmatpush1.msra.mxu0 0.0
    %5453 = vmatprep.subr.mxu0 0.0
    %5454 = vmatpush1.msra.mxu0 0.0
    %5455 = vmatprep.subr.mxu0 0.0
    %5456 = vmatpush1.msra.mxu0 0.0
    %5457 = vmatprep.subr.mxu0 0.0
    %5458 = vmatpush1.msra.mxu0 0.0
    %5459 = vmatprep.subr.mxu0 0.0
    %5460 = vmatpush1.msra.mxu0 0.0
    %5461 = vmatprep.subr.mxu0 0.0
    %5462 = vmatpush1.msra.mxu0 0.0
    %5463 = vmatprep.subr.mxu0 0.0
    %5464 = vmatpush1.msra.mxu0 0.0
    %5465 = vmatprep.subr.mxu0 0.0
    %5466 = vmatpush1.msra.mxu0 0.0
    %5467 = vmatprep.subr.mxu0 0.0
    %5468 = vmatpush1.msra.mxu0 0.0
    %5469 = vmatprep.subr.mxu0 0.0
    %5470 = vmatpush1.msra.mxu0 0.0
    %5471 = vmatprep.subr.mxu0 0.0
    %5472 = vmatpush1.msra.mxu0 %v5434
    %5473 = vmatprep.subr.mxu0 0.0
    %5474 = vmatpush1.msra.mxu0 %v5432
    %5475 = vmatprep.subr.mxu0 0.0
    %5476 = vmatpush2.msra.mxu0 0.0
    %5477 = vmatprep.subr.mxu0 0.0
    %5478 = vmatpush2.msra.mxu0 0.0
    %5479 = vmatprep.subr.mxu0 0.0
    %5480 = vmatpush2.msra.mxu0 0.0
    %5481 = vmatprep.subr.mxu0 0.0
    %5482 = vmatpush2.msra.mxu0 0.0
    %5483 = vmatprep.subr.mxu0 0.0
    %5484 = vmatpush2.msra.mxu0 0.0
    %5485 = vmatprep.subr.mxu0 0.0
    %5486 = vmatpush2.msra.mxu0 0.0
    %5487 = vmatprep.subr.mxu0 0.0
    %5488 = vmatpush2.msra.mxu0 0.0
    %5489 = vmatprep.subr.mxu0 0.0
    %5490 = vmatpush2.msra.mxu0 0.0
    %5491 = vmatprep.subr.mxu0 0.0
    %5492 = vmatpush2.msra.mxu0 0.0
    %5493 = vmatprep.subr.mxu0 0.0
    %5494 = vmatpush2.msra.mxu0 0.0
    %5495 = vmatprep.subr.mxu0 0.0
    %5496 = vmatpush2.msra.mxu0 0.0
    %5497 = vmatprep.subr.mxu0 0.0
    %5498 = vmatpush2.msra.mxu0 0.0
    %5499 = vmatprep.subr.mxu0 0.0
    %5500 = vmatpush2.msra.mxu0 0.0
    %5501 = vmatprep.subr.mxu0 0.0
    %5502 = vmatpush2.msra.mxu0 0.0
    %5503 = vmatprep.subr.mxu0 0.0
    %5504 = vmatpush2.msra.mxu0 0.0
    %5505 = vmatprep.subr.mxu0 0.0
    %5506 = vmatpush2.msra.mxu0 0.0
    %5507 = vmatprep.mubr.f32.mxu0 0.0
    %5508 = vmatmul.mubr.f32.gmra.mxu0 %v5438
    %v5509 = vpop.f32.mrf.mxu0
    %v5510 = vadd.f32 0.0, %v5509
    %v5511 = vpop.f32.mrf.mxu0
    %5512 = vmatprep.mubr.f32.mxu0 0.0
    %5513 = vmatmul.mubr.f32.gmra.mxu0 %v5441
    %v5514 = vpop.f32.mrf.mxu0
    %v5515 = vadd.f32 0.0, %v5514
    %v5516 = vpop.f32.mrf.mxu0
    %5517 = vdwg.mxu0
    %5518 = vrot.lane.b32.xlu0 %v282, 48
    %v5519 = vpop.permute.xlu0 %5518
    %5520 = vrot.lane.b32.xlu0 %v287, 48
    %v5521 = vpop.permute.xlu0 %5520
    %v5525 = vsel %vm1037, %v4992, 0
    %v5528 = vsel %vm1037, %v4993, 0
    %5530 = vmatprep.subr.mxu0 0.0
    %5531 = vmatpush1.msra.mxu0 0.0
    %5532 = vmatprep.subr.mxu0 0.0
    %5533 = vmatpush1.msra.mxu0 0.0
    %5534 = vmatprep.subr.mxu0 0.0
    %5535 = vmatpush1.msra.mxu0 0.0
    %5536 = vmatprep.subr.mxu0 0.0
    %5537 = vmatpush1.msra.mxu0 0.0
    %5538 = vmatprep.subr.mxu0 0.0
    %5539 = vmatpush1.msra.mxu0 0.0
    %5540 = vmatprep.subr.mxu0 0.0
    %5541 = vmatpush1.msra.mxu0 0.0
    %5542 = vmatprep.subr.mxu0 0.0
    %5543 = vmatpush1.msra.mxu0 0.0
    %5544 = vmatprep.subr.mxu0 0.0
    %5545 = vmatpush1.msra.mxu0 0.0
    %5546 = vmatprep.subr.mxu0 0.0
    %5547 = vmatpush1.msra.mxu0 0.0
    %5548 = vmatprep.subr.mxu0 0.0
    %5549 = vmatpush1.msra.mxu0 0.0
    %5550 = vmatprep.subr.mxu0 0.0
    %5551 = vmatpush1.msra.mxu0 0.0
    %5552 = vmatprep.subr.mxu0 0.0
    %5553 = vmatpush1.msra.mxu0 0.0
    %5554 = vmatprep.subr.mxu0 0.0
    %5555 = vmatpush1.msra.mxu0 0.0
    %5556 = vmatprep.subr.mxu0 0.0
    %5557 = vmatpush1.msra.mxu0 0.0
    %5558 = vmatprep.subr.mxu0 0.0
    %5559 = vmatpush1.msra.mxu0 %v5521
    %5560 = vmatprep.subr.mxu0 0.0
    %5561 = vmatpush1.msra.mxu0 %v5519
    %5562 = vmatprep.subr.mxu0 0.0
    %5563 = vmatpush2.msra.mxu0 0.0
    %5564 = vmatprep.subr.mxu0 0.0
    %5565 = vmatpush2.msra.mxu0 0.0
    %5566 = vmatprep.subr.mxu0 0.0
    %5567 = vmatpush2.msra.mxu0 0.0
    %5568 = vmatprep.subr.mxu0 0.0
    %5569 = vmatpush2.msra.mxu0 0.0
    %5570 = vmatprep.subr.mxu0 0.0
    %5571 = vmatpush2.msra.mxu0 0.0
    %5572 = vmatprep.subr.mxu0 0.0
    %5573 = vmatpush2.msra.mxu0 0.0
    %5574 = vmatprep.subr.mxu0 0.0
    %5575 = vmatpush2.msra.mxu0 0.0
    %5576 = vmatprep.subr.mxu0 0.0
    %5577 = vmatpush2.msra.mxu0 0.0
    %5578 = vmatprep.subr.mxu0 0.0
    %5579 = vmatpush2.msra.mxu0 0.0
    %5580 = vmatprep.subr.mxu0 0.0
    %5581 = vmatpush2.msra.mxu0 0.0
    %5582 = vmatprep.subr.mxu0 0.0
    %5583 = vmatpush2.msra.mxu0 0.0
    %5584 = vmatprep.subr.mxu0 0.0
    %5585 = vmatpush2.msra.mxu0 0.0
    %5586 = vmatprep.subr.mxu0 0.0
    %5587 = vmatpush2.msra.mxu0 0.0
    %5588 = vmatprep.subr.mxu0 0.0
    %5589 = vmatpush2.msra.mxu0 0.0
    %5590 = vmatprep.subr.mxu0 0.0
    %5591 = vmatpush2.msra.mxu0 0.0
    %5592 = vmatprep.subr.mxu0 0.0
    %5593 = vmatpush2.msra.mxu0 0.0
    %5594 = vmatprep.mubr.f32.mxu0 0.0
    %5595 = vmatmul.mubr.f32.gmra.mxu0 %v5525
    %v5596 = vpop.f32.mrf.mxu0
    %v5597 = vadd.f32 0.0, %v5596
    %v5598 = vpop.f32.mrf.mxu0
    %5599 = vmatprep.mubr.f32.mxu0 0.0
    %5600 = vmatmul.mubr.f32.gmra.mxu0 %v5528
    %v5601 = vpop.f32.mrf.mxu0
    %v5602 = vadd.f32 0.0, %v5601
    %v5603 = vpop.f32.mrf.mxu0
    %5604 = vdwg.mxu0
    %5605 = vrot.lane.b32.xlu0 %v292, 48
    %v5606 = vpop.permute.xlu0 %5605
    %5607 = vrot.lane.b32.xlu0 %v297, 48
    %v5608 = vpop.permute.xlu0 %5607
    %v5612 = vsel %vm1037, %v4994, 0
    %v5615 = vsel %vm1037, %v4995, 0
    %5617 = vmatprep.subr.mxu0 0.0
    %5618 = vmatpush1.msra.mxu0 0.0
    %5619 = vmatprep.subr.mxu0 0.0
    %5620 = vmatpush1.msra.mxu0 0.0
    %5621 = vmatprep.subr.mxu0 0.0
    %5622 = vmatpush1.msra.mxu0 0.0
    %5623 = vmatprep.subr.mxu0 0.0
    %5624 = vmatpush1.msra.mxu0 0.0
    %5625 = vmatprep.subr.mxu0 0.0
    %5626 = vmatpush1.msra.mxu0 0.0
    %5627 = vmatprep.subr.mxu0 0.0
    %5628 = vmatpush1.msra.mxu0 0.0
    %5629 = vmatprep.subr.mxu0 0.0
    %5630 = vmatpush1.msra.mxu0 0.0
    %5631 = vmatprep.subr.mxu0 0.0
    %5632 = vmatpush1.msra.mxu0 0.0
    %5633 = vmatprep.subr.mxu0 0.0
    %5634 = vmatpush1.msra.mxu0 0.0
    %5635 = vmatprep.subr.mxu0 0.0
    %5636 = vmatpush1.msra.mxu0 0.0
    %5637 = vmatprep.subr.mxu0 0.0
    %5638 = vmatpush1.msra.mxu0 0.0
    %5639 = vmatprep.subr.mxu0 0.0
    %5640 = vmatpush1.msra.mxu0 0.0
    %5641 = vmatprep.subr.mxu0 0.0
    %5642 = vmatpush1.msra.mxu0 0.0
    %5643 = vmatprep.subr.mxu0 0.0
    %5644 = vmatpush1.msra.mxu0 0.0
    %5645 = vmatprep.subr.mxu0 0.0
    %5646 = vmatpush1.msra.mxu0 %v5608
    %5647 = vmatprep.subr.mxu0 0.0
    %5648 = vmatpush1.msra.mxu0 %v5606
    %5649 = vmatprep.subr.mxu0 0.0
    %5650 = vmatpush2.msra.mxu0 0.0
    %5651 = vmatprep.subr.mxu0 0.0
    %5652 = vmatpush2.msra.mxu0 0.0
    %5653 = vmatprep.subr.mxu0 0.0
    %5654 = vmatpush2.msra.mxu0 0.0
    %5655 = vmatprep.subr.mxu0 0.0
    %5656 = vmatpush2.msra.mxu0 0.0
    %5657 = vmatprep.subr.mxu0 0.0
    %5658 = vmatpush2.msra.mxu0 0.0
    %5659 = vmatprep.subr.mxu0 0.0
    %5660 = vmatpush2.msra.mxu0 0.0
    %5661 = vmatprep.subr.mxu0 0.0
    %5662 = vmatpush2.msra.mxu0 0.0
    %5663 = vmatprep.subr.mxu0 0.0
    %5664 = vmatpush2.msra.mxu0 0.0
    %5665 = vmatprep.subr.mxu0 0.0
    %5666 = vmatpush2.msra.mxu0 0.0
    %5667 = vmatprep.subr.mxu0 0.0
    %5668 = vmatpush2.msra.mxu0 0.0
    %5669 = vmatprep.subr.mxu0 0.0
    %5670 = vmatpush2.msra.mxu0 0.0
    %5671 = vmatprep.subr.mxu0 0.0
    %5672 = vmatpush2.msra.mxu0 0.0
    %5673 = vmatprep.subr.mxu0 0.0
    %5674 = vmatpush2.msra.mxu0 0.0
    %5675 = vmatprep.subr.mxu0 0.0
    %5676 = vmatpush2.msra.mxu0 0.0
    %5677 = vmatprep.subr.mxu0 0.0
    %5678 = vmatpush2.msra.mxu0 0.0
    %5679 = vmatprep.subr.mxu0 0.0
    %5680 = vmatpush2.msra.mxu0 0.0
    %5681 = vmatprep.mubr.f32.mxu0 0.0
    %5682 = vmatmul.mubr.f32.gmra.mxu0 %v5612
    %v5683 = vpop.f32.mrf.mxu0
    %v5684 = vadd.f32 0.0, %v5683
    %v5685 = vpop.f32.mrf.mxu0
    %5686 = vmatprep.mubr.f32.mxu0 0.0
    %5687 = vmatmul.mubr.f32.gmra.mxu0 %v5615
    %v5688 = vpop.f32.mrf.mxu0
    %v5689 = vadd.f32 0.0, %v5688
    %v5690 = vpop.f32.mrf.mxu0
    %5691 = vdwg.mxu0
    %v5692 = vld [vmem:[#allocation7 + $0x10] sm:$0xff]
    %v5694 = vsel %vm306, %v5075, 0
    %v5697 = vsel %vm306, %v5080, 0
    %v5700 = vsel %vm306, %v5162, 0
    %v5703 = vsel %vm306, %v5167, 0
    %v5706 = vsel %vm306, %v5249, 0
    %v5709 = vsel %vm306, %v5254, 0
    %v5712 = vsel %vm306, %v5336, 0
    %v5715 = vsel %vm306, %v5341, 0
    %v5718 = vsel %vm306, %v5423, 0
    %v5721 = vsel %vm306, %v5428, 0
    %v5724 = vsel %vm306, %v5510, 0
    %v5727 = vsel %vm306, %v5515, 0
    %v5730 = vsel %vm306, %v5597, 0
    %v5733 = vsel %vm306, %v5602, 0
    %v5736 = vsel %vm306, %v5684, 0
    %v5739 = vsel %vm306, %v5689, 0
    %5741 = vmatprep.subr.mxu0 0.0
    %5742 = vmatpush1.msra.mxu0 0.0
    %5743 = vmatprep.subr.mxu0 0.0
    %5744 = vmatpush1.msra.mxu0 0.0
    %5745 = vmatprep.subr.mxu0 0.0
    %5746 = vmatpush1.msra.mxu0 0.0
    %5747 = vmatprep.subr.mxu0 0.0
    %5748 = vmatpush1.msra.mxu0 0.0
    %5749 = vmatprep.subr.mxu0 0.0
    %5750 = vmatpush1.msra.mxu0 0.0
    %5751 = vmatprep.subr.mxu0 0.0
    %5752 = vmatpush1.msra.mxu0 0.0
    %5753 = vmatprep.subr.mxu0 0.0
    %5754 = vmatpush1.msra.mxu0 0.0
    %5755 = vmatprep.subr.mxu0 0.0
    %5756 = vmatpush1.msra.mxu0 0.0
    %5757 = vmatprep.subr.mxu0 0.0
    %5758 = vmatpush1.msra.mxu0 0.0
    %5759 = vmatprep.subr.mxu0 0.0
    %5760 = vmatpush1.msra.mxu0 0.0
    %5761 = vmatprep.subr.mxu0 0.0
    %5762 = vmatpush1.msra.mxu0 0.0
    %5763 = vmatprep.subr.mxu0 0.0
    %5764 = vmatpush1.msra.mxu0 0.0
    %5765 = vmatprep.subr.mxu0 0.0
    %5766 = vmatpush1.msra.mxu0 0.0
    %5767 = vmatprep.subr.mxu0 0.0
    %5768 = vmatpush1.msra.mxu0 0.0
    %5769 = vmatprep.subr.mxu0 0.0
    %5770 = vmatpush1.msra.mxu0 0.0
    %5771 = vmatprep.subr.mxu0 0.0
    %5772 = vmatpush1.msra.mxu0 %v5692
    %5773 = vmatprep.subr.mxu0 0.0
    %5774 = vmatpush2.msra.mxu0 0.0
    %5775 = vmatprep.subr.mxu0 0.0
    %5776 = vmatpush2.msra.mxu0 0.0
    %5777 = vmatprep.subr.mxu0 0.0
    %5778 = vmatpush2.msra.mxu0 0.0
    %5779 = vmatprep.subr.mxu0 0.0
    %5780 = vmatpush2.msra.mxu0 0.0
    %5781 = vmatprep.subr.mxu0 0.0
    %5782 = vmatpush2.msra.mxu0 0.0
    %5783 = vmatprep.subr.mxu0 0.0
    %5784 = vmatpush2.msra.mxu0 0.0
    %5785 = vmatprep.subr.mxu0 0.0
    %5786 = vmatpush2.msra.mxu0 0.0
    %5787 = vmatprep.subr.mxu0 0.0
    %5788 = vmatpush2.msra.mxu0 0.0
    %5789 = vmatprep.subr.mxu0 0.0
    %5790 = vmatpush2.msra.mxu0 0.0
    %5791 = vmatprep.subr.mxu0 0.0
    %5792 = vmatpush2.msra.mxu0 0.0
    %5793 = vmatprep.subr.mxu0 0.0
    %5794 = vmatpush2.msra.mxu0 0.0
    %5795 = vmatprep.subr.mxu0 0.0
    %5796 = vmatpush2.msra.mxu0 0.0
    %5797 = vmatprep.subr.mxu0 0.0
    %5798 = vmatpush2.msra.mxu0 0.0
    %5799 = vmatprep.subr.mxu0 0.0
    %5800 = vmatpush2.msra.mxu0 0.0
    %5801 = vmatprep.subr.mxu0 0.0
    %5802 = vmatpush2.msra.mxu0 0.0
    %5803 = vmatprep.subr.mxu0 0.0
    %5804 = vmatpush2.msra.mxu0 0.0
    %5805 = vmatprep.mubr.f32.mxu0 0.0
    %5806 = vmatmul.mubr.f32.gmra.mxu0 %v5694
    %v5807 = vpop.f32.mrf.mxu0
    %v5808 = vadd.f32 0.0, %v5807
    %v5809 = vpop.f32.mrf.mxu0
    %5810 = vmatprep.mubr.f32.mxu0 0.0
    %5811 = vmatmul.mubr.f32.gmra.mxu0 %v5697
    %v5812 = vpop.f32.mrf.mxu0
    %v5813 = vadd.f32 0.0, %v5812
    %v5814 = vpop.f32.mrf.mxu0
    %5815 = vmatprep.mubr.f32.mxu0 0.0
    %5816 = vmatmul.mubr.f32.gmra.mxu0 %v5700
    %v5817 = vpop.f32.mrf.mxu0
    %v5818 = vadd.f32 0.0, %v5817
    %v5819 = vpop.f32.mrf.mxu0
    %5820 = vmatprep.mubr.f32.mxu0 0.0
    %5821 = vmatmul.mubr.f32.gmra.mxu0 %v5703
    %v5822 = vpop.f32.mrf.mxu0
    %v5823 = vadd.f32 0.0, %v5822
    %v5824 = vpop.f32.mrf.mxu0
    %5825 = vmatprep.mubr.f32.mxu0 0.0
    %5826 = vmatmul.mubr.f32.gmra.mxu0 %v5706
    %v5827 = vpop.f32.mrf.mxu0
    %v5828 = vadd.f32 0.0, %v5827
    %v5829 = vpop.f32.mrf.mxu0
    %5830 = vmatprep.mubr.f32.mxu0 0.0
    %5831 = vmatmul.mubr.f32.gmra.mxu0 %v5709
    %v5832 = vpop.f32.mrf.mxu0
    %v5833 = vadd.f32 0.0, %v5832
    %v5834 = vpop.f32.mrf.mxu0
    %5835 = vmatprep.mubr.f32.mxu0 0.0
    %5836 = vmatmul.mubr.f32.gmra.mxu0 %v5712
    %v5837 = vpop.f32.mrf.mxu0
    %v5838 = vadd.f32 0.0, %v5837
    %v5839 = vpop.f32.mrf.mxu0
    %5840 = vmatprep.mubr.f32.mxu0 0.0
    %5841 = vmatmul.mubr.f32.gmra.mxu0 %v5715
    %v5842 = vpop.f32.mrf.mxu0
    %v5843 = vadd.f32 0.0, %v5842
    %v5844 = vpop.f32.mrf.mxu0
    %5845 = vmatprep.mubr.f32.mxu0 0.0
    %5846 = vmatmul.mubr.f32.gmra.mxu0 %v5718
    %v5847 = vpop.f32.mrf.mxu0
    %v5848 = vadd.f32 0.0, %v5847
    %v5849 = vpop.f32.mrf.mxu0
    %5850 = vmatprep.mubr.f32.mxu0 0.0
    %5851 = vmatmul.mubr.f32.gmra.mxu0 %v5721
    %v5852 = vpop.f32.mrf.mxu0
    %v5853 = vadd.f32 0.0, %v5852
    %v5854 = vpop.f32.mrf.mxu0
    %5855 = vmatprep.mubr.f32.mxu0 0.0
    %5856 = vmatmul.mubr.f32.gmra.mxu0 %v5724
    %v5857 = vpop.f32.mrf.mxu0
    %v5858 = vadd.f32 0.0, %v5857
    %v5859 = vpop.f32.mrf.mxu0
    %5860 = vmatprep.mubr.f32.mxu0 0.0
    %5861 = vmatmul.mubr.f32.gmra.mxu0 %v5727
    %v5862 = vpop.f32.mrf.mxu0
    %v5863 = vadd.f32 0.0, %v5862
    %v5864 = vpop.f32.mrf.mxu0
    %5865 = vmatprep.mubr.f32.mxu0 0.0
    %5866 = vmatmul.mubr.f32.gmra.mxu0 %v5730
    %v5867 = vpop.f32.mrf.mxu0
    %v5868 = vadd.f32 0.0, %v5867
    %v5869 = vpop.f32.mrf.mxu0
    %5870 = vmatprep.mubr.f32.mxu0 0.0
    %5871 = vmatmul.mubr.f32.gmra.mxu0 %v5733
    %v5872 = vpop.f32.mrf.mxu0
    %v5873 = vadd.f32 0.0, %v5872
    %v5874 = vpop.f32.mrf.mxu0
    %5875 = vmatprep.mubr.f32.mxu0 0.0
    %5876 = vmatmul.mubr.f32.gmra.mxu0 %v5736
    %v5877 = vpop.f32.mrf.mxu0
    %v5878 = vadd.f32 0.0, %v5877
    %v5879 = vpop.f32.mrf.mxu0
    %5880 = vmatprep.mubr.f32.mxu0 0.0
    %5881 = vmatmul.mubr.f32.gmra.mxu0 %v5739
    %v5882 = vpop.f32.mrf.mxu0
    %v5883 = vadd.f32 0.0, %v5882
    %v5884 = vpop.f32.mrf.mxu0
    %5885 = vdwg.mxu0
    %v5886 = vadd.f32 %v3941, %v5808
    %v5887 = vadd.f32 %v3946, %v5813
    %v5888 = vadd.f32 %v3951, %v5818
    %v5889 = vadd.f32 %v3956, %v5823
    %v5890 = vadd.f32 %v3961, %v5828
    %v5891 = vadd.f32 %v3966, %v5833
    %v5892 = vadd.f32 %v3971, %v5838
    %v5893 = vadd.f32 %v3976, %v5843
    %v5894 = vadd.f32 %v3981, %v5848
    %v5895 = vadd.f32 %v3986, %v5853
    %v5896 = vadd.f32 %v3991, %v5858
    %v5897 = vadd.f32 %v3996, %v5863
    %v5898 = vadd.f32 %v4001, %v5868
    %v5899 = vadd.f32 %v4006, %v5873
    %v5900 = vadd.f32 %v4011, %v5878
    %v5901 = vadd.f32 %v4016, %v5883
    %5902 = vrot.lane.b32.xlu0 %v222, 104
    %v5903 = vpop.permute.xlu0 %5902
    %5904 = vrot.lane.b32.xlu0 %v227, 104
    %v5905 = vpop.permute.xlu0 %5904
    %5906 = vrot.lane.b32.xlu0 %v222, 72
    %v5907 = vpop.permute.xlu0 %5906
    %5908 = vrot.lane.b32.xlu0 %v227, 72
    %v5909 = vpop.permute.xlu0 %5908
    %v5910 = vsel %vm306, %v5903, 0
    %v5912 = vsel %vm306, %v5905, 0
    %v5914 = vsel %vm306, %v5907, 0
    %v5916 = vsel %vm306, %v5909, 0
    %5918 = vmatprep.subr.mxu0 0.0
    %5919 = vmatpush1.xpose.msra.mxu0 0.0
    %5920 = vmatprep.subr.mxu0 0.0
    %5921 = vmatpush1.xpose.msra.mxu0 0.0
    %5922 = vmatprep.subr.mxu0 0.0
    %5923 = vmatpush1.xpose.msra.mxu0 0.0
    %5924 = vmatprep.subr.mxu0 0.0
    %5925 = vmatpush1.xpose.msra.mxu0 0.0
    %5926 = vmatprep.subr.mxu0 0.0
    %5927 = vmatpush1.xpose.msra.mxu0 0.0
    %5928 = vmatprep.subr.mxu0 0.0
    %5929 = vmatpush1.xpose.msra.mxu0 0.0
    %5930 = vmatprep.subr.mxu0 0.0
    %5931 = vmatpush1.xpose.msra.mxu0 0.0
    %5932 = vmatprep.subr.mxu0 0.0
    %5933 = vmatpush1.xpose.msra.mxu0 0.0
    %5934 = vmatprep.subr.mxu0 0.0
    %5935 = vmatpush1.xpose.msra.mxu0 0.0
    %5936 = vmatprep.subr.mxu0 0.0
    %5937 = vmatpush1.xpose.msra.mxu0 0.0
    %5938 = vmatprep.subr.mxu0 0.0
    %5939 = vmatpush1.xpose.msra.mxu0 0.0
    %5940 = vmatprep.subr.mxu0 0.0
    %5941 = vmatpush1.xpose.msra.mxu0 0.0
    %5942 = vmatprep.subr.mxu0 0.0
    %5943 = vmatpush1.xpose.msra.mxu0 0.0
    %5944 = vmatprep.subr.mxu0 0.0
    %5945 = vmatpush1.xpose.msra.mxu0 0.0
    %5946 = vmatprep.subr.mxu0 0.0
    %5947 = vmatpush1.xpose.msra.mxu0 %v5916
    %5948 = vmatprep.subr.mxu0 0.0
    %5949 = vmatpush1.xpose.msra.mxu0 %v5914
    %5950 = vmatprep.subr.mxu0 0.0
    %5951 = vmatpush2.xpose.msra.mxu0 0.0
    %5952 = vmatprep.subr.mxu0 0.0
    %5953 = vmatpush2.xpose.msra.mxu0 0.0
    %5954 = vmatprep.subr.mxu0 0.0
    %5955 = vmatpush2.xpose.msra.mxu0 0.0
    %5956 = vmatprep.subr.mxu0 0.0
    %5957 = vmatpush2.xpose.msra.mxu0 0.0
    %5958 = vmatprep.subr.mxu0 0.0
    %5959 = vmatpush2.xpose.msra.mxu0 0.0
    %5960 = vmatprep.subr.mxu0 0.0
    %5961 = vmatpush2.xpose.msra.mxu0 0.0
    %5962 = vmatprep.subr.mxu0 0.0
    %5963 = vmatpush2.xpose.msra.mxu0 0.0
    %5964 = vmatprep.subr.mxu0 0.0
    %5965 = vmatpush2.xpose.msra.mxu0 0.0
    %5966 = vmatprep.subr.mxu0 0.0
    %5967 = vmatpush2.xpose.msra.mxu0 0.0
    %5968 = vmatprep.subr.mxu0 0.0
    %5969 = vmatpush2.xpose.msra.mxu0 0.0
    %5970 = vmatprep.subr.mxu0 0.0
    %5971 = vmatpush2.xpose.msra.mxu0 0.0
    %5972 = vmatprep.subr.mxu0 0.0
    %5973 = vmatpush2.xpose.msra.mxu0 0.0
    %5974 = vmatprep.subr.mxu0 0.0
    %5975 = vmatpush2.xpose.msra.mxu0 0.0
    %5976 = vmatprep.subr.mxu0 0.0
    %5977 = vmatpush2.xpose.msra.mxu0 0.0
    %5978 = vmatprep.subr.mxu0 0.0
    %5979 = vmatpush2.xpose.msra.mxu0 0.0
    %5980 = vmatprep.subr.mxu0 0.0
    %5981 = vmatpush2.xpose.msra.mxu0 0.0
    %5982 = vmatprep.mubr.f32.mxu0 0.0
    %5983 = vmatmul.mubr.f32.gmra.mxu0 %v5910
    %v5984 = vpop.f32.mrf.mxu0
    %v5985 = vadd.f32 0.0, %v5984
    %v5986 = vpop.f32.mrf.mxu0
    %5987 = vmatprep.mubr.f32.mxu0 0.0
    %5988 = vmatmul.mubr.f32.gmra.mxu0 %v5912
    %v5989 = vpop.f32.mrf.mxu0
    %v5990 = vadd.f32 0.0, %v5989
    %v5991 = vpop.f32.mrf.mxu0
    %5992 = vdwg.mxu0
    %5993 = vrot.lane.b32.xlu0 %v232, 104
    %v5994 = vpop.permute.xlu0 %5993
    %5995 = vrot.lane.b32.xlu0 %v237, 104
    %v5996 = vpop.permute.xlu0 %5995
    %5997 = vrot.lane.b32.xlu0 %v232, 72
    %v5998 = vpop.permute.xlu0 %5997
    %5999 = vrot.lane.b32.xlu0 %v237, 72
    %v6000 = vpop.permute.xlu0 %5999
    %v6001 = vsel %vm306, %v5994, 0
    %v6003 = vsel %vm306, %v5996, 0
    %v6005 = vsel %vm306, %v5998, 0
    %v6007 = vsel %vm306, %v6000, 0
    %6009 = vmatprep.subr.mxu0 0.0
    %6010 = vmatpush1.xpose.msra.mxu0 0.0
    %6011 = vmatprep.subr.mxu0 0.0
    %6012 = vmatpush1.xpose.msra.mxu0 0.0
    %6013 = vmatprep.subr.mxu0 0.0
    %6014 = vmatpush1.xpose.msra.mxu0 0.0
    %6015 = vmatprep.subr.mxu0 0.0
    %6016 = vmatpush1.xpose.msra.mxu0 0.0
    %6017 = vmatprep.subr.mxu0 0.0
    %6018 = vmatpush1.xpose.msra.mxu0 0.0
    %6019 = vmatprep.subr.mxu0 0.0
    %6020 = vmatpush1.xpose.msra.mxu0 0.0
    %6021 = vmatprep.subr.mxu0 0.0
    %6022 = vmatpush1.xpose.msra.mxu0 0.0
    %6023 = vmatprep.subr.mxu0 0.0
    %6024 = vmatpush1.xpose.msra.mxu0 0.0
    %6025 = vmatprep.subr.mxu0 0.0
    %6026 = vmatpush1.xpose.msra.mxu0 0.0
    %6027 = vmatprep.subr.mxu0 0.0
    %6028 = vmatpush1.xpose.msra.mxu0 0.0
    %6029 = vmatprep.subr.mxu0 0.0
    %6030 = vmatpush1.xpose.msra.mxu0 0.0
    %6031 = vmatprep.subr.mxu0 0.0
    %6032 = vmatpush1.xpose.msra.mxu0 0.0
    %6033 = vmatprep.subr.mxu0 0.0
    %6034 = vmatpush1.xpose.msra.mxu0 0.0
    %6035 = vmatprep.subr.mxu0 0.0
    %6036 = vmatpush1.xpose.msra.mxu0 0.0
    %6037 = vmatprep.subr.mxu0 0.0
    %6038 = vmatpush1.xpose.msra.mxu0 %v6007
    %6039 = vmatprep.subr.mxu0 0.0
    %6040 = vmatpush1.xpose.msra.mxu0 %v6005
    %6041 = vmatprep.subr.mxu0 0.0
    %6042 = vmatpush2.xpose.msra.mxu0 0.0
    %6043 = vmatprep.subr.mxu0 0.0
    %6044 = vmatpush2.xpose.msra.mxu0 0.0
    %6045 = vmatprep.subr.mxu0 0.0
    %6046 = vmatpush2.xpose.msra.mxu0 0.0
    %6047 = vmatprep.subr.mxu0 0.0
    %6048 = vmatpush2.xpose.msra.mxu0 0.0
    %6049 = vmatprep.subr.mxu0 0.0
    %6050 = vmatpush2.xpose.msra.mxu0 0.0
    %6051 = vmatprep.subr.mxu0 0.0
    %6052 = vmatpush2.xpose.msra.mxu0 0.0
    %6053 = vmatprep.subr.mxu0 0.0
    %6054 = vmatpush2.xpose.msra.mxu0 0.0
    %6055 = vmatprep.subr.mxu0 0.0
    %6056 = vmatpush2.xpose.msra.mxu0 0.0
    %6057 = vmatprep.subr.mxu0 0.0
    %6058 = vmatpush2.xpose.msra.mxu0 0.0
    %6059 = vmatprep.subr.mxu0 0.0
    %6060 = vmatpush2.xpose.msra.mxu0 0.0
    %6061 = vmatprep.subr.mxu0 0.0
    %6062 = vmatpush2.xpose.msra.mxu0 0.0
    %6063 = vmatprep.subr.mxu0 0.0
    %6064 = vmatpush2.xpose.msra.mxu0 0.0
    %6065 = vmatprep.subr.mxu0 0.0
    %6066 = vmatpush2.xpose.msra.mxu0 0.0
    %6067 = vmatprep.subr.mxu0 0.0
    %6068 = vmatpush2.xpose.msra.mxu0 0.0
    %6069 = vmatprep.subr.mxu0 0.0
    %6070 = vmatpush2.xpose.msra.mxu0 0.0
    %6071 = vmatprep.subr.mxu0 0.0
    %6072 = vmatpush2.xpose.msra.mxu0 0.0
    %6073 = vmatprep.mubr.f32.mxu0 0.0
    %6074 = vmatmul.mubr.f32.gmra.mxu0 %v6001
    %v6075 = vpop.f32.mrf.mxu0
    %v6076 = vadd.f32 0.0, %v6075
    %v6077 = vpop.f32.mrf.mxu0
    %6078 = vmatprep.mubr.f32.mxu0 0.0
    %6079 = vmatmul.mubr.f32.gmra.mxu0 %v6003
    %v6080 = vpop.f32.mrf.mxu0
    %v6081 = vadd.f32 0.0, %v6080
    %v6082 = vpop.f32.mrf.mxu0
    %6083 = vdwg.mxu0
    %6084 = vrot.lane.b32.xlu0 %v242, 104
    %v6085 = vpop.permute.xlu0 %6084
    %6086 = vrot.lane.b32.xlu0 %v247, 104
    %v6087 = vpop.permute.xlu0 %6086
    %6088 = vrot.lane.b32.xlu0 %v242, 72
    %v6089 = vpop.permute.xlu0 %6088
    %6090 = vrot.lane.b32.xlu0 %v247, 72
    %v6091 = vpop.permute.xlu0 %6090
    %v6092 = vsel %vm306, %v6085, 0
    %v6094 = vsel %vm306, %v6087, 0
    %v6096 = vsel %vm306, %v6089, 0
    %v6098 = vsel %vm306, %v6091, 0
    %6100 = vmatprep.subr.mxu0 0.0
    %6101 = vmatpush1.xpose.msra.mxu0 0.0
    %6102 = vmatprep.subr.mxu0 0.0
    %6103 = vmatpush1.xpose.msra.mxu0 0.0
    %6104 = vmatprep.subr.mxu0 0.0
    %6105 = vmatpush1.xpose.msra.mxu0 0.0
    %6106 = vmatprep.subr.mxu0 0.0
    %6107 = vmatpush1.xpose.msra.mxu0 0.0
    %6108 = vmatprep.subr.mxu0 0.0
    %6109 = vmatpush1.xpose.msra.mxu0 0.0
    %6110 = vmatprep.subr.mxu0 0.0
    %6111 = vmatpush1.xpose.msra.mxu0 0.0
    %6112 = vmatprep.subr.mxu0 0.0
    %6113 = vmatpush1.xpose.msra.mxu0 0.0
    %6114 = vmatprep.subr.mxu0 0.0
    %6115 = vmatpush1.xpose.msra.mxu0 0.0
    %6116 = vmatprep.subr.mxu0 0.0
    %6117 = vmatpush1.xpose.msra.mxu0 0.0
    %6118 = vmatprep.subr.mxu0 0.0
    %6119 = vmatpush1.xpose.msra.mxu0 0.0
    %6120 = vmatprep.subr.mxu0 0.0
    %6121 = vmatpush1.xpose.msra.mxu0 0.0
    %6122 = vmatprep.subr.mxu0 0.0
    %6123 = vmatpush1.xpose.msra.mxu0 0.0
    %6124 = vmatprep.subr.mxu0 0.0
    %6125 = vmatpush1.xpose.msra.mxu0 0.0
    %6126 = vmatprep.subr.mxu0 0.0
    %6127 = vmatpush1.xpose.msra.mxu0 0.0
    %6128 = vmatprep.subr.mxu0 0.0
    %6129 = vmatpush1.xpose.msra.mxu0 %v6098
    %6130 = vmatprep.subr.mxu0 0.0
    %6131 = vmatpush1.xpose.msra.mxu0 %v6096
    %6132 = vmatprep.subr.mxu0 0.0
    %6133 = vmatpush2.xpose.msra.mxu0 0.0
    %6134 = vmatprep.subr.mxu0 0.0
    %6135 = vmatpush2.xpose.msra.mxu0 0.0
    %6136 = vmatprep.subr.mxu0 0.0
    %6137 = vmatpush2.xpose.msra.mxu0 0.0
    %6138 = vmatprep.subr.mxu0 0.0
    %6139 = vmatpush2.xpose.msra.mxu0 0.0
    %6140 = vmatprep.subr.mxu0 0.0
    %6141 = vmatpush2.xpose.msra.mxu0 0.0
    %6142 = vmatprep.subr.mxu0 0.0
    %6143 = vmatpush2.xpose.msra.mxu0 0.0
    %6144 = vmatprep.subr.mxu0 0.0
    %6145 = vmatpush2.xpose.msra.mxu0 0.0
    %6146 = vmatprep.subr.mxu0 0.0
    %6147 = vmatpush2.xpose.msra.mxu0 0.0
    %6148 = vmatprep.subr.mxu0 0.0
    %6149 = vmatpush2.xpose.msra.mxu0 0.0
    %6150 = vmatprep.subr.mxu0 0.0
    %6151 = vmatpush2.xpose.msra.mxu0 0.0
    %6152 = vmatprep.subr.mxu0 0.0
    %6153 = vmatpush2.xpose.msra.mxu0 0.0
    %6154 = vmatprep.subr.mxu0 0.0
    %6155 = vmatpush2.xpose.msra.mxu0 0.0
    %6156 = vmatprep.subr.mxu0 0.0
    %6157 = vmatpush2.xpose.msra.mxu0 0.0
    %6158 = vmatprep.subr.mxu0 0.0
    %6159 = vmatpush2.xpose.msra.mxu0 0.0
    %6160 = vmatprep.subr.mxu0 0.0
    %6161 = vmatpush2.xpose.msra.mxu0 0.0
    %6162 = vmatprep.subr.mxu0 0.0
    %6163 = vmatpush2.xpose.msra.mxu0 0.0
    %6164 = vmatprep.mubr.f32.mxu0 0.0
    %6165 = vmatmul.mubr.f32.gmra.mxu0 %v6092
    %v6166 = vpop.f32.mrf.mxu0
    %v6167 = vadd.f32 0.0, %v6166
    %v6168 = vpop.f32.mrf.mxu0
    %6169 = vmatprep.mubr.f32.mxu0 0.0
    %6170 = vmatmul.mubr.f32.gmra.mxu0 %v6094
    %v6171 = vpop.f32.mrf.mxu0
    %v6172 = vadd.f32 0.0, %v6171
    %v6173 = vpop.f32.mrf.mxu0
    %6174 = vdwg.mxu0
    %6175 = vrot.lane.b32.xlu0 %v252, 104
    %v6176 = vpop.permute.xlu0 %6175
    %6177 = vrot.lane.b32.xlu0 %v257, 104
    %v6178 = vpop.permute.xlu0 %6177
    %6179 = vrot.lane.b32.xlu0 %v252, 72
    %v6180 = vpop.permute.xlu0 %6179
    %6181 = vrot.lane.b32.xlu0 %v257, 72
    %v6182 = vpop.permute.xlu0 %6181
    %v6183 = vsel %vm306, %v6176, 0
    %v6185 = vsel %vm306, %v6178, 0
    %v6187 = vsel %vm306, %v6180, 0
    %v6189 = vsel %vm306, %v6182, 0
    %6191 = vmatprep.subr.mxu0 0.0
    %6192 = vmatpush1.xpose.msra.mxu0 0.0
    %6193 = vmatprep.subr.mxu0 0.0
    %6194 = vmatpush1.xpose.msra.mxu0 0.0
    %6195 = vmatprep.subr.mxu0 0.0
    %6196 = vmatpush1.xpose.msra.mxu0 0.0
    %6197 = vmatprep.subr.mxu0 0.0
    %6198 = vmatpush1.xpose.msra.mxu0 0.0
    %6199 = vmatprep.subr.mxu0 0.0
    %6200 = vmatpush1.xpose.msra.mxu0 0.0
    %6201 = vmatprep.subr.mxu0 0.0
    %6202 = vmatpush1.xpose.msra.mxu0 0.0
    %6203 = vmatprep.subr.mxu0 0.0
    %6204 = vmatpush1.xpose.msra.mxu0 0.0
    %6205 = vmatprep.subr.mxu0 0.0
    %6206 = vmatpush1.xpose.msra.mxu0 0.0
    %6207 = vmatprep.subr.mxu0 0.0
    %6208 = vmatpush1.xpose.msra.mxu0 0.0
    %6209 = vmatprep.subr.mxu0 0.0
    %6210 = vmatpush1.xpose.msra.mxu0 0.0
    %6211 = vmatprep.subr.mxu0 0.0
    %6212 = vmatpush1.xpose.msra.mxu0 0.0
    %6213 = vmatprep.subr.mxu0 0.0
    %6214 = vmatpush1.xpose.msra.mxu0 0.0
    %6215 = vmatprep.subr.mxu0 0.0
    %6216 = vmatpush1.xpose.msra.mxu0 0.0
    %6217 = vmatprep.subr.mxu0 0.0
    %6218 = vmatpush1.xpose.msra.mxu0 0.0
    %6219 = vmatprep.subr.mxu0 0.0
    %6220 = vmatpush1.xpose.msra.mxu0 %v6189
    %6221 = vmatprep.subr.mxu0 0.0
    %6222 = vmatpush1.xpose.msra.mxu0 %v6187
    %6223 = vmatprep.subr.mxu0 0.0
    %6224 = vmatpush2.xpose.msra.mxu0 0.0
    %6225 = vmatprep.subr.mxu0 0.0
    %6226 = vmatpush2.xpose.msra.mxu0 0.0
    %6227 = vmatprep.subr.mxu0 0.0
    %6228 = vmatpush2.xpose.msra.mxu0 0.0
    %6229 = vmatprep.subr.mxu0 0.0
    %6230 = vmatpush2.xpose.msra.mxu0 0.0
    %6231 = vmatprep.subr.mxu0 0.0
    %6232 = vmatpush2.xpose.msra.mxu0 0.0
    %6233 = vmatprep.subr.mxu0 0.0
    %6234 = vmatpush2.xpose.msra.mxu0 0.0
    %6235 = vmatprep.subr.mxu0 0.0
    %6236 = vmatpush2.xpose.msra.mxu0 0.0
    %6237 = vmatprep.subr.mxu0 0.0
    %6238 = vmatpush2.xpose.msra.mxu0 0.0
    %6239 = vmatprep.subr.mxu0 0.0
    %6240 = vmatpush2.xpose.msra.mxu0 0.0
    %6241 = vmatprep.subr.mxu0 0.0
    %6242 = vmatpush2.xpose.msra.mxu0 0.0
    %6243 = vmatprep.subr.mxu0 0.0
    %6244 = vmatpush2.xpose.msra.mxu0 0.0
    %6245 = vmatprep.subr.mxu0 0.0
    %6246 = vmatpush2.xpose.msra.mxu0 0.0
    %6247 = vmatprep.subr.mxu0 0.0
    %6248 = vmatpush2.xpose.msra.mxu0 0.0
    %6249 = vmatprep.subr.mxu0 0.0
    %6250 = vmatpush2.xpose.msra.mxu0 0.0
    %6251 = vmatprep.subr.mxu0 0.0
    %6252 = vmatpush2.xpose.msra.mxu0 0.0
    %6253 = vmatprep.subr.mxu0 0.0
    %6254 = vmatpush2.xpose.msra.mxu0 0.0
    %6255 = vmatprep.mubr.f32.mxu0 0.0
    %6256 = vmatmul.mubr.f32.gmra.mxu0 %v6183
    %v6257 = vpop.f32.mrf.mxu0
    %v6258 = vadd.f32 0.0, %v6257
    %v6259 = vpop.f32.mrf.mxu0
    %6260 = vmatprep.mubr.f32.mxu0 0.0
    %6261 = vmatmul.mubr.f32.gmra.mxu0 %v6185
    %v6262 = vpop.f32.mrf.mxu0
    %v6263 = vadd.f32 0.0, %v6262
    %v6264 = vpop.f32.mrf.mxu0
    %6265 = vdwg.mxu0
    %6266 = vrot.lane.b32.xlu0 %v262, 104
    %v6267 = vpop.permute.xlu0 %6266
    %6268 = vrot.lane.b32.xlu0 %v267, 104
    %v6269 = vpop.permute.xlu0 %6268
    %6270 = vrot.lane.b32.xlu0 %v262, 72
    %v6271 = vpop.permute.xlu0 %6270
    %6272 = vrot.lane.b32.xlu0 %v267, 72
    %v6273 = vpop.permute.xlu0 %6272
    %v6274 = vsel %vm306, %v6267, 0
    %v6276 = vsel %vm306, %v6269, 0
    %v6278 = vsel %vm306, %v6271, 0
    %v6280 = vsel %vm306, %v6273, 0
    %6282 = vmatprep.subr.mxu0 0.0
    %6283 = vmatpush1.xpose.msra.mxu0 0.0
    %6284 = vmatprep.subr.mxu0 0.0
    %6285 = vmatpush1.xpose.msra.mxu0 0.0
    %6286 = vmatprep.subr.mxu0 0.0
    %6287 = vmatpush1.xpose.msra.mxu0 0.0
    %6288 = vmatprep.subr.mxu0 0.0
    %6289 = vmatpush1.xpose.msra.mxu0 0.0
    %6290 = vmatprep.subr.mxu0 0.0
    %6291 = vmatpush1.xpose.msra.mxu0 0.0
    %6292 = vmatprep.subr.mxu0 0.0
    %6293 = vmatpush1.xpose.msra.mxu0 0.0
    %6294 = vmatprep.subr.mxu0 0.0
    %6295 = vmatpush1.xpose.msra.mxu0 0.0
    %6296 = vmatprep.subr.mxu0 0.0
    %6297 = vmatpush1.xpose.msra.mxu0 0.0
    %6298 = vmatprep.subr.mxu0 0.0
    %6299 = vmatpush1.xpose.msra.mxu0 0.0
    %6300 = vmatprep.subr.mxu0 0.0
    %6301 = vmatpush1.xpose.msra.mxu0 0.0
    %6302 = vmatprep.subr.mxu0 0.0
    %6303 = vmatpush1.xpose.msra.mxu0 0.0
    %6304 = vmatprep.subr.mxu0 0.0
    %6305 = vmatpush1.xpose.msra.mxu0 0.0
    %6306 = vmatprep.subr.mxu0 0.0
    %6307 = vmatpush1.xpose.msra.mxu0 0.0
    %6308 = vmatprep.subr.mxu0 0.0
    %6309 = vmatpush1.xpose.msra.mxu0 0.0
    %6310 = vmatprep.subr.mxu0 0.0
    %6311 = vmatpush1.xpose.msra.mxu0 %v6280
    %6312 = vmatprep.subr.mxu0 0.0
    %6313 = vmatpush1.xpose.msra.mxu0 %v6278
    %6314 = vmatprep.subr.mxu0 0.0
    %6315 = vmatpush2.xpose.msra.mxu0 0.0
    %6316 = vmatprep.subr.mxu0 0.0
    %6317 = vmatpush2.xpose.msra.mxu0 0.0
    %6318 = vmatprep.subr.mxu0 0.0
    %6319 = vmatpush2.xpose.msra.mxu0 0.0
    %6320 = vmatprep.subr.mxu0 0.0
    %6321 = vmatpush2.xpose.msra.mxu0 0.0
    %6322 = vmatprep.subr.mxu0 0.0
    %6323 = vmatpush2.xpose.msra.mxu0 0.0
    %6324 = vmatprep.subr.mxu0 0.0
    %6325 = vmatpush2.xpose.msra.mxu0 0.0
    %6326 = vmatprep.subr.mxu0 0.0
    %6327 = vmatpush2.xpose.msra.mxu0 0.0
    %6328 = vmatprep.subr.mxu0 0.0
    %6329 = vmatpush2.xpose.msra.mxu0 0.0
    %6330 = vmatprep.subr.mxu0 0.0
    %6331 = vmatpush2.xpose.msra.mxu0 0.0
    %6332 = vmatprep.subr.mxu0 0.0
    %6333 = vmatpush2.xpose.msra.mxu0 0.0
    %6334 = vmatprep.subr.mxu0 0.0
    %6335 = vmatpush2.xpose.msra.mxu0 0.0
    %6336 = vmatprep.subr.mxu0 0.0
    %6337 = vmatpush2.xpose.msra.mxu0 0.0
    %6338 = vmatprep.subr.mxu0 0.0
    %6339 = vmatpush2.xpose.msra.mxu0 0.0
    %6340 = vmatprep.subr.mxu0 0.0
    %6341 = vmatpush2.xpose.msra.mxu0 0.0
    %6342 = vmatprep.subr.mxu0 0.0
    %6343 = vmatpush2.xpose.msra.mxu0 0.0
    %6344 = vmatprep.subr.mxu0 0.0
    %6345 = vmatpush2.xpose.msra.mxu0 0.0
    %6346 = vmatprep.mubr.f32.mxu0 0.0
    %6347 = vmatmul.mubr.f32.gmra.mxu0 %v6274
    %v6348 = vpop.f32.mrf.mxu0
    %v6349 = vadd.f32 0.0, %v6348
    %v6350 = vpop.f32.mrf.mxu0
    %6351 = vmatprep.mubr.f32.mxu0 0.0
    %6352 = vmatmul.mubr.f32.gmra.mxu0 %v6276
    %v6353 = vpop.f32.mrf.mxu0
    %v6354 = vadd.f32 0.0, %v6353
    %v6355 = vpop.f32.mrf.mxu0
    %6356 = vdwg.mxu0
    %6357 = vrot.lane.b32.xlu0 %v272, 104
    %v6358 = vpop.permute.xlu0 %6357
    %6359 = vrot.lane.b32.xlu0 %v277, 104
    %v6360 = vpop.permute.xlu0 %6359
    %6361 = vrot.lane.b32.xlu0 %v272, 72
    %v6362 = vpop.permute.xlu0 %6361
    %6363 = vrot.lane.b32.xlu0 %v277, 72
    %v6364 = vpop.permute.xlu0 %6363
    %v6365 = vsel %vm306, %v6358, 0
    %v6367 = vsel %vm306, %v6360, 0
    %v6369 = vsel %vm306, %v6362, 0
    %v6371 = vsel %vm306, %v6364, 0
    %6373 = vmatprep.subr.mxu0 0.0
    %6374 = vmatpush1.xpose.msra.mxu0 0.0
    %6375 = vmatprep.subr.mxu0 0.0
    %6376 = vmatpush1.xpose.msra.mxu0 0.0
    %6377 = vmatprep.subr.mxu0 0.0
    %6378 = vmatpush1.xpose.msra.mxu0 0.0
    %6379 = vmatprep.subr.mxu0 0.0
    %6380 = vmatpush1.xpose.msra.mxu0 0.0
    %6381 = vmatprep.subr.mxu0 0.0
    %6382 = vmatpush1.xpose.msra.mxu0 0.0
    %6383 = vmatprep.subr.mxu0 0.0
    %6384 = vmatpush1.xpose.msra.mxu0 0.0
    %6385 = vmatprep.subr.mxu0 0.0
    %6386 = vmatpush1.xpose.msra.mxu0 0.0
    %6387 = vmatprep.subr.mxu0 0.0
    %6388 = vmatpush1.xpose.msra.mxu0 0.0
    %6389 = vmatprep.subr.mxu0 0.0
    %6390 = vmatpush1.xpose.msra.mxu0 0.0
    %6391 = vmatprep.subr.mxu0 0.0
    %6392 = vmatpush1.xpose.msra.mxu0 0.0
    %6393 = vmatprep.subr.mxu0 0.0
    %6394 = vmatpush1.xpose.msra.mxu0 0.0
    %6395 = vmatprep.subr.mxu0 0.0
    %6396 = vmatpush1.xpose.msra.mxu0 0.0
    %6397 = vmatprep.subr.mxu0 0.0
    %6398 = vmatpush1.xpose.msra.mxu0 0.0
    %6399 = vmatprep.subr.mxu0 0.0
    %6400 = vmatpush1.xpose.msra.mxu0 0.0
    %6401 = vmatprep.subr.mxu0 0.0
    %6402 = vmatpush1.xpose.msra.mxu0 %v6371
    %6403 = vmatprep.subr.mxu0 0.0
    %6404 = vmatpush1.xpose.msra.mxu0 %v6369
    %6405 = vmatprep.subr.mxu0 0.0
    %6406 = vmatpush2.xpose.msra.mxu0 0.0
    %6407 = vmatprep.subr.mxu0 0.0
    %6408 = vmatpush2.xpose.msra.mxu0 0.0
    %6409 = vmatprep.subr.mxu0 0.0
    %6410 = vmatpush2.xpose.msra.mxu0 0.0
    %6411 = vmatprep.subr.mxu0 0.0
    %6412 = vmatpush2.xpose.msra.mxu0 0.0
    %6413 = vmatprep.subr.mxu0 0.0
    %6414 = vmatpush2.xpose.msra.mxu0 0.0
    %6415 = vmatprep.subr.mxu0 0.0
    %6416 = vmatpush2.xpose.msra.mxu0 0.0
    %6417 = vmatprep.subr.mxu0 0.0
    %6418 = vmatpush2.xpose.msra.mxu0 0.0
    %6419 = vmatprep.subr.mxu0 0.0
    %6420 = vmatpush2.xpose.msra.mxu0 0.0
    %6421 = vmatprep.subr.mxu0 0.0
    %6422 = vmatpush2.xpose.msra.mxu0 0.0
    %6423 = vmatprep.subr.mxu0 0.0
    %6424 = vmatpush2.xpose.msra.mxu0 0.0
    %6425 = vmatprep.subr.mxu0 0.0
    %6426 = vmatpush2.xpose.msra.mxu0 0.0
    %6427 = vmatprep.subr.mxu0 0.0
    %6428 = vmatpush2.xpose.msra.mxu0 0.0
    %6429 = vmatprep.subr.mxu0 0.0
    %6430 = vmatpush2.xpose.msra.mxu0 0.0
    %6431 = vmatprep.subr.mxu0 0.0
    %6432 = vmatpush2.xpose.msra.mxu0 0.0
    %6433 = vmatprep.subr.mxu0 0.0
    %6434 = vmatpush2.xpose.msra.mxu0 0.0
    %6435 = vmatprep.subr.mxu0 0.0
    %6436 = vmatpush2.xpose.msra.mxu0 0.0
    %6437 = vmatprep.mubr.f32.mxu0 0.0
    %6438 = vmatmul.mubr.f32.gmra.mxu0 %v6365
    %v6439 = vpop.f32.mrf.mxu0
    %v6440 = vadd.f32 0.0, %v6439
    %v6441 = vpop.f32.mrf.mxu0
    %6442 = vmatprep.mubr.f32.mxu0 0.0
    %6443 = vmatmul.mubr.f32.gmra.mxu0 %v6367
    %v6444 = vpop.f32.mrf.mxu0
    %v6445 = vadd.f32 0.0, %v6444
    %v6446 = vpop.f32.mrf.mxu0
    %6447 = vdwg.mxu0
    %6448 = vrot.lane.b32.xlu0 %v282, 104
    %v6449 = vpop.permute.xlu0 %6448
    %6450 = vrot.lane.b32.xlu0 %v287, 104
    %v6451 = vpop.permute.xlu0 %6450
    %6452 = vrot.lane.b32.xlu0 %v282, 72
    %v6453 = vpop.permute.xlu0 %6452
    %6454 = vrot.lane.b32.xlu0 %v287, 72
    %v6455 = vpop.permute.xlu0 %6454
    %v6456 = vsel %vm306, %v6449, 0
    %v6458 = vsel %vm306, %v6451, 0
    %v6460 = vsel %vm306, %v6453, 0
    %v6462 = vsel %vm306, %v6455, 0
    %6464 = vmatprep.subr.mxu0 0.0
    %6465 = vmatpush1.xpose.msra.mxu0 0.0
    %6466 = vmatprep.subr.mxu0 0.0
    %6467 = vmatpush1.xpose.msra.mxu0 0.0
    %6468 = vmatprep.subr.mxu0 0.0
    %6469 = vmatpush1.xpose.msra.mxu0 0.0
    %6470 = vmatprep.subr.mxu0 0.0
    %6471 = vmatpush1.xpose.msra.mxu0 0.0
    %6472 = vmatprep.subr.mxu0 0.0
    %6473 = vmatpush1.xpose.msra.mxu0 0.0
    %6474 = vmatprep.subr.mxu0 0.0
    %6475 = vmatpush1.xpose.msra.mxu0 0.0
    %6476 = vmatprep.subr.mxu0 0.0
    %6477 = vmatpush1.xpose.msra.mxu0 0.0
    %6478 = vmatprep.subr.mxu0 0.0
    %6479 = vmatpush1.xpose.msra.mxu0 0.0
    %6480 = vmatprep.subr.mxu0 0.0
    %6481 = vmatpush1.xpose.msra.mxu0 0.0
    %6482 = vmatprep.subr.mxu0 0.0
    %6483 = vmatpush1.xpose.msra.mxu0 0.0
    %6484 = vmatprep.subr.mxu0 0.0
    %6485 = vmatpush1.xpose.msra.mxu0 0.0
    %6486 = vmatprep.subr.mxu0 0.0
    %6487 = vmatpush1.xpose.msra.mxu0 0.0
    %6488 = vmatprep.subr.mxu0 0.0
    %6489 = vmatpush1.xpose.msra.mxu0 0.0
    %6490 = vmatprep.subr.mxu0 0.0
    %6491 = vmatpush1.xpose.msra.mxu0 0.0
    %6492 = vmatprep.subr.mxu0 0.0
    %6493 = vmatpush1.xpose.msra.mxu0 %v6462
    %6494 = vmatprep.subr.mxu0 0.0
    %6495 = vmatpush1.xpose.msra.mxu0 %v6460
    %6496 = vmatprep.subr.mxu0 0.0
    %6497 = vmatpush2.xpose.msra.mxu0 0.0
    %6498 = vmatprep.subr.mxu0 0.0
    %6499 = vmatpush2.xpose.msra.mxu0 0.0
    %6500 = vmatprep.subr.mxu0 0.0
    %6501 = vmatpush2.xpose.msra.mxu0 0.0
    %6502 = vmatprep.subr.mxu0 0.0
    %6503 = vmatpush2.xpose.msra.mxu0 0.0
    %6504 = vmatprep.subr.mxu0 0.0
    %6505 = vmatpush2.xpose.msra.mxu0 0.0
    %6506 = vmatprep.subr.mxu0 0.0
    %6507 = vmatpush2.xpose.msra.mxu0 0.0
    %6508 = vmatprep.subr.mxu0 0.0
    %6509 = vmatpush2.xpose.msra.mxu0 0.0
    %6510 = vmatprep.subr.mxu0 0.0
    %6511 = vmatpush2.xpose.msra.mxu0 0.0
    %6512 = vmatprep.subr.mxu0 0.0
    %6513 = vmatpush2.xpose.msra.mxu0 0.0
    %6514 = vmatprep.subr.mxu0 0.0
    %6515 = vmatpush2.xpose.msra.mxu0 0.0
    %6516 = vmatprep.subr.mxu0 0.0
    %6517 = vmatpush2.xpose.msra.mxu0 0.0
    %6518 = vmatprep.subr.mxu0 0.0
    %6519 = vmatpush2.xpose.msra.mxu0 0.0
    %6520 = vmatprep.subr.mxu0 0.0
    %6521 = vmatpush2.xpose.msra.mxu0 0.0
    %6522 = vmatprep.subr.mxu0 0.0
    %6523 = vmatpush2.xpose.msra.mxu0 0.0
    %6524 = vmatprep.subr.mxu0 0.0
    %6525 = vmatpush2.xpose.msra.mxu0 0.0
    %6526 = vmatprep.subr.mxu0 0.0
    %6527 = vmatpush2.xpose.msra.mxu0 0.0
    %6528 = vmatprep.mubr.f32.mxu0 0.0
    %6529 = vmatmul.mubr.f32.gmra.mxu0 %v6456
    %v6530 = vpop.f32.mrf.mxu0
    %v6531 = vadd.f32 0.0, %v6530
    %v6532 = vpop.f32.mrf.mxu0
    %6533 = vmatprep.mubr.f32.mxu0 0.0
    %6534 = vmatmul.mubr.f32.gmra.mxu0 %v6458
    %v6535 = vpop.f32.mrf.mxu0
    %v6536 = vadd.f32 0.0, %v6535
    %v6537 = vpop.f32.mrf.mxu0
    %6538 = vdwg.mxu0
    %6539 = vrot.lane.b32.xlu0 %v292, 104
    %v6540 = vpop.permute.xlu0 %6539
    %6541 = vrot.lane.b32.xlu0 %v297, 104
    %v6542 = vpop.permute.xlu0 %6541
    %6543 = vrot.lane.b32.xlu0 %v292, 72
    %v6544 = vpop.permute.xlu0 %6543
    %6545 = vrot.lane.b32.xlu0 %v297, 72
    %v6546 = vpop.permute.xlu0 %6545
    %v6547 = vsel %vm306, %v6540, 0
    %v6549 = vsel %vm306, %v6542, 0
    %v6551 = vsel %vm306, %v6544, 0
    %v6553 = vsel %vm306, %v6546, 0
    %6555 = vmatprep.subr.mxu0 0.0
    %6556 = vmatpush1.xpose.msra.mxu0 0.0
    %6557 = vmatprep.subr.mxu0 0.0
    %6558 = vmatpush1.xpose.msra.mxu0 0.0
    %6559 = vmatprep.subr.mxu0 0.0
    %6560 = vmatpush1.xpose.msra.mxu0 0.0
    %6561 = vmatprep.subr.mxu0 0.0
    %6562 = vmatpush1.xpose.msra.mxu0 0.0
    %6563 = vmatprep.subr.mxu0 0.0
    %6564 = vmatpush1.xpose.msra.mxu0 0.0
    %6565 = vmatprep.subr.mxu0 0.0
    %6566 = vmatpush1.xpose.msra.mxu0 0.0
    %6567 = vmatprep.subr.mxu0 0.0
    %6568 = vmatpush1.xpose.msra.mxu0 0.0
    %6569 = vmatprep.subr.mxu0 0.0
    %6570 = vmatpush1.xpose.msra.mxu0 0.0
    %6571 = vmatprep.subr.mxu0 0.0
    %6572 = vmatpush1.xpose.msra.mxu0 0.0
    %6573 = vmatprep.subr.mxu0 0.0
    %6574 = vmatpush1.xpose.msra.mxu0 0.0
    %6575 = vmatprep.subr.mxu0 0.0
    %6576 = vmatpush1.xpose.msra.mxu0 0.0
    %6577 = vmatprep.subr.mxu0 0.0
    %6578 = vmatpush1.xpose.msra.mxu0 0.0
    %6579 = vmatprep.subr.mxu0 0.0
    %6580 = vmatpush1.xpose.msra.mxu0 0.0
    %6581 = vmatprep.subr.mxu0 0.0
    %6582 = vmatpush1.xpose.msra.mxu0 0.0
    %6583 = vmatprep.subr.mxu0 0.0
    %6584 = vmatpush1.xpose.msra.mxu0 %v6553
    %6585 = vmatprep.subr.mxu0 0.0
    %6586 = vmatpush1.xpose.msra.mxu0 %v6551
    %6587 = vmatprep.subr.mxu0 0.0
    %6588 = vmatpush2.xpose.msra.mxu0 0.0
    %6589 = vmatprep.subr.mxu0 0.0
    %6590 = vmatpush2.xpose.msra.mxu0 0.0
    %6591 = vmatprep.subr.mxu0 0.0
    %6592 = vmatpush2.xpose.msra.mxu0 0.0
    %6593 = vmatprep.subr.mxu0 0.0
    %6594 = vmatpush2.xpose.msra.mxu0 0.0
    %6595 = vmatprep.subr.mxu0 0.0
    %6596 = vmatpush2.xpose.msra.mxu0 0.0
    %6597 = vmatprep.subr.mxu0 0.0
    %6598 = vmatpush2.xpose.msra.mxu0 0.0
    %6599 = vmatprep.subr.mxu0 0.0
    %6600 = vmatpush2.xpose.msra.mxu0 0.0
    %6601 = vmatprep.subr.mxu0 0.0
    %6602 = vmatpush2.xpose.msra.mxu0 0.0
    %6603 = vmatprep.subr.mxu0 0.0
    %6604 = vmatpush2.xpose.msra.mxu0 0.0
    %6605 = vmatprep.subr.mxu0 0.0
    %6606 = vmatpush2.xpose.msra.mxu0 0.0
    %6607 = vmatprep.subr.mxu0 0.0
    %6608 = vmatpush2.xpose.msra.mxu0 0.0
    %6609 = vmatprep.subr.mxu0 0.0
    %6610 = vmatpush2.xpose.msra.mxu0 0.0
    %6611 = vmatprep.subr.mxu0 0.0
    %6612 = vmatpush2.xpose.msra.mxu0 0.0
    %6613 = vmatprep.subr.mxu0 0.0
    %6614 = vmatpush2.xpose.msra.mxu0 0.0
    %6615 = vmatprep.subr.mxu0 0.0
    %6616 = vmatpush2.xpose.msra.mxu0 0.0
    %6617 = vmatprep.subr.mxu0 0.0
    %6618 = vmatpush2.xpose.msra.mxu0 0.0
    %6619 = vmatprep.mubr.f32.mxu0 0.0
    %6620 = vmatmul.mubr.f32.gmra.mxu0 %v6547
    %v6621 = vpop.f32.mrf.mxu0
    %v6622 = vadd.f32 0.0, %v6621
    %v6623 = vpop.f32.mrf.mxu0
    %6624 = vmatprep.mubr.f32.mxu0 0.0
    %6625 = vmatmul.mubr.f32.gmra.mxu0 %v6549
    %v6626 = vpop.f32.mrf.mxu0
    %v6627 = vadd.f32 0.0, %v6626
    %v6628 = vpop.f32.mrf.mxu0
    %6629 = vdwg.mxu0
    %s6630 = scalar_lea.vmem [#allocation8], 192
    %v6631 = vld [vmem:[%s6630] sm:$0xff]
    %v6632 = vld [vmem:[%s6630 + $0x8] sm:$0xff]
    %v6633 = vld [vmem:[%s6630 + $0x10] sm:$0xff]
    %v6634 = vld [vmem:[%s6630 + $0x18] sm:$0xff]
    %v6635 = vld [vmem:[%s6630 + $0x20] sm:$0xff]
    %v6636 = vld [vmem:[%s6630 + $0x28] sm:$0xff]
    %v6637 = vld [vmem:[%s6630 + $0x30] sm:$0xff]
    %v6638 = vld [vmem:[%s6630 + $0x38] sm:$0xff]
    %v6639 = vadd.f32 %v5985, %v6631
    %v6640 = vadd.f32 %v5990, %v6632
    %v6641 = vadd.f32 %v6076, %v6633
    %v6642 = vadd.f32 %v6081, %v6634
    %v6643 = vadd.f32 %v6167, %v6635
    %v6644 = vadd.f32 %v6172, %v6636
    %v6645 = vadd.f32 %v6258, %v6637
    %v6646 = vadd.f32 %v6263, %v6638
    %v6647 = vadd.f32 %v6349, %v6631
    %v6648 = vadd.f32 %v6354, %v6632
    %v6649 = vadd.f32 %v6440, %v6633
    %v6650 = vadd.f32 %v6445, %v6634
    %v6651 = vadd.f32 %v6531, %v6635
    %v6652 = vadd.f32 %v6536, %v6636
    %v6653 = vadd.f32 %v6622, %v6637
    %v6654 = vadd.f32 %v6627, %v6638
    %v6655 = vsel %vm1037, %v6639, -inf
    %6656 = vmax.xlane.f32.xlu0 %v6655
    %v6657 = vpop.xlane.xlu0 %6656
    %v6658 = vsel %vm1037, %v6640, -inf
    %6659 = vmax.xlane.f32.xlu0 %v6658
    %v6660 = vpop.xlane.xlu0 %6659
    %v6661 = vsel %vm1037, %v6641, -inf
    %6662 = vmax.xlane.f32.xlu0 %v6661
    %v6663 = vpop.xlane.xlu0 %6662
    %v6664 = vsel %vm1037, %v6642, -inf
    %6665 = vmax.xlane.f32.xlu0 %v6664
    %v6666 = vpop.xlane.xlu0 %6665
    %v6667 = vsel %vm1037, %v6643, -inf
    %6668 = vmax.xlane.f32.xlu0 %v6667
    %v6669 = vpop.xlane.xlu0 %6668
    %v6670 = vsel %vm1037, %v6644, -inf
    %6671 = vmax.xlane.f32.xlu0 %v6670
    %v6672 = vpop.xlane.xlu0 %6671
    %v6673 = vsel %vm1037, %v6645, -inf
    %6674 = vmax.xlane.f32.xlu0 %v6673
    %v6675 = vpop.xlane.xlu0 %6674
    %v6676 = vsel %vm1037, %v6646, -inf
    %6677 = vmax.xlane.f32.xlu0 %v6676
    %v6678 = vpop.xlane.xlu0 %6677
    %v6679 = vsel %vm1037, %v6647, -inf
    %6680 = vmax.xlane.f32.xlu0 %v6679
    %v6681 = vpop.xlane.xlu0 %6680
    %v6682 = vsel %vm1037, %v6648, -inf
    %6683 = vmax.xlane.f32.xlu0 %v6682
    %v6684 = vpop.xlane.xlu0 %6683
    %v6685 = vsel %vm1037, %v6649, -inf
    %6686 = vmax.xlane.f32.xlu0 %v6685
    %v6687 = vpop.xlane.xlu0 %6686
    %v6688 = vsel %vm1037, %v6650, -inf
    %6689 = vmax.xlane.f32.xlu0 %v6688
    %v6690 = vpop.xlane.xlu0 %6689
    %v6691 = vsel %vm1037, %v6651, -inf
    %6692 = vmax.xlane.f32.xlu0 %v6691
    %v6693 = vpop.xlane.xlu0 %6692
    %v6694 = vsel %vm1037, %v6652, -inf
    %6695 = vmax.xlane.f32.xlu0 %v6694
    %v6696 = vpop.xlane.xlu0 %6695
    %v6697 = vsel %vm1037, %v6653, -inf
    %6698 = vmax.xlane.f32.xlu0 %v6697
    %v6699 = vpop.xlane.xlu0 %6698
    %v6700 = vsel %vm1037, %v6654, -inf
    %6701 = vmax.xlane.f32.xlu0 %v6700
    %v6702 = vpop.xlane.xlu0 %6701
    %v6703 = vsub.f32 %v6639, %v6657
    %v6704 = vsub.f32 %v6640, %v6660
    %v6705 = vsub.f32 %v6641, %v6663
    %v6706 = vsub.f32 %v6642, %v6666
    %v6707 = vsub.f32 %v6643, %v6669
    %v6708 = vsub.f32 %v6644, %v6672
    %v6709 = vsub.f32 %v6645, %v6675
    %v6710 = vsub.f32 %v6646, %v6678
    %v6711 = vsub.f32 %v6647, %v6681
    %v6712 = vsub.f32 %v6648, %v6684
    %v6713 = vsub.f32 %v6649, %v6687
    %v6714 = vsub.f32 %v6650, %v6690
    %v6715 = vsub.f32 %v6651, %v6693
    %v6716 = vsub.f32 %v6652, %v6696
    %v6717 = vsub.f32 %v6653, %v6699
    %v6718 = vsub.f32 %v6654, %v6702
    %v6719 = vmul.f32 %v6703, 1.442695
    %v6720 = vpow.pop %v6719
    %v6721 = vmul.f32 %v6704, 1.442695
    %v6722 = vpow.pop %v6721
    %v6723 = vmul.f32 %v6705, 1.442695
    %v6724 = vpow.pop %v6723
    %v6725 = vmul.f32 %v6706, 1.442695
    %v6726 = vpow.pop %v6725
    %v6727 = vmul.f32 %v6707, 1.442695
    %v6728 = vpow.pop %v6727
    %v6729 = vmul.f32 %v6708, 1.442695
    %v6730 = vpow.pop %v6729
    %v6731 = vmul.f32 %v6709, 1.442695
    %v6732 = vpow.pop %v6731
    %v6733 = vmul.f32 %v6710, 1.442695
    %v6734 = vpow.pop %v6733
    %v6735 = vmul.f32 %v6711, 1.442695
    %v6736 = vpow.pop %v6735
    %v6737 = vmul.f32 %v6712, 1.442695
    %v6738 = vpow.pop %v6737
    %v6739 = vmul.f32 %v6713, 1.442695
    %v6740 = vpow.pop %v6739
    %v6741 = vmul.f32 %v6714, 1.442695
    %v6742 = vpow.pop %v6741
    %v6743 = vmul.f32 %v6715, 1.442695
    %v6744 = vpow.pop %v6743
    %v6745 = vmul.f32 %v6716, 1.442695
    %v6746 = vpow.pop %v6745
    %v6747 = vmul.f32 %v6717, 1.442695
    %v6748 = vpow.pop %v6747
    %v6749 = vmul.f32 %v6718, 1.442695
    %v6750 = vpow.pop %v6749
    %v6751 = vsel %vm1037, %v6720, 0.0
    %6752 = vadd.xlane.f32.xlu0 %v6751
    %v6753 = vpop.xlane.xlu0 %6752
    %v6754 = vsel %vm1037, %v6722, 0.0
    %6755 = vadd.xlane.f32.xlu0 %v6754
    %v6756 = vpop.xlane.xlu0 %6755
    %v6757 = vsel %vm1037, %v6724, 0.0
    %6758 = vadd.xlane.f32.xlu0 %v6757
    %v6759 = vpop.xlane.xlu0 %6758
    %v6760 = vsel %vm1037, %v6726, 0.0
    %6761 = vadd.xlane.f32.xlu0 %v6760
    %v6762 = vpop.xlane.xlu0 %6761
    %v6763 = vsel %vm1037, %v6728, 0.0
    %6764 = vadd.xlane.f32.xlu0 %v6763
    %v6765 = vpop.xlane.xlu0 %6764
    %v6766 = vsel %vm1037, %v6730, 0.0
    %6767 = vadd.xlane.f32.xlu0 %v6766
    %v6768 = vpop.xlane.xlu0 %6767
    %v6769 = vsel %vm1037, %v6732, 0.0
    %6770 = vadd.xlane.f32.xlu0 %v6769
    %v6771 = vpop.xlane.xlu0 %6770
    %v6772 = vsel %vm1037, %v6734, 0.0
    %6773 = vadd.xlane.f32.xlu0 %v6772
    %v6774 = vpop.xlane.xlu0 %6773
    %v6775 = vsel %vm1037, %v6736, 0.0
    %6776 = vadd.xlane.f32.xlu0 %v6775
    %v6777 = vpop.xlane.xlu0 %6776
    %v6778 = vsel %vm1037, %v6738, 0.0
    %6779 = vadd.xlane.f32.xlu0 %v6778
    %v6780 = vpop.xlane.xlu0 %6779
    %v6781 = vsel %vm1037, %v6740, 0.0
    %6782 = vadd.xlane.f32.xlu0 %v6781
    %v6783 = vpop.xlane.xlu0 %6782
    %v6784 = vsel %vm1037, %v6742, 0.0
    %6785 = vadd.xlane.f32.xlu0 %v6784
    %v6786 = vpop.xlane.xlu0 %6785
    %v6787 = vsel %vm1037, %v6744, 0.0
    %6788 = vadd.xlane.f32.xlu0 %v6787
    %v6789 = vpop.xlane.xlu0 %6788
    %v6790 = vsel %vm1037, %v6746, 0.0
    %6791 = vadd.xlane.f32.xlu0 %v6790
    %v6792 = vpop.xlane.xlu0 %6791
    %v6793 = vsel %vm1037, %v6748, 0.0
    %6794 = vadd.xlane.f32.xlu0 %v6793
    %v6795 = vpop.xlane.xlu0 %6794
    %v6796 = vsel %vm1037, %v6750, 0.0
    %6797 = vadd.xlane.f32.xlu0 %v6796
    %v6798 = vpop.xlane.xlu0 %6797
    %v6799 = vrcp.pop %v6753
    %v6800 = vrcp.pop %v6756
    %v6801 = vrcp.pop %v6759
    %v6802 = vrcp.pop %v6762
    %v6803 = vrcp.pop %v6765
    %v6804 = vrcp.pop %v6768
    %v6805 = vrcp.pop %v6771
    %v6806 = vrcp.pop %v6774
    %v6807 = vrcp.pop %v6777
    %v6808 = vrcp.pop %v6780
    %v6809 = vrcp.pop %v6783
    %v6810 = vrcp.pop %v6786
    %v6811 = vrcp.pop %v6789
    %v6812 = vrcp.pop %v6792
    %v6813 = vrcp.pop %v6795
    %v6814 = vrcp.pop %v6798
    %v6815 = vmul.f32 %v6753, %v6799
    %v6816 = vmul.f32 %v6756, %v6800
    %v6817 = vmul.f32 %v6759, %v6801
    %v6818 = vmul.f32 %v6762, %v6802
    %v6819 = vmul.f32 %v6765, %v6803
    %v6820 = vmul.f32 %v6768, %v6804
    %v6821 = vmul.f32 %v6771, %v6805
    %v6822 = vmul.f32 %v6774, %v6806
    %v6823 = vmul.f32 %v6777, %v6807
    %v6824 = vmul.f32 %v6780, %v6808
    %v6825 = vmul.f32 %v6783, %v6809
    %v6826 = vmul.f32 %v6786, %v6810
    %v6827 = vmul.f32 %v6789, %v6811
    %v6828 = vmul.f32 %v6792, %v6812
    %v6829 = vmul.f32 %v6795, %v6813
    %v6830 = vmul.f32 %v6798, %v6814
    %v6831 = vsub.f32 2.0, %v6815
    %v6832 = vsub.f32 2.0, %v6816
    %v6833 = vsub.f32 2.0, %v6817
    %v6834 = vsub.f32 2.0, %v6818
    %v6835 = vsub.f32 2.0, %v6819
    %v6836 = vsub.f32 2.0, %v6820
    %v6837 = vsub.f32 2.0, %v6821
    %v6838 = vsub.f32 2.0, %v6822
    %v6839 = vsub.f32 2.0, %v6823
    %v6840 = vsub.f32 2.0, %v6824
    %v6841 = vsub.f32 2.0, %v6825
    %v6842 = vsub.f32 2.0, %v6826
    %v6843 = vsub.f32 2.0, %v6827
    %v6844 = vsub.f32 2.0, %v6828
    %v6845 = vsub.f32 2.0, %v6829
    %v6846 = vsub.f32 2.0, %v6830
    %v6847 = vmul.f32 %v6799, %v6831
    %v6848 = vmul.f32 %v6800, %v6832
    %v6849 = vmul.f32 %v6801, %v6833
    %v6850 = vmul.f32 %v6802, %v6834
    %v6851 = vmul.f32 %v6803, %v6835
    %v6852 = vmul.f32 %v6804, %v6836
    %v6853 = vmul.f32 %v6805, %v6837
    %v6854 = vmul.f32 %v6806, %v6838
    %v6855 = vmul.f32 %v6807, %v6839
    %v6856 = vmul.f32 %v6808, %v6840
    %v6857 = vmul.f32 %v6809, %v6841
    %v6858 = vmul.f32 %v6810, %v6842
    %v6859 = vmul.f32 %v6811, %v6843
    %v6860 = vmul.f32 %v6812, %v6844
    %v6861 = vmul.f32 %v6813, %v6845
    %v6862 = vmul.f32 %v6814, %v6846
    %v6863 = vmul.f32 %v6720, %v6847
    %v6864 = vmul.f32 %v6722, %v6848
    %v6865 = vmul.f32 %v6724, %v6849
    %v6866 = vmul.f32 %v6726, %v6850
    %v6867 = vmul.f32 %v6728, %v6851
    %v6868 = vmul.f32 %v6730, %v6852
    %v6869 = vmul.f32 %v6732, %v6853
    %v6870 = vmul.f32 %v6734, %v6854
    %v6871 = vmul.f32 %v6736, %v6855
    %v6872 = vmul.f32 %v6738, %v6856
    %v6873 = vmul.f32 %v6740, %v6857
    %v6874 = vmul.f32 %v6742, %v6858
    %v6875 = vmul.f32 %v6744, %v6859
    %v6876 = vmul.f32 %v6746, %v6860
    %v6877 = vmul.f32 %v6748, %v6861
    %v6878 = vmul.f32 %v6750, %v6862
    %6879 = vrot.lane.b32.xlu0 %v222, 40
    %v6880 = vpop.permute.xlu0 %6879
    %6881 = vrot.lane.b32.xlu0 %v227, 40
    %v6882 = vpop.permute.xlu0 %6881
    %v6886 = vsel %vm1037, %v6863, 0
    %v6889 = vsel %vm1037, %v6864, 0
    %6891 = vmatprep.subr.mxu0 0.0
    %6892 = vmatpush1.msra.mxu0 0.0
    %6893 = vmatprep.subr.mxu0 0.0
    %6894 = vmatpush1.msra.mxu0 0.0
    %6895 = vmatprep.subr.mxu0 0.0
    %6896 = vmatpush1.msra.mxu0 0.0
    %6897 = vmatprep.subr.mxu0 0.0
    %6898 = vmatpush1.msra.mxu0 0.0
    %6899 = vmatprep.subr.mxu0 0.0
    %6900 = vmatpush1.msra.mxu0 0.0
    %6901 = vmatprep.subr.mxu0 0.0
    %6902 = vmatpush1.msra.mxu0 0.0
    %6903 = vmatprep.subr.mxu0 0.0
    %6904 = vmatpush1.msra.mxu0 0.0
    %6905 = vmatprep.subr.mxu0 0.0
    %6906 = vmatpush1.msra.mxu0 0.0
    %6907 = vmatprep.subr.mxu0 0.0
    %6908 = vmatpush1.msra.mxu0 0.0
    %6909 = vmatprep.subr.mxu0 0.0
    %6910 = vmatpush1.msra.mxu0 0.0
    %6911 = vmatprep.subr.mxu0 0.0
    %6912 = vmatpush1.msra.mxu0 0.0
    %6913 = vmatprep.subr.mxu0 0.0
    %6914 = vmatpush1.msra.mxu0 0.0
    %6915 = vmatprep.subr.mxu0 0.0
    %6916 = vmatpush1.msra.mxu0 0.0
    %6917 = vmatprep.subr.mxu0 0.0
    %6918 = vmatpush1.msra.mxu0 0.0
    %6919 = vmatprep.subr.mxu0 0.0
    %6920 = vmatpush1.msra.mxu0 %v6882
    %6921 = vmatprep.subr.mxu0 0.0
    %6922 = vmatpush1.msra.mxu0 %v6880
    %6923 = vmatprep.subr.mxu0 0.0
    %6924 = vmatpush2.msra.mxu0 0.0
    %6925 = vmatprep.subr.mxu0 0.0
    %6926 = vmatpush2.msra.mxu0 0.0
    %6927 = vmatprep.subr.mxu0 0.0
    %6928 = vmatpush2.msra.mxu0 0.0
    %6929 = vmatprep.subr.mxu0 0.0
    %6930 = vmatpush2.msra.mxu0 0.0
    %6931 = vmatprep.subr.mxu0 0.0
    %6932 = vmatpush2.msra.mxu0 0.0
    %6933 = vmatprep.subr.mxu0 0.0
    %6934 = vmatpush2.msra.mxu0 0.0
    %6935 = vmatprep.subr.mxu0 0.0
    %6936 = vmatpush2.msra.mxu0 0.0
    %6937 = vmatprep.subr.mxu0 0.0
    %6938 = vmatpush2.msra.mxu0 0.0
    %6939 = vmatprep.subr.mxu0 0.0
    %6940 = vmatpush2.msra.mxu0 0.0
    %6941 = vmatprep.subr.mxu0 0.0
    %6942 = vmatpush2.msra.mxu0 0.0
    %6943 = vmatprep.subr.mxu0 0.0
    %6944 = vmatpush2.msra.mxu0 0.0
    %6945 = vmatprep.subr.mxu0 0.0
    %6946 = vmatpush2.msra.mxu0 0.0
    %6947 = vmatprep.subr.mxu0 0.0
    %6948 = vmatpush2.msra.mxu0 0.0
    %6949 = vmatprep.subr.mxu0 0.0
    %6950 = vmatpush2.msra.mxu0 0.0
    %6951 = vmatprep.subr.mxu0 0.0
    %6952 = vmatpush2.msra.mxu0 0.0
    %6953 = vmatprep.subr.mxu0 0.0
    %6954 = vmatpush2.msra.mxu0 0.0
    %6955 = vmatprep.mubr.f32.mxu0 0.0
    %6956 = vmatmul.mubr.f32.gmra.mxu0 %v6886
    %v6957 = vpop.f32.mrf.mxu0
    %v6958 = vadd.f32 0.0, %v6957
    %v6959 = vpop.f32.mrf.mxu0
    %6960 = vmatprep.mubr.f32.mxu0 0.0
    %6961 = vmatmul.mubr.f32.gmra.mxu0 %v6889
    %v6962 = vpop.f32.mrf.mxu0
    %v6963 = vadd.f32 0.0, %v6962
    %v6964 = vpop.f32.mrf.mxu0
    %6965 = vdwg.mxu0
    %6966 = vrot.lane.b32.xlu0 %v232, 40
    %v6967 = vpop.permute.xlu0 %6966
    %6968 = vrot.lane.b32.xlu0 %v237, 40
    %v6969 = vpop.permute.xlu0 %6968
    %v6973 = vsel %vm1037, %v6865, 0
    %v6976 = vsel %vm1037, %v6866, 0
    %6978 = vmatprep.subr.mxu0 0.0
    %6979 = vmatpush1.msra.mxu0 0.0
    %6980 = vmatprep.subr.mxu0 0.0
    %6981 = vmatpush1.msra.mxu0 0.0
    %6982 = vmatprep.subr.mxu0 0.0
    %6983 = vmatpush1.msra.mxu0 0.0
    %6984 = vmatprep.subr.mxu0 0.0
    %6985 = vmatpush1.msra.mxu0 0.0
    %6986 = vmatprep.subr.mxu0 0.0
    %6987 = vmatpush1.msra.mxu0 0.0
    %6988 = vmatprep.subr.mxu0 0.0
    %6989 = vmatpush1.msra.mxu0 0.0
    %6990 = vmatprep.subr.mxu0 0.0
    %6991 = vmatpush1.msra.mxu0 0.0
    %6992 = vmatprep.subr.mxu0 0.0
    %6993 = vmatpush1.msra.mxu0 0.0
    %6994 = vmatprep.subr.mxu0 0.0
    %6995 = vmatpush1.msra.mxu0 0.0
    %6996 = vmatprep.subr.mxu0 0.0
    %6997 = vmatpush1.msra.mxu0 0.0
    %6998 = vmatprep.subr.mxu0 0.0
    %6999 = vmatpush1.msra.mxu0 0.0
    %7000 = vmatprep.subr.mxu0 0.0
    %7001 = vmatpush1.msra.mxu0 0.0
    %7002 = vmatprep.subr.mxu0 0.0
    %7003 = vmatpush1.msra.mxu0 0.0
    %7004 = vmatprep.subr.mxu0 0.0
    %7005 = vmatpush1.msra.mxu0 0.0
    %7006 = vmatprep.subr.mxu0 0.0
    %7007 = vmatpush1.msra.mxu0 %v6969
    %7008 = vmatprep.subr.mxu0 0.0
    %7009 = vmatpush1.msra.mxu0 %v6967
    %7010 = vmatprep.subr.mxu0 0.0
    %7011 = vmatpush2.msra.mxu0 0.0
    %7012 = vmatprep.subr.mxu0 0.0
    %7013 = vmatpush2.msra.mxu0 0.0
    %7014 = vmatprep.subr.mxu0 0.0
    %7015 = vmatpush2.msra.mxu0 0.0
    %7016 = vmatprep.subr.mxu0 0.0
    %7017 = vmatpush2.msra.mxu0 0.0
    %7018 = vmatprep.subr.mxu0 0.0
    %7019 = vmatpush2.msra.mxu0 0.0
    %7020 = vmatprep.subr.mxu0 0.0
    %7021 = vmatpush2.msra.mxu0 0.0
    %7022 = vmatprep.subr.mxu0 0.0
    %7023 = vmatpush2.msra.mxu0 0.0
    %7024 = vmatprep.subr.mxu0 0.0
    %7025 = vmatpush2.msra.mxu0 0.0
    %7026 = vmatprep.subr.mxu0 0.0
    %7027 = vmatpush2.msra.mxu0 0.0
    %7028 = vmatprep.subr.mxu0 0.0
    %7029 = vmatpush2.msra.mxu0 0.0
    %7030 = vmatprep.subr.mxu0 0.0
    %7031 = vmatpush2.msra.mxu0 0.0
    %7032 = vmatprep.subr.mxu0 0.0
    %7033 = vmatpush2.msra.mxu0 0.0
    %7034 = vmatprep.subr.mxu0 0.0
    %7035 = vmatpush2.msra.mxu0 0.0
    %7036 = vmatprep.subr.mxu0 0.0
    %7037 = vmatpush2.msra.mxu0 0.0
    %7038 = vmatprep.subr.mxu0 0.0
    %7039 = vmatpush2.msra.mxu0 0.0
    %7040 = vmatprep.subr.mxu0 0.0
    %7041 = vmatpush2.msra.mxu0 0.0
    %7042 = vmatprep.mubr.f32.mxu0 0.0
    %7043 = vmatmul.mubr.f32.gmra.mxu0 %v6973
    %v7044 = vpop.f32.mrf.mxu0
    %v7045 = vadd.f32 0.0, %v7044
    %v7046 = vpop.f32.mrf.mxu0
    %7047 = vmatprep.mubr.f32.mxu0 0.0
    %7048 = vmatmul.mubr.f32.gmra.mxu0 %v6976
    %v7049 = vpop.f32.mrf.mxu0
    %v7050 = vadd.f32 0.0, %v7049
    %v7051 = vpop.f32.mrf.mxu0
    %7052 = vdwg.mxu0
    %7053 = vrot.lane.b32.xlu0 %v242, 40
    %v7054 = vpop.permute.xlu0 %7053
    %7055 = vrot.lane.b32.xlu0 %v247, 40
    %v7056 = vpop.permute.xlu0 %7055
    %v7060 = vsel %vm1037, %v6867, 0
    %v7063 = vsel %vm1037, %v6868, 0
    %7065 = vmatprep.subr.mxu0 0.0
    %7066 = vmatpush1.msra.mxu0 0.0
    %7067 = vmatprep.subr.mxu0 0.0
    %7068 = vmatpush1.msra.mxu0 0.0
    %7069 = vmatprep.subr.mxu0 0.0
    %7070 = vmatpush1.msra.mxu0 0.0
    %7071 = vmatprep.subr.mxu0 0.0
    %7072 = vmatpush1.msra.mxu0 0.0
    %7073 = vmatprep.subr.mxu0 0.0
    %7074 = vmatpush1.msra.mxu0 0.0
    %7075 = vmatprep.subr.mxu0 0.0
    %7076 = vmatpush1.msra.mxu0 0.0
    %7077 = vmatprep.subr.mxu0 0.0
    %7078 = vmatpush1.msra.mxu0 0.0
    %7079 = vmatprep.subr.mxu0 0.0
    %7080 = vmatpush1.msra.mxu0 0.0
    %7081 = vmatprep.subr.mxu0 0.0
    %7082 = vmatpush1.msra.mxu0 0.0
    %7083 = vmatprep.subr.mxu0 0.0
    %7084 = vmatpush1.msra.mxu0 0.0
    %7085 = vmatprep.subr.mxu0 0.0
    %7086 = vmatpush1.msra.mxu0 0.0
    %7087 = vmatprep.subr.mxu0 0.0
    %7088 = vmatpush1.msra.mxu0 0.0
    %7089 = vmatprep.subr.mxu0 0.0
    %7090 = vmatpush1.msra.mxu0 0.0
    %7091 = vmatprep.subr.mxu0 0.0
    %7092 = vmatpush1.msra.mxu0 0.0
    %7093 = vmatprep.subr.mxu0 0.0
    %7094 = vmatpush1.msra.mxu0 %v7056
    %7095 = vmatprep.subr.mxu0 0.0
    %7096 = vmatpush1.msra.mxu0 %v7054
    %7097 = vmatprep.subr.mxu0 0.0
    %7098 = vmatpush2.msra.mxu0 0.0
    %7099 = vmatprep.subr.mxu0 0.0
    %7100 = vmatpush2.msra.mxu0 0.0
    %7101 = vmatprep.subr.mxu0 0.0
    %7102 = vmatpush2.msra.mxu0 0.0
    %7103 = vmatprep.subr.mxu0 0.0
    %7104 = vmatpush2.msra.mxu0 0.0
    %7105 = vmatprep.subr.mxu0 0.0
    %7106 = vmatpush2.msra.mxu0 0.0
    %7107 = vmatprep.subr.mxu0 0.0
    %7108 = vmatpush2.msra.mxu0 0.0
    %7109 = vmatprep.subr.mxu0 0.0
    %7110 = vmatpush2.msra.mxu0 0.0
    %7111 = vmatprep.subr.mxu0 0.0
    %7112 = vmatpush2.msra.mxu0 0.0
    %7113 = vmatprep.subr.mxu0 0.0
    %7114 = vmatpush2.msra.mxu0 0.0
    %7115 = vmatprep.subr.mxu0 0.0
    %7116 = vmatpush2.msra.mxu0 0.0
    %7117 = vmatprep.subr.mxu0 0.0
    %7118 = vmatpush2.msra.mxu0 0.0
    %7119 = vmatprep.subr.mxu0 0.0
    %7120 = vmatpush2.msra.mxu0 0.0
    %7121 = vmatprep.subr.mxu0 0.0
    %7122 = vmatpush2.msra.mxu0 0.0
    %7123 = vmatprep.subr.mxu0 0.0
    %7124 = vmatpush2.msra.mxu0 0.0
    %7125 = vmatprep.subr.mxu0 0.0
    %7126 = vmatpush2.msra.mxu0 0.0
    %7127 = vmatprep.subr.mxu0 0.0
    %7128 = vmatpush2.msra.mxu0 0.0
    %7129 = vmatprep.mubr.f32.mxu0 0.0
    %7130 = vmatmul.mubr.f32.gmra.mxu0 %v7060
    %v7131 = vpop.f32.mrf.mxu0
    %v7132 = vadd.f32 0.0, %v7131
    %v7133 = vpop.f32.mrf.mxu0
    %7134 = vmatprep.mubr.f32.mxu0 0.0
    %7135 = vmatmul.mubr.f32.gmra.mxu0 %v7063
    %v7136 = vpop.f32.mrf.mxu0
    %v7137 = vadd.f32 0.0, %v7136
    %v7138 = vpop.f32.mrf.mxu0
    %7139 = vdwg.mxu0
    %7140 = vrot.lane.b32.xlu0 %v252, 40
    %v7141 = vpop.permute.xlu0 %7140
    %7142 = vrot.lane.b32.xlu0 %v257, 40
    %v7143 = vpop.permute.xlu0 %7142
    %v7147 = vsel %vm1037, %v6869, 0
    %v7150 = vsel %vm1037, %v6870, 0
    %7152 = vmatprep.subr.mxu0 0.0
    %7153 = vmatpush1.msra.mxu0 0.0
    %7154 = vmatprep.subr.mxu0 0.0
    %7155 = vmatpush1.msra.mxu0 0.0
    %7156 = vmatprep.subr.mxu0 0.0
    %7157 = vmatpush1.msra.mxu0 0.0
    %7158 = vmatprep.subr.mxu0 0.0
    %7159 = vmatpush1.msra.mxu0 0.0
    %7160 = vmatprep.subr.mxu0 0.0
    %7161 = vmatpush1.msra.mxu0 0.0
    %7162 = vmatprep.subr.mxu0 0.0
    %7163 = vmatpush1.msra.mxu0 0.0
    %7164 = vmatprep.subr.mxu0 0.0
    %7165 = vmatpush1.msra.mxu0 0.0
    %7166 = vmatprep.subr.mxu0 0.0
    %7167 = vmatpush1.msra.mxu0 0.0
    %7168 = vmatprep.subr.mxu0 0.0
    %7169 = vmatpush1.msra.mxu0 0.0
    %7170 = vmatprep.subr.mxu0 0.0
    %7171 = vmatpush1.msra.mxu0 0.0
    %7172 = vmatprep.subr.mxu0 0.0
    %7173 = vmatpush1.msra.mxu0 0.0
    %7174 = vmatprep.subr.mxu0 0.0
    %7175 = vmatpush1.msra.mxu0 0.0
    %7176 = vmatprep.subr.mxu0 0.0
    %7177 = vmatpush1.msra.mxu0 0.0
    %7178 = vmatprep.subr.mxu0 0.0
    %7179 = vmatpush1.msra.mxu0 0.0
    %7180 = vmatprep.subr.mxu0 0.0
    %7181 = vmatpush1.msra.mxu0 %v7143
    %7182 = vmatprep.subr.mxu0 0.0
    %7183 = vmatpush1.msra.mxu0 %v7141
    %7184 = vmatprep.subr.mxu0 0.0
    %7185 = vmatpush2.msra.mxu0 0.0
    %7186 = vmatprep.subr.mxu0 0.0
    %7187 = vmatpush2.msra.mxu0 0.0
    %7188 = vmatprep.subr.mxu0 0.0
    %7189 = vmatpush2.msra.mxu0 0.0
    %7190 = vmatprep.subr.mxu0 0.0
    %7191 = vmatpush2.msra.mxu0 0.0
    %7192 = vmatprep.subr.mxu0 0.0
    %7193 = vmatpush2.msra.mxu0 0.0
    %7194 = vmatprep.subr.mxu0 0.0
    %7195 = vmatpush2.msra.mxu0 0.0
    %7196 = vmatprep.subr.mxu0 0.0
    %7197 = vmatpush2.msra.mxu0 0.0
    %7198 = vmatprep.subr.mxu0 0.0
    %7199 = vmatpush2.msra.mxu0 0.0
    %7200 = vmatprep.subr.mxu0 0.0
    %7201 = vmatpush2.msra.mxu0 0.0
    %7202 = vmatprep.subr.mxu0 0.0
    %7203 = vmatpush2.msra.mxu0 0.0
    %7204 = vmatprep.subr.mxu0 0.0
    %7205 = vmatpush2.msra.mxu0 0.0
    %7206 = vmatprep.subr.mxu0 0.0
    %7207 = vmatpush2.msra.mxu0 0.0
    %7208 = vmatprep.subr.mxu0 0.0
    %7209 = vmatpush2.msra.mxu0 0.0
    %7210 = vmatprep.subr.mxu0 0.0
    %7211 = vmatpush2.msra.mxu0 0.0
    %7212 = vmatprep.subr.mxu0 0.0
    %7213 = vmatpush2.msra.mxu0 0.0
    %7214 = vmatprep.subr.mxu0 0.0
    %7215 = vmatpush2.msra.mxu0 0.0
    %7216 = vmatprep.mubr.f32.mxu0 0.0
    %7217 = vmatmul.mubr.f32.gmra.mxu0 %v7147
    %v7218 = vpop.f32.mrf.mxu0
    %v7219 = vadd.f32 0.0, %v7218
    %v7220 = vpop.f32.mrf.mxu0
    %7221 = vmatprep.mubr.f32.mxu0 0.0
    %7222 = vmatmul.mubr.f32.gmra.mxu0 %v7150
    %v7223 = vpop.f32.mrf.mxu0
    %v7224 = vadd.f32 0.0, %v7223
    %v7225 = vpop.f32.mrf.mxu0
    %7226 = vdwg.mxu0
    %7227 = vrot.lane.b32.xlu0 %v262, 40
    %v7228 = vpop.permute.xlu0 %7227
    %7229 = vrot.lane.b32.xlu0 %v267, 40
    %v7230 = vpop.permute.xlu0 %7229
    %v7234 = vsel %vm1037, %v6871, 0
    %v7237 = vsel %vm1037, %v6872, 0
    %7239 = vmatprep.subr.mxu0 0.0
    %7240 = vmatpush1.msra.mxu0 0.0
    %7241 = vmatprep.subr.mxu0 0.0
    %7242 = vmatpush1.msra.mxu0 0.0
    %7243 = vmatprep.subr.mxu0 0.0
    %7244 = vmatpush1.msra.mxu0 0.0
    %7245 = vmatprep.subr.mxu0 0.0
    %7246 = vmatpush1.msra.mxu0 0.0
    %7247 = vmatprep.subr.mxu0 0.0
    %7248 = vmatpush1.msra.mxu0 0.0
    %7249 = vmatprep.subr.mxu0 0.0
    %7250 = vmatpush1.msra.mxu0 0.0
    %7251 = vmatprep.subr.mxu0 0.0
    %7252 = vmatpush1.msra.mxu0 0.0
    %7253 = vmatprep.subr.mxu0 0.0
    %7254 = vmatpush1.msra.mxu0 0.0
    %7255 = vmatprep.subr.mxu0 0.0
    %7256 = vmatpush1.msra.mxu0 0.0
    %7257 = vmatprep.subr.mxu0 0.0
    %7258 = vmatpush1.msra.mxu0 0.0
    %7259 = vmatprep.subr.mxu0 0.0
    %7260 = vmatpush1.msra.mxu0 0.0
    %7261 = vmatprep.subr.mxu0 0.0
    %7262 = vmatpush1.msra.mxu0 0.0
    %7263 = vmatprep.subr.mxu0 0.0
    %7264 = vmatpush1.msra.mxu0 0.0
    %7265 = vmatprep.subr.mxu0 0.0
    %7266 = vmatpush1.msra.mxu0 0.0
    %7267 = vmatprep.subr.mxu0 0.0
    %7268 = vmatpush1.msra.mxu0 %v7230
    %7269 = vmatprep.subr.mxu0 0.0
    %7270 = vmatpush1.msra.mxu0 %v7228
    %7271 = vmatprep.subr.mxu0 0.0
    %7272 = vmatpush2.msra.mxu0 0.0
    %7273 = vmatprep.subr.mxu0 0.0
    %7274 = vmatpush2.msra.mxu0 0.0
    %7275 = vmatprep.subr.mxu0 0.0
    %7276 = vmatpush2.msra.mxu0 0.0
    %7277 = vmatprep.subr.mxu0 0.0
    %7278 = vmatpush2.msra.mxu0 0.0
    %7279 = vmatprep.subr.mxu0 0.0
    %7280 = vmatpush2.msra.mxu0 0.0
    %7281 = vmatprep.subr.mxu0 0.0
    %7282 = vmatpush2.msra.mxu0 0.0
    %7283 = vmatprep.subr.mxu0 0.0
    %7284 = vmatpush2.msra.mxu0 0.0
    %7285 = vmatprep.subr.mxu0 0.0
    %7286 = vmatpush2.msra.mxu0 0.0
    %7287 = vmatprep.subr.mxu0 0.0
    %7288 = vmatpush2.msra.mxu0 0.0
    %7289 = vmatprep.subr.mxu0 0.0
    %7290 = vmatpush2.msra.mxu0 0.0
    %7291 = vmatprep.subr.mxu0 0.0
    %7292 = vmatpush2.msra.mxu0 0.0
    %7293 = vmatprep.subr.mxu0 0.0
    %7294 = vmatpush2.msra.mxu0 0.0
    %7295 = vmatprep.subr.mxu0 0.0
    %7296 = vmatpush2.msra.mxu0 0.0
    %7297 = vmatprep.subr.mxu0 0.0
    %7298 = vmatpush2.msra.mxu0 0.0
    %7299 = vmatprep.subr.mxu0 0.0
    %7300 = vmatpush2.msra.mxu0 0.0
    %7301 = vmatprep.subr.mxu0 0.0
    %7302 = vmatpush2.msra.mxu0 0.0
    %7303 = vmatprep.mubr.f32.mxu0 0.0
    %7304 = vmatmul.mubr.f32.gmra.mxu0 %v7234
    %v7305 = vpop.f32.mrf.mxu0
    %v7306 = vadd.f32 0.0, %v7305
    %v7307 = vpop.f32.mrf.mxu0
    %7308 = vmatprep.mubr.f32.mxu0 0.0
    %7309 = vmatmul.mubr.f32.gmra.mxu0 %v7237
    %v7310 = vpop.f32.mrf.mxu0
    %v7311 = vadd.f32 0.0, %v7310
    %v7312 = vpop.f32.mrf.mxu0
    %7313 = vdwg.mxu0
    %7314 = vrot.lane.b32.xlu0 %v272, 40
    %v7315 = vpop.permute.xlu0 %7314
    %7316 = vrot.lane.b32.xlu0 %v277, 40
    %v7317 = vpop.permute.xlu0 %7316
    %v7321 = vsel %vm1037, %v6873, 0
    %v7324 = vsel %vm1037, %v6874, 0
    %7326 = vmatprep.subr.mxu0 0.0
    %7327 = vmatpush1.msra.mxu0 0.0
    %7328 = vmatprep.subr.mxu0 0.0
    %7329 = vmatpush1.msra.mxu0 0.0
    %7330 = vmatprep.subr.mxu0 0.0
    %7331 = vmatpush1.msra.mxu0 0.0
    %7332 = vmatprep.subr.mxu0 0.0
    %7333 = vmatpush1.msra.mxu0 0.0
    %7334 = vmatprep.subr.mxu0 0.0
    %7335 = vmatpush1.msra.mxu0 0.0
    %7336 = vmatprep.subr.mxu0 0.0
    %7337 = vmatpush1.msra.mxu0 0.0
    %7338 = vmatprep.subr.mxu0 0.0
    %7339 = vmatpush1.msra.mxu0 0.0
    %7340 = vmatprep.subr.mxu0 0.0
    %7341 = vmatpush1.msra.mxu0 0.0
    %7342 = vmatprep.subr.mxu0 0.0
    %7343 = vmatpush1.msra.mxu0 0.0
    %7344 = vmatprep.subr.mxu0 0.0
    %7345 = vmatpush1.msra.mxu0 0.0
    %7346 = vmatprep.subr.mxu0 0.0
    %7347 = vmatpush1.msra.mxu0 0.0
    %7348 = vmatprep.subr.mxu0 0.0
    %7349 = vmatpush1.msra.mxu0 0.0
    %7350 = vmatprep.subr.mxu0 0.0
    %7351 = vmatpush1.msra.mxu0 0.0
    %7352 = vmatprep.subr.mxu0 0.0
    %7353 = vmatpush1.msra.mxu0 0.0
    %7354 = vmatprep.subr.mxu0 0.0
    %7355 = vmatpush1.msra.mxu0 %v7317
    %7356 = vmatprep.subr.mxu0 0.0
    %7357 = vmatpush1.msra.mxu0 %v7315
    %7358 = vmatprep.subr.mxu0 0.0
    %7359 = vmatpush2.msra.mxu0 0.0
    %7360 = vmatprep.subr.mxu0 0.0
    %7361 = vmatpush2.msra.mxu0 0.0
    %7362 = vmatprep.subr.mxu0 0.0
    %7363 = vmatpush2.msra.mxu0 0.0
    %7364 = vmatprep.subr.mxu0 0.0
    %7365 = vmatpush2.msra.mxu0 0.0
    %7366 = vmatprep.subr.mxu0 0.0
    %7367 = vmatpush2.msra.mxu0 0.0
    %7368 = vmatprep.subr.mxu0 0.0
    %7369 = vmatpush2.msra.mxu0 0.0
    %7370 = vmatprep.subr.mxu0 0.0
    %7371 = vmatpush2.msra.mxu0 0.0
    %7372 = vmatprep.subr.mxu0 0.0
    %7373 = vmatpush2.msra.mxu0 0.0
    %7374 = vmatprep.subr.mxu0 0.0
    %7375 = vmatpush2.msra.mxu0 0.0
    %7376 = vmatprep.subr.mxu0 0.0
    %7377 = vmatpush2.msra.mxu0 0.0
    %7378 = vmatprep.subr.mxu0 0.0
    %7379 = vmatpush2.msra.mxu0 0.0
    %7380 = vmatprep.subr.mxu0 0.0
    %7381 = vmatpush2.msra.mxu0 0.0
    %7382 = vmatprep.subr.mxu0 0.0
    %7383 = vmatpush2.msra.mxu0 0.0
    %7384 = vmatprep.subr.mxu0 0.0
    %7385 = vmatpush2.msra.mxu0 0.0
    %7386 = vmatprep.subr.mxu0 0.0
    %7387 = vmatpush2.msra.mxu0 0.0
    %7388 = vmatprep.subr.mxu0 0.0
    %7389 = vmatpush2.msra.mxu0 0.0
    %7390 = vmatprep.mubr.f32.mxu0 0.0
    %7391 = vmatmul.mubr.f32.gmra.mxu0 %v7321
    %v7392 = vpop.f32.mrf.mxu0
    %v7393 = vadd.f32 0.0, %v7392
    %v7394 = vpop.f32.mrf.mxu0
    %7395 = vmatprep.mubr.f32.mxu0 0.0
    %7396 = vmatmul.mubr.f32.gmra.mxu0 %v7324
    %v7397 = vpop.f32.mrf.mxu0
    %v7398 = vadd.f32 0.0, %v7397
    %v7399 = vpop.f32.mrf.mxu0
    %7400 = vdwg.mxu0
    %7401 = vrot.lane.b32.xlu0 %v282, 40
    %v7402 = vpop.permute.xlu0 %7401
    %7403 = vrot.lane.b32.xlu0 %v287, 40
    %v7404 = vpop.permute.xlu0 %7403
    %v7408 = vsel %vm1037, %v6875, 0
    %v7411 = vsel %vm1037, %v6876, 0
    %7413 = vmatprep.subr.mxu0 0.0
    %7414 = vmatpush1.msra.mxu0 0.0
    %7415 = vmatprep.subr.mxu0 0.0
    %7416 = vmatpush1.msra.mxu0 0.0
    %7417 = vmatprep.subr.mxu0 0.0
    %7418 = vmatpush1.msra.mxu0 0.0
    %7419 = vmatprep.subr.mxu0 0.0
    %7420 = vmatpush1.msra.mxu0 0.0
    %7421 = vmatprep.subr.mxu0 0.0
    %7422 = vmatpush1.msra.mxu0 0.0
    %7423 = vmatprep.subr.mxu0 0.0
    %7424 = vmatpush1.msra.mxu0 0.0
    %7425 = vmatprep.subr.mxu0 0.0
    %7426 = vmatpush1.msra.mxu0 0.0
    %7427 = vmatprep.subr.mxu0 0.0
    %7428 = vmatpush1.msra.mxu0 0.0
    %7429 = vmatprep.subr.mxu0 0.0
    %7430 = vmatpush1.msra.mxu0 0.0
    %7431 = vmatprep.subr.mxu0 0.0
    %7432 = vmatpush1.msra.mxu0 0.0
    %7433 = vmatprep.subr.mxu0 0.0
    %7434 = vmatpush1.msra.mxu0 0.0
    %7435 = vmatprep.subr.mxu0 0.0
    %7436 = vmatpush1.msra.mxu0 0.0
    %7437 = vmatprep.subr.mxu0 0.0
    %7438 = vmatpush1.msra.mxu0 0.0
    %7439 = vmatprep.subr.mxu0 0.0
    %7440 = vmatpush1.msra.mxu0 0.0
    %7441 = vmatprep.subr.mxu0 0.0
    %7442 = vmatpush1.msra.mxu0 %v7404
    %7443 = vmatprep.subr.mxu0 0.0
    %7444 = vmatpush1.msra.mxu0 %v7402
    %7445 = vmatprep.subr.mxu0 0.0
    %7446 = vmatpush2.msra.mxu0 0.0
    %7447 = vmatprep.subr.mxu0 0.0
    %7448 = vmatpush2.msra.mxu0 0.0
    %7449 = vmatprep.subr.mxu0 0.0
    %7450 = vmatpush2.msra.mxu0 0.0
    %7451 = vmatprep.subr.mxu0 0.0
    %7452 = vmatpush2.msra.mxu0 0.0
    %7453 = vmatprep.subr.mxu0 0.0
    %7454 = vmatpush2.msra.mxu0 0.0
    %7455 = vmatprep.subr.mxu0 0.0
    %7456 = vmatpush2.msra.mxu0 0.0
    %7457 = vmatprep.subr.mxu0 0.0
    %7458 = vmatpush2.msra.mxu0 0.0
    %7459 = vmatprep.subr.mxu0 0.0
    %7460 = vmatpush2.msra.mxu0 0.0
    %7461 = vmatprep.subr.mxu0 0.0
    %7462 = vmatpush2.msra.mxu0 0.0
    %7463 = vmatprep.subr.mxu0 0.0
    %7464 = vmatpush2.msra.mxu0 0.0
    %7465 = vmatprep.subr.mxu0 0.0
    %7466 = vmatpush2.msra.mxu0 0.0
    %7467 = vmatprep.subr.mxu0 0.0
    %7468 = vmatpush2.msra.mxu0 0.0
    %7469 = vmatprep.subr.mxu0 0.0
    %7470 = vmatpush2.msra.mxu0 0.0
    %7471 = vmatprep.subr.mxu0 0.0
    %7472 = vmatpush2.msra.mxu0 0.0
    %7473 = vmatprep.subr.mxu0 0.0
    %7474 = vmatpush2.msra.mxu0 0.0
    %7475 = vmatprep.subr.mxu0 0.0
    %7476 = vmatpush2.msra.mxu0 0.0
    %7477 = vmatprep.mubr.f32.mxu0 0.0
    %7478 = vmatmul.mubr.f32.gmra.mxu0 %v7408
    %v7479 = vpop.f32.mrf.mxu0
    %v7480 = vadd.f32 0.0, %v7479
    %v7481 = vpop.f32.mrf.mxu0
    %7482 = vmatprep.mubr.f32.mxu0 0.0
    %7483 = vmatmul.mubr.f32.gmra.mxu0 %v7411
    %v7484 = vpop.f32.mrf.mxu0
    %v7485 = vadd.f32 0.0, %v7484
    %v7486 = vpop.f32.mrf.mxu0
    %7487 = vdwg.mxu0
    %7488 = vrot.lane.b32.xlu0 %v292, 40
    %v7489 = vpop.permute.xlu0 %7488
    %7490 = vrot.lane.b32.xlu0 %v297, 40
    %v7491 = vpop.permute.xlu0 %7490
    %v7495 = vsel %vm1037, %v6877, 0
    %v7498 = vsel %vm1037, %v6878, 0
    %7500 = vmatprep.subr.mxu0 0.0
    %7501 = vmatpush1.msra.mxu0 0.0
    %7502 = vmatprep.subr.mxu0 0.0
    %7503 = vmatpush1.msra.mxu0 0.0
    %7504 = vmatprep.subr.mxu0 0.0
    %7505 = vmatpush1.msra.mxu0 0.0
    %7506 = vmatprep.subr.mxu0 0.0
    %7507 = vmatpush1.msra.mxu0 0.0
    %7508 = vmatprep.subr.mxu0 0.0
    %7509 = vmatpush1.msra.mxu0 0.0
    %7510 = vmatprep.subr.mxu0 0.0
    %7511 = vmatpush1.msra.mxu0 0.0
    %7512 = vmatprep.subr.mxu0 0.0
    %7513 = vmatpush1.msra.mxu0 0.0
    %7514 = vmatprep.subr.mxu0 0.0
    %7515 = vmatpush1.msra.mxu0 0.0
    %7516 = vmatprep.subr.mxu0 0.0
    %7517 = vmatpush1.msra.mxu0 0.0
    %7518 = vmatprep.subr.mxu0 0.0
    %7519 = vmatpush1.msra.mxu0 0.0
    %7520 = vmatprep.subr.mxu0 0.0
    %7521 = vmatpush1.msra.mxu0 0.0
    %7522 = vmatprep.subr.mxu0 0.0
    %7523 = vmatpush1.msra.mxu0 0.0
    %7524 = vmatprep.subr.mxu0 0.0
    %7525 = vmatpush1.msra.mxu0 0.0
    %7526 = vmatprep.subr.mxu0 0.0
    %7527 = vmatpush1.msra.mxu0 0.0
    %7528 = vmatprep.subr.mxu0 0.0
    %7529 = vmatpush1.msra.mxu0 %v7491
    %7530 = vmatprep.subr.mxu0 0.0
    %7531 = vmatpush1.msra.mxu0 %v7489
    %7532 = vmatprep.subr.mxu0 0.0
    %7533 = vmatpush2.msra.mxu0 0.0
    %7534 = vmatprep.subr.mxu0 0.0
    %7535 = vmatpush2.msra.mxu0 0.0
    %7536 = vmatprep.subr.mxu0 0.0
    %7537 = vmatpush2.msra.mxu0 0.0
    %7538 = vmatprep.subr.mxu0 0.0
    %7539 = vmatpush2.msra.mxu0 0.0
    %7540 = vmatprep.subr.mxu0 0.0
    %7541 = vmatpush2.msra.mxu0 0.0
    %7542 = vmatprep.subr.mxu0 0.0
    %7543 = vmatpush2.msra.mxu0 0.0
    %7544 = vmatprep.subr.mxu0 0.0
    %7545 = vmatpush2.msra.mxu0 0.0
    %7546 = vmatprep.subr.mxu0 0.0
    %7547 = vmatpush2.msra.mxu0 0.0
    %7548 = vmatprep.subr.mxu0 0.0
    %7549 = vmatpush2.msra.mxu0 0.0
    %7550 = vmatprep.subr.mxu0 0.0
    %7551 = vmatpush2.msra.mxu0 0.0
    %7552 = vmatprep.subr.mxu0 0.0
    %7553 = vmatpush2.msra.mxu0 0.0
    %7554 = vmatprep.subr.mxu0 0.0
    %7555 = vmatpush2.msra.mxu0 0.0
    %7556 = vmatprep.subr.mxu0 0.0
    %7557 = vmatpush2.msra.mxu0 0.0
    %7558 = vmatprep.subr.mxu0 0.0
    %7559 = vmatpush2.msra.mxu0 0.0
    %7560 = vmatprep.subr.mxu0 0.0
    %7561 = vmatpush2.msra.mxu0 0.0
    %7562 = vmatprep.subr.mxu0 0.0
    %7563 = vmatpush2.msra.mxu0 0.0
    %7564 = vmatprep.mubr.f32.mxu0 0.0
    %7565 = vmatmul.mubr.f32.gmra.mxu0 %v7495
    %v7566 = vpop.f32.mrf.mxu0
    %v7567 = vadd.f32 0.0, %v7566
    %v7568 = vpop.f32.mrf.mxu0
    %7569 = vmatprep.mubr.f32.mxu0 0.0
    %7570 = vmatmul.mubr.f32.gmra.mxu0 %v7498
    %v7571 = vpop.f32.mrf.mxu0
    %v7572 = vadd.f32 0.0, %v7571
    %v7573 = vpop.f32.mrf.mxu0
    %7574 = vdwg.mxu0
    %v7575 = vld [vmem:[#allocation7 + $0x18] sm:$0xff]
    %v7577 = vsel %vm306, %v6958, 0
    %v7580 = vsel %vm306, %v6963, 0
    %v7583 = vsel %vm306, %v7045, 0
    %v7586 = vsel %vm306, %v7050, 0
    %v7589 = vsel %vm306, %v7132, 0
    %v7592 = vsel %vm306, %v7137, 0
    %v7595 = vsel %vm306, %v7219, 0
    %v7598 = vsel %vm306, %v7224, 0
    %v7601 = vsel %vm306, %v7306, 0
    %v7604 = vsel %vm306, %v7311, 0
    %v7607 = vsel %vm306, %v7393, 0
    %v7610 = vsel %vm306, %v7398, 0
    %v7613 = vsel %vm306, %v7480, 0
    %v7616 = vsel %vm306, %v7485, 0
    %v7619 = vsel %vm306, %v7567, 0
    %v7622 = vsel %vm306, %v7572, 0
    %7624 = vmatprep.subr.mxu0 0.0
    %7625 = vmatpush1.msra.mxu0 0.0
    %7626 = vmatprep.subr.mxu0 0.0
    %7627 = vmatpush1.msra.mxu0 0.0
    %7628 = vmatprep.subr.mxu0 0.0
    %7629 = vmatpush1.msra.mxu0 0.0
    %7630 = vmatprep.subr.mxu0 0.0
    %7631 = vmatpush1.msra.mxu0 0.0
    %7632 = vmatprep.subr.mxu0 0.0
    %7633 = vmatpush1.msra.mxu0 0.0
    %7634 = vmatprep.subr.mxu0 0.0
    %7635 = vmatpush1.msra.mxu0 0.0
    %7636 = vmatprep.subr.mxu0 0.0
    %7637 = vmatpush1.msra.mxu0 0.0
    %7638 = vmatprep.subr.mxu0 0.0
    %7639 = vmatpush1.msra.mxu0 0.0
    %7640 = vmatprep.subr.mxu0 0.0
    %7641 = vmatpush1.msra.mxu0 0.0
    %7642 = vmatprep.subr.mxu0 0.0
    %7643 = vmatpush1.msra.mxu0 0.0
    %7644 = vmatprep.subr.mxu0 0.0
    %7645 = vmatpush1.msra.mxu0 0.0
    %7646 = vmatprep.subr.mxu0 0.0
    %7647 = vmatpush1.msra.mxu0 0.0
    %7648 = vmatprep.subr.mxu0 0.0
    %7649 = vmatpush1.msra.mxu0 0.0
    %7650 = vmatprep.subr.mxu0 0.0
    %7651 = vmatpush1.msra.mxu0 0.0
    %7652 = vmatprep.subr.mxu0 0.0
    %7653 = vmatpush1.msra.mxu0 0.0
    %7654 = vmatprep.subr.mxu0 0.0
    %7655 = vmatpush1.msra.mxu0 %v7575
    %7656 = vmatprep.subr.mxu0 0.0
    %7657 = vmatpush2.msra.mxu0 0.0
    %7658 = vmatprep.subr.mxu0 0.0
    %7659 = vmatpush2.msra.mxu0 0.0
    %7660 = vmatprep.subr.mxu0 0.0
    %7661 = vmatpush2.msra.mxu0 0.0
    %7662 = vmatprep.subr.mxu0 0.0
    %7663 = vmatpush2.msra.mxu0 0.0
    %7664 = vmatprep.subr.mxu0 0.0
    %7665 = vmatpush2.msra.mxu0 0.0
    %7666 = vmatprep.subr.mxu0 0.0
    %7667 = vmatpush2.msra.mxu0 0.0
    %7668 = vmatprep.subr.mxu0 0.0
    %7669 = vmatpush2.msra.mxu0 0.0
    %7670 = vmatprep.subr.mxu0 0.0
    %7671 = vmatpush2.msra.mxu0 0.0
    %7672 = vmatprep.subr.mxu0 0.0
    %7673 = vmatpush2.msra.mxu0 0.0
    %7674 = vmatprep.subr.mxu0 0.0
    %7675 = vmatpush2.msra.mxu0 0.0
    %7676 = vmatprep.subr.mxu0 0.0
    %7677 = vmatpush2.msra.mxu0 0.0
    %7678 = vmatprep.subr.mxu0 0.0
    %7679 = vmatpush2.msra.mxu0 0.0
    %7680 = vmatprep.subr.mxu0 0.0
    %7681 = vmatpush2.msra.mxu0 0.0
    %7682 = vmatprep.subr.mxu0 0.0
    %7683 = vmatpush2.msra.mxu0 0.0
    %7684 = vmatprep.subr.mxu0 0.0
    %7685 = vmatpush2.msra.mxu0 0.0
    %7686 = vmatprep.subr.mxu0 0.0
    %7687 = vmatpush2.msra.mxu0 0.0
    %7688 = vmatprep.mubr.f32.mxu0 0.0
    %7689 = vmatmul.mubr.f32.gmra.mxu0 %v7577
    %v7690 = vpop.f32.mrf.mxu0
    %v7691 = vadd.f32 0.0, %v7690
    %v7692 = vpop.f32.mrf.mxu0
    %7693 = vmatprep.mubr.f32.mxu0 0.0
    %7694 = vmatmul.mubr.f32.gmra.mxu0 %v7580
    %v7695 = vpop.f32.mrf.mxu0
    %v7696 = vadd.f32 0.0, %v7695
    %v7697 = vpop.f32.mrf.mxu0
    %7698 = vmatprep.mubr.f32.mxu0 0.0
    %7699 = vmatmul.mubr.f32.gmra.mxu0 %v7583
    %v7700 = vpop.f32.mrf.mxu0
    %v7701 = vadd.f32 0.0, %v7700
    %v7702 = vpop.f32.mrf.mxu0
    %7703 = vmatprep.mubr.f32.mxu0 0.0
    %7704 = vmatmul.mubr.f32.gmra.mxu0 %v7586
    %v7705 = vpop.f32.mrf.mxu0
    %v7706 = vadd.f32 0.0, %v7705
    %v7707 = vpop.f32.mrf.mxu0
    %7708 = vmatprep.mubr.f32.mxu0 0.0
    %7709 = vmatmul.mubr.f32.gmra.mxu0 %v7589
    %v7710 = vpop.f32.mrf.mxu0
    %v7711 = vadd.f32 0.0, %v7710
    %v7712 = vpop.f32.mrf.mxu0
    %7713 = vmatprep.mubr.f32.mxu0 0.0
    %7714 = vmatmul.mubr.f32.gmra.mxu0 %v7592
    %v7715 = vpop.f32.mrf.mxu0
    %v7716 = vadd.f32 0.0, %v7715
    %v7717 = vpop.f32.mrf.mxu0
    %7718 = vmatprep.mubr.f32.mxu0 0.0
    %7719 = vmatmul.mubr.f32.gmra.mxu0 %v7595
    %v7720 = vpop.f32.mrf.mxu0
    %v7721 = vadd.f32 0.0, %v7720
    %v7722 = vpop.f32.mrf.mxu0
    %7723 = vmatprep.mubr.f32.mxu0 0.0
    %7724 = vmatmul.mubr.f32.gmra.mxu0 %v7598
    %v7725 = vpop.f32.mrf.mxu0
    %v7726 = vadd.f32 0.0, %v7725
    %v7727 = vpop.f32.mrf.mxu0
    %7728 = vmatprep.mubr.f32.mxu0 0.0
    %7729 = vmatmul.mubr.f32.gmra.mxu0 %v7601
    %v7730 = vpop.f32.mrf.mxu0
    %v7731 = vadd.f32 0.0, %v7730
    %v7732 = vpop.f32.mrf.mxu0
    %7733 = vmatprep.mubr.f32.mxu0 0.0
    %7734 = vmatmul.mubr.f32.gmra.mxu0 %v7604
    %v7735 = vpop.f32.mrf.mxu0
    %v7736 = vadd.f32 0.0, %v7735
    %v7737 = vpop.f32.mrf.mxu0
    %7738 = vmatprep.mubr.f32.mxu0 0.0
    %7739 = vmatmul.mubr.f32.gmra.mxu0 %v7607
    %v7740 = vpop.f32.mrf.mxu0
    %v7741 = vadd.f32 0.0, %v7740
    %v7742 = vpop.f32.mrf.mxu0
    %7743 = vmatprep.mubr.f32.mxu0 0.0
    %7744 = vmatmul.mubr.f32.gmra.mxu0 %v7610
    %v7745 = vpop.f32.mrf.mxu0
    %v7746 = vadd.f32 0.0, %v7745
    %v7747 = vpop.f32.mrf.mxu0
    %7748 = vmatprep.mubr.f32.mxu0 0.0
    %7749 = vmatmul.mubr.f32.gmra.mxu0 %v7613
    %v7750 = vpop.f32.mrf.mxu0
    %v7751 = vadd.f32 0.0, %v7750
    %v7752 = vpop.f32.mrf.mxu0
    %7753 = vmatprep.mubr.f32.mxu0 0.0
    %7754 = vmatmul.mubr.f32.gmra.mxu0 %v7616
    %v7755 = vpop.f32.mrf.mxu0
    %v7756 = vadd.f32 0.0, %v7755
    %v7757 = vpop.f32.mrf.mxu0
    %7758 = vmatprep.mubr.f32.mxu0 0.0
    %7759 = vmatmul.mubr.f32.gmra.mxu0 %v7619
    %v7760 = vpop.f32.mrf.mxu0
    %v7761 = vadd.f32 0.0, %v7760
    %v7762 = vpop.f32.mrf.mxu0
    %7763 = vmatprep.mubr.f32.mxu0 0.0
    %7764 = vmatmul.mubr.f32.gmra.mxu0 %v7622
    %v7765 = vpop.f32.mrf.mxu0
    %v7766 = vadd.f32 0.0, %v7765
    %v7767 = vpop.f32.mrf.mxu0
    %7768 = vdwg.mxu0
    %v7769 = vadd.f32 %v5886, %v7691
    %v7770 = vadd.f32 %v5887, %v7696
    %v7771 = vadd.f32 %v5888, %v7701
    %v7772 = vadd.f32 %v5889, %v7706
    %v7773 = vadd.f32 %v5890, %v7711
    %v7774 = vadd.f32 %v5891, %v7716
    %v7775 = vadd.f32 %v5892, %v7721
    %v7776 = vadd.f32 %v5893, %v7726
    %v7777 = vadd.f32 %v5894, %v7731
    %v7778 = vadd.f32 %v5895, %v7736
    %v7779 = vadd.f32 %v5896, %v7741
    %v7780 = vadd.f32 %v5897, %v7746
    %v7781 = vadd.f32 %v5898, %v7751
    %v7782 = vadd.f32 %v5899, %v7756
    %v7783 = vadd.f32 %v5900, %v7761
    %v7784 = vadd.f32 %v5901, %v7766
    %v7785 = vld [vmem:[%s4] sm:$0x1]
    %v7787 = vlaneseq
    %v7788 = vshrl.u32 %v7787, 7
    %v7789 = vsub.s32 0, %v7788
    %v7790 = vrot.slane %v7785, %v7789
    %v7792 = vadd.f32 %v7769, %v7790
    %v7793 = vadd.f32 %v7770, %v7790
    %v7794 = vadd.f32 %v7771, %v7790
    %v7795 = vadd.f32 %v7772, %v7790
    %v7796 = vadd.f32 %v7773, %v7790
    %v7797 = vadd.f32 %v7774, %v7790
    %v7798 = vadd.f32 %v7775, %v7790
    %v7799 = vadd.f32 %v7776, %v7790
    %v7800 = vadd.f32 %v7777, %v7790
    %v7801 = vadd.f32 %v7778, %v7790
    %v7802 = vadd.f32 %v7779, %v7790
    %v7803 = vadd.f32 %v7780, %v7790
    %v7804 = vadd.f32 %v7781, %v7790
    %v7805 = vadd.f32 %v7782, %v7790
    %v7806 = vadd.f32 %v7783, %v7790
    %v7807 = vadd.f32 %v7784, %v7790
    %7808 = vst.msk [vmem:[#allocation10] sm:$0xff] %vm106, %v7792
    %7809 = vst.msk [vmem:[#allocation10 + $0x8] sm:$0xff] %vm106, %v7793
    %7810 = vst.msk [vmem:[#allocation10 + $0x10] sm:$0xff] %vm106, %v7794
    %7811 = vst.msk [vmem:[#allocation10 + $0x18] sm:$0xff] %vm106, %v7795
    %7812 = vst.msk [vmem:[#allocation10 + $0x20] sm:$0xff] %vm106, %v7796
    %7813 = vst.msk [vmem:[#allocation10 + $0x28] sm:$0xff] %vm106, %v7797
    %7814 = vst.msk [vmem:[#allocation10 + $0x30] sm:$0xff] %vm106, %v7798
    %7815 = vst.msk [vmem:[#allocation10 + $0x38] sm:$0xff] %vm106, %v7799
    %7816 = vst.msk [vmem:[#allocation10 + $0x40] sm:$0xff] %vm106, %v7800
    %7817 = vst.msk [vmem:[#allocation10 + $0x48] sm:$0xff] %vm106, %v7801
    %7818 = vst.msk [vmem:[#allocation10 + $0x50] sm:$0xff] %vm106, %v7802
    %7819 = vst.msk [vmem:[#allocation10 + $0x58] sm:$0xff] %vm106, %v7803
    %7820 = vst.msk [vmem:[#allocation10 + $0x60] sm:$0xff] %vm106, %v7804
    %7821 = vst.msk [vmem:[#allocation10 + $0x68] sm:$0xff] %vm106, %v7805
    %7822 = vst.msk [vmem:[#allocation10 + $0x70] sm:$0xff] %vm106, %v7806
    %7823 = vst.msk [vmem:[#allocation10 + $0x78] sm:$0xff] %vm106, %v7807
    // Predicated region
    $region42: #{tpu_custom_call.1} parent=1 // pred_check
      _
    $region43: #{tpu_custom_call.1} parent=1 // pred_check_branch
      %7825 = sbr.rel (0) target = $region45
    $region44: #{tpu_custom_call.1} parent=1 // pred_region
      %s7827 = ssub.s32 2048, 2048
      %7828 = vsyncadd [#allocation4], %s7827
      %s7829 = sshll.u32 [#allocation10], 4
      %s7830 = int_to_ptr.vmem [resolvable:$true] %s7829
      %7835 = dma.vmem_to_hbm [thread:$0]  %s7830, 2048, %s6, [#allocation4], 128, 128, 8
    $region45: #{tpu_custom_call.1} parent=1 // pred_fallthru
      _
    // Predicated region
    $region46: #{tpu_custom_call.1} parent=1 // pred_check
      _
    $region47: #{tpu_custom_call.1} parent=1 // pred_check_branch
      %7837 = sbr.rel (0) target = $region49
    $region48: #{tpu_custom_call.1} parent=1 // pred_region
      %7838 = dma.done [#allocation4], 2048
    $region49: #{tpu_custom_call.1} parent=1 // pred_fallthru
      _
    %7839 = vsyncpa [#allocation3], 1
    %7840 = vsyncpa [#allocation6], 1
    %7841 = vsyncpa [#allocation9], 1
    %7842 = vsyncpa [#allocation4], 1

</llo_original>
